<compile_context>
chip_gen: v7x
topology: tpu7x:2x2x1
jax: 0.10.0
libtpu: 0.0.40
codegen_flags: <defaults>
</compile_context>

<pallas_src>
import functools

import jax
import jax.numpy as jnp
from jax.experimental import pallas as pl
from jax.experimental.pallas import tpu as pltpu


def _resblock3x3_kernel(x_ref, w1_ref, w2_ref, b_ref, o_ref,
                        slab_ref, hpad_ref, *, W, Wr, off, base, Q, Qr):
    # x_ref   : (1, Pr, Cp) f32   zero-padded image, spatially flattened with
    #                             row stride Wr (mult of 8) and `off` leading
    #                             zeros so slab slices (off + dy*Wr) are aligned.
    # w1_ref  : (3, 3*Cp, Cp) bf16  conv1 weights (bn1 scale folded), dy-major,
    #                               rows indexed by dx*Cp + cin.
    # w2_ref  : (3, 3*Cp, Cp) bf16  conv2 weights (bn2 scale folded).
    # b_ref   : (2, 1, Cp) f32    bn1 / bn2 additive shifts.
    # o_ref   : (1, Qr, Cp)       output; row q -> pixel (q // Wr, q % Wr).
    # slab_ref: (Sr, 3*Cp) bf16   scratch: dx-expanded im2col slab (shared).
    # hpad_ref: (Pr, Cp) f32      scratch: zero-padded conv1 activation.
    Cp = o_ref.shape[-1]
    Sr = slab_ref.shape[0]
    Pr = hpad_ref.shape[0]

    # ---- valid-pixel mask, generated in-kernel (no (Q,1) operand DMA) ----
    # Output row q sits at padded column (q + 1) mod Wr; valid columns are
    # 1..W and only the first Q rows are real pixels.  The mod is computed in
    # f32 with a +0.5-offset truncation, which is exact for q + 1 < ~4e6.
    q_i = jax.lax.broadcasted_iota(jnp.int32, (Qr, 1), 0)
    q_f = q_i.astype(jnp.float32)
    row_f = ((q_f + 1.5) * (1.0 / Wr)).astype(jnp.int32).astype(jnp.float32)
    col_f = (q_f + 1.0) - float(Wr) * row_f
    valid = (col_f >= 1.0) & (col_f <= float(W)) & (q_i < Q)

    def conv3x3(read_rows, w_ref):
        # Build the dx-expanded bf16 slab once: slab[p, dx*Cp + c] = src[p+dx, c].
        # (3 shifted f32 reads + cast, stored lane-block-aligned.)
        for dx in range(3):
            slab_ref[:, dx * Cp:(dx + 1) * Cp] = (
                read_rows(dx, dx + Sr).astype(jnp.bfloat16))
        # 3x3 conv = 3 accumulating K = 3*Cp MXU matmuls (one per dy); the LHS
        # are 8-aligned row-offset slices of the slab.
        acc = jnp.zeros((Qr, Cp), jnp.float32)
        for dy in range(3):
            o = off + dy * Wr
            acc = acc + jnp.dot(slab_ref[o:o + Qr, :], w_ref[dy],
                                preferred_element_type=jnp.float32)
        return acc

    # ---- conv1 (bn1 scale folded) -> shift -> relu -> mask ----
    h = jnp.maximum(conv3x3(lambda lo, hi: x_ref[0, lo:hi, :], w1_ref)
                    + b_ref[0], 0.0)
    h = jnp.where(valid, h, 0.0)

    # Zero-padded conv1 activation for conv2.  Only the halo rows conv2 reads
    # need to be zero; the interior is fully (re)written every step.
    hpad_ref[:base, :] = jnp.zeros((base, Cp), jnp.float32)
    if Pr > base + Qr:
        hpad_ref[base + Qr:, :] = jnp.zeros((Pr - base - Qr, Cp), jnp.float32)
    hpad_ref[base:base + Qr, :] = h

    # ---- conv2 (bn2 scale folded) -> shift -> + identity residual -> relu ----
    acc2 = conv3x3(lambda lo, hi: hpad_ref[lo:hi, :], w2_ref)
    res = x_ref[0, base:base + Qr, :]            # f32 identity-downsample residual
    y = jnp.maximum(acc2 + b_ref[1] + res, 0.0)
    o_ref[0, :, :] = y.astype(o_ref.dtype)


@jax.jit
def resblock_forward(x_nchw, w1, w2, bn1_params, bn2_params):
    """ResBlock forward (stride=1, downsample=Identity, eval-mode BN).

    x_nchw: (N, C, H, W) float32.  w1/w2: PyTorch conv weights (C, C, 3, 3).
    bn*_params: (gamma, beta, running_mean, running_var), each (C,).
    """
    N, C, H, W = x_nchw.shape
    assert w1.shape == (C, C, 3, 3) and w2.shape == (C, C, 3, 3), \
        "only stride=1 / identity-downsample ResBlock is supported"
    eps = 1e-5

    Cp = 128 * pl.cdiv(C, 128)             # lane-dense channel padding
    Wr = 8 * pl.cdiv(W + 2, 8)             # padded row stride (sublane-aligned)
    off = 8                                # leading zeros: keeps the bf16 slab
                                           # LHS offsets (off + dy*Wr) 8-aligned
    base = off + Wr + 1                    # flat index of interior pixel (0, 0)
    Q = (H - 1) * Wr + W                   # flat rows spanned by the interior
    Qr = 8 * pl.cdiv(Q, 8)                 # rounded row range actually computed
    Sr = 8 * pl.cdiv(off + 2 * Wr + Qr, 8)            # im2col slab rows
    Pr = max(8 * pl.cdiv(off + (H + 2) * Wr, 8), Sr + 8)   # padded flat length

    # Fold eval-mode BN into the conv weights: bn(conv(x)) = conv_{w*s}(x) + shift.
    def fold(w, params):
        gamma, beta, mean, var = params
        scale = gamma / jnp.sqrt(var + eps)              # (C,)
        shift = beta - mean * scale                      # (C,)
        wt = jnp.transpose(w, (2, 3, 1, 0)) * scale      # (3, 3, Cin, Cout)
        wt = jnp.pad(wt, ((0, 0), (0, 0), (0, Cp - C), (0, Cp - C)))
        wt = wt.reshape(3, 3 * Cp, Cp).astype(jnp.bfloat16)   # dy, (dx,cin), cout
        return wt, jnp.pad(shift, (0, Cp - C))

    w1p, b1 = fold(w1, bn1_params)
    w2p, b2 = fold(w2, bn2_params)
    bias = jnp.stack([b1, b2]).reshape(2, 1, Cp).astype(jnp.float32)

    # NCHW -> NHWC, zero-pad the spatial halo / row stride / channels, flatten
    # spatial, and add `off` leading (+ any trailing) zeros.
    xpad = jnp.pad(jnp.transpose(x_nchw, (0, 2, 3, 1)).astype(jnp.float32),
                   ((0, 0), (1, 1), (1, Wr - 1 - W), (0, Cp - C)))
    xpad = xpad.reshape(N, (H + 2) * Wr, Cp)
    xpad = jnp.pad(xpad, ((0, 0), (off, Pr - off - (H + 2) * Wr), (0, 0)))

    kernel = functools.partial(_resblock3x3_kernel, W=W, Wr=Wr, off=off,
                               base=base, Q=Q, Qr=Qr)

    out_flat = pl.pallas_call(
        kernel,
        out_shape=jax.ShapeDtypeStruct((N, Qr, Cp), x_nchw.dtype),
        grid_spec=pltpu.PrefetchScalarGridSpec(
            num_scalar_prefetch=0,
            grid=(N,),
            in_specs=[
                pl.BlockSpec((1, Pr, Cp), lambda n: (n, 0, 0)),      # padded image
                pl.BlockSpec((3, 3 * Cp, Cp), lambda n: (0, 0, 0)),  # folded w1
                pl.BlockSpec((3, 3 * Cp, Cp), lambda n: (0, 0, 0)),  # folded w2
                pl.BlockSpec((2, 1, Cp), lambda n: (0, 0, 0)),       # bn shifts
            ],
            out_specs=pl.BlockSpec((1, Qr, Cp), lambda n: (n, 0, 0)),
            scratch_shapes=[
                pltpu.VMEM((Sr, 3 * Cp), jnp.bfloat16),   # shared im2col slab
                pltpu.VMEM((Pr, Cp), jnp.float32),        # padded conv1 activation
            ]),
        compiler_params=pltpu.CompilerParams(
            dimension_semantics=("parallel",)),
    )(xpad, w1p, w2p, bias)

    # Flat rows q = i*Wr + j  ->  NHWC interior  ->  NCHW (drop channel pad).
    out = jnp.pad(out_flat, ((0, 0), (0, H * Wr - Qr), (0, 0)))
    out = out.reshape(N, H, Wr, Cp)[:, :, :W, :C]
    return jnp.transpose(out, (0, 3, 1, 2))


def _reference(x, w1, w2, bn1_params, bn2_params):
    """Pure-JAX reference matching the PyTorch forward (eval-mode BN, f32)."""
    eps = 1e-5

    def conv(x, w):
        return jax.lax.conv_general_dilated(
            x, w, window_strides=(1, 1), padding=((1, 1), (1, 1)),
            dimension_numbers=("NCHW", "OIHW", "NCHW"),
            precision=jax.lax.Precision.HIGHEST)

    def bn(x, params):
        g, b, m, v = (p.reshape(1, -1, 1, 1) for p in params)
        return (x - m) / jnp.sqrt(v + eps) * g + b

    out = jax.nn.relu(bn(conv(x, w1), bn1_params))
    out = jax.nn.relu(x + bn(conv(out, w2), bn2_params))
    return out


if __name__ == "__main__":
    # downsample=None (Identity) requires in_channel == out_channel, stride=1.
    N, C, H, W = 2, 4, 16, 16
    key = jax.random.PRNGKey(0)
    kx, kw1, kw2, kg1, kb1, kg2, kb2 = jax.random.split(key, 7)

    x = jax.random.normal(kx, (N, C, H, W), dtype=jnp.float32)

    # Conv weights: (C_out, C_in, 3, 3).
    w1 = 0.1 * jax.random.normal(kw1, (C, C, 3, 3), dtype=jnp.float32)
    w2 = 0.1 * jax.random.normal(kw2, (C, C, 3, 3), dtype=jnp.float32)

    # BN params (gamma, beta, running_mean, running_var): non-trivial, deterministic.
    bn1_params = (
        1.0 + 0.1 * jax.random.normal(kg1, (C,), dtype=jnp.float32),
        0.1 * jax.random.normal(kb1, (C,), dtype=jnp.float32),
        jnp.zeros((C,), jnp.float32),
        jnp.ones((C,), jnp.float32),
    )
    bn2_params = (
        1.0 + 0.1 * jax.random.normal(kg2, (C,), dtype=jnp.float32),
        0.1 * jax.random.normal(kb2, (C,), dtype=jnp.float32),
        jnp.zeros((C,), jnp.float32),
        jnp.ones((C,), jnp.float32),
    )

    out = jax.block_until_ready(resblock_forward(x, w1, w2, bn1_params, bn2_params))
    ref = _reference(x, w1, w2, bn1_params, bn2_params)

    assert out.shape == (N, C, H, W)
    # bf16 MXU inputs (f32 accumulate, f32 residual) vs an f32 reference.
    max_err = float(jnp.max(jnp.abs(out - ref)))
    assert max_err < 5e-2, f"mismatch vs reference, max abs err {max_err}"

    print("KERNEL_OK")
</pallas_src>

<mosaic_0001>
module attributes {stable_mosaic.version = 11 : i64} {
  func.func @_resblock3x3_kernel(%arg0: i32, %arg1: memref<1x440x128xf32, #tpu.memory_space<vmem>>, %arg2: memref<3x384x128xbf16, #tpu.memory_space<vmem>>, %arg3: memref<3x384x128xbf16, #tpu.memory_space<vmem>>, %arg4: memref<2x1x128xf32, #tpu.memory_space<vmem>>, %arg5: memref<1x376x128xf32, #tpu.memory_space<vmem>>, %arg6: memref<432x384xbf16, #tpu.memory_space<vmem>>, %arg7: memref<440x128xf32, #tpu.memory_space<vmem>>) attributes {dimension_semantics = [#tpu.dimension_semantics<parallel>], iteration_bounds = array<i64: 2>, scalar_prefetch = 0 : i64, scratch_operands = 2 : i64, tpu.core_type = #tpu.core_type<tc>, window_params = [{transform_indices = @transform_0, window_bounds = array<i64: 1, 440, 128>}, {pipeline_mode = #tpu.pipeline_mode<synchronous>, transform_indices = @transform_1, window_bounds = array<i64: 3, 384, 128>}, {pipeline_mode = #tpu.pipeline_mode<synchronous>, transform_indices = @transform_2, window_bounds = array<i64: 3, 384, 128>}, {pipeline_mode = #tpu.pipeline_mode<synchronous>, transform_indices = @transform_3, window_bounds = array<i64: 2, 1, 128>}, {transform_indices = @transform_4, window_bounds = array<i64: 1, 376, 128>}]} {
    %0 = tpu.iota {dimensions = array<i32: 0>} : vector<376x1xi32>
    %1 = arith.sitofp %0 : vector<376x1xi32> to vector<376x1xf32>
    %cst = arith.constant 1.500000e+00 : f32
    %2 = vector.broadcast %cst : f32 to vector<376x1xf32>
    %3 = arith.addf %1, %2 : vector<376x1xf32>
    %cst_0 = arith.constant 0.0416666679 : f32
    %4 = vector.broadcast %cst_0 : f32 to vector<376x1xf32>
    %5 = arith.mulf %3, %4 : vector<376x1xf32>
    %6 = arith.fptosi %5 : vector<376x1xf32> to vector<376x1xi32>
    %7 = arith.sitofp %6 : vector<376x1xi32> to vector<376x1xf32>
    %cst_1 = arith.constant 1.000000e+00 : f32
    %8 = vector.broadcast %cst_1 : f32 to vector<376x1xf32>
    %9 = arith.addf %1, %8 : vector<376x1xf32>
    %cst_2 = arith.constant 2.400000e+01 : f32
    %10 = vector.broadcast %cst_2 : f32 to vector<376x1xf32>
    %11 = arith.mulf %10, %7 : vector<376x1xf32>
    %12 = arith.subf %9, %11 : vector<376x1xf32>
    %cst_3 = arith.constant 1.000000e+00 : f32
    %13 = vector.broadcast %cst_3 : f32 to vector<376x1xf32>
    %14 = arith.cmpf oge, %12, %13 : vector<376x1xf32>
    %cst_4 = arith.constant 1.600000e+01 : f32
    %15 = vector.broadcast %cst_4 : f32 to vector<376x1xf32>
    %16 = arith.cmpf ole, %12, %15 : vector<376x1xf32>
    %17 = arith.andi %14, %16 : vector<376x1xi1>
    %c376_i32 = arith.constant 376 : i32
    %18 = vector.broadcast %c376_i32 : i32 to vector<376x1xi32>
    %19 = arith.cmpi slt, %0, %18 : vector<376x1xi32>
    %20 = arith.andi %17, %19 : vector<376x1xi1>
    %c0 = arith.constant 0 : index
    %c0_5 = arith.constant 0 : index
    %c0_6 = arith.constant 0 : index
    %21 = vector.load %arg1[%c0, %c0_5, %c0_6] : memref<1x440x128xf32, #tpu.memory_space<vmem>>, vector<1x432x128xf32>
    %22 = vector.shape_cast %21 : vector<1x432x128xf32> to vector<432x128xf32>
    %23 = arith.truncf %22 : vector<432x128xf32> to vector<432x128xbf16>
    %c0_7 = arith.constant 0 : index
    %c0_8 = arith.constant 0 : index
    %24 = vector.load %arg6[%c0_7, %c0_8] : memref<432x384xbf16, #tpu.memory_space<vmem>>, vector<432x128xbf16>
    tpu.vector_store %arg6[%c0_7, %c0_8], %23 {strides = array<i32>} : memref<432x384xbf16, #tpu.memory_space<vmem>>, vector<432x128xbf16>,
    %c0_9 = arith.constant 0 : index
    %c1 = arith.constant 1 : index
    %c0_10 = arith.constant 0 : index
    %25 = vector.load %arg1[%c0_9, %c1, %c0_10] : memref<1x440x128xf32, #tpu.memory_space<vmem>>, vector<1x432x128xf32>
    %26 = vector.shape_cast %25 : vector<1x432x128xf32> to vector<432x128xf32>
    %27 = arith.truncf %26 : vector<432x128xf32> to vector<432x128xbf16>
    %c0_11 = arith.constant 0 : index
    %c128 = arith.constant 128 : index
    %28 = vector.load %arg6[%c0_11, %c128] : memref<432x384xbf16, #tpu.memory_space<vmem>>, vector<432x128xbf16>
    tpu.vector_store %arg6[%c0_11, %c128], %27 {strides = array<i32>} : memref<432x384xbf16, #tpu.memory_space<vmem>>, vector<432x128xbf16>,
    %c0_12 = arith.constant 0 : index
    %c2 = arith.constant 2 : index
    %c0_13 = arith.constant 0 : index
    %29 = vector.load %arg1[%c0_12, %c2, %c0_13] : memref<1x440x128xf32, #tpu.memory_space<vmem>>, vector<1x432x128xf32>
    %30 = vector.shape_cast %29 : vector<1x432x128xf32> to vector<432x128xf32>
    %31 = arith.truncf %30 : vector<432x128xf32> to vector<432x128xbf16>
    %c0_14 = arith.constant 0 : index
    %c256 = arith.constant 256 : index
    %32 = vector.load %arg6[%c0_14, %c256] : memref<432x384xbf16, #tpu.memory_space<vmem>>, vector<432x128xbf16>
    tpu.vector_store %arg6[%c0_14, %c256], %31 {strides = array<i32>} : memref<432x384xbf16, #tpu.memory_space<vmem>>, vector<432x128xbf16>,
    %cst_15 = arith.constant 0.000000e+00 : f32
    %33 = vector.broadcast %cst_15 : f32 to vector<376x128xf32>
    %c8 = arith.constant 8 : index
    %c0_16 = arith.constant 0 : index
    %34 = vector.load %arg6[%c8, %c0_16] : memref<432x384xbf16, #tpu.memory_space<vmem>>, vector<376x384xbf16>
    %c0_17 = arith.constant 0 : index
    %c0_18 = arith.constant 0 : index
    %c0_19 = arith.constant 0 : index
    %35 = vector.load %arg2[%c0_17, %c0_18, %c0_19] : memref<3x384x128xbf16, #tpu.memory_space<vmem>>, vector<1x384x128xbf16>
    %36 = vector.shape_cast %35 : vector<1x384x128xbf16> to vector<384x128xbf16>
    %cst_20 = arith.constant dense<0.000000e+00> : vector<376x128xf32>
    %37 = tpu.matmul %34, %36, %cst_20 {dimension_numbers = #tpu.dot_dimension_numbers<[1], [0], [0], [1], [0, 0, 1, 1], [], []>} : vector<376x384xbf16>, vector<384x128xbf16>, vector<376x128xf32> -> vector<376x128xf32>
    %38 = arith.addf %33, %37 : vector<376x128xf32>
    %c32 = arith.constant 32 : index
    %c0_21 = arith.constant 0 : index
    %39 = vector.load %arg6[%c32, %c0_21] : memref<432x384xbf16, #tpu.memory_space<vmem>>, vector<376x384xbf16>
    %c1_22 = arith.constant 1 : index
    %c0_23 = arith.constant 0 : index
    %c0_24 = arith.constant 0 : index
    %40 = vector.load %arg2[%c1_22, %c0_23, %c0_24] : memref<3x384x128xbf16, #tpu.memory_space<vmem>>, vector<1x384x128xbf16>
    %41 = vector.shape_cast %40 : vector<1x384x128xbf16> to vector<384x128xbf16>
    %cst_25 = arith.constant dense<0.000000e+00> : vector<376x128xf32>
    %42 = tpu.matmul %39, %41, %cst_25 {dimension_numbers = #tpu.dot_dimension_numbers<[1], [0], [0], [1], [0, 0, 1, 1], [], []>} : vector<376x384xbf16>, vector<384x128xbf16>, vector<376x128xf32> -> vector<376x128xf32>
    %43 = arith.addf %38, %42 : vector<376x128xf32>
    %c56 = arith.constant 56 : index
    %c0_26 = arith.constant 0 : index
    %44 = vector.load %arg6[%c56, %c0_26] : memref<432x384xbf16, #tpu.memory_space<vmem>>, vector<376x384xbf16>
    %c2_27 = arith.constant 2 : index
    %c0_28 = arith.constant 0 : index
    %c0_29 = arith.constant 0 : index
    %45 = vector.load %arg2[%c2_27, %c0_28, %c0_29] : memref<3x384x128xbf16, #tpu.memory_space<vmem>>, vector<1x384x128xbf16>
    %46 = vector.shape_cast %45 : vector<1x384x128xbf16> to vector<384x128xbf16>
    %cst_30 = arith.constant dense<0.000000e+00> : vector<376x128xf32>
    %47 = tpu.matmul %44, %46, %cst_30 {dimension_numbers = #tpu.dot_dimension_numbers<[1], [0], [0], [1], [0, 0, 1, 1], [], []>} : vector<376x384xbf16>, vector<384x128xbf16>, vector<376x128xf32> -> vector<376x128xf32>
    %48 = arith.addf %43, %47 : vector<376x128xf32>
    %c0_31 = arith.constant 0 : index
    %c0_32 = arith.constant 0 : index
    %c0_33 = arith.constant 0 : index
    %49 = vector.load %arg4[%c0_31, %c0_32, %c0_33] : memref<2x1x128xf32, #tpu.memory_space<vmem>>, vector<1x1x128xf32>
    %50 = vector.shape_cast %49 : vector<1x1x128xf32> to vector<1x128xf32>
    %51 = vector.broadcast %50 : vector<1x128xf32> to vector<376x128xf32>
    %52 = arith.addf %48, %51 : vector<376x128xf32>
    %cst_34 = arith.constant 0.000000e+00 : f32
    %53 = vector.broadcast %cst_34 : f32 to vector<376x128xf32>
    %54 = arith.maximumf %52, %53 : vector<376x128xf32>
    %cst_35 = arith.constant 0.000000e+00 : f32
    %55 = vector.shape_cast %20 : vector<376x1xi1> to vector<376x1xi1>
    %56 = vector.broadcast %55 : vector<376x1xi1> to vector<376x128xi1>
    %57 = vector.broadcast %cst_35 : f32 to vector<376x128xf32>
    %58 = arith.select %56, %54, %57 : vector<376x128xi1>, vector<376x128xf32>
    %cst_36 = arith.constant 0.000000e+00 : f32
    %59 = vector.broadcast %cst_36 : f32 to vector<33x128xf32>
    %c0_37 = arith.constant 0 : index
    %c0_38 = arith.constant 0 : index
    %60 = vector.load %arg7[%c0_37, %c0_38] : memref<440x128xf32, #tpu.memory_space<vmem>>, vector<33x128xf32>
    tpu.vector_store %arg7[%c0_37, %c0_38], %59 {strides = array<i32>} : memref<440x128xf32, #tpu.memory_space<vmem>>, vector<33x128xf32>,
    %cst_39 = arith.constant 0.000000e+00 : f32
    %61 = vector.broadcast %cst_39 : f32 to vector<31x128xf32>
    %c409 = arith.constant 409 : index
    %c0_40 = arith.constant 0 : index
    %62 = vector.load %arg7[%c409, %c0_40] : memref<440x128xf32, #tpu.memory_space<vmem>>, vector<31x128xf32>
    tpu.vector_store %arg7[%c409, %c0_40], %61 {strides = array<i32>} : memref<440x128xf32, #tpu.memory_space<vmem>>, vector<31x128xf32>,
    %c33 = arith.constant 33 : index
    %c0_41 = arith.constant 0 : index
    %63 = vector.load %arg7[%c33, %c0_41] : memref<440x128xf32, #tpu.memory_space<vmem>>, vector<376x128xf32>
    tpu.vector_store %arg7[%c33, %c0_41], %58 {strides = array<i32>} : memref<440x128xf32, #tpu.memory_space<vmem>>, vector<376x128xf32>,
    %c0_42 = arith.constant 0 : index
    %c0_43 = arith.constant 0 : index
    %64 = vector.load %arg7[%c0_42, %c0_43] : memref<440x128xf32, #tpu.memory_space<vmem>>, vector<432x128xf32>
    %65 = arith.truncf %64 : vector<432x128xf32> to vector<432x128xbf16>
    %c0_44 = arith.constant 0 : index
    %c0_45 = arith.constant 0 : index
    %66 = vector.load %arg6[%c0_44, %c0_45] : memref<432x384xbf16, #tpu.memory_space<vmem>>, vector<432x128xbf16>
    tpu.vector_store %arg6[%c0_44, %c0_45], %65 {strides = array<i32>} : memref<432x384xbf16, #tpu.memory_space<vmem>>, vector<432x128xbf16>,
    %c1_46 = arith.constant 1 : index
    %c0_47 = arith.constant 0 : index
    %67 = vector.load %arg7[%c1_46, %c0_47] : memref<440x128xf32, #tpu.memory_space<vmem>>, vector<432x128xf32>
    %68 = arith.truncf %67 : vector<432x128xf32> to vector<432x128xbf16>
    %c0_48 = arith.constant 0 : index
    %c128_49 = arith.constant 128 : index
    %69 = vector.load %arg6[%c0_48, %c128_49] : memref<432x384xbf16, #tpu.memory_space<vmem>>, vector<432x128xbf16>
    tpu.vector_store %arg6[%c0_48, %c128_49], %68 {strides = array<i32>} : memref<432x384xbf16, #tpu.memory_space<vmem>>, vector<432x128xbf16>,
    %c2_50 = arith.constant 2 : index
    %c0_51 = arith.constant 0 : index
    %70 = vector.load %arg7[%c2_50, %c0_51] : memref<440x128xf32, #tpu.memory_space<vmem>>, vector<432x128xf32>
    %71 = arith.truncf %70 : vector<432x128xf32> to vector<432x128xbf16>
    %c0_52 = arith.constant 0 : index
    %c256_53 = arith.constant 256 : index
    %72 = vector.load %arg6[%c0_52, %c256_53] : memref<432x384xbf16, #tpu.memory_space<vmem>>, vector<432x128xbf16>
    tpu.vector_store %arg6[%c0_52, %c256_53], %71 {strides = array<i32>} : memref<432x384xbf16, #tpu.memory_space<vmem>>, vector<432x128xbf16>,
    %cst_54 = arith.constant 0.000000e+00 : f32
    %73 = vector.broadcast %cst_54 : f32 to vector<376x128xf32>
    %c8_55 = arith.constant 8 : index
    %c0_56 = arith.constant 0 : index
    %74 = vector.load %arg6[%c8_55, %c0_56] : memref<432x384xbf16, #tpu.memory_space<vmem>>, vector<376x384xbf16>
    %c0_57 = arith.constant 0 : index
    %c0_58 = arith.constant 0 : index
    %c0_59 = arith.constant 0 : index
    %75 = vector.load %arg3[%c0_57, %c0_58, %c0_59] : memref<3x384x128xbf16, #tpu.memory_space<vmem>>, vector<1x384x128xbf16>
    %76 = vector.shape_cast %75 : vector<1x384x128xbf16> to vector<384x128xbf16>
    %cst_60 = arith.constant dense<0.000000e+00> : vector<376x128xf32>
    %77 = tpu.matmul %74, %76, %cst_60 {dimension_numbers = #tpu.dot_dimension_numbers<[1], [0], [0], [1], [0, 0, 1, 1], [], []>} : vector<376x384xbf16>, vector<384x128xbf16>, vector<376x128xf32> -> vector<376x128xf32>
    %78 = arith.addf %73, %77 : vector<376x128xf32>
    %c32_61 = arith.constant 32 : index
    %c0_62 = arith.constant 0 : index
    %79 = vector.load %arg6[%c32_61, %c0_62] : memref<432x384xbf16, #tpu.memory_space<vmem>>, vector<376x384xbf16>
    %c1_63 = arith.constant 1 : index
    %c0_64 = arith.constant 0 : index
    %c0_65 = arith.constant 0 : index
    %80 = vector.load %arg3[%c1_63, %c0_64, %c0_65] : memref<3x384x128xbf16, #tpu.memory_space<vmem>>, vector<1x384x128xbf16>
    %81 = vector.shape_cast %80 : vector<1x384x128xbf16> to vector<384x128xbf16>
    %cst_66 = arith.constant dense<0.000000e+00> : vector<376x128xf32>
    %82 = tpu.matmul %79, %81, %cst_66 {dimension_numbers = #tpu.dot_dimension_numbers<[1], [0], [0], [1], [0, 0, 1, 1], [], []>} : vector<376x384xbf16>, vector<384x128xbf16>, vector<376x128xf32> -> vector<376x128xf32>
    %83 = arith.addf %78, %82 : vector<376x128xf32>
    %c56_67 = arith.constant 56 : index
    %c0_68 = arith.constant 0 : index
    %84 = vector.load %arg6[%c56_67, %c0_68] : memref<432x384xbf16, #tpu.memory_space<vmem>>, vector<376x384xbf16>
    %c2_69 = arith.constant 2 : index
    %c0_70 = arith.constant 0 : index
    %c0_71 = arith.constant 0 : index
    %85 = vector.load %arg3[%c2_69, %c0_70, %c0_71] : memref<3x384x128xbf16, #tpu.memory_space<vmem>>, vector<1x384x128xbf16>
    %86 = vector.shape_cast %85 : vector<1x384x128xbf16> to vector<384x128xbf16>
    %cst_72 = arith.constant dense<0.000000e+00> : vector<376x128xf32>
    %87 = tpu.matmul %84, %86, %cst_72 {dimension_numbers = #tpu.dot_dimension_numbers<[1], [0], [0], [1], [0, 0, 1, 1], [], []>} : vector<376x384xbf16>, vector<384x128xbf16>, vector<376x128xf32> -> vector<376x128xf32>
    %88 = arith.addf %83, %87 : vector<376x128xf32>
    %c0_73 = arith.constant 0 : index
    %c33_74 = arith.constant 33 : index
    %c0_75 = arith.constant 0 : index
    %89 = vector.load %arg1[%c0_73, %c33_74, %c0_75] : memref<1x440x128xf32, #tpu.memory_space<vmem>>, vector<1x376x128xf32>
    %90 = vector.shape_cast %89 : vector<1x376x128xf32> to vector<376x128xf32>
    %c1_76 = arith.constant 1 : index
    %c0_77 = arith.constant 0 : index
    %c0_78 = arith.constant 0 : index
    %91 = vector.load %arg4[%c1_76, %c0_77, %c0_78] : memref<2x1x128xf32, #tpu.memory_space<vmem>>, vector<1x1x128xf32>
    %92 = vector.shape_cast %91 : vector<1x1x128xf32> to vector<1x128xf32>
    %93 = vector.broadcast %92 : vector<1x128xf32> to vector<376x128xf32>
    %94 = arith.addf %88, %93 : vector<376x128xf32>
    %95 = arith.addf %94, %90 : vector<376x128xf32>
    %cst_79 = arith.constant 0.000000e+00 : f32
    %96 = vector.broadcast %cst_79 : f32 to vector<376x128xf32>
    %97 = arith.maximumf %95, %96 : vector<376x128xf32>
    %c0_80 = arith.constant 0 : index
    %c0_81 = arith.constant 0 : index
    %c0_82 = arith.constant 0 : index
    %98 = vector.load %arg5[%c0_80, %c0_81, %c0_82] : memref<1x376x128xf32, #tpu.memory_space<vmem>>, vector<1x376x128xf32>
    %99 = vector.shape_cast %98 : vector<1x376x128xf32> to vector<376x128xf32>
    %100 = vector.shape_cast %97 : vector<376x128xf32> to vector<1x376x128xf32>
    tpu.vector_store %arg5[%c0_80, %c0_81, %c0_82], %100 {strides = array<i32>} : memref<1x376x128xf32, #tpu.memory_space<vmem>>, vector<1x376x128xf32>,
    return
  }
  func.func @transform_0(%arg0: i32) -> (i32, i32, i32) {
    %c0_i32 = arith.constant 0 : i32
    %c0_i32_0 = arith.constant 0 : i32
    %c0_i32_1 = arith.constant 0 : i32
    return %arg0, %c0_i32, %c0_i32_0 : i32, i32, i32
  }
  func.func @transform_1(%arg0: i32) -> (i32, i32, i32) {
    %c0_i32 = arith.constant 0 : i32
    %c0_i32_0 = arith.constant 0 : i32
    %c0_i32_1 = arith.constant 0 : i32
    %c0_i32_2 = arith.constant 0 : i32
    return %c0_i32, %c0_i32_0, %c0_i32_1 : i32, i32, i32
  }
  func.func @transform_2(%arg0: i32) -> (i32, i32, i32) {
    %c0_i32 = arith.constant 0 : i32
    %c0_i32_0 = arith.constant 0 : i32
    %c0_i32_1 = arith.constant 0 : i32
    %c0_i32_2 = arith.constant 0 : i32
    return %c0_i32, %c0_i32_0, %c0_i32_1 : i32, i32, i32
  }
  func.func @transform_3(%arg0: i32) -> (i32, i32, i32) {
    %c0_i32 = arith.constant 0 : i32
    %c0_i32_0 = arith.constant 0 : i32
    %c0_i32_1 = arith.constant 0 : i32
    %c0_i32_2 = arith.constant 0 : i32
    return %c0_i32, %c0_i32_0, %c0_i32_1 : i32, i32, i32
  }
  func.func @transform_4(%arg0: i32) -> (i32, i32, i32) {
    %c0_i32 = arith.constant 0 : i32
    %c0_i32_0 = arith.constant 0 : i32
    %c0_i32_1 = arith.constant 0 : i32
    return %arg0, %c0_i32, %c0_i32_0 : i32, i32, i32
  }
}

</mosaic_0001>

<llo_original>
// kernel: resblock_forward.1
$region0: #{resblock_forward.1}
  #allocation0 [shape = 'u32[]', space=smem, size = 0x4, offset = 0x4, fixed_abs, tag = 'smem constant byte address 0x4 - core index']
  #allocation1 [shape = 'u32[144,128]{1,0:T(1,128)}', space=vmem, size = 0x12000, scoped, tag = 'internal scratch']
  #allocation2 [shape = 'bf16[432,384]{1,0:T(16,128)(2,1)}', space=vmem, size = 0x51000, scoped, tag = 'scratch operand']
  #allocation3 [shape = 'f32[440,128]{1,0:T(8,128)}', space=vmem, size = 0x37000, scoped, tag = 'scratch operand']
  %s0 = inlined_call_operand.vmem [shape: f32[2,440,128], index: 0, kind: input, shape index: {}]
  %s1 = inlined_call_operand.vmem [shape: bf16[3,384,128], index: 1, kind: input, shape index: {}]
  %s2 = inlined_call_operand.vmem [shape: bf16[3,384,128], index: 2, kind: input, shape index: {}]
  %s3 = inlined_call_operand.vmem [shape: f32[2,1,128], index: 3, kind: input, shape index: {}]
  %s4 = inlined_call_operand.vmem [shape: f32[2,376,128], index: 4, kind: output, shape index: {}]
  %s5 = sld [smem:[#allocation0]]
  $region49: #{resblock_forward.1} parent=0
    _
  %s7 = ssub.s32 1, %s5
  %s8 = scalar_select 0, %s7, %s5
  loop: start=0, step=1, limit=4
  $region2: #{resblock_forward.1} parent=0 // loop_pre_header
    _
  $region3: #{resblock_forward.1} parent=0 // loop_header
    %s10 = sphi 0, %s14
    %p11 = scmp.ge.s32.totalorder %s10, 4
    %s20 = sphi 0, %s22
    %s23 = sphi 0, %s20
    %s24 = sphi 0, %s23
    %s40 = sphi 0, %s24
    %s44 = sphi 0, %s44
    %s46 = sphi 0, %s44
    %s47 = sphi 0, %s46
    %s61 = sphi 0, %s47
    %s65 = sphi 0, %s65
    %s67 = sphi 0, %s65
    %s68 = sphi 0, %s67
    %s82 = sphi 0, %s68
    %s86 = sphi 0, %s86
    %s88 = sphi 0, %s86
    %s89 = sphi 0, %s88
    %s103 = sphi 0, %s89
    %s109 = sphi 0, %s111
    %s112 = sphi 0, %s109
    %s113 = sphi 0, %s112
    %s129 = sphi 0, %s113
  $region4: #{resblock_forward.1} parent=0 // loop_header_branch
    %13 = sbr.rel (%p11) target = $region8
  $region5: #{resblock_forward.1} parent=0 // loop_body
    %s15 = ssub.s32 %s10, 1
    %s16 = ssub.s32 %s10, 2
    %s17 = sadd.s32 %s10, 1
    %s18 = ssub.s32 %s10, %s17
    %p19 = scmp.eq.s32.totalorder %s18, 0
    %s21 = sadd.s32 %s20, 1
    %s22 = scalar_select %p19, %s20, %s21
    %p25 = pneg %p19
    %p26 = scmp.eq.s32.totalorder %s10, 1
    %p27 = por %p25, %p26
    %p28 = scmp.ne.s32.totalorder %s20, %s23
    %p29 = scmp.eq.s32.totalorder %s10, 0
    %p30 = por %p28, %p29
    %p31 = scmp.ne.s32.totalorder %s20, %s23
    %p32 = scmp.eq.s32.totalorder %s15, 1
    %p33 = por %p31, %p32
    %p34 = scmp.ne.s32.totalorder %s23, %s24
    %p35 = scmp.eq.s32.totalorder %s15, 0
    %p36 = por %p34, %p35
    %p37 = scmp.ne.s32.totalorder %s23, %s24
    %p38 = scmp.eq.s32.totalorder %s16, 1
    %p39 = por %p37, %p38
    %p41 = scmp.ne.s32.totalorder %s24, %s40
    %p42 = scmp.eq.s32.totalorder %s16, 0
    %p43 = por %p41, %p42
    %s45 = sadd.s32 %s44, 1
    %p48 = scmp.eq.s32.totalorder %s10, 1
    %p49 = scmp.ne.s32.totalorder %s44, %s46
    %p50 = scmp.eq.s32.totalorder %s10, 0
    %p51 = por %p49, %p50
    %p52 = scmp.ne.s32.totalorder %s44, %s46
    %p53 = scmp.eq.s32.totalorder %s15, 1
    %p54 = por %p52, %p53
    %p55 = scmp.ne.s32.totalorder %s46, %s47
    %p56 = scmp.eq.s32.totalorder %s15, 0
    %p57 = por %p55, %p56
    %p58 = scmp.ne.s32.totalorder %s46, %s47
    %p59 = scmp.eq.s32.totalorder %s16, 1
    %p60 = por %p58, %p59
    %p62 = scmp.ne.s32.totalorder %s47, %s61
    %p63 = scmp.eq.s32.totalorder %s16, 0
    %p64 = por %p62, %p63
    %s66 = sadd.s32 %s65, 1
    %p69 = scmp.eq.s32.totalorder %s10, 1
    %p70 = scmp.ne.s32.totalorder %s65, %s67
    %p71 = scmp.eq.s32.totalorder %s10, 0
    %p72 = por %p70, %p71
    %p73 = scmp.ne.s32.totalorder %s65, %s67
    %p74 = scmp.eq.s32.totalorder %s15, 1
    %p75 = por %p73, %p74
    %p76 = scmp.ne.s32.totalorder %s67, %s68
    %p77 = scmp.eq.s32.totalorder %s15, 0
    %p78 = por %p76, %p77
    %p79 = scmp.ne.s32.totalorder %s67, %s68
    %p80 = scmp.eq.s32.totalorder %s16, 1
    %p81 = por %p79, %p80
    %p83 = scmp.ne.s32.totalorder %s68, %s82
    %p84 = scmp.eq.s32.totalorder %s16, 0
    %p85 = por %p83, %p84
    %s87 = sadd.s32 %s86, 1
    %p90 = scmp.eq.s32.totalorder %s10, 1
    %p91 = scmp.ne.s32.totalorder %s86, %s88
    %p92 = scmp.eq.s32.totalorder %s10, 0
    %p93 = por %p91, %p92
    %p94 = scmp.ne.s32.totalorder %s86, %s88
    %p95 = scmp.eq.s32.totalorder %s15, 1
    %p96 = por %p94, %p95
    %p97 = scmp.ne.s32.totalorder %s88, %s89
    %p98 = scmp.eq.s32.totalorder %s15, 0
    %p99 = por %p97, %p98
    %p100 = scmp.ne.s32.totalorder %s88, %s89
    %p101 = scmp.eq.s32.totalorder %s16, 1
    %p102 = por %p100, %p101
    %p104 = scmp.ne.s32.totalorder %s89, %s103
    %p105 = scmp.eq.s32.totalorder %s16, 0
    %p106 = por %p104, %p105
    %s107 = ssub.s32 %s10, %s17
    %p108 = scmp.eq.s32.totalorder %s107, 0
    %s110 = sadd.s32 %s109, 1
    %s111 = scalar_select %p108, %s109, %s110
    %p114 = pneg %p108
    %p115 = scmp.eq.s32.totalorder %s10, 1
    %p116 = por %p114, %p115
    %p117 = scmp.ne.s32.totalorder %s109, %s112
    %p118 = scmp.eq.s32.totalorder %s10, 0
    %p119 = por %p117, %p118
    %p120 = scmp.ne.s32.totalorder %s109, %s112
    %p121 = scmp.eq.s32.totalorder %s15, 1
    %p122 = por %p120, %p121
    %p123 = scmp.ne.s32.totalorder %s112, %s113
    %p124 = scmp.eq.s32.totalorder %s15, 0
    %p125 = por %p123, %p124
    %p126 = scmp.ne.s32.totalorder %s112, %s113
    %p127 = scmp.eq.s32.totalorder %s16, 1
    %p128 = por %p126, %p127
    %p130 = scmp.ne.s32.totalorder %s113, %s129
    %p131 = scmp.eq.s32.totalorder %s16, 0
    %p132 = por %p130, %p131
    %p133 = scmp.le.s32.totalorder 1, %s10
    %p134 = scmp.lt.s32.totalorder %s10, 3
    %p135 = pnand %p133, %p134
    %p136 = pneg %p135
    // Predicated region
    $region9: #{resblock_forward.1} parent=5 // pred_check
      _
    $region10: #{resblock_forward.1} parent=5 // pred_check_branch
      %138 = sbr.rel (%p135) target = $region12
    $region11: #{resblock_forward.1} parent=5 // pred_region
      %s139 = ssub.s32 %s10, 1
      // Predicated region
      $region13: #{resblock_forward.1} parent=11 // pred_check
        %p140 = pneg %p57
      $region14: #{resblock_forward.1} parent=11 // pred_check_branch
        %142 = sbr.rel (%p140) target = $region16
      $region15: #{resblock_forward.1} parent=11 // pred_region
        _
      $region16: #{resblock_forward.1} parent=11 // pred_fallthru
        _
      // Predicated region
      $region17: #{resblock_forward.1} parent=11 // pred_check
        %p143 = pneg %p78
      $region18: #{resblock_forward.1} parent=11 // pred_check_branch
        %145 = sbr.rel (%p143) target = $region20
      $region19: #{resblock_forward.1} parent=11 // pred_region
        _
      $region20: #{resblock_forward.1} parent=11 // pred_fallthru
        _
      // Predicated region
      $region21: #{resblock_forward.1} parent=11 // pred_check
        %p146 = pneg %p99
      $region22: #{resblock_forward.1} parent=11 // pred_check_branch
        %148 = sbr.rel (%p146) target = $region24
      $region23: #{resblock_forward.1} parent=11 // pred_region
        _
      $region24: #{resblock_forward.1} parent=11 // pred_fallthru
        _
    $region12: #{resblock_forward.1} parent=5 // pred_fallthru
      _
    %p149 = scmp.lt.s32.totalorder %s10, 2
    // Predicated region
    $region25: #{resblock_forward.1} parent=5 // pred_check
      %p150 = pneg %p149
    $region26: #{resblock_forward.1} parent=5 // pred_check_branch
      %152 = sbr.rel (%p150) target = $region28
    $region27: #{resblock_forward.1} parent=5 // pred_region
      // Predicated region
      $region29: #{resblock_forward.1} parent=27 // pred_check
        %p153 = pneg %p30
      $region30: #{resblock_forward.1} parent=27 // pred_check_branch
        %155 = sbr.rel (%p153) target = $region32
      $region31: #{resblock_forward.1} parent=27 // pred_region
        %p156 = scmp.lt.s32.totalorder %s10, 1
        %s157 = scalar_select %p156, %s10, 1
        %s158 = smul.addr %s157, 55
        %s159 = smul.addr %s158, 8
        %s160 = scalar_lea.vmem %s0, %s159
      $region32: #{resblock_forward.1} parent=27 // pred_fallthru
        _
    $region28: #{resblock_forward.1} parent=5 // pred_fallthru
      _
    %p161 = scmp.le.s32.totalorder 1, %s10
    %p162 = scmp.lt.s32.totalorder %s10, 3
    %p163 = pnand %p161, %p162
    %p164 = pneg %p163
    // Predicated region
    $region33: #{resblock_forward.1} parent=5 // pred_check
      _
    $region34: #{resblock_forward.1} parent=5 // pred_check_branch
      %166 = sbr.rel (%p163) target = $region36
    $region35: #{resblock_forward.1} parent=5 // pred_region
      %s167 = ssub.s32 %s10, 1
      %p168 = scmp.lt.s32.totalorder %s15, 1
      %s169 = scalar_select %p168, %s15, 1
      %s170 = smul.addr %s169, 55
      %s171 = smul.addr %s170, 8
      %s172 = scalar_lea.vmem %s0, %s171
      %p173 = pneg %p36
      %p174 = pneg %p33
      %p175 = pneg %p57
      %p176 = pneg %p54
      %p177 = pneg %p78
      %p178 = pneg %p75
      %p179 = pneg %p99
      %p180 = pneg %p96
      %p181 = pneg %p125
      %p182 = pneg %p122
      %p183 = scmp.lt.s32.totalorder %s15, 1
      %s184 = scalar_select %p183, %s15, 1
      %s185 = smul.addr %s184, 47
      %s186 = smul.addr %s185, 8
      %s187 = scalar_lea.vmem %s4, %s186
      %p188 = scmp.lt.s32.totalorder %s15, 1
      %s189 = scalar_select %p188, %s15, 1
      %s190 = smul.addr %s189, 55
      %s191 = smul.addr %s190, 8
      %s192 = scalar_lea.vmem %s0, %s191
      %p193 = scmp.lt.s32.totalorder %s15, 1
      %s194 = scalar_select %p193, %s15, 1
      %s195 = smul.addr %s194, 47
      %s196 = smul.addr %s195, 8
      %s197 = scalar_lea.vmem %s4, %s196
      %v199 = vlaneseq
      %v200 = vshrl.u32 %v199, 7
      %v201 = vadd.s32 %v200, 8
      %v202 = vadd.s32 %v200, 16
      %v203 = vadd.s32 %v200, 24
      %v204 = vadd.s32 %v200, 32
      %v205 = vadd.s32 %v200, 40
      %v206 = vadd.s32 %v200, 48
      %v207 = vadd.s32 %v200, 56
      %v208 = vadd.s32 %v200, 64
      %v209 = vadd.s32 %v200, 72
      %v210 = vadd.s32 %v200, 80
      %v211 = vadd.s32 %v200, 88
      %v212 = vadd.s32 %v200, 96
      %v213 = vadd.s32 %v200, 104
      %v214 = vadd.s32 %v200, 112
      %v215 = vadd.s32 %v200, 120
      %v216 = vadd.s32 %v200, 128
      %v217 = vadd.s32 %v200, 136
      %v218 = vadd.s32 %v200, 144
      %v219 = vadd.s32 %v200, 152
      %v220 = vadd.s32 %v200, 160
      %v221 = vadd.s32 %v200, 168
      %v222 = vadd.s32 %v200, 176
      %v223 = vadd.s32 %v200, 184
      %v224 = vadd.s32 %v200, 192
      %v225 = vadd.s32 %v200, 200
      %v226 = vadd.s32 %v200, 208
      %v227 = vadd.s32 %v200, 216
      %v228 = vadd.s32 %v200, 224
      %v229 = vadd.s32 %v200, 232
      %v230 = vadd.s32 %v200, 240
      %v231 = vadd.s32 %v200, 248
      %v232 = vadd.s32 %v200, 256
      %v233 = vadd.s32 %v200, 264
      %v234 = vadd.s32 %v200, 272
      %v235 = vadd.s32 %v200, 280
      %v236 = vadd.s32 %v200, 288
      %v237 = vadd.s32 %v200, 296
      %v238 = vadd.s32 %v200, 304
      %v239 = vadd.s32 %v200, 312
      %v240 = vadd.s32 %v200, 320
      %v241 = vadd.s32 %v200, 328
      %v242 = vadd.s32 %v200, 336
      %v243 = vadd.s32 %v200, 344
      %v244 = vadd.s32 %v200, 352
      %v245 = vadd.s32 %v200, 360
      %v246 = vadd.s32 %v200, 368
      %v247 = vcvt.s32.f32 %v200
      %v248 = vcvt.s32.f32 %v201
      %v249 = vcvt.s32.f32 %v202
      %v250 = vcvt.s32.f32 %v203
      %v251 = vcvt.s32.f32 %v204
      %v252 = vcvt.s32.f32 %v205
      %v253 = vcvt.s32.f32 %v206
      %v254 = vcvt.s32.f32 %v207
      %v255 = vcvt.s32.f32 %v208
      %v256 = vcvt.s32.f32 %v209
      %v257 = vcvt.s32.f32 %v210
      %v258 = vcvt.s32.f32 %v211
      %v259 = vcvt.s32.f32 %v212
      %v260 = vcvt.s32.f32 %v213
      %v261 = vcvt.s32.f32 %v214
      %v262 = vcvt.s32.f32 %v215
      %v263 = vcvt.s32.f32 %v216
      %v264 = vcvt.s32.f32 %v217
      %v265 = vcvt.s32.f32 %v218
      %v266 = vcvt.s32.f32 %v219
      %v267 = vcvt.s32.f32 %v220
      %v268 = vcvt.s32.f32 %v221
      %v269 = vcvt.s32.f32 %v222
      %v270 = vcvt.s32.f32 %v223
      %v271 = vcvt.s32.f32 %v224
      %v272 = vcvt.s32.f32 %v225
      %v273 = vcvt.s32.f32 %v226
      %v274 = vcvt.s32.f32 %v227
      %v275 = vcvt.s32.f32 %v228
      %v276 = vcvt.s32.f32 %v229
      %v277 = vcvt.s32.f32 %v230
      %v278 = vcvt.s32.f32 %v231
      %v279 = vcvt.s32.f32 %v232
      %v280 = vcvt.s32.f32 %v233
      %v281 = vcvt.s32.f32 %v234
      %v282 = vcvt.s32.f32 %v235
      %v283 = vcvt.s32.f32 %v236
      %v284 = vcvt.s32.f32 %v237
      %v285 = vcvt.s32.f32 %v238
      %v286 = vcvt.s32.f32 %v239
      %v287 = vcvt.s32.f32 %v240
      %v288 = vcvt.s32.f32 %v241
      %v289 = vcvt.s32.f32 %v242
      %v290 = vcvt.s32.f32 %v243
      %v291 = vcvt.s32.f32 %v244
      %v292 = vcvt.s32.f32 %v245
      %v293 = vcvt.s32.f32 %v246
      %v294 = vadd.f32 %v247, 1.5
      %v295 = vadd.f32 %v248, 1.5
      %v296 = vadd.f32 %v249, 1.5
      %v297 = vadd.f32 %v250, 1.5
      %v298 = vadd.f32 %v251, 1.5
      %v299 = vadd.f32 %v252, 1.5
      %v300 = vadd.f32 %v253, 1.5
      %v301 = vadd.f32 %v254, 1.5
      %v302 = vadd.f32 %v255, 1.5
      %v303 = vadd.f32 %v256, 1.5
      %v304 = vadd.f32 %v257, 1.5
      %v305 = vadd.f32 %v258, 1.5
      %v306 = vadd.f32 %v259, 1.5
      %v307 = vadd.f32 %v260, 1.5
      %v308 = vadd.f32 %v261, 1.5
      %v309 = vadd.f32 %v262, 1.5
      %v310 = vadd.f32 %v263, 1.5
      %v311 = vadd.f32 %v264, 1.5
      %v312 = vadd.f32 %v265, 1.5
      %v313 = vadd.f32 %v266, 1.5
      %v314 = vadd.f32 %v267, 1.5
      %v315 = vadd.f32 %v268, 1.5
      %v316 = vadd.f32 %v269, 1.5
      %v317 = vadd.f32 %v270, 1.5
      %v318 = vadd.f32 %v271, 1.5
      %v319 = vadd.f32 %v272, 1.5
      %v320 = vadd.f32 %v273, 1.5
      %v321 = vadd.f32 %v274, 1.5
      %v322 = vadd.f32 %v275, 1.5
      %v323 = vadd.f32 %v276, 1.5
      %v324 = vadd.f32 %v277, 1.5
      %v325 = vadd.f32 %v278, 1.5
      %v326 = vadd.f32 %v279, 1.5
      %v327 = vadd.f32 %v280, 1.5
      %v328 = vadd.f32 %v281, 1.5
      %v329 = vadd.f32 %v282, 1.5
      %v330 = vadd.f32 %v283, 1.5
      %v331 = vadd.f32 %v284, 1.5
      %v332 = vadd.f32 %v285, 1.5
      %v333 = vadd.f32 %v286, 1.5
      %v334 = vadd.f32 %v287, 1.5
      %v335 = vadd.f32 %v288, 1.5
      %v336 = vadd.f32 %v289, 1.5
      %v337 = vadd.f32 %v290, 1.5
      %v338 = vadd.f32 %v291, 1.5
      %v339 = vadd.f32 %v292, 1.5
      %v340 = vadd.f32 %v293, 1.5
      %v341 = vmul.f32 %v294, 0.041666668
      %v342 = vmul.f32 %v295, 0.041666668
      %v343 = vmul.f32 %v296, 0.041666668
      %v344 = vmul.f32 %v297, 0.041666668
      %v345 = vmul.f32 %v298, 0.041666668
      %v346 = vmul.f32 %v299, 0.041666668
      %v347 = vmul.f32 %v300, 0.041666668
      %v348 = vmul.f32 %v301, 0.041666668
      %v349 = vmul.f32 %v302, 0.041666668
      %v350 = vmul.f32 %v303, 0.041666668
      %v351 = vmul.f32 %v304, 0.041666668
      %v352 = vmul.f32 %v305, 0.041666668
      %v353 = vmul.f32 %v306, 0.041666668
      %v354 = vmul.f32 %v307, 0.041666668
      %v355 = vmul.f32 %v308, 0.041666668
      %v356 = vmul.f32 %v309, 0.041666668
      %v357 = vmul.f32 %v310, 0.041666668
      %v358 = vmul.f32 %v311, 0.041666668
      %v359 = vmul.f32 %v312, 0.041666668
      %v360 = vmul.f32 %v313, 0.041666668
      %v361 = vmul.f32 %v314, 0.041666668
      %v362 = vmul.f32 %v315, 0.041666668
      %v363 = vmul.f32 %v316, 0.041666668
      %v364 = vmul.f32 %v317, 0.041666668
      %v365 = vmul.f32 %v318, 0.041666668
      %v366 = vmul.f32 %v319, 0.041666668
      %v367 = vmul.f32 %v320, 0.041666668
      %v368 = vmul.f32 %v321, 0.041666668
      %v369 = vmul.f32 %v322, 0.041666668
      %v370 = vmul.f32 %v323, 0.041666668
      %v371 = vmul.f32 %v324, 0.041666668
      %v372 = vmul.f32 %v325, 0.041666668
      %v373 = vmul.f32 %v326, 0.041666668
      %v374 = vmul.f32 %v327, 0.041666668
      %v375 = vmul.f32 %v328, 0.041666668
      %v376 = vmul.f32 %v329, 0.041666668
      %v377 = vmul.f32 %v330, 0.041666668
      %v378 = vmul.f32 %v331, 0.041666668
      %v379 = vmul.f32 %v332, 0.041666668
      %v380 = vmul.f32 %v333, 0.041666668
      %v381 = vmul.f32 %v334, 0.041666668
      %v382 = vmul.f32 %v335, 0.041666668
      %v383 = vmul.f32 %v336, 0.041666668
      %v384 = vmul.f32 %v337, 0.041666668
      %v385 = vmul.f32 %v338, 0.041666668
      %v386 = vmul.f32 %v339, 0.041666668
      %v387 = vmul.f32 %v340, 0.041666668
      %v388 = vcvt.f32.s32.to.zero.pseudo %v341
      %v389 = vcvt.f32.s32.to.zero.pseudo %v342
      %v390 = vcvt.f32.s32.to.zero.pseudo %v343
      %v391 = vcvt.f32.s32.to.zero.pseudo %v344
      %v392 = vcvt.f32.s32.to.zero.pseudo %v345
      %v393 = vcvt.f32.s32.to.zero.pseudo %v346
      %v394 = vcvt.f32.s32.to.zero.pseudo %v347
      %v395 = vcvt.f32.s32.to.zero.pseudo %v348
      %v396 = vcvt.f32.s32.to.zero.pseudo %v349
      %v397 = vcvt.f32.s32.to.zero.pseudo %v350
      %v398 = vcvt.f32.s32.to.zero.pseudo %v351
      %v399 = vcvt.f32.s32.to.zero.pseudo %v352
      %v400 = vcvt.f32.s32.to.zero.pseudo %v353
      %v401 = vcvt.f32.s32.to.zero.pseudo %v354
      %v402 = vcvt.f32.s32.to.zero.pseudo %v355
      %v403 = vcvt.f32.s32.to.zero.pseudo %v356
      %v404 = vcvt.f32.s32.to.zero.pseudo %v357
      %v405 = vcvt.f32.s32.to.zero.pseudo %v358
      %v406 = vcvt.f32.s32.to.zero.pseudo %v359
      %v407 = vcvt.f32.s32.to.zero.pseudo %v360
      %v408 = vcvt.f32.s32.to.zero.pseudo %v361
      %v409 = vcvt.f32.s32.to.zero.pseudo %v362
      %v410 = vcvt.f32.s32.to.zero.pseudo %v363
      %v411 = vcvt.f32.s32.to.zero.pseudo %v364
      %v412 = vcvt.f32.s32.to.zero.pseudo %v365
      %v413 = vcvt.f32.s32.to.zero.pseudo %v366
      %v414 = vcvt.f32.s32.to.zero.pseudo %v367
      %v415 = vcvt.f32.s32.to.zero.pseudo %v368
      %v416 = vcvt.f32.s32.to.zero.pseudo %v369
      %v417 = vcvt.f32.s32.to.zero.pseudo %v370
      %v418 = vcvt.f32.s32.to.zero.pseudo %v371
      %v419 = vcvt.f32.s32.to.zero.pseudo %v372
      %v420 = vcvt.f32.s32.to.zero.pseudo %v373
      %v421 = vcvt.f32.s32.to.zero.pseudo %v374
      %v422 = vcvt.f32.s32.to.zero.pseudo %v375
      %v423 = vcvt.f32.s32.to.zero.pseudo %v376
      %v424 = vcvt.f32.s32.to.zero.pseudo %v377
      %v425 = vcvt.f32.s32.to.zero.pseudo %v378
      %v426 = vcvt.f32.s32.to.zero.pseudo %v379
      %v427 = vcvt.f32.s32.to.zero.pseudo %v380
      %v428 = vcvt.f32.s32.to.zero.pseudo %v381
      %v429 = vcvt.f32.s32.to.zero.pseudo %v382
      %v430 = vcvt.f32.s32.to.zero.pseudo %v383
      %v431 = vcvt.f32.s32.to.zero.pseudo %v384
      %v432 = vcvt.f32.s32.to.zero.pseudo %v385
      %v433 = vcvt.f32.s32.to.zero.pseudo %v386
      %v434 = vcvt.f32.s32.to.zero.pseudo %v387
      %v435 = vcvt.s32.f32 %v388
      %v436 = vcvt.s32.f32 %v389
      %v437 = vcvt.s32.f32 %v390
      %v438 = vcvt.s32.f32 %v391
      %v439 = vcvt.s32.f32 %v392
      %v440 = vcvt.s32.f32 %v393
      %v441 = vcvt.s32.f32 %v394
      %v442 = vcvt.s32.f32 %v395
      %v443 = vcvt.s32.f32 %v396
      %v444 = vcvt.s32.f32 %v397
      %v445 = vcvt.s32.f32 %v398
      %v446 = vcvt.s32.f32 %v399
      %v447 = vcvt.s32.f32 %v400
      %v448 = vcvt.s32.f32 %v401
      %v449 = vcvt.s32.f32 %v402
      %v450 = vcvt.s32.f32 %v403
      %v451 = vcvt.s32.f32 %v404
      %v452 = vcvt.s32.f32 %v405
      %v453 = vcvt.s32.f32 %v406
      %v454 = vcvt.s32.f32 %v407
      %v455 = vcvt.s32.f32 %v408
      %v456 = vcvt.s32.f32 %v409
      %v457 = vcvt.s32.f32 %v410
      %v458 = vcvt.s32.f32 %v411
      %v459 = vcvt.s32.f32 %v412
      %v460 = vcvt.s32.f32 %v413
      %v461 = vcvt.s32.f32 %v414
      %v462 = vcvt.s32.f32 %v415
      %v463 = vcvt.s32.f32 %v416
      %v464 = vcvt.s32.f32 %v417
      %v465 = vcvt.s32.f32 %v418
      %v466 = vcvt.s32.f32 %v419
      %v467 = vcvt.s32.f32 %v420
      %v468 = vcvt.s32.f32 %v421
      %v469 = vcvt.s32.f32 %v422
      %v470 = vcvt.s32.f32 %v423
      %v471 = vcvt.s32.f32 %v424
      %v472 = vcvt.s32.f32 %v425
      %v473 = vcvt.s32.f32 %v426
      %v474 = vcvt.s32.f32 %v427
      %v475 = vcvt.s32.f32 %v428
      %v476 = vcvt.s32.f32 %v429
      %v477 = vcvt.s32.f32 %v430
      %v478 = vcvt.s32.f32 %v431
      %v479 = vcvt.s32.f32 %v432
      %v480 = vcvt.s32.f32 %v433
      %v481 = vcvt.s32.f32 %v434
      %v482 = vadd.f32 %v247, 1.0
      %v483 = vadd.f32 %v248, 1.0
      %v484 = vadd.f32 %v249, 1.0
      %v485 = vadd.f32 %v250, 1.0
      %v486 = vadd.f32 %v251, 1.0
      %v487 = vadd.f32 %v252, 1.0
      %v488 = vadd.f32 %v253, 1.0
      %v489 = vadd.f32 %v254, 1.0
      %v490 = vadd.f32 %v255, 1.0
      %v491 = vadd.f32 %v256, 1.0
      %v492 = vadd.f32 %v257, 1.0
      %v493 = vadd.f32 %v258, 1.0
      %v494 = vadd.f32 %v259, 1.0
      %v495 = vadd.f32 %v260, 1.0
      %v496 = vadd.f32 %v261, 1.0
      %v497 = vadd.f32 %v262, 1.0
      %v498 = vadd.f32 %v263, 1.0
      %v499 = vadd.f32 %v264, 1.0
      %v500 = vadd.f32 %v265, 1.0
      %v501 = vadd.f32 %v266, 1.0
      %v502 = vadd.f32 %v267, 1.0
      %v503 = vadd.f32 %v268, 1.0
      %v504 = vadd.f32 %v269, 1.0
      %v505 = vadd.f32 %v270, 1.0
      %v506 = vadd.f32 %v271, 1.0
      %v507 = vadd.f32 %v272, 1.0
      %v508 = vadd.f32 %v273, 1.0
      %v509 = vadd.f32 %v274, 1.0
      %v510 = vadd.f32 %v275, 1.0
      %v511 = vadd.f32 %v276, 1.0
      %v512 = vadd.f32 %v277, 1.0
      %v513 = vadd.f32 %v278, 1.0
      %v514 = vadd.f32 %v279, 1.0
      %v515 = vadd.f32 %v280, 1.0
      %v516 = vadd.f32 %v281, 1.0
      %v517 = vadd.f32 %v282, 1.0
      %v518 = vadd.f32 %v283, 1.0
      %v519 = vadd.f32 %v284, 1.0
      %v520 = vadd.f32 %v285, 1.0
      %v521 = vadd.f32 %v286, 1.0
      %v522 = vadd.f32 %v287, 1.0
      %v523 = vadd.f32 %v288, 1.0
      %v524 = vadd.f32 %v289, 1.0
      %v525 = vadd.f32 %v290, 1.0
      %v526 = vadd.f32 %v291, 1.0
      %v527 = vadd.f32 %v292, 1.0
      %v528 = vadd.f32 %v293, 1.0
      %v529 = vmul.f32 %v435, 24.0
      %v530 = vmul.f32 %v436, 24.0
      %v531 = vmul.f32 %v437, 24.0
      %v532 = vmul.f32 %v438, 24.0
      %v533 = vmul.f32 %v439, 24.0
      %v534 = vmul.f32 %v440, 24.0
      %v535 = vmul.f32 %v441, 24.0
      %v536 = vmul.f32 %v442, 24.0
      %v537 = vmul.f32 %v443, 24.0
      %v538 = vmul.f32 %v444, 24.0
      %v539 = vmul.f32 %v445, 24.0
      %v540 = vmul.f32 %v446, 24.0
      %v541 = vmul.f32 %v447, 24.0
      %v542 = vmul.f32 %v448, 24.0
      %v543 = vmul.f32 %v449, 24.0
      %v544 = vmul.f32 %v450, 24.0
      %v545 = vmul.f32 %v451, 24.0
      %v546 = vmul.f32 %v452, 24.0
      %v547 = vmul.f32 %v453, 24.0
      %v548 = vmul.f32 %v454, 24.0
      %v549 = vmul.f32 %v455, 24.0
      %v550 = vmul.f32 %v456, 24.0
      %v551 = vmul.f32 %v457, 24.0
      %v552 = vmul.f32 %v458, 24.0
      %v553 = vmul.f32 %v459, 24.0
      %v554 = vmul.f32 %v460, 24.0
      %v555 = vmul.f32 %v461, 24.0
      %v556 = vmul.f32 %v462, 24.0
      %v557 = vmul.f32 %v463, 24.0
      %v558 = vmul.f32 %v464, 24.0
      %v559 = vmul.f32 %v465, 24.0
      %v560 = vmul.f32 %v466, 24.0
      %v561 = vmul.f32 %v467, 24.0
      %v562 = vmul.f32 %v468, 24.0
      %v563 = vmul.f32 %v469, 24.0
      %v564 = vmul.f32 %v470, 24.0
      %v565 = vmul.f32 %v471, 24.0
      %v566 = vmul.f32 %v472, 24.0
      %v567 = vmul.f32 %v473, 24.0
      %v568 = vmul.f32 %v474, 24.0
      %v569 = vmul.f32 %v475, 24.0
      %v570 = vmul.f32 %v476, 24.0
      %v571 = vmul.f32 %v477, 24.0
      %v572 = vmul.f32 %v478, 24.0
      %v573 = vmul.f32 %v479, 24.0
      %v574 = vmul.f32 %v480, 24.0
      %v575 = vmul.f32 %v481, 24.0
      %v576 = vsub.f32 %v482, %v529
      %v577 = vsub.f32 %v483, %v530
      %v578 = vsub.f32 %v484, %v531
      %v579 = vsub.f32 %v485, %v532
      %v580 = vsub.f32 %v486, %v533
      %v581 = vsub.f32 %v487, %v534
      %v582 = vsub.f32 %v488, %v535
      %v583 = vsub.f32 %v489, %v536
      %v584 = vsub.f32 %v490, %v537
      %v585 = vsub.f32 %v491, %v538
      %v586 = vsub.f32 %v492, %v539
      %v587 = vsub.f32 %v493, %v540
      %v588 = vsub.f32 %v494, %v541
      %v589 = vsub.f32 %v495, %v542
      %v590 = vsub.f32 %v496, %v543
      %v591 = vsub.f32 %v497, %v544
      %v592 = vsub.f32 %v498, %v545
      %v593 = vsub.f32 %v499, %v546
      %v594 = vsub.f32 %v500, %v547
      %v595 = vsub.f32 %v501, %v548
      %v596 = vsub.f32 %v502, %v549
      %v597 = vsub.f32 %v503, %v550
      %v598 = vsub.f32 %v504, %v551
      %v599 = vsub.f32 %v505, %v552
      %v600 = vsub.f32 %v506, %v553
      %v601 = vsub.f32 %v507, %v554
      %v602 = vsub.f32 %v508, %v555
      %v603 = vsub.f32 %v509, %v556
      %v604 = vsub.f32 %v510, %v557
      %v605 = vsub.f32 %v511, %v558
      %v606 = vsub.f32 %v512, %v559
      %v607 = vsub.f32 %v513, %v560
      %v608 = vsub.f32 %v514, %v561
      %v609 = vsub.f32 %v515, %v562
      %v610 = vsub.f32 %v516, %v563
      %v611 = vsub.f32 %v517, %v564
      %v612 = vsub.f32 %v518, %v565
      %v613 = vsub.f32 %v519, %v566
      %v614 = vsub.f32 %v520, %v567
      %v615 = vsub.f32 %v521, %v568
      %v616 = vsub.f32 %v522, %v569
      %v617 = vsub.f32 %v523, %v570
      %v618 = vsub.f32 %v524, %v571
      %v619 = vsub.f32 %v525, %v572
      %v620 = vsub.f32 %v526, %v573
      %v621 = vsub.f32 %v527, %v574
      %v622 = vsub.f32 %v528, %v575
      %vm623 = vcmp.ge.f32.partialorder %v576, 1.0
      %vm624 = vcmp.ge.f32.partialorder %v577, 1.0
      %vm625 = vcmp.ge.f32.partialorder %v578, 1.0
      %vm626 = vcmp.ge.f32.partialorder %v579, 1.0
      %vm627 = vcmp.ge.f32.partialorder %v580, 1.0
      %vm628 = vcmp.ge.f32.partialorder %v581, 1.0
      %vm629 = vcmp.ge.f32.partialorder %v582, 1.0
      %vm630 = vcmp.ge.f32.partialorder %v583, 1.0
      %vm631 = vcmp.ge.f32.partialorder %v584, 1.0
      %vm632 = vcmp.ge.f32.partialorder %v585, 1.0
      %vm633 = vcmp.ge.f32.partialorder %v586, 1.0
      %vm634 = vcmp.ge.f32.partialorder %v587, 1.0
      %vm635 = vcmp.ge.f32.partialorder %v588, 1.0
      %vm636 = vcmp.ge.f32.partialorder %v589, 1.0
      %vm637 = vcmp.ge.f32.partialorder %v590, 1.0
      %vm638 = vcmp.ge.f32.partialorder %v591, 1.0
      %vm639 = vcmp.ge.f32.partialorder %v592, 1.0
      %vm640 = vcmp.ge.f32.partialorder %v593, 1.0
      %vm641 = vcmp.ge.f32.partialorder %v594, 1.0
      %vm642 = vcmp.ge.f32.partialorder %v595, 1.0
      %vm643 = vcmp.ge.f32.partialorder %v596, 1.0
      %vm644 = vcmp.ge.f32.partialorder %v597, 1.0
      %vm645 = vcmp.ge.f32.partialorder %v598, 1.0
      %vm646 = vcmp.ge.f32.partialorder %v599, 1.0
      %vm647 = vcmp.ge.f32.partialorder %v600, 1.0
      %vm648 = vcmp.ge.f32.partialorder %v601, 1.0
      %vm649 = vcmp.ge.f32.partialorder %v602, 1.0
      %vm650 = vcmp.ge.f32.partialorder %v603, 1.0
      %vm651 = vcmp.ge.f32.partialorder %v604, 1.0
      %vm652 = vcmp.ge.f32.partialorder %v605, 1.0
      %vm653 = vcmp.ge.f32.partialorder %v606, 1.0
      %vm654 = vcmp.ge.f32.partialorder %v607, 1.0
      %vm655 = vcmp.ge.f32.partialorder %v608, 1.0
      %vm656 = vcmp.ge.f32.partialorder %v609, 1.0
      %vm657 = vcmp.ge.f32.partialorder %v610, 1.0
      %vm658 = vcmp.ge.f32.partialorder %v611, 1.0
      %vm659 = vcmp.ge.f32.partialorder %v612, 1.0
      %vm660 = vcmp.ge.f32.partialorder %v613, 1.0
      %vm661 = vcmp.ge.f32.partialorder %v614, 1.0
      %vm662 = vcmp.ge.f32.partialorder %v615, 1.0
      %vm663 = vcmp.ge.f32.partialorder %v616, 1.0
      %vm664 = vcmp.ge.f32.partialorder %v617, 1.0
      %vm665 = vcmp.ge.f32.partialorder %v618, 1.0
      %vm666 = vcmp.ge.f32.partialorder %v619, 1.0
      %vm667 = vcmp.ge.f32.partialorder %v620, 1.0
      %vm668 = vcmp.ge.f32.partialorder %v621, 1.0
      %vm669 = vcmp.ge.f32.partialorder %v622, 1.0
      %vm670 = vcmp.le.f32.partialorder %v576, 16.0
      %vm671 = vcmp.le.f32.partialorder %v577, 16.0
      %vm672 = vcmp.le.f32.partialorder %v578, 16.0
      %vm673 = vcmp.le.f32.partialorder %v579, 16.0
      %vm674 = vcmp.le.f32.partialorder %v580, 16.0
      %vm675 = vcmp.le.f32.partialorder %v581, 16.0
      %vm676 = vcmp.le.f32.partialorder %v582, 16.0
      %vm677 = vcmp.le.f32.partialorder %v583, 16.0
      %vm678 = vcmp.le.f32.partialorder %v584, 16.0
      %vm679 = vcmp.le.f32.partialorder %v585, 16.0
      %vm680 = vcmp.le.f32.partialorder %v586, 16.0
      %vm681 = vcmp.le.f32.partialorder %v587, 16.0
      %vm682 = vcmp.le.f32.partialorder %v588, 16.0
      %vm683 = vcmp.le.f32.partialorder %v589, 16.0
      %vm684 = vcmp.le.f32.partialorder %v590, 16.0
      %vm685 = vcmp.le.f32.partialorder %v591, 16.0
      %vm686 = vcmp.le.f32.partialorder %v592, 16.0
      %vm687 = vcmp.le.f32.partialorder %v593, 16.0
      %vm688 = vcmp.le.f32.partialorder %v594, 16.0
      %vm689 = vcmp.le.f32.partialorder %v595, 16.0
      %vm690 = vcmp.le.f32.partialorder %v596, 16.0
      %vm691 = vcmp.le.f32.partialorder %v597, 16.0
      %vm692 = vcmp.le.f32.partialorder %v598, 16.0
      %vm693 = vcmp.le.f32.partialorder %v599, 16.0
      %vm694 = vcmp.le.f32.partialorder %v600, 16.0
      %vm695 = vcmp.le.f32.partialorder %v601, 16.0
      %vm696 = vcmp.le.f32.partialorder %v602, 16.0
      %vm697 = vcmp.le.f32.partialorder %v603, 16.0
      %vm698 = vcmp.le.f32.partialorder %v604, 16.0
      %vm699 = vcmp.le.f32.partialorder %v605, 16.0
      %vm700 = vcmp.le.f32.partialorder %v606, 16.0
      %vm701 = vcmp.le.f32.partialorder %v607, 16.0
      %vm702 = vcmp.le.f32.partialorder %v608, 16.0
      %vm703 = vcmp.le.f32.partialorder %v609, 16.0
      %vm704 = vcmp.le.f32.partialorder %v610, 16.0
      %vm705 = vcmp.le.f32.partialorder %v611, 16.0
      %vm706 = vcmp.le.f32.partialorder %v612, 16.0
      %vm707 = vcmp.le.f32.partialorder %v613, 16.0
      %vm708 = vcmp.le.f32.partialorder %v614, 16.0
      %vm709 = vcmp.le.f32.partialorder %v615, 16.0
      %vm710 = vcmp.le.f32.partialorder %v616, 16.0
      %vm711 = vcmp.le.f32.partialorder %v617, 16.0
      %vm712 = vcmp.le.f32.partialorder %v618, 16.0
      %vm713 = vcmp.le.f32.partialorder %v619, 16.0
      %vm714 = vcmp.le.f32.partialorder %v620, 16.0
      %vm715 = vcmp.le.f32.partialorder %v621, 16.0
      %vm716 = vcmp.le.f32.partialorder %v622, 16.0
      %vm717 = vmand %vm623, %vm670
      %vm718 = vmand %vm624, %vm671
      %vm719 = vmand %vm625, %vm672
      %vm720 = vmand %vm626, %vm673
      %vm721 = vmand %vm627, %vm674
      %vm722 = vmand %vm628, %vm675
      %vm723 = vmand %vm629, %vm676
      %vm724 = vmand %vm630, %vm677
      %vm725 = vmand %vm631, %vm678
      %vm726 = vmand %vm632, %vm679
      %vm727 = vmand %vm633, %vm680
      %vm728 = vmand %vm634, %vm681
      %vm729 = vmand %vm635, %vm682
      %vm730 = vmand %vm636, %vm683
      %vm731 = vmand %vm637, %vm684
      %vm732 = vmand %vm638, %vm685
      %vm733 = vmand %vm639, %vm686
      %vm734 = vmand %vm640, %vm687
      %vm735 = vmand %vm641, %vm688
      %vm736 = vmand %vm642, %vm689
      %vm737 = vmand %vm643, %vm690
      %vm738 = vmand %vm644, %vm691
      %vm739 = vmand %vm645, %vm692
      %vm740 = vmand %vm646, %vm693
      %vm741 = vmand %vm647, %vm694
      %vm742 = vmand %vm648, %vm695
      %vm743 = vmand %vm649, %vm696
      %vm744 = vmand %vm650, %vm697
      %vm745 = vmand %vm651, %vm698
      %vm746 = vmand %vm652, %vm699
      %vm747 = vmand %vm653, %vm700
      %vm748 = vmand %vm654, %vm701
      %vm749 = vmand %vm655, %vm702
      %vm750 = vmand %vm656, %vm703
      %vm751 = vmand %vm657, %vm704
      %vm752 = vmand %vm658, %vm705
      %vm753 = vmand %vm659, %vm706
      %vm754 = vmand %vm660, %vm707
      %vm755 = vmand %vm661, %vm708
      %vm756 = vmand %vm662, %vm709
      %vm757 = vmand %vm663, %vm710
      %vm758 = vmand %vm664, %vm711
      %vm759 = vmand %vm665, %vm712
      %vm760 = vmand %vm666, %vm713
      %vm761 = vmand %vm667, %vm714
      %vm762 = vmand %vm668, %vm715
      %vm763 = vmand %vm669, %vm716
      %vm764 = vcmp.lt.s32.totalorder %v200, 376
      %vm765 = vcmp.lt.s32.totalorder %v201, 376
      %vm766 = vcmp.lt.s32.totalorder %v202, 376
      %vm767 = vcmp.lt.s32.totalorder %v203, 376
      %vm768 = vcmp.lt.s32.totalorder %v204, 376
      %vm769 = vcmp.lt.s32.totalorder %v205, 376
      %vm770 = vcmp.lt.s32.totalorder %v206, 376
      %vm771 = vcmp.lt.s32.totalorder %v207, 376
      %vm772 = vcmp.lt.s32.totalorder %v208, 376
      %vm773 = vcmp.lt.s32.totalorder %v209, 376
      %vm774 = vcmp.lt.s32.totalorder %v210, 376
      %vm775 = vcmp.lt.s32.totalorder %v211, 376
      %vm776 = vcmp.lt.s32.totalorder %v212, 376
      %vm777 = vcmp.lt.s32.totalorder %v213, 376
      %vm778 = vcmp.lt.s32.totalorder %v214, 376
      %vm779 = vcmp.lt.s32.totalorder %v215, 376
      %vm780 = vcmp.lt.s32.totalorder %v216, 376
      %vm781 = vcmp.lt.s32.totalorder %v217, 376
      %vm782 = vcmp.lt.s32.totalorder %v218, 376
      %vm783 = vcmp.lt.s32.totalorder %v219, 376
      %vm784 = vcmp.lt.s32.totalorder %v220, 376
      %vm785 = vcmp.lt.s32.totalorder %v221, 376
      %vm786 = vcmp.lt.s32.totalorder %v222, 376
      %vm787 = vcmp.lt.s32.totalorder %v223, 376
      %vm788 = vcmp.lt.s32.totalorder %v224, 376
      %vm789 = vcmp.lt.s32.totalorder %v225, 376
      %vm790 = vcmp.lt.s32.totalorder %v226, 376
      %vm791 = vcmp.lt.s32.totalorder %v227, 376
      %vm792 = vcmp.lt.s32.totalorder %v228, 376
      %vm793 = vcmp.lt.s32.totalorder %v229, 376
      %vm794 = vcmp.lt.s32.totalorder %v230, 376
      %vm795 = vcmp.lt.s32.totalorder %v231, 376
      %vm796 = vcmp.lt.s32.totalorder %v232, 376
      %vm797 = vcmp.lt.s32.totalorder %v233, 376
      %vm798 = vcmp.lt.s32.totalorder %v234, 376
      %vm799 = vcmp.lt.s32.totalorder %v235, 376
      %vm800 = vcmp.lt.s32.totalorder %v236, 376
      %vm801 = vcmp.lt.s32.totalorder %v237, 376
      %vm802 = vcmp.lt.s32.totalorder %v238, 376
      %vm803 = vcmp.lt.s32.totalorder %v239, 376
      %vm804 = vcmp.lt.s32.totalorder %v240, 376
      %vm805 = vcmp.lt.s32.totalorder %v241, 376
      %vm806 = vcmp.lt.s32.totalorder %v242, 376
      %vm807 = vcmp.lt.s32.totalorder %v243, 376
      %vm808 = vcmp.lt.s32.totalorder %v244, 376
      %vm809 = vcmp.lt.s32.totalorder %v245, 376
      %vm810 = vcmp.lt.s32.totalorder %v246, 376
      %vm811 = vmand %vm717, %vm764
      %vm812 = vmand %vm718, %vm765
      %vm813 = vmand %vm719, %vm766
      %vm814 = vmand %vm720, %vm767
      %vm815 = vmand %vm721, %vm768
      %vm816 = vmand %vm722, %vm769
      %vm817 = vmand %vm723, %vm770
      %vm818 = vmand %vm724, %vm771
      %vm819 = vmand %vm725, %vm772
      %vm820 = vmand %vm726, %vm773
      %vm821 = vmand %vm727, %vm774
      %vm822 = vmand %vm728, %vm775
      %vm823 = vmand %vm729, %vm776
      %vm824 = vmand %vm730, %vm777
      %vm825 = vmand %vm731, %vm778
      %vm826 = vmand %vm732, %vm779
      %vm827 = vmand %vm733, %vm780
      %vm828 = vmand %vm734, %vm781
      %vm829 = vmand %vm735, %vm782
      %vm830 = vmand %vm736, %vm783
      %vm831 = vmand %vm737, %vm784
      %vm832 = vmand %vm738, %vm785
      %vm833 = vmand %vm739, %vm786
      %vm834 = vmand %vm740, %vm787
      %vm835 = vmand %vm741, %vm788
      %vm836 = vmand %vm742, %vm789
      %vm837 = vmand %vm743, %vm790
      %vm838 = vmand %vm744, %vm791
      %vm839 = vmand %vm745, %vm792
      %vm840 = vmand %vm746, %vm793
      %vm841 = vmand %vm747, %vm794
      %vm842 = vmand %vm748, %vm795
      %vm843 = vmand %vm749, %vm796
      %vm844 = vmand %vm750, %vm797
      %vm845 = vmand %vm751, %vm798
      %vm846 = vmand %vm752, %vm799
      %vm847 = vmand %vm753, %vm800
      %vm848 = vmand %vm754, %vm801
      %vm849 = vmand %vm755, %vm802
      %vm850 = vmand %vm756, %vm803
      %vm851 = vmand %vm757, %vm804
      %vm852 = vmand %vm758, %vm805
      %vm853 = vmand %vm759, %vm806
      %vm854 = vmand %vm760, %vm807
      %vm855 = vmand %vm761, %vm808
      %vm856 = vmand %vm762, %vm809
      %vm857 = vmand %vm763, %vm810
      %v858 = vld [vmem:[%s192] sm:$0xff]
      %v859 = vld [vmem:[%s192 + $0x8] sm:$0xff]
      %v860 = vld [vmem:[%s192 + $0x10] sm:$0xff]
      %v861 = vld [vmem:[%s192 + $0x18] sm:$0xff]
      %v862 = vld [vmem:[%s192 + $0x20] sm:$0xff]
      %v863 = vld [vmem:[%s192 + $0x28] sm:$0xff]
      %v864 = vld [vmem:[%s192 + $0x30] sm:$0xff]
      %v865 = vld [vmem:[%s192 + $0x38] sm:$0xff]
      %v866 = vld [vmem:[%s192 + $0x40] sm:$0xff]
      %v867 = vld [vmem:[%s192 + $0x48] sm:$0xff]
      %v868 = vld [vmem:[%s192 + $0x50] sm:$0xff]
      %v869 = vld [vmem:[%s192 + $0x58] sm:$0xff]
      %v870 = vld [vmem:[%s192 + $0x60] sm:$0xff]
      %v871 = vld [vmem:[%s192 + $0x68] sm:$0xff]
      %v872 = vld [vmem:[%s192 + $0x70] sm:$0xff]
      %v873 = vld [vmem:[%s192 + $0x78] sm:$0xff]
      %v874 = vld [vmem:[%s192 + $0x80] sm:$0xff]
      %v875 = vld [vmem:[%s192 + $0x88] sm:$0xff]
      %v876 = vld [vmem:[%s192 + $0x90] sm:$0xff]
      %v877 = vld [vmem:[%s192 + $0x98] sm:$0xff]
      %v878 = vld [vmem:[%s192 + $0xa0] sm:$0xff]
      %v879 = vld [vmem:[%s192 + $0xa8] sm:$0xff]
      %v880 = vld [vmem:[%s192 + $0xb0] sm:$0xff]
      %v881 = vld [vmem:[%s192 + $0xb8] sm:$0xff]
      %v882 = vld [vmem:[%s192 + $0xc0] sm:$0xff]
      %v883 = vld [vmem:[%s192 + $0xc8] sm:$0xff]
      %v884 = vld [vmem:[%s192 + $0xd0] sm:$0xff]
      %v885 = vld [vmem:[%s192 + $0xd8] sm:$0xff]
      %v886 = vld [vmem:[%s192 + $0xe0] sm:$0xff]
      %v887 = vld [vmem:[%s192 + $0xe8] sm:$0xff]
      %v888 = vld [vmem:[%s192 + $0xf0] sm:$0xff]
      %v889 = vld [vmem:[%s192 + $0xf8] sm:$0xff]
      %v890 = vld [vmem:[%s192 + $0x100] sm:$0xff]
      %v891 = vld [vmem:[%s192 + $0x108] sm:$0xff]
      %v892 = vld [vmem:[%s192 + $0x110] sm:$0xff]
      %v893 = vld [vmem:[%s192 + $0x118] sm:$0xff]
      %v894 = vld [vmem:[%s192 + $0x120] sm:$0xff]
      %v895 = vld [vmem:[%s192 + $0x128] sm:$0xff]
      %v896 = vld [vmem:[%s192 + $0x130] sm:$0xff]
      %v897 = vld [vmem:[%s192 + $0x138] sm:$0xff]
      %v898 = vld [vmem:[%s192 + $0x140] sm:$0xff]
      %v899 = vld [vmem:[%s192 + $0x148] sm:$0xff]
      %v900 = vld [vmem:[%s192 + $0x150] sm:$0xff]
      %v901 = vld [vmem:[%s192 + $0x158] sm:$0xff]
      %v902 = vld [vmem:[%s192 + $0x160] sm:$0xff]
      %v903 = vld [vmem:[%s192 + $0x168] sm:$0xff]
      %v904 = vld [vmem:[%s192 + $0x170] sm:$0xff]
      %v905 = vld [vmem:[%s192 + $0x178] sm:$0xff]
      %v906 = vld [vmem:[%s192 + $0x180] sm:$0xff]
      %v907 = vld [vmem:[%s192 + $0x188] sm:$0xff]
      %v908 = vld [vmem:[%s192 + $0x190] sm:$0xff]
      %v909 = vld [vmem:[%s192 + $0x198] sm:$0xff]
      %v910 = vld [vmem:[%s192 + $0x1a0] sm:$0xff]
      %v911 = vld [vmem:[%s192 + $0x1a8] sm:$0xff]
      %v912 = vpack.c.bf16 %v859, %v858
      %v913 = vpack.c.bf16 %v861, %v860
      %v914 = vpack.c.bf16 %v863, %v862
      %v915 = vpack.c.bf16 %v865, %v864
      %v916 = vpack.c.bf16 %v867, %v866
      %v917 = vpack.c.bf16 %v869, %v868
      %v918 = vpack.c.bf16 %v871, %v870
      %v919 = vpack.c.bf16 %v873, %v872
      %v920 = vpack.c.bf16 %v875, %v874
      %v921 = vpack.c.bf16 %v877, %v876
      %v922 = vpack.c.bf16 %v879, %v878
      %v923 = vpack.c.bf16 %v881, %v880
      %v924 = vpack.c.bf16 %v883, %v882
      %v925 = vpack.c.bf16 %v885, %v884
      %v926 = vpack.c.bf16 %v887, %v886
      %v927 = vpack.c.bf16 %v889, %v888
      %v928 = vpack.c.bf16 %v891, %v890
      %v929 = vpack.c.bf16 %v893, %v892
      %v930 = vpack.c.bf16 %v895, %v894
      %v931 = vpack.c.bf16 %v897, %v896
      %v932 = vpack.c.bf16 %v899, %v898
      %v933 = vpack.c.bf16 %v901, %v900
      %v934 = vpack.c.bf16 %v903, %v902
      %v935 = vpack.c.bf16 %v905, %v904
      %v936 = vpack.c.bf16 %v907, %v906
      %v937 = vpack.c.bf16 %v909, %v908
      %v938 = vpack.c.bf16 %v911, %v910
      %939 = vst [vmem:[#allocation2] sm:$0xff] %v912
      %940 = vst [vmem:[#allocation2 + $0x18] sm:$0xff] %v913
      %941 = vst [vmem:[#allocation2 + $0x30] sm:$0xff] %v914
      %942 = vst [vmem:[#allocation2 + $0x48] sm:$0xff] %v915
      %943 = vst [vmem:[#allocation2 + $0x60] sm:$0xff] %v916
      %944 = vst [vmem:[#allocation2 + $0x78] sm:$0xff] %v917
      %945 = vst [vmem:[#allocation2 + $0x90] sm:$0xff] %v918
      %946 = vst [vmem:[#allocation2 + $0xa8] sm:$0xff] %v919
      %947 = vst [vmem:[#allocation2 + $0xc0] sm:$0xff] %v920
      %948 = vst [vmem:[#allocation2 + $0xd8] sm:$0xff] %v921
      %949 = vst [vmem:[#allocation2 + $0xf0] sm:$0xff] %v922
      %950 = vst [vmem:[#allocation2 + $0x108] sm:$0xff] %v923
      %951 = vst [vmem:[#allocation2 + $0x120] sm:$0xff] %v924
      %952 = vst [vmem:[#allocation2 + $0x138] sm:$0xff] %v925
      %953 = vst [vmem:[#allocation2 + $0x150] sm:$0xff] %v926
      %954 = vst [vmem:[#allocation2 + $0x168] sm:$0xff] %v927
      %955 = vst [vmem:[#allocation2 + $0x180] sm:$0xff] %v928
      %956 = vst [vmem:[#allocation2 + $0x198] sm:$0xff] %v929
      %957 = vst [vmem:[#allocation2 + $0x1b0] sm:$0xff] %v930
      %958 = vst [vmem:[#allocation2 + $0x1c8] sm:$0xff] %v931
      %959 = vst [vmem:[#allocation2 + $0x1e0] sm:$0xff] %v932
      %960 = vst [vmem:[#allocation2 + $0x1f8] sm:$0xff] %v933
      %961 = vst [vmem:[#allocation2 + $0x210] sm:$0xff] %v934
      %962 = vst [vmem:[#allocation2 + $0x228] sm:$0xff] %v935
      %963 = vst [vmem:[#allocation2 + $0x240] sm:$0xff] %v936
      %964 = vst [vmem:[#allocation2 + $0x258] sm:$0xff] %v937
      %965 = vst [vmem:[#allocation2 + $0x270] sm:$0xff] %v938
      %v966 = vld [vmem:[%s192 + $0x1] sm:$0xff]
      %v967 = vld [vmem:[%s192 + $0x9] sm:$0xff]
      %v968 = vld [vmem:[%s192 + $0x11] sm:$0xff]
      %v969 = vld [vmem:[%s192 + $0x19] sm:$0xff]
      %v970 = vld [vmem:[%s192 + $0x21] sm:$0xff]
      %v971 = vld [vmem:[%s192 + $0x29] sm:$0xff]
      %v972 = vld [vmem:[%s192 + $0x31] sm:$0xff]
      %v973 = vld [vmem:[%s192 + $0x39] sm:$0xff]
      %v974 = vld [vmem:[%s192 + $0x41] sm:$0xff]
      %v975 = vld [vmem:[%s192 + $0x49] sm:$0xff]
      %v976 = vld [vmem:[%s192 + $0x51] sm:$0xff]
      %v977 = vld [vmem:[%s192 + $0x59] sm:$0xff]
      %v978 = vld [vmem:[%s192 + $0x61] sm:$0xff]
      %v979 = vld [vmem:[%s192 + $0x69] sm:$0xff]
      %v980 = vld [vmem:[%s192 + $0x71] sm:$0xff]
      %v981 = vld [vmem:[%s192 + $0x79] sm:$0xff]
      %v982 = vld [vmem:[%s192 + $0x81] sm:$0xff]
      %v983 = vld [vmem:[%s192 + $0x89] sm:$0xff]
      %v984 = vld [vmem:[%s192 + $0x91] sm:$0xff]
      %v985 = vld [vmem:[%s192 + $0x99] sm:$0xff]
      %v986 = vld [vmem:[%s192 + $0xa1] sm:$0xff]
      %v987 = vld [vmem:[%s192 + $0xa9] sm:$0xff]
      %v988 = vld [vmem:[%s192 + $0xb1] sm:$0xff]
      %v989 = vld [vmem:[%s192 + $0xb9] sm:$0xff]
      %v990 = vld [vmem:[%s192 + $0xc1] sm:$0xff]
      %v991 = vld [vmem:[%s192 + $0xc9] sm:$0xff]
      %v992 = vld [vmem:[%s192 + $0xd1] sm:$0xff]
      %v993 = vld [vmem:[%s192 + $0xd9] sm:$0xff]
      %v994 = vld [vmem:[%s192 + $0xe1] sm:$0xff]
      %v995 = vld [vmem:[%s192 + $0xe9] sm:$0xff]
      %v996 = vld [vmem:[%s192 + $0xf1] sm:$0xff]
      %v997 = vld [vmem:[%s192 + $0xf9] sm:$0xff]
      %v998 = vld [vmem:[%s192 + $0x101] sm:$0xff]
      %v999 = vld [vmem:[%s192 + $0x109] sm:$0xff]
      %v1000 = vld [vmem:[%s192 + $0x111] sm:$0xff]
      %v1001 = vld [vmem:[%s192 + $0x119] sm:$0xff]
      %v1002 = vld [vmem:[%s192 + $0x121] sm:$0xff]
      %v1003 = vld [vmem:[%s192 + $0x129] sm:$0xff]
      %v1004 = vld [vmem:[%s192 + $0x131] sm:$0xff]
      %v1005 = vld [vmem:[%s192 + $0x139] sm:$0xff]
      %v1006 = vld [vmem:[%s192 + $0x141] sm:$0xff]
      %v1007 = vld [vmem:[%s192 + $0x149] sm:$0xff]
      %v1008 = vld [vmem:[%s192 + $0x151] sm:$0xff]
      %v1009 = vld [vmem:[%s192 + $0x159] sm:$0xff]
      %v1010 = vld [vmem:[%s192 + $0x161] sm:$0xff]
      %v1011 = vld [vmem:[%s192 + $0x169] sm:$0xff]
      %v1012 = vld [vmem:[%s192 + $0x171] sm:$0xff]
      %v1013 = vld [vmem:[%s192 + $0x179] sm:$0xff]
      %v1014 = vld [vmem:[%s192 + $0x181] sm:$0xff]
      %v1015 = vld [vmem:[%s192 + $0x189] sm:$0xff]
      %v1016 = vld [vmem:[%s192 + $0x191] sm:$0xff]
      %v1017 = vld [vmem:[%s192 + $0x199] sm:$0xff]
      %v1018 = vld [vmem:[%s192 + $0x1a1] sm:$0xff]
      %v1019 = vld [vmem:[%s192 + $0x1a9] sm:$0xff]
      %v1020 = vpack.c.bf16 %v967, %v966
      %v1021 = vpack.c.bf16 %v969, %v968
      %v1022 = vpack.c.bf16 %v971, %v970
      %v1023 = vpack.c.bf16 %v973, %v972
      %v1024 = vpack.c.bf16 %v975, %v974
      %v1025 = vpack.c.bf16 %v977, %v976
      %v1026 = vpack.c.bf16 %v979, %v978
      %v1027 = vpack.c.bf16 %v981, %v980
      %v1028 = vpack.c.bf16 %v983, %v982
      %v1029 = vpack.c.bf16 %v985, %v984
      %v1030 = vpack.c.bf16 %v987, %v986
      %v1031 = vpack.c.bf16 %v989, %v988
      %v1032 = vpack.c.bf16 %v991, %v990
      %v1033 = vpack.c.bf16 %v993, %v992
      %v1034 = vpack.c.bf16 %v995, %v994
      %v1035 = vpack.c.bf16 %v997, %v996
      %v1036 = vpack.c.bf16 %v999, %v998
      %v1037 = vpack.c.bf16 %v1001, %v1000
      %v1038 = vpack.c.bf16 %v1003, %v1002
      %v1039 = vpack.c.bf16 %v1005, %v1004
      %v1040 = vpack.c.bf16 %v1007, %v1006
      %v1041 = vpack.c.bf16 %v1009, %v1008
      %v1042 = vpack.c.bf16 %v1011, %v1010
      %v1043 = vpack.c.bf16 %v1013, %v1012
      %v1044 = vpack.c.bf16 %v1015, %v1014
      %v1045 = vpack.c.bf16 %v1017, %v1016
      %v1046 = vpack.c.bf16 %v1019, %v1018
      %1047 = vst [vmem:[#allocation2 + $0x8] sm:$0xff] %v1020
      %1048 = vst [vmem:[#allocation2 + $0x20] sm:$0xff] %v1021
      %1049 = vst [vmem:[#allocation2 + $0x38] sm:$0xff] %v1022
      %1050 = vst [vmem:[#allocation2 + $0x50] sm:$0xff] %v1023
      %1051 = vst [vmem:[#allocation2 + $0x68] sm:$0xff] %v1024
      %1052 = vst [vmem:[#allocation2 + $0x80] sm:$0xff] %v1025
      %1053 = vst [vmem:[#allocation2 + $0x98] sm:$0xff] %v1026
      %1054 = vst [vmem:[#allocation2 + $0xb0] sm:$0xff] %v1027
      %1055 = vst [vmem:[#allocation2 + $0xc8] sm:$0xff] %v1028
      %1056 = vst [vmem:[#allocation2 + $0xe0] sm:$0xff] %v1029
      %1057 = vst [vmem:[#allocation2 + $0xf8] sm:$0xff] %v1030
      %1058 = vst [vmem:[#allocation2 + $0x110] sm:$0xff] %v1031
      %1059 = vst [vmem:[#allocation2 + $0x128] sm:$0xff] %v1032
      %1060 = vst [vmem:[#allocation2 + $0x140] sm:$0xff] %v1033
      %1061 = vst [vmem:[#allocation2 + $0x158] sm:$0xff] %v1034
      %1062 = vst [vmem:[#allocation2 + $0x170] sm:$0xff] %v1035
      %1063 = vst [vmem:[#allocation2 + $0x188] sm:$0xff] %v1036
      %1064 = vst [vmem:[#allocation2 + $0x1a0] sm:$0xff] %v1037
      %1065 = vst [vmem:[#allocation2 + $0x1b8] sm:$0xff] %v1038
      %1066 = vst [vmem:[#allocation2 + $0x1d0] sm:$0xff] %v1039
      %1067 = vst [vmem:[#allocation2 + $0x1e8] sm:$0xff] %v1040
      %1068 = vst [vmem:[#allocation2 + $0x200] sm:$0xff] %v1041
      %1069 = vst [vmem:[#allocation2 + $0x218] sm:$0xff] %v1042
      %1070 = vst [vmem:[#allocation2 + $0x230] sm:$0xff] %v1043
      %1071 = vst [vmem:[#allocation2 + $0x248] sm:$0xff] %v1044
      %1072 = vst [vmem:[#allocation2 + $0x260] sm:$0xff] %v1045
      %1073 = vst [vmem:[#allocation2 + $0x278] sm:$0xff] %v1046
      %v1074 = vld [vmem:[%s192 + $0x2] sm:$0xff]
      %v1075 = vld [vmem:[%s192 + $0xa] sm:$0xff]
      %v1076 = vld [vmem:[%s192 + $0x12] sm:$0xff]
      %v1077 = vld [vmem:[%s192 + $0x1a] sm:$0xff]
      %v1078 = vld [vmem:[%s192 + $0x22] sm:$0xff]
      %v1079 = vld [vmem:[%s192 + $0x2a] sm:$0xff]
      %v1080 = vld [vmem:[%s192 + $0x32] sm:$0xff]
      %v1081 = vld [vmem:[%s192 + $0x3a] sm:$0xff]
      %v1082 = vld [vmem:[%s192 + $0x42] sm:$0xff]
      %v1083 = vld [vmem:[%s192 + $0x4a] sm:$0xff]
      %v1084 = vld [vmem:[%s192 + $0x52] sm:$0xff]
      %v1085 = vld [vmem:[%s192 + $0x5a] sm:$0xff]
      %v1086 = vld [vmem:[%s192 + $0x62] sm:$0xff]
      %v1087 = vld [vmem:[%s192 + $0x6a] sm:$0xff]
      %v1088 = vld [vmem:[%s192 + $0x72] sm:$0xff]
      %v1089 = vld [vmem:[%s192 + $0x7a] sm:$0xff]
      %v1090 = vld [vmem:[%s192 + $0x82] sm:$0xff]
      %v1091 = vld [vmem:[%s192 + $0x8a] sm:$0xff]
      %v1092 = vld [vmem:[%s192 + $0x92] sm:$0xff]
      %v1093 = vld [vmem:[%s192 + $0x9a] sm:$0xff]
      %v1094 = vld [vmem:[%s192 + $0xa2] sm:$0xff]
      %v1095 = vld [vmem:[%s192 + $0xaa] sm:$0xff]
      %v1096 = vld [vmem:[%s192 + $0xb2] sm:$0xff]
      %v1097 = vld [vmem:[%s192 + $0xba] sm:$0xff]
      %v1098 = vld [vmem:[%s192 + $0xc2] sm:$0xff]
      %v1099 = vld [vmem:[%s192 + $0xca] sm:$0xff]
      %v1100 = vld [vmem:[%s192 + $0xd2] sm:$0xff]
      %v1101 = vld [vmem:[%s192 + $0xda] sm:$0xff]
      %v1102 = vld [vmem:[%s192 + $0xe2] sm:$0xff]
      %v1103 = vld [vmem:[%s192 + $0xea] sm:$0xff]
      %v1104 = vld [vmem:[%s192 + $0xf2] sm:$0xff]
      %v1105 = vld [vmem:[%s192 + $0xfa] sm:$0xff]
      %v1106 = vld [vmem:[%s192 + $0x102] sm:$0xff]
      %v1107 = vld [vmem:[%s192 + $0x10a] sm:$0xff]
      %v1108 = vld [vmem:[%s192 + $0x112] sm:$0xff]
      %v1109 = vld [vmem:[%s192 + $0x11a] sm:$0xff]
      %v1110 = vld [vmem:[%s192 + $0x122] sm:$0xff]
      %v1111 = vld [vmem:[%s192 + $0x12a] sm:$0xff]
      %v1112 = vld [vmem:[%s192 + $0x132] sm:$0xff]
      %v1113 = vld [vmem:[%s192 + $0x13a] sm:$0xff]
      %v1114 = vld [vmem:[%s192 + $0x142] sm:$0xff]
      %v1115 = vld [vmem:[%s192 + $0x14a] sm:$0xff]
      %v1116 = vld [vmem:[%s192 + $0x152] sm:$0xff]
      %v1117 = vld [vmem:[%s192 + $0x15a] sm:$0xff]
      %v1118 = vld [vmem:[%s192 + $0x162] sm:$0xff]
      %v1119 = vld [vmem:[%s192 + $0x16a] sm:$0xff]
      %v1120 = vld [vmem:[%s192 + $0x172] sm:$0xff]
      %v1121 = vld [vmem:[%s192 + $0x17a] sm:$0xff]
      %v1122 = vld [vmem:[%s192 + $0x182] sm:$0xff]
      %v1123 = vld [vmem:[%s192 + $0x18a] sm:$0xff]
      %v1124 = vld [vmem:[%s192 + $0x192] sm:$0xff]
      %v1125 = vld [vmem:[%s192 + $0x19a] sm:$0xff]
      %v1126 = vld [vmem:[%s192 + $0x1a2] sm:$0xff]
      %v1127 = vld [vmem:[%s192 + $0x1aa] sm:$0xff]
      %v1128 = vpack.c.bf16 %v1075, %v1074
      %v1129 = vpack.c.bf16 %v1077, %v1076
      %v1130 = vpack.c.bf16 %v1079, %v1078
      %v1131 = vpack.c.bf16 %v1081, %v1080
      %v1132 = vpack.c.bf16 %v1083, %v1082
      %v1133 = vpack.c.bf16 %v1085, %v1084
      %v1134 = vpack.c.bf16 %v1087, %v1086
      %v1135 = vpack.c.bf16 %v1089, %v1088
      %v1136 = vpack.c.bf16 %v1091, %v1090
      %v1137 = vpack.c.bf16 %v1093, %v1092
      %v1138 = vpack.c.bf16 %v1095, %v1094
      %v1139 = vpack.c.bf16 %v1097, %v1096
      %v1140 = vpack.c.bf16 %v1099, %v1098
      %v1141 = vpack.c.bf16 %v1101, %v1100
      %v1142 = vpack.c.bf16 %v1103, %v1102
      %v1143 = vpack.c.bf16 %v1105, %v1104
      %v1144 = vpack.c.bf16 %v1107, %v1106
      %v1145 = vpack.c.bf16 %v1109, %v1108
      %v1146 = vpack.c.bf16 %v1111, %v1110
      %v1147 = vpack.c.bf16 %v1113, %v1112
      %v1148 = vpack.c.bf16 %v1115, %v1114
      %v1149 = vpack.c.bf16 %v1117, %v1116
      %v1150 = vpack.c.bf16 %v1119, %v1118
      %v1151 = vpack.c.bf16 %v1121, %v1120
      %v1152 = vpack.c.bf16 %v1123, %v1122
      %v1153 = vpack.c.bf16 %v1125, %v1124
      %v1154 = vpack.c.bf16 %v1127, %v1126
      %1155 = vst [vmem:[#allocation2 + $0x10] sm:$0xff] %v1128
      %1156 = vst [vmem:[#allocation2 + $0x28] sm:$0xff] %v1129
      %1157 = vst [vmem:[#allocation2 + $0x40] sm:$0xff] %v1130
      %1158 = vst [vmem:[#allocation2 + $0x58] sm:$0xff] %v1131
      %1159 = vst [vmem:[#allocation2 + $0x70] sm:$0xff] %v1132
      %1160 = vst [vmem:[#allocation2 + $0x88] sm:$0xff] %v1133
      %1161 = vst [vmem:[#allocation2 + $0xa0] sm:$0xff] %v1134
      %1162 = vst [vmem:[#allocation2 + $0xb8] sm:$0xff] %v1135
      %1163 = vst [vmem:[#allocation2 + $0xd0] sm:$0xff] %v1136
      %1164 = vst [vmem:[#allocation2 + $0xe8] sm:$0xff] %v1137
      %1165 = vst [vmem:[#allocation2 + $0x100] sm:$0xff] %v1138
      %1166 = vst [vmem:[#allocation2 + $0x118] sm:$0xff] %v1139
      %1167 = vst [vmem:[#allocation2 + $0x130] sm:$0xff] %v1140
      %1168 = vst [vmem:[#allocation2 + $0x148] sm:$0xff] %v1141
      %1169 = vst [vmem:[#allocation2 + $0x160] sm:$0xff] %v1142
      %1170 = vst [vmem:[#allocation2 + $0x178] sm:$0xff] %v1143
      %1171 = vst [vmem:[#allocation2 + $0x190] sm:$0xff] %v1144
      %1172 = vst [vmem:[#allocation2 + $0x1a8] sm:$0xff] %v1145
      %1173 = vst [vmem:[#allocation2 + $0x1c0] sm:$0xff] %v1146
      %1174 = vst [vmem:[#allocation2 + $0x1d8] sm:$0xff] %v1147
      %1175 = vst [vmem:[#allocation2 + $0x1f0] sm:$0xff] %v1148
      %1176 = vst [vmem:[#allocation2 + $0x208] sm:$0xff] %v1149
      %1177 = vst [vmem:[#allocation2 + $0x220] sm:$0xff] %v1150
      %1178 = vst [vmem:[#allocation2 + $0x238] sm:$0xff] %v1151
      %1179 = vst [vmem:[#allocation2 + $0x250] sm:$0xff] %v1152
      %1180 = vst [vmem:[#allocation2 + $0x268] sm:$0xff] %v1153
      %1181 = vst [vmem:[#allocation2 + $0x280] sm:$0xff] %v1154
      %v1182 = vld [vmem:[#allocation2] sm:$0xf0]
      %v1183 = vld [vmem:[#allocation2 + $0x8] sm:$0xf0]
      %v1184 = vld [vmem:[#allocation2 + $0x10] sm:$0xf0]
      %v1185 = vld [vmem:[#allocation2 + $0x18] sm:$0xff]
      %v1186 = vld [vmem:[#allocation2 + $0x20] sm:$0xff]
      %v1187 = vld [vmem:[#allocation2 + $0x28] sm:$0xff]
      %v1188 = vld [vmem:[#allocation2 + $0x30] sm:$0xff]
      %v1189 = vld [vmem:[#allocation2 + $0x38] sm:$0xff]
      %v1190 = vld [vmem:[#allocation2 + $0x40] sm:$0xff]
      %v1191 = vld [vmem:[#allocation2 + $0x48] sm:$0xff]
      %v1192 = vld [vmem:[#allocation2 + $0x50] sm:$0xff]
      %v1193 = vld [vmem:[#allocation2 + $0x58] sm:$0xff]
      %v1194 = vld [vmem:[#allocation2 + $0x60] sm:$0xff]
      %v1195 = vld [vmem:[#allocation2 + $0x68] sm:$0xff]
      %v1196 = vld [vmem:[#allocation2 + $0x70] sm:$0xff]
      %v1197 = vld [vmem:[#allocation2 + $0x78] sm:$0xff]
      %v1198 = vld [vmem:[#allocation2 + $0x80] sm:$0xff]
      %v1199 = vld [vmem:[#allocation2 + $0x88] sm:$0xff]
      %v1200 = vld [vmem:[#allocation2 + $0x90] sm:$0xff]
      %v1201 = vld [vmem:[#allocation2 + $0x98] sm:$0xff]
      %v1202 = vld [vmem:[#allocation2 + $0xa0] sm:$0xff]
      %v1203 = vld [vmem:[#allocation2 + $0xa8] sm:$0xff]
      %v1204 = vld [vmem:[#allocation2 + $0xb0] sm:$0xff]
      %v1205 = vld [vmem:[#allocation2 + $0xb8] sm:$0xff]
      %v1206 = vld [vmem:[#allocation2 + $0xc0] sm:$0xff]
      %v1207 = vld [vmem:[#allocation2 + $0xc8] sm:$0xff]
      %v1208 = vld [vmem:[#allocation2 + $0xd0] sm:$0xff]
      %v1209 = vld [vmem:[#allocation2 + $0xd8] sm:$0xff]
      %v1210 = vld [vmem:[#allocation2 + $0xe0] sm:$0xff]
      %v1211 = vld [vmem:[#allocation2 + $0xe8] sm:$0xff]
      %v1212 = vld [vmem:[#allocation2 + $0xf0] sm:$0xff]
      %v1213 = vld [vmem:[#allocation2 + $0xf8] sm:$0xff]
      %v1214 = vld [vmem:[#allocation2 + $0x100] sm:$0xff]
      %v1215 = vld [vmem:[#allocation2 + $0x108] sm:$0xff]
      %v1216 = vld [vmem:[#allocation2 + $0x110] sm:$0xff]
      %v1217 = vld [vmem:[#allocation2 + $0x118] sm:$0xff]
      %v1218 = vld [vmem:[#allocation2 + $0x120] sm:$0xff]
      %v1219 = vld [vmem:[#allocation2 + $0x128] sm:$0xff]
      %v1220 = vld [vmem:[#allocation2 + $0x130] sm:$0xff]
      %v1221 = vld [vmem:[#allocation2 + $0x138] sm:$0xff]
      %v1222 = vld [vmem:[#allocation2 + $0x140] sm:$0xff]
      %v1223 = vld [vmem:[#allocation2 + $0x148] sm:$0xff]
      %v1224 = vld [vmem:[#allocation2 + $0x150] sm:$0xff]
      %v1225 = vld [vmem:[#allocation2 + $0x158] sm:$0xff]
      %v1226 = vld [vmem:[#allocation2 + $0x160] sm:$0xff]
      %v1227 = vld [vmem:[#allocation2 + $0x168] sm:$0xff]
      %v1228 = vld [vmem:[#allocation2 + $0x170] sm:$0xff]
      %v1229 = vld [vmem:[#allocation2 + $0x178] sm:$0xff]
      %v1230 = vld [vmem:[#allocation2 + $0x180] sm:$0xff]
      %v1231 = vld [vmem:[#allocation2 + $0x188] sm:$0xff]
      %v1232 = vld [vmem:[#allocation2 + $0x190] sm:$0xff]
      %v1233 = vld [vmem:[#allocation2 + $0x198] sm:$0xff]
      %v1234 = vld [vmem:[#allocation2 + $0x1a0] sm:$0xff]
      %v1235 = vld [vmem:[#allocation2 + $0x1a8] sm:$0xff]
      %v1236 = vld [vmem:[#allocation2 + $0x1b0] sm:$0xff]
      %v1237 = vld [vmem:[#allocation2 + $0x1b8] sm:$0xff]
      %v1238 = vld [vmem:[#allocation2 + $0x1c0] sm:$0xff]
      %v1239 = vld [vmem:[#allocation2 + $0x1c8] sm:$0xff]
      %v1240 = vld [vmem:[#allocation2 + $0x1d0] sm:$0xff]
      %v1241 = vld [vmem:[#allocation2 + $0x1d8] sm:$0xff]
      %v1242 = vld [vmem:[#allocation2 + $0x1e0] sm:$0xff]
      %v1243 = vld [vmem:[#allocation2 + $0x1e8] sm:$0xff]
      %v1244 = vld [vmem:[#allocation2 + $0x1f0] sm:$0xff]
      %v1245 = vld [vmem:[#allocation2 + $0x1f8] sm:$0xff]
      %v1246 = vld [vmem:[#allocation2 + $0x200] sm:$0xff]
      %v1247 = vld [vmem:[#allocation2 + $0x208] sm:$0xff]
      %v1248 = vld [vmem:[#allocation2 + $0x210] sm:$0xff]
      %v1249 = vld [vmem:[#allocation2 + $0x218] sm:$0xff]
      %v1250 = vld [vmem:[#allocation2 + $0x220] sm:$0xff]
      %v1251 = vld [vmem:[#allocation2 + $0x228] sm:$0xff]
      %v1252 = vld [vmem:[#allocation2 + $0x230] sm:$0xff]
      %v1253 = vld [vmem:[#allocation2 + $0x238] sm:$0xff]
      %v1254 = vld [vmem:[%s1] sm:$0xf]
      %v1255 = vld [vmem:[%s1 + $0x4] sm:$0xf]
      %v1256 = vld [vmem:[%s1 + $0x8] sm:$0xf]
      %v1257 = vld [vmem:[%s1 + $0xc] sm:$0xf]
      %v1258 = vld [vmem:[%s1 + $0x10] sm:$0xf]
      %v1259 = vld [vmem:[%s1 + $0x14] sm:$0xf]
      %v1260 = vld [vmem:[%s1 + $0x18] sm:$0xf]
      %v1261 = vld [vmem:[%s1 + $0x1c] sm:$0xf]
      %v1262 = vld [vmem:[%s1 + $0x20] sm:$0xf]
      %v1263 = vld [vmem:[%s1 + $0x24] sm:$0xf]
      %v1264 = vld [vmem:[%s1 + $0x28] sm:$0xf]
      %v1265 = vld [vmem:[%s1 + $0x2c] sm:$0xf]
      %v1266 = vld [vmem:[%s1 + $0x30] sm:$0xf]
      %v1267 = vld [vmem:[%s1 + $0x34] sm:$0xf]
      %v1268 = vld [vmem:[%s1 + $0x38] sm:$0xf]
      %v1269 = vld [vmem:[%s1 + $0x3c] sm:$0xf]
      %v1270 = vld [vmem:[%s1 + $0x40] sm:$0xf]
      %v1271 = vld [vmem:[%s1 + $0x44] sm:$0xf]
      %v1272 = vld [vmem:[%s1 + $0x48] sm:$0xf]
      %v1273 = vld [vmem:[%s1 + $0x4c] sm:$0xf]
      %v1274 = vld [vmem:[%s1 + $0x50] sm:$0xf]
      %v1275 = vld [vmem:[%s1 + $0x54] sm:$0xf]
      %v1276 = vld [vmem:[%s1 + $0x58] sm:$0xf]
      %v1277 = vld [vmem:[%s1 + $0x5c] sm:$0xf]
      %v1278 = vld [vmem:[%s1 + $0x60] sm:$0xf]
      %v1279 = vld [vmem:[%s1 + $0x64] sm:$0xf]
      %v1280 = vld [vmem:[%s1 + $0x68] sm:$0xf]
      %v1281 = vld [vmem:[%s1 + $0x6c] sm:$0xf]
      %v1282 = vld [vmem:[%s1 + $0x70] sm:$0xf]
      %v1283 = vld [vmem:[%s1 + $0x74] sm:$0xf]
      %v1284 = vld [vmem:[%s1 + $0x78] sm:$0xf]
      %v1285 = vld [vmem:[%s1 + $0x7c] sm:$0xf]
      %v1286 = vld [vmem:[%s1 + $0x80] sm:$0xf]
      %v1287 = vld [vmem:[%s1 + $0x84] sm:$0xf]
      %v1288 = vld [vmem:[%s1 + $0x88] sm:$0xf]
      %v1289 = vld [vmem:[%s1 + $0x8c] sm:$0xf]
      %v1290 = vld [vmem:[%s1 + $0x90] sm:$0xf]
      %v1291 = vld [vmem:[%s1 + $0x94] sm:$0xf]
      %v1292 = vld [vmem:[%s1 + $0x98] sm:$0xf]
      %v1293 = vld [vmem:[%s1 + $0x9c] sm:$0xf]
      %v1294 = vld [vmem:[%s1 + $0xa0] sm:$0xf]
      %v1295 = vld [vmem:[%s1 + $0xa4] sm:$0xf]
      %v1296 = vld [vmem:[%s1 + $0xa8] sm:$0xf]
      %v1297 = vld [vmem:[%s1 + $0xac] sm:$0xf]
      %v1298 = vld [vmem:[%s1 + $0xb0] sm:$0xf]
      %v1299 = vld [vmem:[%s1 + $0xb4] sm:$0xf]
      %v1300 = vld [vmem:[%s1 + $0xb8] sm:$0xf]
      %v1301 = vld [vmem:[%s1 + $0xbc] sm:$0xf]
      %v1302 = vld [vmem:[#allocation2 + $0x240] sm:$0xff]
      %v1303 = vld [vmem:[#allocation2 + $0x248] sm:$0xff]
      %v1304 = vld [vmem:[#allocation2 + $0x250] sm:$0xff]
      %v1305 = vld [vmem:[#allocation2 + $0x258] sm:$0xf]
      %v1306 = vld [vmem:[#allocation2 + $0x260] sm:$0xf]
      %v1307 = vld [vmem:[#allocation2 + $0x268] sm:$0xf]
      %s1308 = scalar_lea.vmem %s1, 192
      %v1309 = vld [vmem:[%s1308] sm:$0xf]
      %v1310 = vld [vmem:[%s1308 + $0x4] sm:$0xf]
      %v1311 = vld [vmem:[%s1308 + $0x8] sm:$0xf]
      %v1312 = vld [vmem:[%s1308 + $0xc] sm:$0xf]
      %v1313 = vld [vmem:[%s1308 + $0x10] sm:$0xf]
      %v1314 = vld [vmem:[%s1308 + $0x14] sm:$0xf]
      %v1315 = vld [vmem:[%s1308 + $0x18] sm:$0xf]
      %v1316 = vld [vmem:[%s1308 + $0x1c] sm:$0xf]
      %v1317 = vld [vmem:[%s1308 + $0x20] sm:$0xf]
      %v1318 = vld [vmem:[%s1308 + $0x24] sm:$0xf]
      %v1319 = vld [vmem:[%s1308 + $0x28] sm:$0xf]
      %v1320 = vld [vmem:[%s1308 + $0x2c] sm:$0xf]
      %v1321 = vld [vmem:[%s1308 + $0x30] sm:$0xf]
      %v1322 = vld [vmem:[%s1308 + $0x34] sm:$0xf]
      %v1323 = vld [vmem:[%s1308 + $0x38] sm:$0xf]
      %v1324 = vld [vmem:[%s1308 + $0x3c] sm:$0xf]
      %v1325 = vld [vmem:[%s1308 + $0x40] sm:$0xf]
      %v1326 = vld [vmem:[%s1308 + $0x44] sm:$0xf]
      %v1327 = vld [vmem:[%s1308 + $0x48] sm:$0xf]
      %v1328 = vld [vmem:[%s1308 + $0x4c] sm:$0xf]
      %v1329 = vld [vmem:[%s1308 + $0x50] sm:$0xf]
      %v1330 = vld [vmem:[%s1308 + $0x54] sm:$0xf]
      %v1331 = vld [vmem:[%s1308 + $0x58] sm:$0xf]
      %v1332 = vld [vmem:[%s1308 + $0x5c] sm:$0xf]
      %v1333 = vld [vmem:[%s1308 + $0x60] sm:$0xf]
      %v1334 = vld [vmem:[%s1308 + $0x64] sm:$0xf]
      %v1335 = vld [vmem:[%s1308 + $0x68] sm:$0xf]
      %v1336 = vld [vmem:[%s1308 + $0x6c] sm:$0xf]
      %v1337 = vld [vmem:[%s1308 + $0x70] sm:$0xf]
      %v1338 = vld [vmem:[%s1308 + $0x74] sm:$0xf]
      %v1339 = vld [vmem:[%s1308 + $0x78] sm:$0xf]
      %v1340 = vld [vmem:[%s1308 + $0x7c] sm:$0xf]
      %v1341 = vld [vmem:[%s1308 + $0x80] sm:$0xf]
      %v1342 = vld [vmem:[%s1308 + $0x84] sm:$0xf]
      %v1343 = vld [vmem:[%s1308 + $0x88] sm:$0xf]
      %v1344 = vld [vmem:[%s1308 + $0x8c] sm:$0xf]
      %v1345 = vld [vmem:[%s1308 + $0x90] sm:$0xf]
      %v1346 = vld [vmem:[%s1308 + $0x94] sm:$0xf]
      %v1347 = vld [vmem:[%s1308 + $0x98] sm:$0xf]
      %v1348 = vld [vmem:[%s1308 + $0x9c] sm:$0xf]
      %v1349 = vld [vmem:[%s1308 + $0xa0] sm:$0xf]
      %v1350 = vld [vmem:[%s1308 + $0xa4] sm:$0xf]
      %v1351 = vld [vmem:[%s1308 + $0xa8] sm:$0xf]
      %v1352 = vld [vmem:[%s1308 + $0xac] sm:$0xf]
      %v1353 = vld [vmem:[%s1308 + $0xb0] sm:$0xf]
      %v1354 = vld [vmem:[%s1308 + $0xb4] sm:$0xf]
      %v1355 = vld [vmem:[%s1308 + $0xb8] sm:$0xf]
      %v1356 = vld [vmem:[%s1308 + $0xbc] sm:$0xf]
      %v1405 = vunpack.c.l.b16 %v1309
      %v1406 = vunpack.c.l.b16 %v1310
      %v1407 = vunpack.c.l.b16 %v1311
      %v1408 = vunpack.c.l.b16 %v1312
      %v1409 = vunpack.c.l.b16 %v1313
      %v1410 = vunpack.c.l.b16 %v1314
      %v1411 = vunpack.c.l.b16 %v1315
      %v1412 = vunpack.c.l.b16 %v1316
      %v1413 = vunpack.c.l.b16 %v1317
      %v1414 = vunpack.c.l.b16 %v1318
      %v1415 = vunpack.c.l.b16 %v1319
      %v1416 = vunpack.c.l.b16 %v1320
      %v1417 = vunpack.c.l.b16 %v1321
      %v1418 = vunpack.c.l.b16 %v1322
      %v1419 = vunpack.c.l.b16 %v1323
      %v1420 = vunpack.c.l.b16 %v1324
      %v1421 = vunpack.c.l.b16 %v1325
      %v1422 = vunpack.c.l.b16 %v1326
      %v1423 = vunpack.c.l.b16 %v1327
      %v1424 = vunpack.c.l.b16 %v1328
      %v1425 = vunpack.c.l.b16 %v1329
      %v1426 = vunpack.c.l.b16 %v1330
      %v1427 = vunpack.c.l.b16 %v1331
      %v1428 = vunpack.c.l.b16 %v1332
      %v1429 = vunpack.c.l.b16 %v1333
      %v1430 = vunpack.c.l.b16 %v1334
      %v1431 = vunpack.c.l.b16 %v1335
      %v1432 = vunpack.c.l.b16 %v1336
      %v1433 = vunpack.c.l.b16 %v1337
      %v1434 = vunpack.c.l.b16 %v1338
      %v1435 = vunpack.c.l.b16 %v1339
      %v1436 = vunpack.c.l.b16 %v1340
      %v1437 = vunpack.c.l.b16 %v1341
      %v1438 = vunpack.c.l.b16 %v1342
      %v1439 = vunpack.c.l.b16 %v1343
      %v1440 = vunpack.c.l.b16 %v1344
      %v1441 = vunpack.c.l.b16 %v1345
      %v1442 = vunpack.c.l.b16 %v1346
      %v1443 = vunpack.c.l.b16 %v1347
      %v1444 = vunpack.c.l.b16 %v1348
      %v1445 = vunpack.c.l.b16 %v1349
      %v1446 = vunpack.c.l.b16 %v1350
      %v1447 = vunpack.c.l.b16 %v1351
      %v1448 = vunpack.c.l.b16 %v1352
      %v1449 = vunpack.c.l.b16 %v1353
      %v1450 = vunpack.c.l.b16 %v1354
      %v1451 = vunpack.c.l.b16 %v1355
      %v1452 = vunpack.c.l.b16 %v1356
      %v1453 = vpack.c.b16 %v1406, %v1405
      %v1454 = vpack.c.b16 %v1408, %v1407
      %v1455 = vpack.c.b16 %v1410, %v1409
      %v1456 = vpack.c.b16 %v1412, %v1411
      %v1457 = vpack.c.b16 %v1414, %v1413
      %v1458 = vpack.c.b16 %v1416, %v1415
      %v1459 = vpack.c.b16 %v1418, %v1417
      %v1460 = vpack.c.b16 %v1420, %v1419
      %v1461 = vpack.c.b16 %v1422, %v1421
      %v1462 = vpack.c.b16 %v1424, %v1423
      %v1463 = vpack.c.b16 %v1426, %v1425
      %v1464 = vpack.c.b16 %v1428, %v1427
      %v1465 = vpack.c.b16 %v1430, %v1429
      %v1466 = vpack.c.b16 %v1432, %v1431
      %v1467 = vpack.c.b16 %v1434, %v1433
      %v1468 = vpack.c.b16 %v1436, %v1435
      %v1469 = vpack.c.b16 %v1438, %v1437
      %v1470 = vpack.c.b16 %v1440, %v1439
      %v1471 = vpack.c.b16 %v1442, %v1441
      %v1472 = vpack.c.b16 %v1444, %v1443
      %v1473 = vpack.c.b16 %v1446, %v1445
      %v1474 = vpack.c.b16 %v1448, %v1447
      %v1475 = vpack.c.b16 %v1450, %v1449
      %v1476 = vpack.c.b16 %v1452, %v1451
      %1501 = vmatprep.subr.bf16.mxu0 0
      %1502 = vmatpush1.bf16.msra.mxu0 %v1453
      %1503 = vmatprep.subr.bf16.mxu0 0
      %1504 = vmatpush1.bf16.msra.mxu0 %v1454
      %1505 = vmatprep.subr.bf16.mxu0 0
      %1506 = vmatpush1.bf16.msra.mxu0 %v1455
      %1507 = vmatprep.subr.bf16.mxu0 0
      %1508 = vmatpush1.bf16.msra.mxu0 %v1456
      %1509 = vmatprep.subr.bf16.mxu0 0
      %1510 = vmatpush1.bf16.msra.mxu0 %v1457
      %1511 = vmatprep.subr.bf16.mxu0 0
      %1512 = vmatpush1.bf16.msra.mxu0 %v1458
      %1513 = vmatprep.subr.bf16.mxu0 0
      %1514 = vmatpush1.bf16.msra.mxu0 %v1459
      %1515 = vmatprep.subr.bf16.mxu0 0
      %1516 = vmatpush1.bf16.msra.mxu0 %v1460
      %1517 = vmatprep.subr.bf16.mxu0 0
      %1518 = vmatpush1.bf16.msra.mxu0 %v1461
      %1519 = vmatprep.subr.bf16.mxu0 0
      %1520 = vmatpush1.bf16.msra.mxu0 %v1462
      %1521 = vmatprep.subr.bf16.mxu0 0
      %1522 = vmatpush1.bf16.msra.mxu0 %v1463
      %1523 = vmatprep.subr.bf16.mxu0 0
      %1524 = vmatpush1.bf16.msra.mxu0 %v1464
      %1525 = vmatprep.subr.bf16.mxu0 0
      %1526 = vmatpush1.bf16.msra.mxu0 %v1465
      %1527 = vmatprep.subr.bf16.mxu0 0
      %1528 = vmatpush1.bf16.msra.mxu0 %v1466
      %1529 = vmatprep.subr.bf16.mxu0 0
      %1530 = vmatpush1.bf16.msra.mxu0 %v1467
      %1531 = vmatprep.subr.bf16.mxu0 0
      %1532 = vmatpush1.bf16.msra.mxu0 %v1468
      %1533 = vmatprep.mubr.bf16.mxu0 %v1189
      %1534 = vmatmul.mubr.bf16.gmra.mrb[0].mxu0 %v1188
      %v1535 = vpop.f32.mrb[0].mxu0
      %v1536 = vadd.f32 0.0, %v1535
      %v1537 = vpop.f32.mrb[0].mxu0
      %v1538 = vpop.f32.mrb[0].mxu0
      %v1539 = vadd.f32 0.0, %v1538
      %v1540 = vpop.f32.mrb[0].mxu0
      %1541 = vmatprep.mubr.bf16.mxu0 %v1192
      %1542 = vmatmul.mubr.bf16.gmra.mrb[0].mxu0 %v1191
      %v1543 = vpop.f32.mrb[0].mxu0
      %v1544 = vadd.f32 0.0, %v1543
      %v1545 = vpop.f32.mrb[0].mxu0
      %v1546 = vpop.f32.mrb[0].mxu0
      %v1547 = vadd.f32 0.0, %v1546
      %v1548 = vpop.f32.mrb[0].mxu0
      %1549 = vmatprep.mubr.bf16.mxu0 %v1195
      %1550 = vmatmul.mubr.bf16.gmra.mrb[0].mxu0 %v1194
      %v1551 = vpop.f32.mrb[0].mxu0
      %v1552 = vadd.f32 0.0, %v1551
      %v1553 = vpop.f32.mrb[0].mxu0
      %v1554 = vpop.f32.mrb[0].mxu0
      %v1555 = vadd.f32 0.0, %v1554
      %v1556 = vpop.f32.mrb[0].mxu0
      %1557 = vmatprep.mubr.bf16.mxu0 %v1198
      %1558 = vmatmul.mubr.bf16.gmra.mrb[0].mxu0 %v1197
      %v1559 = vpop.f32.mrb[0].mxu0
      %v1560 = vadd.f32 0.0, %v1559
      %v1561 = vpop.f32.mrb[0].mxu0
      %v1562 = vpop.f32.mrb[0].mxu0
      %v1563 = vadd.f32 0.0, %v1562
      %v1564 = vpop.f32.mrb[0].mxu0
      %1565 = vmatprep.mubr.bf16.mxu0 %v1201
      %1566 = vmatmul.mubr.bf16.gmra.mrb[0].mxu0 %v1200
      %v1567 = vpop.f32.mrb[0].mxu0
      %v1568 = vadd.f32 0.0, %v1567
      %v1569 = vpop.f32.mrb[0].mxu0
      %v1570 = vpop.f32.mrb[0].mxu0
      %v1571 = vadd.f32 0.0, %v1570
      %v1572 = vpop.f32.mrb[0].mxu0
      %1573 = vmatprep.mubr.bf16.mxu0 %v1204
      %1574 = vmatmul.mubr.bf16.gmra.mrb[0].mxu0 %v1203
      %v1575 = vpop.f32.mrb[0].mxu0
      %v1576 = vadd.f32 0.0, %v1575
      %v1577 = vpop.f32.mrb[0].mxu0
      %v1578 = vpop.f32.mrb[0].mxu0
      %v1579 = vadd.f32 0.0, %v1578
      %v1580 = vpop.f32.mrb[0].mxu0
      %1581 = vmatprep.mubr.bf16.mxu0 %v1207
      %1582 = vmatmul.mubr.bf16.gmra.mrb[0].mxu0 %v1206
      %v1583 = vpop.f32.mrb[0].mxu0
      %v1584 = vadd.f32 0.0, %v1583
      %v1585 = vpop.f32.mrb[0].mxu0
      %v1586 = vpop.f32.mrb[0].mxu0
      %v1587 = vadd.f32 0.0, %v1586
      %v1588 = vpop.f32.mrb[0].mxu0
      %1589 = vmatprep.mubr.bf16.mxu0 %v1210
      %1590 = vmatmul.mubr.bf16.gmra.mrb[0].mxu0 %v1209
      %v1591 = vpop.f32.mrb[0].mxu0
      %v1592 = vadd.f32 0.0, %v1591
      %v1593 = vpop.f32.mrb[0].mxu0
      %v1594 = vpop.f32.mrb[0].mxu0
      %v1595 = vadd.f32 0.0, %v1594
      %v1596 = vpop.f32.mrb[0].mxu0
      %1597 = vmatprep.mubr.bf16.mxu0 %v1213
      %1598 = vmatmul.mubr.bf16.gmra.mrb[0].mxu0 %v1212
      %v1599 = vpop.f32.mrb[0].mxu0
      %v1600 = vadd.f32 0.0, %v1599
      %v1601 = vpop.f32.mrb[0].mxu0
      %v1602 = vpop.f32.mrb[0].mxu0
      %v1603 = vadd.f32 0.0, %v1602
      %v1604 = vpop.f32.mrb[0].mxu0
      %1605 = vmatprep.mubr.bf16.mxu0 %v1216
      %1606 = vmatmul.mubr.bf16.gmra.mrb[0].mxu0 %v1215
      %v1607 = vpop.f32.mrb[0].mxu0
      %v1608 = vadd.f32 0.0, %v1607
      %v1609 = vpop.f32.mrb[0].mxu0
      %v1610 = vpop.f32.mrb[0].mxu0
      %v1611 = vadd.f32 0.0, %v1610
      %v1612 = vpop.f32.mrb[0].mxu0
      %1613 = vmatprep.mubr.bf16.mxu0 %v1219
      %1614 = vmatmul.mubr.bf16.gmra.mrb[0].mxu0 %v1218
      %v1615 = vpop.f32.mrb[0].mxu0
      %v1616 = vadd.f32 0.0, %v1615
      %v1617 = vpop.f32.mrb[0].mxu0
      %v1618 = vpop.f32.mrb[0].mxu0
      %v1619 = vadd.f32 0.0, %v1618
      %v1620 = vpop.f32.mrb[0].mxu0
      %1621 = vmatprep.mubr.bf16.mxu0 %v1222
      %1622 = vmatmul.mubr.bf16.gmra.mrb[0].mxu0 %v1221
      %v1623 = vpop.f32.mrb[0].mxu0
      %v1624 = vadd.f32 0.0, %v1623
      %v1625 = vpop.f32.mrb[0].mxu0
      %v1626 = vpop.f32.mrb[0].mxu0
      %v1627 = vadd.f32 0.0, %v1626
      %v1628 = vpop.f32.mrb[0].mxu0
      %1629 = vmatprep.mubr.bf16.mxu0 %v1225
      %1630 = vmatmul.mubr.bf16.gmra.mrb[0].mxu0 %v1224
      %v1631 = vpop.f32.mrb[0].mxu0
      %v1632 = vadd.f32 0.0, %v1631
      %v1633 = vpop.f32.mrb[0].mxu0
      %v1634 = vpop.f32.mrb[0].mxu0
      %v1635 = vadd.f32 0.0, %v1634
      %v1636 = vpop.f32.mrb[0].mxu0
      %1637 = vmatprep.mubr.bf16.mxu0 %v1228
      %1638 = vmatmul.mubr.bf16.gmra.mrb[0].mxu0 %v1227
      %v1639 = vpop.f32.mrb[0].mxu0
      %v1640 = vadd.f32 0.0, %v1639
      %v1641 = vpop.f32.mrb[0].mxu0
      %v1642 = vpop.f32.mrb[0].mxu0
      %v1643 = vadd.f32 0.0, %v1642
      %v1644 = vpop.f32.mrb[0].mxu0
      %1645 = vmatprep.mubr.bf16.mxu0 %v1231
      %1646 = vmatmul.mubr.bf16.gmra.mrb[0].mxu0 %v1230
      %v1647 = vpop.f32.mrb[0].mxu0
      %v1648 = vadd.f32 0.0, %v1647
      %v1649 = vpop.f32.mrb[0].mxu0
      %v1650 = vpop.f32.mrb[0].mxu0
      %v1651 = vadd.f32 0.0, %v1650
      %v1652 = vpop.f32.mrb[0].mxu0
      %1653 = vmatprep.mubr.bf16.mxu0 %v1234
      %1654 = vmatmul.mubr.bf16.gmra.mrb[0].mxu0 %v1233
      %v1655 = vpop.f32.mrb[0].mxu0
      %v1656 = vadd.f32 0.0, %v1655
      %v1657 = vpop.f32.mrb[0].mxu0
      %v1658 = vpop.f32.mrb[0].mxu0
      %v1659 = vadd.f32 0.0, %v1658
      %v1660 = vpop.f32.mrb[0].mxu0
      %1661 = vmatprep.mubr.bf16.mxu0 %v1237
      %1662 = vmatmul.mubr.bf16.gmra.mrb[0].mxu0 %v1236
      %v1663 = vpop.f32.mrb[0].mxu0
      %v1664 = vadd.f32 0.0, %v1663
      %v1665 = vpop.f32.mrb[0].mxu0
      %v1666 = vpop.f32.mrb[0].mxu0
      %v1667 = vadd.f32 0.0, %v1666
      %v1668 = vpop.f32.mrb[0].mxu0
      %1669 = vmatprep.mubr.bf16.mxu0 %v1240
      %1670 = vmatmul.mubr.bf16.gmra.mrb[0].mxu0 %v1239
      %v1671 = vpop.f32.mrb[0].mxu0
      %v1672 = vadd.f32 0.0, %v1671
      %v1673 = vpop.f32.mrb[0].mxu0
      %v1674 = vpop.f32.mrb[0].mxu0
      %v1675 = vadd.f32 0.0, %v1674
      %v1676 = vpop.f32.mrb[0].mxu0
      %1677 = vmatprep.mubr.bf16.mxu0 %v1243
      %1678 = vmatmul.mubr.bf16.gmra.mrb[0].mxu0 %v1242
      %v1679 = vpop.f32.mrb[0].mxu0
      %v1680 = vadd.f32 0.0, %v1679
      %v1681 = vpop.f32.mrb[0].mxu0
      %v1682 = vpop.f32.mrb[0].mxu0
      %v1683 = vadd.f32 0.0, %v1682
      %v1684 = vpop.f32.mrb[0].mxu0
      %1685 = vmatprep.mubr.bf16.mxu0 %v1246
      %1686 = vmatmul.mubr.bf16.gmra.mrb[0].mxu0 %v1245
      %v1687 = vpop.f32.mrb[0].mxu0
      %v1688 = vadd.f32 0.0, %v1687
      %v1689 = vpop.f32.mrb[0].mxu0
      %v1690 = vpop.f32.mrb[0].mxu0
      %v1691 = vadd.f32 0.0, %v1690
      %v1692 = vpop.f32.mrb[0].mxu0
      %1693 = vmatprep.mubr.bf16.mxu0 %v1249
      %1694 = vmatmul.mubr.bf16.gmra.mrb[0].mxu0 %v1248
      %v1695 = vpop.f32.mrb[0].mxu0
      %v1696 = vadd.f32 0.0, %v1695
      %v1697 = vpop.f32.mrb[0].mxu0
      %v1698 = vpop.f32.mrb[0].mxu0
      %v1699 = vadd.f32 0.0, %v1698
      %v1700 = vpop.f32.mrb[0].mxu0
      %1701 = vmatprep.mubr.bf16.mxu0 %v1252
      %1702 = vmatmul.mubr.bf16.gmra.mrb[0].mxu0 %v1251
      %v1703 = vpop.f32.mrb[0].mxu0
      %v1704 = vadd.f32 0.0, %v1703
      %v1705 = vpop.f32.mrb[0].mxu0
      %v1706 = vpop.f32.mrb[0].mxu0
      %v1707 = vadd.f32 0.0, %v1706
      %v1708 = vpop.f32.mrb[0].mxu0
      %1709 = vmatprep.mubr.bf16.mxu0 %v1303
      %1710 = vmatmul.mubr.bf16.gmra.mrb[0].mxu0 %v1302
      %v1711 = vpop.f32.mrb[0].mxu0
      %v1712 = vadd.f32 0.0, %v1711
      %v1713 = vpop.f32.mrb[0].mxu0
      %v1714 = vpop.f32.mrb[0].mxu0
      %v1715 = vadd.f32 0.0, %v1714
      %v1716 = vpop.f32.mrb[0].mxu0
      %1717 = vmatprep.mubr.bf16.mxu0 %v1306
      %1718 = vmatmul.mubr.bf16.gmra.mrb[0].mxu0 %v1305
      %v1719 = vpop.f32.mrb[0].mxu0
      %v1720 = vadd.f32 0.0, %v1719
      %v1721 = vpop.f32.mrb[0].mxu0
      %v1722 = vpop.f32.mrb[0].mxu0
      %v1723 = vpop.f32.mrb[0].mxu0
      %1724 = vdwg.mxu0
      %1725 = vmatprep.subr.bf16.mxu0 0
      %1726 = vmatpush1.bf16.msra.mxu0 %v1469
      %1727 = vmatprep.subr.bf16.mxu0 0
      %1728 = vmatpush1.bf16.msra.mxu0 %v1470
      %1729 = vmatprep.subr.bf16.mxu0 0
      %1730 = vmatpush1.bf16.msra.mxu0 %v1471
      %1731 = vmatprep.subr.bf16.mxu0 0
      %1732 = vmatpush1.bf16.msra.mxu0 %v1472
      %1733 = vmatprep.subr.bf16.mxu0 0
      %1734 = vmatpush1.bf16.msra.mxu0 %v1473
      %1735 = vmatprep.subr.bf16.mxu0 0
      %1736 = vmatpush1.bf16.msra.mxu0 %v1474
      %1737 = vmatprep.subr.bf16.mxu0 0
      %1738 = vmatpush1.bf16.msra.mxu0 %v1475
      %1739 = vmatprep.subr.bf16.mxu0 0
      %1740 = vmatpush1.bf16.msra.mxu0 %v1476
      %1741 = vmatprep.subr.bf16.mxu0 0
      %1742 = vmatpush1.bf16.msra.mxu0 0
      %1743 = vmatprep.subr.bf16.mxu0 0
      %1744 = vmatpush1.bf16.msra.mxu0 0
      %1745 = vmatprep.subr.bf16.mxu0 0
      %1746 = vmatpush1.bf16.msra.mxu0 0
      %1747 = vmatprep.subr.bf16.mxu0 0
      %1748 = vmatpush1.bf16.msra.mxu0 0
      %1749 = vmatprep.subr.bf16.mxu0 0
      %1750 = vmatpush1.bf16.msra.mxu0 0
      %1751 = vmatprep.subr.bf16.mxu0 0
      %1752 = vmatpush1.bf16.msra.mxu0 0
      %1753 = vmatprep.subr.bf16.mxu0 0
      %1754 = vmatpush1.bf16.msra.mxu0 0
      %1755 = vmatprep.subr.bf16.mxu0 0
      %1756 = vmatpush1.bf16.msra.mxu0 0
      %1757 = vmatprep.mubr.bf16.mxu0 0
      %1758 = vmatmul.mubr.bf16.gmra.mrb[0].mxu0 %v1190
      %v1759 = vpop.f32.mrb[0].mxu0
      %v1760 = vadd.f32 %v1536, %v1759
      %v1761 = vpop.f32.mrb[0].mxu0
      %v1762 = vpop.f32.mrb[0].mxu0
      %v1763 = vadd.f32 %v1539, %v1762
      %v1764 = vpop.f32.mrb[0].mxu0
      %1765 = vmatprep.mubr.bf16.mxu0 0
      %1766 = vmatmul.mubr.bf16.gmra.mrb[0].mxu0 %v1193
      %v1767 = vpop.f32.mrb[0].mxu0
      %v1768 = vadd.f32 %v1544, %v1767
      %v1769 = vpop.f32.mrb[0].mxu0
      %v1770 = vpop.f32.mrb[0].mxu0
      %v1771 = vadd.f32 %v1547, %v1770
      %v1772 = vpop.f32.mrb[0].mxu0
      %1773 = vmatprep.mubr.bf16.mxu0 0
      %1774 = vmatmul.mubr.bf16.gmra.mrb[0].mxu0 %v1196
      %v1775 = vpop.f32.mrb[0].mxu0
      %v1776 = vadd.f32 %v1552, %v1775
      %v1777 = vpop.f32.mrb[0].mxu0
      %v1778 = vpop.f32.mrb[0].mxu0
      %v1779 = vadd.f32 %v1555, %v1778
      %v1780 = vpop.f32.mrb[0].mxu0
      %1781 = vmatprep.mubr.bf16.mxu0 0
      %1782 = vmatmul.mubr.bf16.gmra.mrb[0].mxu0 %v1199
      %v1783 = vpop.f32.mrb[0].mxu0
      %v1784 = vadd.f32 %v1560, %v1783
      %v1785 = vpop.f32.mrb[0].mxu0
      %v1786 = vpop.f32.mrb[0].mxu0
      %v1787 = vadd.f32 %v1563, %v1786
      %v1788 = vpop.f32.mrb[0].mxu0
      %1789 = vmatprep.mubr.bf16.mxu0 0
      %1790 = vmatmul.mubr.bf16.gmra.mrb[0].mxu0 %v1202
      %v1791 = vpop.f32.mrb[0].mxu0
      %v1792 = vadd.f32 %v1568, %v1791
      %v1793 = vpop.f32.mrb[0].mxu0
      %v1794 = vpop.f32.mrb[0].mxu0
      %v1795 = vadd.f32 %v1571, %v1794
      %v1796 = vpop.f32.mrb[0].mxu0
      %1797 = vmatprep.mubr.bf16.mxu0 0
      %1798 = vmatmul.mubr.bf16.gmra.mrb[0].mxu0 %v1205
      %v1799 = vpop.f32.mrb[0].mxu0
      %v1800 = vadd.f32 %v1576, %v1799
      %v1801 = vpop.f32.mrb[0].mxu0
      %v1802 = vpop.f32.mrb[0].mxu0
      %v1803 = vadd.f32 %v1579, %v1802
      %v1804 = vpop.f32.mrb[0].mxu0
      %1805 = vmatprep.mubr.bf16.mxu0 0
      %1806 = vmatmul.mubr.bf16.gmra.mrb[0].mxu0 %v1208
      %v1807 = vpop.f32.mrb[0].mxu0
      %v1808 = vadd.f32 %v1584, %v1807
      %v1809 = vpop.f32.mrb[0].mxu0
      %v1810 = vpop.f32.mrb[0].mxu0
      %v1811 = vadd.f32 %v1587, %v1810
      %v1812 = vpop.f32.mrb[0].mxu0
      %1813 = vmatprep.mubr.bf16.mxu0 0
      %1814 = vmatmul.mubr.bf16.gmra.mrb[0].mxu0 %v1211
      %v1815 = vpop.f32.mrb[0].mxu0
      %v1816 = vadd.f32 %v1592, %v1815
      %v1817 = vpop.f32.mrb[0].mxu0
      %v1818 = vpop.f32.mrb[0].mxu0
      %v1819 = vadd.f32 %v1595, %v1818
      %v1820 = vpop.f32.mrb[0].mxu0
      %1821 = vmatprep.mubr.bf16.mxu0 0
      %1822 = vmatmul.mubr.bf16.gmra.mrb[0].mxu0 %v1214
      %v1823 = vpop.f32.mrb[0].mxu0
      %v1824 = vadd.f32 %v1600, %v1823
      %v1825 = vpop.f32.mrb[0].mxu0
      %v1826 = vpop.f32.mrb[0].mxu0
      %v1827 = vadd.f32 %v1603, %v1826
      %v1828 = vpop.f32.mrb[0].mxu0
      %1829 = vmatprep.mubr.bf16.mxu0 0
      %1830 = vmatmul.mubr.bf16.gmra.mrb[0].mxu0 %v1217
      %v1831 = vpop.f32.mrb[0].mxu0
      %v1832 = vadd.f32 %v1608, %v1831
      %v1833 = vpop.f32.mrb[0].mxu0
      %v1834 = vpop.f32.mrb[0].mxu0
      %v1835 = vadd.f32 %v1611, %v1834
      %v1836 = vpop.f32.mrb[0].mxu0
      %1837 = vmatprep.mubr.bf16.mxu0 0
      %1838 = vmatmul.mubr.bf16.gmra.mrb[0].mxu0 %v1220
      %v1839 = vpop.f32.mrb[0].mxu0
      %v1840 = vadd.f32 %v1616, %v1839
      %v1841 = vpop.f32.mrb[0].mxu0
      %v1842 = vpop.f32.mrb[0].mxu0
      %v1843 = vadd.f32 %v1619, %v1842
      %v1844 = vpop.f32.mrb[0].mxu0
      %1845 = vmatprep.mubr.bf16.mxu0 0
      %1846 = vmatmul.mubr.bf16.gmra.mrb[0].mxu0 %v1223
      %v1847 = vpop.f32.mrb[0].mxu0
      %v1848 = vadd.f32 %v1624, %v1847
      %v1849 = vpop.f32.mrb[0].mxu0
      %v1850 = vpop.f32.mrb[0].mxu0
      %v1851 = vadd.f32 %v1627, %v1850
      %v1852 = vpop.f32.mrb[0].mxu0
      %1853 = vmatprep.mubr.bf16.mxu0 0
      %1854 = vmatmul.mubr.bf16.gmra.mrb[0].mxu0 %v1226
      %v1855 = vpop.f32.mrb[0].mxu0
      %v1856 = vadd.f32 %v1632, %v1855
      %v1857 = vpop.f32.mrb[0].mxu0
      %v1858 = vpop.f32.mrb[0].mxu0
      %v1859 = vadd.f32 %v1635, %v1858
      %v1860 = vpop.f32.mrb[0].mxu0
      %1861 = vmatprep.mubr.bf16.mxu0 0
      %1862 = vmatmul.mubr.bf16.gmra.mrb[0].mxu0 %v1229
      %v1863 = vpop.f32.mrb[0].mxu0
      %v1864 = vadd.f32 %v1640, %v1863
      %v1865 = vpop.f32.mrb[0].mxu0
      %v1866 = vpop.f32.mrb[0].mxu0
      %v1867 = vadd.f32 %v1643, %v1866
      %v1868 = vpop.f32.mrb[0].mxu0
      %1869 = vmatprep.mubr.bf16.mxu0 0
      %1870 = vmatmul.mubr.bf16.gmra.mrb[0].mxu0 %v1232
      %v1871 = vpop.f32.mrb[0].mxu0
      %v1872 = vadd.f32 %v1648, %v1871
      %v1873 = vpop.f32.mrb[0].mxu0
      %v1874 = vpop.f32.mrb[0].mxu0
      %v1875 = vadd.f32 %v1651, %v1874
      %v1876 = vpop.f32.mrb[0].mxu0
      %1877 = vmatprep.mubr.bf16.mxu0 0
      %1878 = vmatmul.mubr.bf16.gmra.mrb[0].mxu0 %v1235
      %v1879 = vpop.f32.mrb[0].mxu0
      %v1880 = vadd.f32 %v1656, %v1879
      %v1881 = vpop.f32.mrb[0].mxu0
      %v1882 = vpop.f32.mrb[0].mxu0
      %v1883 = vadd.f32 %v1659, %v1882
      %v1884 = vpop.f32.mrb[0].mxu0
      %1885 = vmatprep.mubr.bf16.mxu0 0
      %1886 = vmatmul.mubr.bf16.gmra.mrb[0].mxu0 %v1238
      %v1887 = vpop.f32.mrb[0].mxu0
      %v1888 = vadd.f32 %v1664, %v1887
      %v1889 = vpop.f32.mrb[0].mxu0
      %v1890 = vpop.f32.mrb[0].mxu0
      %v1891 = vadd.f32 %v1667, %v1890
      %v1892 = vpop.f32.mrb[0].mxu0
      %1893 = vmatprep.mubr.bf16.mxu0 0
      %1894 = vmatmul.mubr.bf16.gmra.mrb[0].mxu0 %v1241
      %v1895 = vpop.f32.mrb[0].mxu0
      %v1896 = vadd.f32 %v1672, %v1895
      %v1897 = vpop.f32.mrb[0].mxu0
      %v1898 = vpop.f32.mrb[0].mxu0
      %v1899 = vadd.f32 %v1675, %v1898
      %v1900 = vpop.f32.mrb[0].mxu0
      %1901 = vmatprep.mubr.bf16.mxu0 0
      %1902 = vmatmul.mubr.bf16.gmra.mrb[0].mxu0 %v1244
      %v1903 = vpop.f32.mrb[0].mxu0
      %v1904 = vadd.f32 %v1680, %v1903
      %v1905 = vpop.f32.mrb[0].mxu0
      %v1906 = vpop.f32.mrb[0].mxu0
      %v1907 = vadd.f32 %v1683, %v1906
      %v1908 = vpop.f32.mrb[0].mxu0
      %1909 = vmatprep.mubr.bf16.mxu0 0
      %1910 = vmatmul.mubr.bf16.gmra.mrb[0].mxu0 %v1247
      %v1911 = vpop.f32.mrb[0].mxu0
      %v1912 = vadd.f32 %v1688, %v1911
      %v1913 = vpop.f32.mrb[0].mxu0
      %v1914 = vpop.f32.mrb[0].mxu0
      %v1915 = vadd.f32 %v1691, %v1914
      %v1916 = vpop.f32.mrb[0].mxu0
      %1917 = vmatprep.mubr.bf16.mxu0 0
      %1918 = vmatmul.mubr.bf16.gmra.mrb[0].mxu0 %v1250
      %v1919 = vpop.f32.mrb[0].mxu0
      %v1920 = vadd.f32 %v1696, %v1919
      %v1921 = vpop.f32.mrb[0].mxu0
      %v1922 = vpop.f32.mrb[0].mxu0
      %v1923 = vadd.f32 %v1699, %v1922
      %v1924 = vpop.f32.mrb[0].mxu0
      %1925 = vmatprep.mubr.bf16.mxu0 0
      %1926 = vmatmul.mubr.bf16.gmra.mrb[0].mxu0 %v1253
      %v1927 = vpop.f32.mrb[0].mxu0
      %v1928 = vadd.f32 %v1704, %v1927
      %v1929 = vpop.f32.mrb[0].mxu0
      %v1930 = vpop.f32.mrb[0].mxu0
      %v1931 = vadd.f32 %v1707, %v1930
      %v1932 = vpop.f32.mrb[0].mxu0
      %1933 = vmatprep.mubr.bf16.mxu0 0
      %1934 = vmatmul.mubr.bf16.gmra.mrb[0].mxu0 %v1304
      %v1935 = vpop.f32.mrb[0].mxu0
      %v1936 = vadd.f32 %v1712, %v1935
      %v1937 = vpop.f32.mrb[0].mxu0
      %v1938 = vpop.f32.mrb[0].mxu0
      %v1939 = vadd.f32 %v1715, %v1938
      %v1940 = vpop.f32.mrb[0].mxu0
      %1941 = vmatprep.mubr.bf16.mxu0 0
      %1942 = vmatmul.mubr.bf16.gmra.mrb[0].mxu0 %v1307
      %v1943 = vpop.f32.mrb[0].mxu0
      %v1944 = vadd.f32 %v1720, %v1943
      %v1945 = vpop.f32.mrb[0].mxu0
      %v1946 = vpop.f32.mrb[0].mxu0
      %v1947 = vpop.f32.mrb[0].mxu0
      %1948 = vdwg.mxu0
      %vm2021 = vcmask 1043456
      %v2022 = vrot.slane %v1182, 4
      %v2023 = vrot.slane %v1185, 4
      %v2024 = vsel %vm2021, %v2022, %v2023
      %v2025 = vrot.slane %v1183, 4
      %v2026 = vrot.slane %v1186, 4
      %v2027 = vsel %vm2021, %v2025, %v2026
      %v2028 = vrot.slane %v1184, 4
      %v2029 = vrot.slane %v1187, 4
      %v2030 = vsel %vm2021, %v2028, %v2029
      %v2031 = vrot.slane %v1188, 4
      %v2032 = vsel %vm2021, %v2023, %v2031
      %v2033 = vrot.slane %v1189, 4
      %v2034 = vsel %vm2021, %v2026, %v2033
      %v2035 = vrot.slane %v1190, 4
      %v2036 = vsel %vm2021, %v2029, %v2035
      %v2037 = vrot.slane %v1191, 4
      %v2038 = vsel %vm2021, %v2031, %v2037
      %v2039 = vrot.slane %v1192, 4
      %v2040 = vsel %vm2021, %v2033, %v2039
      %v2041 = vrot.slane %v1193, 4
      %v2042 = vsel %vm2021, %v2035, %v2041
      %v2043 = vrot.slane %v1194, 4
      %v2044 = vsel %vm2021, %v2037, %v2043
      %v2045 = vrot.slane %v1195, 4
      %v2046 = vsel %vm2021, %v2039, %v2045
      %v2047 = vrot.slane %v1196, 4
      %v2048 = vsel %vm2021, %v2041, %v2047
      %v2049 = vrot.slane %v1197, 4
      %v2050 = vsel %vm2021, %v2043, %v2049
      %v2051 = vrot.slane %v1198, 4
      %v2052 = vsel %vm2021, %v2045, %v2051
      %v2053 = vrot.slane %v1199, 4
      %v2054 = vsel %vm2021, %v2047, %v2053
      %v2055 = vrot.slane %v1200, 4
      %v2056 = vsel %vm2021, %v2049, %v2055
      %v2057 = vrot.slane %v1201, 4
      %v2058 = vsel %vm2021, %v2051, %v2057
      %v2059 = vrot.slane %v1202, 4
      %v2060 = vsel %vm2021, %v2053, %v2059
      %v2061 = vrot.slane %v1203, 4
      %v2062 = vsel %vm2021, %v2055, %v2061
      %v2063 = vrot.slane %v1204, 4
      %v2064 = vsel %vm2021, %v2057, %v2063
      %v2065 = vrot.slane %v1205, 4
      %v2066 = vsel %vm2021, %v2059, %v2065
      %v2067 = vrot.slane %v1206, 4
      %v2068 = vsel %vm2021, %v2061, %v2067
      %v2069 = vrot.slane %v1207, 4
      %v2070 = vsel %vm2021, %v2063, %v2069
      %v2071 = vrot.slane %v1208, 4
      %v2072 = vsel %vm2021, %v2065, %v2071
      %v2073 = vrot.slane %v1209, 4
      %v2074 = vsel %vm2021, %v2067, %v2073
      %v2075 = vrot.slane %v1210, 4
      %v2076 = vsel %vm2021, %v2069, %v2075
      %v2077 = vrot.slane %v1211, 4
      %v2078 = vsel %vm2021, %v2071, %v2077
      %v2079 = vrot.slane %v1212, 4
      %v2080 = vsel %vm2021, %v2073, %v2079
      %v2081 = vrot.slane %v1213, 4
      %v2082 = vsel %vm2021, %v2075, %v2081
      %v2083 = vrot.slane %v1214, 4
      %v2084 = vsel %vm2021, %v2077, %v2083
      %v2085 = vrot.slane %v1215, 4
      %v2086 = vsel %vm2021, %v2079, %v2085
      %v2087 = vrot.slane %v1216, 4
      %v2088 = vsel %vm2021, %v2081, %v2087
      %v2089 = vrot.slane %v1217, 4
      %v2090 = vsel %vm2021, %v2083, %v2089
      %v2091 = vrot.slane %v1218, 4
      %v2092 = vsel %vm2021, %v2085, %v2091
      %v2093 = vrot.slane %v1219, 4
      %v2094 = vsel %vm2021, %v2087, %v2093
      %v2095 = vrot.slane %v1220, 4
      %v2096 = vsel %vm2021, %v2089, %v2095
      %v2097 = vrot.slane %v1221, 4
      %v2098 = vsel %vm2021, %v2091, %v2097
      %v2099 = vrot.slane %v1222, 4
      %v2100 = vsel %vm2021, %v2093, %v2099
      %v2101 = vrot.slane %v1223, 4
      %v2102 = vsel %vm2021, %v2095, %v2101
      %v2103 = vrot.slane %v1224, 4
      %v2104 = vsel %vm2021, %v2097, %v2103
      %v2105 = vrot.slane %v1225, 4
      %v2106 = vsel %vm2021, %v2099, %v2105
      %v2107 = vrot.slane %v1226, 4
      %v2108 = vsel %vm2021, %v2101, %v2107
      %v2109 = vrot.slane %v1227, 4
      %v2110 = vsel %vm2021, %v2103, %v2109
      %v2111 = vrot.slane %v1228, 4
      %v2112 = vsel %vm2021, %v2105, %v2111
      %v2113 = vrot.slane %v1229, 4
      %v2114 = vsel %vm2021, %v2107, %v2113
      %v2115 = vrot.slane %v1230, 4
      %v2116 = vsel %vm2021, %v2109, %v2115
      %v2117 = vrot.slane %v1231, 4
      %v2118 = vsel %vm2021, %v2111, %v2117
      %v2119 = vrot.slane %v1232, 4
      %v2120 = vsel %vm2021, %v2113, %v2119
      %v2121 = vrot.slane %v1233, 4
      %v2122 = vsel %vm2021, %v2115, %v2121
      %v2123 = vrot.slane %v1234, 4
      %v2124 = vsel %vm2021, %v2117, %v2123
      %v2125 = vrot.slane %v1235, 4
      %v2126 = vsel %vm2021, %v2119, %v2125
      %v2127 = vrot.slane %v1236, 4
      %v2128 = vsel %vm2021, %v2121, %v2127
      %v2129 = vrot.slane %v1237, 4
      %v2130 = vsel %vm2021, %v2123, %v2129
      %v2131 = vrot.slane %v1238, 4
      %v2132 = vsel %vm2021, %v2125, %v2131
      %v2133 = vrot.slane %v1239, 4
      %v2134 = vsel %vm2021, %v2127, %v2133
      %v2135 = vrot.slane %v1240, 4
      %v2136 = vsel %vm2021, %v2129, %v2135
      %v2137 = vrot.slane %v1241, 4
      %v2138 = vsel %vm2021, %v2131, %v2137
      %v2139 = vrot.slane %v1242, 4
      %v2140 = vsel %vm2021, %v2133, %v2139
      %v2141 = vrot.slane %v1243, 4
      %v2142 = vsel %vm2021, %v2135, %v2141
      %v2143 = vrot.slane %v1244, 4
      %v2144 = vsel %vm2021, %v2137, %v2143
      %v2145 = vrot.slane %v1245, 4
      %v2146 = vsel %vm2021, %v2139, %v2145
      %v2147 = vrot.slane %v1246, 4
      %v2148 = vsel %vm2021, %v2141, %v2147
      %v2149 = vrot.slane %v1247, 4
      %v2150 = vsel %vm2021, %v2143, %v2149
      %v2151 = vrot.slane %v1248, 4
      %v2152 = vsel %vm2021, %v2145, %v2151
      %v2153 = vrot.slane %v1249, 4
      %v2154 = vsel %vm2021, %v2147, %v2153
      %v2155 = vrot.slane %v1250, 4
      %v2156 = vsel %vm2021, %v2149, %v2155
      %v2157 = vrot.slane %v1251, 4
      %v2158 = vsel %vm2021, %v2151, %v2157
      %v2159 = vrot.slane %v1252, 4
      %v2160 = vsel %vm2021, %v2153, %v2159
      %v2161 = vrot.slane %v1253, 4
      %v2162 = vsel %vm2021, %v2155, %v2161
      %v2283 = vunpack.c.l.b16 %v1254
      %v2284 = vunpack.c.l.b16 %v1255
      %v2285 = vunpack.c.l.b16 %v1256
      %v2286 = vunpack.c.l.b16 %v1257
      %v2287 = vunpack.c.l.b16 %v1258
      %v2288 = vunpack.c.l.b16 %v1259
      %v2289 = vunpack.c.l.b16 %v1260
      %v2290 = vunpack.c.l.b16 %v1261
      %v2291 = vunpack.c.l.b16 %v1262
      %v2292 = vunpack.c.l.b16 %v1263
      %v2293 = vunpack.c.l.b16 %v1264
      %v2294 = vunpack.c.l.b16 %v1265
      %v2295 = vunpack.c.l.b16 %v1266
      %v2296 = vunpack.c.l.b16 %v1267
      %v2297 = vunpack.c.l.b16 %v1268
      %v2298 = vunpack.c.l.b16 %v1269
      %v2299 = vunpack.c.l.b16 %v1270
      %v2300 = vunpack.c.l.b16 %v1271
      %v2301 = vunpack.c.l.b16 %v1272
      %v2302 = vunpack.c.l.b16 %v1273
      %v2303 = vunpack.c.l.b16 %v1274
      %v2304 = vunpack.c.l.b16 %v1275
      %v2305 = vunpack.c.l.b16 %v1276
      %v2306 = vunpack.c.l.b16 %v1277
      %v2307 = vunpack.c.l.b16 %v1278
      %v2308 = vunpack.c.l.b16 %v1279
      %v2309 = vunpack.c.l.b16 %v1280
      %v2310 = vunpack.c.l.b16 %v1281
      %v2311 = vunpack.c.l.b16 %v1282
      %v2312 = vunpack.c.l.b16 %v1283
      %v2313 = vunpack.c.l.b16 %v1284
      %v2314 = vunpack.c.l.b16 %v1285
      %v2315 = vunpack.c.l.b16 %v1286
      %v2316 = vunpack.c.l.b16 %v1287
      %v2317 = vunpack.c.l.b16 %v1288
      %v2318 = vunpack.c.l.b16 %v1289
      %v2319 = vunpack.c.l.b16 %v1290
      %v2320 = vunpack.c.l.b16 %v1291
      %v2321 = vunpack.c.l.b16 %v1292
      %v2322 = vunpack.c.l.b16 %v1293
      %v2323 = vunpack.c.l.b16 %v1294
      %v2324 = vunpack.c.l.b16 %v1295
      %v2325 = vunpack.c.l.b16 %v1296
      %v2326 = vunpack.c.l.b16 %v1297
      %v2327 = vunpack.c.l.b16 %v1298
      %v2328 = vunpack.c.l.b16 %v1299
      %v2329 = vunpack.c.l.b16 %v1300
      %v2330 = vunpack.c.l.b16 %v1301
      %v2331 = vpack.c.b16 %v2284, %v2283
      %v2332 = vpack.c.b16 %v2286, %v2285
      %v2333 = vpack.c.b16 %v2288, %v2287
      %v2334 = vpack.c.b16 %v2290, %v2289
      %v2335 = vpack.c.b16 %v2292, %v2291
      %v2336 = vpack.c.b16 %v2294, %v2293
      %v2337 = vpack.c.b16 %v2296, %v2295
      %v2338 = vpack.c.b16 %v2298, %v2297
      %v2339 = vpack.c.b16 %v2300, %v2299
      %v2340 = vpack.c.b16 %v2302, %v2301
      %v2341 = vpack.c.b16 %v2304, %v2303
      %v2342 = vpack.c.b16 %v2306, %v2305
      %v2343 = vpack.c.b16 %v2308, %v2307
      %v2344 = vpack.c.b16 %v2310, %v2309
      %v2345 = vpack.c.b16 %v2312, %v2311
      %v2346 = vpack.c.b16 %v2314, %v2313
      %v2347 = vpack.c.b16 %v2316, %v2315
      %v2348 = vpack.c.b16 %v2318, %v2317
      %v2349 = vpack.c.b16 %v2320, %v2319
      %v2350 = vpack.c.b16 %v2322, %v2321
      %v2351 = vpack.c.b16 %v2324, %v2323
      %v2352 = vpack.c.b16 %v2326, %v2325
      %v2353 = vpack.c.b16 %v2328, %v2327
      %v2354 = vpack.c.b16 %v2330, %v2329
      %2379 = vmatprep.subr.bf16.mxu0 0
      %2380 = vmatpush1.bf16.msra.mxu0 %v2331
      %2381 = vmatprep.subr.bf16.mxu0 0
      %2382 = vmatpush1.bf16.msra.mxu0 %v2332
      %2383 = vmatprep.subr.bf16.mxu0 0
      %2384 = vmatpush1.bf16.msra.mxu0 %v2333
      %2385 = vmatprep.subr.bf16.mxu0 0
      %2386 = vmatpush1.bf16.msra.mxu0 %v2334
      %2387 = vmatprep.subr.bf16.mxu0 0
      %2388 = vmatpush1.bf16.msra.mxu0 %v2335
      %2389 = vmatprep.subr.bf16.mxu0 0
      %2390 = vmatpush1.bf16.msra.mxu0 %v2336
      %2391 = vmatprep.subr.bf16.mxu0 0
      %2392 = vmatpush1.bf16.msra.mxu0 %v2337
      %2393 = vmatprep.subr.bf16.mxu0 0
      %2394 = vmatpush1.bf16.msra.mxu0 %v2338
      %2395 = vmatprep.subr.bf16.mxu0 0
      %2396 = vmatpush1.bf16.msra.mxu0 %v2339
      %2397 = vmatprep.subr.bf16.mxu0 0
      %2398 = vmatpush1.bf16.msra.mxu0 %v2340
      %2399 = vmatprep.subr.bf16.mxu0 0
      %2400 = vmatpush1.bf16.msra.mxu0 %v2341
      %2401 = vmatprep.subr.bf16.mxu0 0
      %2402 = vmatpush1.bf16.msra.mxu0 %v2342
      %2403 = vmatprep.subr.bf16.mxu0 0
      %2404 = vmatpush1.bf16.msra.mxu0 %v2343
      %2405 = vmatprep.subr.bf16.mxu0 0
      %2406 = vmatpush1.bf16.msra.mxu0 %v2344
      %2407 = vmatprep.subr.bf16.mxu0 0
      %2408 = vmatpush1.bf16.msra.mxu0 %v2345
      %2409 = vmatprep.subr.bf16.mxu0 0
      %2410 = vmatpush1.bf16.msra.mxu0 %v2346
      %2411 = vmatprep.mubr.bf16.mxu0 %v2027
      %2412 = vmatmul.mubr.bf16.gmra.mrb[0].mxu0 %v2024
      %v2413 = vpop.f32.mrb[0].mxu0
      %v2414 = vadd.f32 %v1760, %v2413
      %v2415 = vpop.f32.mrb[0].mxu0
      %v2416 = vpop.f32.mrb[0].mxu0
      %v2417 = vadd.f32 %v1763, %v2416
      %v2418 = vpop.f32.mrb[0].mxu0
      %2419 = vmatprep.mubr.bf16.mxu0 %v2034
      %2420 = vmatmul.mubr.bf16.gmra.mrb[0].mxu0 %v2032
      %v2421 = vpop.f32.mrb[0].mxu0
      %v2422 = vadd.f32 %v1768, %v2421
      %v2423 = vpop.f32.mrb[0].mxu0
      %v2424 = vpop.f32.mrb[0].mxu0
      %v2425 = vadd.f32 %v1771, %v2424
      %v2426 = vpop.f32.mrb[0].mxu0
      %2427 = vmatprep.mubr.bf16.mxu0 %v2040
      %2428 = vmatmul.mubr.bf16.gmra.mrb[0].mxu0 %v2038
      %v2429 = vpop.f32.mrb[0].mxu0
      %v2430 = vadd.f32 %v1776, %v2429
      %v2431 = vpop.f32.mrb[0].mxu0
      %v2432 = vpop.f32.mrb[0].mxu0
      %v2433 = vadd.f32 %v1779, %v2432
      %v2434 = vpop.f32.mrb[0].mxu0
      %2435 = vmatprep.mubr.bf16.mxu0 %v2046
      %2436 = vmatmul.mubr.bf16.gmra.mrb[0].mxu0 %v2044
      %v2437 = vpop.f32.mrb[0].mxu0
      %v2438 = vadd.f32 %v1784, %v2437
      %v2439 = vpop.f32.mrb[0].mxu0
      %v2440 = vpop.f32.mrb[0].mxu0
      %v2441 = vadd.f32 %v1787, %v2440
      %v2442 = vpop.f32.mrb[0].mxu0
      %2443 = vmatprep.mubr.bf16.mxu0 %v2052
      %2444 = vmatmul.mubr.bf16.gmra.mrb[0].mxu0 %v2050
      %v2445 = vpop.f32.mrb[0].mxu0
      %v2446 = vadd.f32 %v1792, %v2445
      %v2447 = vpop.f32.mrb[0].mxu0
      %v2448 = vpop.f32.mrb[0].mxu0
      %v2449 = vadd.f32 %v1795, %v2448
      %v2450 = vpop.f32.mrb[0].mxu0
      %2451 = vmatprep.mubr.bf16.mxu0 %v2058
      %2452 = vmatmul.mubr.bf16.gmra.mrb[0].mxu0 %v2056
      %v2453 = vpop.f32.mrb[0].mxu0
      %v2454 = vadd.f32 %v1800, %v2453
      %v2455 = vpop.f32.mrb[0].mxu0
      %v2456 = vpop.f32.mrb[0].mxu0
      %v2457 = vadd.f32 %v1803, %v2456
      %v2458 = vpop.f32.mrb[0].mxu0
      %2459 = vmatprep.mubr.bf16.mxu0 %v2064
      %2460 = vmatmul.mubr.bf16.gmra.mrb[0].mxu0 %v2062
      %v2461 = vpop.f32.mrb[0].mxu0
      %v2462 = vadd.f32 %v1808, %v2461
      %v2463 = vpop.f32.mrb[0].mxu0
      %v2464 = vpop.f32.mrb[0].mxu0
      %v2465 = vadd.f32 %v1811, %v2464
      %v2466 = vpop.f32.mrb[0].mxu0
      %2467 = vmatprep.mubr.bf16.mxu0 %v2070
      %2468 = vmatmul.mubr.bf16.gmra.mrb[0].mxu0 %v2068
      %v2469 = vpop.f32.mrb[0].mxu0
      %v2470 = vadd.f32 %v1816, %v2469
      %v2471 = vpop.f32.mrb[0].mxu0
      %v2472 = vpop.f32.mrb[0].mxu0
      %v2473 = vadd.f32 %v1819, %v2472
      %v2474 = vpop.f32.mrb[0].mxu0
      %2475 = vmatprep.mubr.bf16.mxu0 %v2076
      %2476 = vmatmul.mubr.bf16.gmra.mrb[0].mxu0 %v2074
      %v2477 = vpop.f32.mrb[0].mxu0
      %v2478 = vadd.f32 %v1824, %v2477
      %v2479 = vpop.f32.mrb[0].mxu0
      %v2480 = vpop.f32.mrb[0].mxu0
      %v2481 = vadd.f32 %v1827, %v2480
      %v2482 = vpop.f32.mrb[0].mxu0
      %2483 = vmatprep.mubr.bf16.mxu0 %v2082
      %2484 = vmatmul.mubr.bf16.gmra.mrb[0].mxu0 %v2080
      %v2485 = vpop.f32.mrb[0].mxu0
      %v2486 = vadd.f32 %v1832, %v2485
      %v2487 = vpop.f32.mrb[0].mxu0
      %v2488 = vpop.f32.mrb[0].mxu0
      %v2489 = vadd.f32 %v1835, %v2488
      %v2490 = vpop.f32.mrb[0].mxu0
      %2491 = vmatprep.mubr.bf16.mxu0 %v2088
      %2492 = vmatmul.mubr.bf16.gmra.mrb[0].mxu0 %v2086
      %v2493 = vpop.f32.mrb[0].mxu0
      %v2494 = vadd.f32 %v1840, %v2493
      %v2495 = vpop.f32.mrb[0].mxu0
      %v2496 = vpop.f32.mrb[0].mxu0
      %v2497 = vadd.f32 %v1843, %v2496
      %v2498 = vpop.f32.mrb[0].mxu0
      %2499 = vmatprep.mubr.bf16.mxu0 %v2094
      %2500 = vmatmul.mubr.bf16.gmra.mrb[0].mxu0 %v2092
      %v2501 = vpop.f32.mrb[0].mxu0
      %v2502 = vadd.f32 %v1848, %v2501
      %v2503 = vpop.f32.mrb[0].mxu0
      %v2504 = vpop.f32.mrb[0].mxu0
      %v2505 = vadd.f32 %v1851, %v2504
      %v2506 = vpop.f32.mrb[0].mxu0
      %2507 = vmatprep.mubr.bf16.mxu0 %v2100
      %2508 = vmatmul.mubr.bf16.gmra.mrb[0].mxu0 %v2098
      %v2509 = vpop.f32.mrb[0].mxu0
      %v2510 = vadd.f32 %v1856, %v2509
      %v2511 = vpop.f32.mrb[0].mxu0
      %v2512 = vpop.f32.mrb[0].mxu0
      %v2513 = vadd.f32 %v1859, %v2512
      %v2514 = vpop.f32.mrb[0].mxu0
      %2515 = vmatprep.mubr.bf16.mxu0 %v2106
      %2516 = vmatmul.mubr.bf16.gmra.mrb[0].mxu0 %v2104
      %v2517 = vpop.f32.mrb[0].mxu0
      %v2518 = vadd.f32 %v1864, %v2517
      %v2519 = vpop.f32.mrb[0].mxu0
      %v2520 = vpop.f32.mrb[0].mxu0
      %v2521 = vadd.f32 %v1867, %v2520
      %v2522 = vpop.f32.mrb[0].mxu0
      %2523 = vmatprep.mubr.bf16.mxu0 %v2112
      %2524 = vmatmul.mubr.bf16.gmra.mrb[0].mxu0 %v2110
      %v2525 = vpop.f32.mrb[0].mxu0
      %v2526 = vadd.f32 %v1872, %v2525
      %v2527 = vpop.f32.mrb[0].mxu0
      %v2528 = vpop.f32.mrb[0].mxu0
      %v2529 = vadd.f32 %v1875, %v2528
      %v2530 = vpop.f32.mrb[0].mxu0
      %2531 = vmatprep.mubr.bf16.mxu0 %v2118
      %2532 = vmatmul.mubr.bf16.gmra.mrb[0].mxu0 %v2116
      %v2533 = vpop.f32.mrb[0].mxu0
      %v2534 = vadd.f32 %v1880, %v2533
      %v2535 = vpop.f32.mrb[0].mxu0
      %v2536 = vpop.f32.mrb[0].mxu0
      %v2537 = vadd.f32 %v1883, %v2536
      %v2538 = vpop.f32.mrb[0].mxu0
      %2539 = vmatprep.mubr.bf16.mxu0 %v2124
      %2540 = vmatmul.mubr.bf16.gmra.mrb[0].mxu0 %v2122
      %v2541 = vpop.f32.mrb[0].mxu0
      %v2542 = vadd.f32 %v1888, %v2541
      %v2543 = vpop.f32.mrb[0].mxu0
      %v2544 = vpop.f32.mrb[0].mxu0
      %v2545 = vadd.f32 %v1891, %v2544
      %v2546 = vpop.f32.mrb[0].mxu0
      %2547 = vmatprep.mubr.bf16.mxu0 %v2130
      %2548 = vmatmul.mubr.bf16.gmra.mrb[0].mxu0 %v2128
      %v2549 = vpop.f32.mrb[0].mxu0
      %v2550 = vadd.f32 %v1896, %v2549
      %v2551 = vpop.f32.mrb[0].mxu0
      %v2552 = vpop.f32.mrb[0].mxu0
      %v2553 = vadd.f32 %v1899, %v2552
      %v2554 = vpop.f32.mrb[0].mxu0
      %2555 = vmatprep.mubr.bf16.mxu0 %v2136
      %2556 = vmatmul.mubr.bf16.gmra.mrb[0].mxu0 %v2134
      %v2557 = vpop.f32.mrb[0].mxu0
      %v2558 = vadd.f32 %v1904, %v2557
      %v2559 = vpop.f32.mrb[0].mxu0
      %v2560 = vpop.f32.mrb[0].mxu0
      %v2561 = vadd.f32 %v1907, %v2560
      %v2562 = vpop.f32.mrb[0].mxu0
      %2563 = vmatprep.mubr.bf16.mxu0 %v2142
      %2564 = vmatmul.mubr.bf16.gmra.mrb[0].mxu0 %v2140
      %v2565 = vpop.f32.mrb[0].mxu0
      %v2566 = vadd.f32 %v1912, %v2565
      %v2567 = vpop.f32.mrb[0].mxu0
      %v2568 = vpop.f32.mrb[0].mxu0
      %v2569 = vadd.f32 %v1915, %v2568
      %v2570 = vpop.f32.mrb[0].mxu0
      %2571 = vmatprep.mubr.bf16.mxu0 %v2148
      %2572 = vmatmul.mubr.bf16.gmra.mrb[0].mxu0 %v2146
      %v2573 = vpop.f32.mrb[0].mxu0
      %v2574 = vadd.f32 %v1920, %v2573
      %v2575 = vpop.f32.mrb[0].mxu0
      %v2576 = vpop.f32.mrb[0].mxu0
      %v2577 = vadd.f32 %v1923, %v2576
      %v2578 = vpop.f32.mrb[0].mxu0
      %2579 = vmatprep.mubr.bf16.mxu0 %v2154
      %2580 = vmatmul.mubr.bf16.gmra.mrb[0].mxu0 %v2152
      %v2581 = vpop.f32.mrb[0].mxu0
      %v2582 = vadd.f32 %v1928, %v2581
      %v2583 = vpop.f32.mrb[0].mxu0
      %v2584 = vpop.f32.mrb[0].mxu0
      %v2585 = vadd.f32 %v1931, %v2584
      %v2586 = vpop.f32.mrb[0].mxu0
      %2587 = vmatprep.mubr.bf16.mxu0 %v2160
      %2588 = vmatmul.mubr.bf16.gmra.mrb[0].mxu0 %v2158
      %v2589 = vpop.f32.mrb[0].mxu0
      %v2590 = vadd.f32 %v1936, %v2589
      %v2591 = vpop.f32.mrb[0].mxu0
      %v2592 = vpop.f32.mrb[0].mxu0
      %v2593 = vadd.f32 %v1939, %v2592
      %v2594 = vpop.f32.mrb[0].mxu0
      %2595 = vmatprep.mubr.bf16.mxu0 %v2159
      %2596 = vmatmul.mubr.bf16.gmra.mrb[0].mxu0 %v2157
      %v2597 = vpop.f32.mrb[0].mxu0
      %v2598 = vadd.f32 %v1944, %v2597
      %v2599 = vpop.f32.mrb[0].mxu0
      %v2600 = vpop.f32.mrb[0].mxu0
      %v2601 = vpop.f32.mrb[0].mxu0
      %2602 = vdwg.mxu0
      %2603 = vmatprep.subr.bf16.mxu0 0
      %2604 = vmatpush1.bf16.msra.mxu0 %v2347
      %2605 = vmatprep.subr.bf16.mxu0 0
      %2606 = vmatpush1.bf16.msra.mxu0 %v2348
      %2607 = vmatprep.subr.bf16.mxu0 0
      %2608 = vmatpush1.bf16.msra.mxu0 %v2349
      %2609 = vmatprep.subr.bf16.mxu0 0
      %2610 = vmatpush1.bf16.msra.mxu0 %v2350
      %2611 = vmatprep.subr.bf16.mxu0 0
      %2612 = vmatpush1.bf16.msra.mxu0 %v2351
      %2613 = vmatprep.subr.bf16.mxu0 0
      %2614 = vmatpush1.bf16.msra.mxu0 %v2352
      %2615 = vmatprep.subr.bf16.mxu0 0
      %2616 = vmatpush1.bf16.msra.mxu0 %v2353
      %2617 = vmatprep.subr.bf16.mxu0 0
      %2618 = vmatpush1.bf16.msra.mxu0 %v2354
      %2619 = vmatprep.subr.bf16.mxu0 0
      %2620 = vmatpush1.bf16.msra.mxu0 0
      %2621 = vmatprep.subr.bf16.mxu0 0
      %2622 = vmatpush1.bf16.msra.mxu0 0
      %2623 = vmatprep.subr.bf16.mxu0 0
      %2624 = vmatpush1.bf16.msra.mxu0 0
      %2625 = vmatprep.subr.bf16.mxu0 0
      %2626 = vmatpush1.bf16.msra.mxu0 0
      %2627 = vmatprep.subr.bf16.mxu0 0
      %2628 = vmatpush1.bf16.msra.mxu0 0
      %2629 = vmatprep.subr.bf16.mxu0 0
      %2630 = vmatpush1.bf16.msra.mxu0 0
      %2631 = vmatprep.subr.bf16.mxu0 0
      %2632 = vmatpush1.bf16.msra.mxu0 0
      %2633 = vmatprep.subr.bf16.mxu0 0
      %2634 = vmatpush1.bf16.msra.mxu0 0
      %2635 = vmatprep.mubr.bf16.mxu0 0
      %2636 = vmatmul.mubr.bf16.gmra.mrb[0].mxu0 %v2030
      %v2637 = vpop.f32.mrb[0].mxu0
      %v2638 = vadd.f32 %v2414, %v2637
      %v2639 = vpop.f32.mrb[0].mxu0
      %v2640 = vpop.f32.mrb[0].mxu0
      %v2641 = vadd.f32 %v2417, %v2640
      %v2642 = vpop.f32.mrb[0].mxu0
      %2643 = vmatprep.mubr.bf16.mxu0 0
      %2644 = vmatmul.mubr.bf16.gmra.mrb[0].mxu0 %v2036
      %v2645 = vpop.f32.mrb[0].mxu0
      %v2646 = vadd.f32 %v2422, %v2645
      %v2647 = vpop.f32.mrb[0].mxu0
      %v2648 = vpop.f32.mrb[0].mxu0
      %v2649 = vadd.f32 %v2425, %v2648
      %v2650 = vpop.f32.mrb[0].mxu0
      %2651 = vmatprep.mubr.bf16.mxu0 0
      %2652 = vmatmul.mubr.bf16.gmra.mrb[0].mxu0 %v2042
      %v2653 = vpop.f32.mrb[0].mxu0
      %v2654 = vadd.f32 %v2430, %v2653
      %v2655 = vpop.f32.mrb[0].mxu0
      %v2656 = vpop.f32.mrb[0].mxu0
      %v2657 = vadd.f32 %v2433, %v2656
      %v2658 = vpop.f32.mrb[0].mxu0
      %2659 = vmatprep.mubr.bf16.mxu0 0
      %2660 = vmatmul.mubr.bf16.gmra.mrb[0].mxu0 %v2048
      %v2661 = vpop.f32.mrb[0].mxu0
      %v2662 = vadd.f32 %v2438, %v2661
      %v2663 = vpop.f32.mrb[0].mxu0
      %v2664 = vpop.f32.mrb[0].mxu0
      %v2665 = vadd.f32 %v2441, %v2664
      %v2666 = vpop.f32.mrb[0].mxu0
      %2667 = vmatprep.mubr.bf16.mxu0 0
      %2668 = vmatmul.mubr.bf16.gmra.mrb[0].mxu0 %v2054
      %v2669 = vpop.f32.mrb[0].mxu0
      %v2670 = vadd.f32 %v2446, %v2669
      %v2671 = vpop.f32.mrb[0].mxu0
      %v2672 = vpop.f32.mrb[0].mxu0
      %v2673 = vadd.f32 %v2449, %v2672
      %v2674 = vpop.f32.mrb[0].mxu0
      %2675 = vmatprep.mubr.bf16.mxu0 0
      %2676 = vmatmul.mubr.bf16.gmra.mrb[0].mxu0 %v2060
      %v2677 = vpop.f32.mrb[0].mxu0
      %v2678 = vadd.f32 %v2454, %v2677
      %v2679 = vpop.f32.mrb[0].mxu0
      %v2680 = vpop.f32.mrb[0].mxu0
      %v2681 = vadd.f32 %v2457, %v2680
      %v2682 = vpop.f32.mrb[0].mxu0
      %2683 = vmatprep.mubr.bf16.mxu0 0
      %2684 = vmatmul.mubr.bf16.gmra.mrb[0].mxu0 %v2066
      %v2685 = vpop.f32.mrb[0].mxu0
      %v2686 = vadd.f32 %v2462, %v2685
      %v2687 = vpop.f32.mrb[0].mxu0
      %v2688 = vpop.f32.mrb[0].mxu0
      %v2689 = vadd.f32 %v2465, %v2688
      %v2690 = vpop.f32.mrb[0].mxu0
      %2691 = vmatprep.mubr.bf16.mxu0 0
      %2692 = vmatmul.mubr.bf16.gmra.mrb[0].mxu0 %v2072
      %v2693 = vpop.f32.mrb[0].mxu0
      %v2694 = vadd.f32 %v2470, %v2693
      %v2695 = vpop.f32.mrb[0].mxu0
      %v2696 = vpop.f32.mrb[0].mxu0
      %v2697 = vadd.f32 %v2473, %v2696
      %v2698 = vpop.f32.mrb[0].mxu0
      %2699 = vmatprep.mubr.bf16.mxu0 0
      %2700 = vmatmul.mubr.bf16.gmra.mrb[0].mxu0 %v2078
      %v2701 = vpop.f32.mrb[0].mxu0
      %v2702 = vadd.f32 %v2478, %v2701
      %v2703 = vpop.f32.mrb[0].mxu0
      %v2704 = vpop.f32.mrb[0].mxu0
      %v2705 = vadd.f32 %v2481, %v2704
      %v2706 = vpop.f32.mrb[0].mxu0
      %2707 = vmatprep.mubr.bf16.mxu0 0
      %2708 = vmatmul.mubr.bf16.gmra.mrb[0].mxu0 %v2084
      %v2709 = vpop.f32.mrb[0].mxu0
      %v2710 = vadd.f32 %v2486, %v2709
      %v2711 = vpop.f32.mrb[0].mxu0
      %v2712 = vpop.f32.mrb[0].mxu0
      %v2713 = vadd.f32 %v2489, %v2712
      %v2714 = vpop.f32.mrb[0].mxu0
      %2715 = vmatprep.mubr.bf16.mxu0 0
      %2716 = vmatmul.mubr.bf16.gmra.mrb[0].mxu0 %v2090
      %v2717 = vpop.f32.mrb[0].mxu0
      %v2718 = vadd.f32 %v2494, %v2717
      %v2719 = vpop.f32.mrb[0].mxu0
      %v2720 = vpop.f32.mrb[0].mxu0
      %v2721 = vadd.f32 %v2497, %v2720
      %v2722 = vpop.f32.mrb[0].mxu0
      %2723 = vmatprep.mubr.bf16.mxu0 0
      %2724 = vmatmul.mubr.bf16.gmra.mrb[0].mxu0 %v2096
      %v2725 = vpop.f32.mrb[0].mxu0
      %v2726 = vadd.f32 %v2502, %v2725
      %v2727 = vpop.f32.mrb[0].mxu0
      %v2728 = vpop.f32.mrb[0].mxu0
      %v2729 = vadd.f32 %v2505, %v2728
      %v2730 = vpop.f32.mrb[0].mxu0
      %2731 = vmatprep.mubr.bf16.mxu0 0
      %2732 = vmatmul.mubr.bf16.gmra.mrb[0].mxu0 %v2102
      %v2733 = vpop.f32.mrb[0].mxu0
      %v2734 = vadd.f32 %v2510, %v2733
      %v2735 = vpop.f32.mrb[0].mxu0
      %v2736 = vpop.f32.mrb[0].mxu0
      %v2737 = vadd.f32 %v2513, %v2736
      %v2738 = vpop.f32.mrb[0].mxu0
      %2739 = vmatprep.mubr.bf16.mxu0 0
      %2740 = vmatmul.mubr.bf16.gmra.mrb[0].mxu0 %v2108
      %v2741 = vpop.f32.mrb[0].mxu0
      %v2742 = vadd.f32 %v2518, %v2741
      %v2743 = vpop.f32.mrb[0].mxu0
      %v2744 = vpop.f32.mrb[0].mxu0
      %v2745 = vadd.f32 %v2521, %v2744
      %v2746 = vpop.f32.mrb[0].mxu0
      %2747 = vmatprep.mubr.bf16.mxu0 0
      %2748 = vmatmul.mubr.bf16.gmra.mrb[0].mxu0 %v2114
      %v2749 = vpop.f32.mrb[0].mxu0
      %v2750 = vadd.f32 %v2526, %v2749
      %v2751 = vpop.f32.mrb[0].mxu0
      %v2752 = vpop.f32.mrb[0].mxu0
      %v2753 = vadd.f32 %v2529, %v2752
      %v2754 = vpop.f32.mrb[0].mxu0
      %2755 = vmatprep.mubr.bf16.mxu0 0
      %2756 = vmatmul.mubr.bf16.gmra.mrb[0].mxu0 %v2120
      %v2757 = vpop.f32.mrb[0].mxu0
      %v2758 = vadd.f32 %v2534, %v2757
      %v2759 = vpop.f32.mrb[0].mxu0
      %v2760 = vpop.f32.mrb[0].mxu0
      %v2761 = vadd.f32 %v2537, %v2760
      %v2762 = vpop.f32.mrb[0].mxu0
      %2763 = vmatprep.mubr.bf16.mxu0 0
      %2764 = vmatmul.mubr.bf16.gmra.mrb[0].mxu0 %v2126
      %v2765 = vpop.f32.mrb[0].mxu0
      %v2766 = vadd.f32 %v2542, %v2765
      %v2767 = vpop.f32.mrb[0].mxu0
      %v2768 = vpop.f32.mrb[0].mxu0
      %v2769 = vadd.f32 %v2545, %v2768
      %v2770 = vpop.f32.mrb[0].mxu0
      %2771 = vmatprep.mubr.bf16.mxu0 0
      %2772 = vmatmul.mubr.bf16.gmra.mrb[0].mxu0 %v2132
      %v2773 = vpop.f32.mrb[0].mxu0
      %v2774 = vadd.f32 %v2550, %v2773
      %v2775 = vpop.f32.mrb[0].mxu0
      %v2776 = vpop.f32.mrb[0].mxu0
      %v2777 = vadd.f32 %v2553, %v2776
      %v2778 = vpop.f32.mrb[0].mxu0
      %2779 = vmatprep.mubr.bf16.mxu0 0
      %2780 = vmatmul.mubr.bf16.gmra.mrb[0].mxu0 %v2138
      %v2781 = vpop.f32.mrb[0].mxu0
      %v2782 = vadd.f32 %v2558, %v2781
      %v2783 = vpop.f32.mrb[0].mxu0
      %v2784 = vpop.f32.mrb[0].mxu0
      %v2785 = vadd.f32 %v2561, %v2784
      %v2786 = vpop.f32.mrb[0].mxu0
      %2787 = vmatprep.mubr.bf16.mxu0 0
      %2788 = vmatmul.mubr.bf16.gmra.mrb[0].mxu0 %v2144
      %v2789 = vpop.f32.mrb[0].mxu0
      %v2790 = vadd.f32 %v2566, %v2789
      %v2791 = vpop.f32.mrb[0].mxu0
      %v2792 = vpop.f32.mrb[0].mxu0
      %v2793 = vadd.f32 %v2569, %v2792
      %v2794 = vpop.f32.mrb[0].mxu0
      %2795 = vmatprep.mubr.bf16.mxu0 0
      %2796 = vmatmul.mubr.bf16.gmra.mrb[0].mxu0 %v2150
      %v2797 = vpop.f32.mrb[0].mxu0
      %v2798 = vadd.f32 %v2574, %v2797
      %v2799 = vpop.f32.mrb[0].mxu0
      %v2800 = vpop.f32.mrb[0].mxu0
      %v2801 = vadd.f32 %v2577, %v2800
      %v2802 = vpop.f32.mrb[0].mxu0
      %2803 = vmatprep.mubr.bf16.mxu0 0
      %2804 = vmatmul.mubr.bf16.gmra.mrb[0].mxu0 %v2156
      %v2805 = vpop.f32.mrb[0].mxu0
      %v2806 = vadd.f32 %v2582, %v2805
      %v2807 = vpop.f32.mrb[0].mxu0
      %v2808 = vpop.f32.mrb[0].mxu0
      %v2809 = vadd.f32 %v2585, %v2808
      %v2810 = vpop.f32.mrb[0].mxu0
      %2811 = vmatprep.mubr.bf16.mxu0 0
      %2812 = vmatmul.mubr.bf16.gmra.mrb[0].mxu0 %v2162
      %v2813 = vpop.f32.mrb[0].mxu0
      %v2814 = vadd.f32 %v2590, %v2813
      %v2815 = vpop.f32.mrb[0].mxu0
      %v2816 = vpop.f32.mrb[0].mxu0
      %v2817 = vadd.f32 %v2593, %v2816
      %v2818 = vpop.f32.mrb[0].mxu0
      %2819 = vmatprep.mubr.bf16.mxu0 0
      %2820 = vmatmul.mubr.bf16.gmra.mrb[0].mxu0 %v2161
      %v2821 = vpop.f32.mrb[0].mxu0
      %v2822 = vadd.f32 %v2598, %v2821
      %v2823 = vpop.f32.mrb[0].mxu0
      %v2824 = vpop.f32.mrb[0].mxu0
      %v2825 = vpop.f32.mrb[0].mxu0
      %2826 = vdwg.mxu0
      %v2827 = vld [vmem:[#allocation2 + $0x48] sm:$0xf0]
      %v2828 = vld [vmem:[#allocation2 + $0x50] sm:$0xf0]
      %v2829 = vld [vmem:[#allocation2 + $0x58] sm:$0xf0]
      %v2830 = vld [vmem:[#allocation2 + $0x60] sm:$0xff]
      %v2831 = vld [vmem:[#allocation2 + $0x68] sm:$0xff]
      %v2832 = vld [vmem:[#allocation2 + $0x70] sm:$0xff]
      %v2833 = vld [vmem:[#allocation2 + $0x78] sm:$0xff]
      %v2834 = vld [vmem:[#allocation2 + $0x80] sm:$0xff]
      %v2835 = vld [vmem:[#allocation2 + $0x88] sm:$0xff]
      %v2836 = vld [vmem:[#allocation2 + $0x90] sm:$0xff]
      %v2837 = vld [vmem:[#allocation2 + $0x98] sm:$0xff]
      %v2838 = vld [vmem:[#allocation2 + $0xa0] sm:$0xff]
      %v2839 = vld [vmem:[#allocation2 + $0xa8] sm:$0xff]
      %v2840 = vld [vmem:[#allocation2 + $0xb0] sm:$0xff]
      %v2841 = vld [vmem:[#allocation2 + $0xb8] sm:$0xff]
      %v2842 = vld [vmem:[#allocation2 + $0xc0] sm:$0xff]
      %v2843 = vld [vmem:[#allocation2 + $0xc8] sm:$0xff]
      %v2844 = vld [vmem:[#allocation2 + $0xd0] sm:$0xff]
      %v2845 = vld [vmem:[#allocation2 + $0xd8] sm:$0xff]
      %v2846 = vld [vmem:[#allocation2 + $0xe0] sm:$0xff]
      %v2847 = vld [vmem:[#allocation2 + $0xe8] sm:$0xff]
      %v2848 = vld [vmem:[#allocation2 + $0xf0] sm:$0xff]
      %v2849 = vld [vmem:[#allocation2 + $0xf8] sm:$0xff]
      %v2850 = vld [vmem:[#allocation2 + $0x100] sm:$0xff]
      %v2851 = vld [vmem:[#allocation2 + $0x108] sm:$0xff]
      %v2852 = vld [vmem:[#allocation2 + $0x110] sm:$0xff]
      %v2853 = vld [vmem:[#allocation2 + $0x118] sm:$0xff]
      %v2854 = vld [vmem:[#allocation2 + $0x120] sm:$0xff]
      %v2855 = vld [vmem:[#allocation2 + $0x128] sm:$0xff]
      %v2856 = vld [vmem:[#allocation2 + $0x130] sm:$0xff]
      %v2857 = vld [vmem:[#allocation2 + $0x138] sm:$0xff]
      %v2858 = vld [vmem:[#allocation2 + $0x140] sm:$0xff]
      %v2859 = vld [vmem:[#allocation2 + $0x148] sm:$0xff]
      %v2860 = vld [vmem:[#allocation2 + $0x150] sm:$0xff]
      %v2861 = vld [vmem:[#allocation2 + $0x158] sm:$0xff]
      %v2862 = vld [vmem:[#allocation2 + $0x160] sm:$0xff]
      %v2863 = vld [vmem:[#allocation2 + $0x168] sm:$0xff]
      %v2864 = vld [vmem:[#allocation2 + $0x170] sm:$0xff]
      %v2865 = vld [vmem:[#allocation2 + $0x178] sm:$0xff]
      %v2866 = vld [vmem:[#allocation2 + $0x180] sm:$0xff]
      %v2867 = vld [vmem:[#allocation2 + $0x188] sm:$0xff]
      %v2868 = vld [vmem:[#allocation2 + $0x190] sm:$0xff]
      %v2869 = vld [vmem:[#allocation2 + $0x198] sm:$0xff]
      %v2870 = vld [vmem:[#allocation2 + $0x1a0] sm:$0xff]
      %v2871 = vld [vmem:[#allocation2 + $0x1a8] sm:$0xff]
      %v2872 = vld [vmem:[#allocation2 + $0x1b0] sm:$0xff]
      %v2873 = vld [vmem:[#allocation2 + $0x1b8] sm:$0xff]
      %v2874 = vld [vmem:[#allocation2 + $0x1c0] sm:$0xff]
      %v2875 = vld [vmem:[#allocation2 + $0x1c8] sm:$0xff]
      %v2876 = vld [vmem:[#allocation2 + $0x1d0] sm:$0xff]
      %v2877 = vld [vmem:[#allocation2 + $0x1d8] sm:$0xff]
      %v2878 = vld [vmem:[#allocation2 + $0x1e0] sm:$0xff]
      %v2879 = vld [vmem:[#allocation2 + $0x1e8] sm:$0xff]
      %v2880 = vld [vmem:[#allocation2 + $0x1f0] sm:$0xff]
      %v2881 = vld [vmem:[#allocation2 + $0x1f8] sm:$0xff]
      %v2882 = vld [vmem:[#allocation2 + $0x200] sm:$0xff]
      %v2883 = vld [vmem:[#allocation2 + $0x208] sm:$0xff]
      %v2884 = vld [vmem:[#allocation2 + $0x210] sm:$0xff]
      %v2885 = vld [vmem:[#allocation2 + $0x218] sm:$0xff]
      %v2886 = vld [vmem:[#allocation2 + $0x220] sm:$0xff]
      %v2887 = vld [vmem:[#allocation2 + $0x228] sm:$0xff]
      %v2888 = vld [vmem:[#allocation2 + $0x230] sm:$0xff]
      %v2889 = vld [vmem:[#allocation2 + $0x238] sm:$0xff]
      %v2890 = vld [vmem:[#allocation2 + $0x240] sm:$0xff]
      %v2891 = vld [vmem:[#allocation2 + $0x248] sm:$0xff]
      %v2892 = vld [vmem:[#allocation2 + $0x250] sm:$0xff]
      %v2893 = vld [vmem:[#allocation2 + $0x258] sm:$0xff]
      %v2894 = vld [vmem:[#allocation2 + $0x260] sm:$0xff]
      %v2895 = vld [vmem:[#allocation2 + $0x268] sm:$0xff]
      %v2896 = vld [vmem:[#allocation2 + $0x270] sm:$0xff]
      %v2897 = vld [vmem:[#allocation2 + $0x278] sm:$0xff]
      %v2898 = vld [vmem:[#allocation2 + $0x280] sm:$0xff]
      %s2899 = scalar_lea.vmem %s1, 384
      %v2900 = vld [vmem:[%s2899] sm:$0xf]
      %v2901 = vld [vmem:[%s2899 + $0x4] sm:$0xf]
      %v2902 = vld [vmem:[%s2899 + $0x8] sm:$0xf]
      %v2903 = vld [vmem:[%s2899 + $0xc] sm:$0xf]
      %v2904 = vld [vmem:[%s2899 + $0x10] sm:$0xf]
      %v2905 = vld [vmem:[%s2899 + $0x14] sm:$0xf]
      %v2906 = vld [vmem:[%s2899 + $0x18] sm:$0xf]
      %v2907 = vld [vmem:[%s2899 + $0x1c] sm:$0xf]
      %v2908 = vld [vmem:[%s2899 + $0x20] sm:$0xf]
      %v2909 = vld [vmem:[%s2899 + $0x24] sm:$0xf]
      %v2910 = vld [vmem:[%s2899 + $0x28] sm:$0xf]
      %v2911 = vld [vmem:[%s2899 + $0x2c] sm:$0xf]
      %v2912 = vld [vmem:[%s2899 + $0x30] sm:$0xf]
      %v2913 = vld [vmem:[%s2899 + $0x34] sm:$0xf]
      %v2914 = vld [vmem:[%s2899 + $0x38] sm:$0xf]
      %v2915 = vld [vmem:[%s2899 + $0x3c] sm:$0xf]
      %v2916 = vld [vmem:[%s2899 + $0x40] sm:$0xf]
      %v2917 = vld [vmem:[%s2899 + $0x44] sm:$0xf]
      %v2918 = vld [vmem:[%s2899 + $0x48] sm:$0xf]
      %v2919 = vld [vmem:[%s2899 + $0x4c] sm:$0xf]
      %v2920 = vld [vmem:[%s2899 + $0x50] sm:$0xf]
      %v2921 = vld [vmem:[%s2899 + $0x54] sm:$0xf]
      %v2922 = vld [vmem:[%s2899 + $0x58] sm:$0xf]
      %v2923 = vld [vmem:[%s2899 + $0x5c] sm:$0xf]
      %v2924 = vld [vmem:[%s2899 + $0x60] sm:$0xf]
      %v2925 = vld [vmem:[%s2899 + $0x64] sm:$0xf]
      %v2926 = vld [vmem:[%s2899 + $0x68] sm:$0xf]
      %v2927 = vld [vmem:[%s2899 + $0x6c] sm:$0xf]
      %v2928 = vld [vmem:[%s2899 + $0x70] sm:$0xf]
      %v2929 = vld [vmem:[%s2899 + $0x74] sm:$0xf]
      %v2930 = vld [vmem:[%s2899 + $0x78] sm:$0xf]
      %v2931 = vld [vmem:[%s2899 + $0x7c] sm:$0xf]
      %v2932 = vld [vmem:[%s2899 + $0x80] sm:$0xf]
      %v2933 = vld [vmem:[%s2899 + $0x84] sm:$0xf]
      %v2934 = vld [vmem:[%s2899 + $0x88] sm:$0xf]
      %v2935 = vld [vmem:[%s2899 + $0x8c] sm:$0xf]
      %v2936 = vld [vmem:[%s2899 + $0x90] sm:$0xf]
      %v2937 = vld [vmem:[%s2899 + $0x94] sm:$0xf]
      %v2938 = vld [vmem:[%s2899 + $0x98] sm:$0xf]
      %v2939 = vld [vmem:[%s2899 + $0x9c] sm:$0xf]
      %v2940 = vld [vmem:[%s2899 + $0xa0] sm:$0xf]
      %v2941 = vld [vmem:[%s2899 + $0xa4] sm:$0xf]
      %v2942 = vld [vmem:[%s2899 + $0xa8] sm:$0xf]
      %v2943 = vld [vmem:[%s2899 + $0xac] sm:$0xf]
      %v2944 = vld [vmem:[%s2899 + $0xb0] sm:$0xf]
      %v2945 = vld [vmem:[%s2899 + $0xb4] sm:$0xf]
      %v2946 = vld [vmem:[%s2899 + $0xb8] sm:$0xf]
      %v2947 = vld [vmem:[%s2899 + $0xbc] sm:$0xf]
      %v3020 = vrot.slane %v2827, 4
      %v3021 = vrot.slane %v2830, 4
      %v3022 = vsel %vm2021, %v3020, %v3021
      %v3023 = vrot.slane %v2828, 4
      %v3024 = vrot.slane %v2831, 4
      %v3025 = vsel %vm2021, %v3023, %v3024
      %v3026 = vrot.slane %v2829, 4
      %v3027 = vrot.slane %v2832, 4
      %v3028 = vsel %vm2021, %v3026, %v3027
      %v3029 = vrot.slane %v2833, 4
      %v3030 = vsel %vm2021, %v3021, %v3029
      %v3031 = vrot.slane %v2834, 4
      %v3032 = vsel %vm2021, %v3024, %v3031
      %v3033 = vrot.slane %v2835, 4
      %v3034 = vsel %vm2021, %v3027, %v3033
      %v3035 = vrot.slane %v2836, 4
      %v3036 = vsel %vm2021, %v3029, %v3035
      %v3037 = vrot.slane %v2837, 4
      %v3038 = vsel %vm2021, %v3031, %v3037
      %v3039 = vrot.slane %v2838, 4
      %v3040 = vsel %vm2021, %v3033, %v3039
      %v3041 = vrot.slane %v2839, 4
      %v3042 = vsel %vm2021, %v3035, %v3041
      %v3043 = vrot.slane %v2840, 4
      %v3044 = vsel %vm2021, %v3037, %v3043
      %v3045 = vrot.slane %v2841, 4
      %v3046 = vsel %vm2021, %v3039, %v3045
      %v3047 = vrot.slane %v2842, 4
      %v3048 = vsel %vm2021, %v3041, %v3047
      %v3049 = vrot.slane %v2843, 4
      %v3050 = vsel %vm2021, %v3043, %v3049
      %v3051 = vrot.slane %v2844, 4
      %v3052 = vsel %vm2021, %v3045, %v3051
      %v3053 = vrot.slane %v2845, 4
      %v3054 = vsel %vm2021, %v3047, %v3053
      %v3055 = vrot.slane %v2846, 4
      %v3056 = vsel %vm2021, %v3049, %v3055
      %v3057 = vrot.slane %v2847, 4
      %v3058 = vsel %vm2021, %v3051, %v3057
      %v3059 = vrot.slane %v2848, 4
      %v3060 = vsel %vm2021, %v3053, %v3059
      %v3061 = vrot.slane %v2849, 4
      %v3062 = vsel %vm2021, %v3055, %v3061
      %v3063 = vrot.slane %v2850, 4
      %v3064 = vsel %vm2021, %v3057, %v3063
      %v3065 = vrot.slane %v2851, 4
      %v3066 = vsel %vm2021, %v3059, %v3065
      %v3067 = vrot.slane %v2852, 4
      %v3068 = vsel %vm2021, %v3061, %v3067
      %v3069 = vrot.slane %v2853, 4
      %v3070 = vsel %vm2021, %v3063, %v3069
      %v3071 = vrot.slane %v2854, 4
      %v3072 = vsel %vm2021, %v3065, %v3071
      %v3073 = vrot.slane %v2855, 4
      %v3074 = vsel %vm2021, %v3067, %v3073
      %v3075 = vrot.slane %v2856, 4
      %v3076 = vsel %vm2021, %v3069, %v3075
      %v3077 = vrot.slane %v2857, 4
      %v3078 = vsel %vm2021, %v3071, %v3077
      %v3079 = vrot.slane %v2858, 4
      %v3080 = vsel %vm2021, %v3073, %v3079
      %v3081 = vrot.slane %v2859, 4
      %v3082 = vsel %vm2021, %v3075, %v3081
      %v3083 = vrot.slane %v2860, 4
      %v3084 = vsel %vm2021, %v3077, %v3083
      %v3085 = vrot.slane %v2861, 4
      %v3086 = vsel %vm2021, %v3079, %v3085
      %v3087 = vrot.slane %v2862, 4
      %v3088 = vsel %vm2021, %v3081, %v3087
      %v3089 = vrot.slane %v2863, 4
      %v3090 = vsel %vm2021, %v3083, %v3089
      %v3091 = vrot.slane %v2864, 4
      %v3092 = vsel %vm2021, %v3085, %v3091
      %v3093 = vrot.slane %v2865, 4
      %v3094 = vsel %vm2021, %v3087, %v3093
      %v3095 = vrot.slane %v2866, 4
      %v3096 = vsel %vm2021, %v3089, %v3095
      %v3097 = vrot.slane %v2867, 4
      %v3098 = vsel %vm2021, %v3091, %v3097
      %v3099 = vrot.slane %v2868, 4
      %v3100 = vsel %vm2021, %v3093, %v3099
      %v3101 = vrot.slane %v2869, 4
      %v3102 = vsel %vm2021, %v3095, %v3101
      %v3103 = vrot.slane %v2870, 4
      %v3104 = vsel %vm2021, %v3097, %v3103
      %v3105 = vrot.slane %v2871, 4
      %v3106 = vsel %vm2021, %v3099, %v3105
      %v3107 = vrot.slane %v2872, 4
      %v3108 = vsel %vm2021, %v3101, %v3107
      %v3109 = vrot.slane %v2873, 4
      %v3110 = vsel %vm2021, %v3103, %v3109
      %v3111 = vrot.slane %v2874, 4
      %v3112 = vsel %vm2021, %v3105, %v3111
      %v3113 = vrot.slane %v2875, 4
      %v3114 = vsel %vm2021, %v3107, %v3113
      %v3115 = vrot.slane %v2876, 4
      %v3116 = vsel %vm2021, %v3109, %v3115
      %v3117 = vrot.slane %v2877, 4
      %v3118 = vsel %vm2021, %v3111, %v3117
      %v3119 = vrot.slane %v2878, 4
      %v3120 = vsel %vm2021, %v3113, %v3119
      %v3121 = vrot.slane %v2879, 4
      %v3122 = vsel %vm2021, %v3115, %v3121
      %v3123 = vrot.slane %v2880, 4
      %v3124 = vsel %vm2021, %v3117, %v3123
      %v3125 = vrot.slane %v2881, 4
      %v3126 = vsel %vm2021, %v3119, %v3125
      %v3127 = vrot.slane %v2882, 4
      %v3128 = vsel %vm2021, %v3121, %v3127
      %v3129 = vrot.slane %v2883, 4
      %v3130 = vsel %vm2021, %v3123, %v3129
      %v3131 = vrot.slane %v2884, 4
      %v3132 = vsel %vm2021, %v3125, %v3131
      %v3133 = vrot.slane %v2885, 4
      %v3134 = vsel %vm2021, %v3127, %v3133
      %v3135 = vrot.slane %v2886, 4
      %v3136 = vsel %vm2021, %v3129, %v3135
      %v3137 = vrot.slane %v2887, 4
      %v3138 = vsel %vm2021, %v3131, %v3137
      %v3139 = vrot.slane %v2888, 4
      %v3140 = vsel %vm2021, %v3133, %v3139
      %v3141 = vrot.slane %v2889, 4
      %v3142 = vsel %vm2021, %v3135, %v3141
      %v3143 = vrot.slane %v2890, 4
      %v3144 = vsel %vm2021, %v3137, %v3143
      %v3145 = vrot.slane %v2891, 4
      %v3146 = vsel %vm2021, %v3139, %v3145
      %v3147 = vrot.slane %v2892, 4
      %v3148 = vsel %vm2021, %v3141, %v3147
      %v3149 = vrot.slane %v2893, 4
      %v3150 = vsel %vm2021, %v3143, %v3149
      %v3151 = vrot.slane %v2894, 4
      %v3152 = vsel %vm2021, %v3145, %v3151
      %v3153 = vrot.slane %v2895, 4
      %v3154 = vsel %vm2021, %v3147, %v3153
      %v3155 = vrot.slane %v2896, 4
      %v3156 = vsel %vm2021, %v3149, %v3155
      %v3157 = vrot.slane %v2897, 4
      %v3158 = vsel %vm2021, %v3151, %v3157
      %v3159 = vrot.slane %v2898, 4
      %v3160 = vsel %vm2021, %v3153, %v3159
      %v3281 = vunpack.c.l.b16 %v2900
      %v3282 = vunpack.c.l.b16 %v2901
      %v3283 = vunpack.c.l.b16 %v2902
      %v3284 = vunpack.c.l.b16 %v2903
      %v3285 = vunpack.c.l.b16 %v2904
      %v3286 = vunpack.c.l.b16 %v2905
      %v3287 = vunpack.c.l.b16 %v2906
      %v3288 = vunpack.c.l.b16 %v2907
      %v3289 = vunpack.c.l.b16 %v2908
      %v3290 = vunpack.c.l.b16 %v2909
      %v3291 = vunpack.c.l.b16 %v2910
      %v3292 = vunpack.c.l.b16 %v2911
      %v3293 = vunpack.c.l.b16 %v2912
      %v3294 = vunpack.c.l.b16 %v2913
      %v3295 = vunpack.c.l.b16 %v2914
      %v3296 = vunpack.c.l.b16 %v2915
      %v3297 = vunpack.c.l.b16 %v2916
      %v3298 = vunpack.c.l.b16 %v2917
      %v3299 = vunpack.c.l.b16 %v2918
      %v3300 = vunpack.c.l.b16 %v2919
      %v3301 = vunpack.c.l.b16 %v2920
      %v3302 = vunpack.c.l.b16 %v2921
      %v3303 = vunpack.c.l.b16 %v2922
      %v3304 = vunpack.c.l.b16 %v2923
      %v3305 = vunpack.c.l.b16 %v2924
      %v3306 = vunpack.c.l.b16 %v2925
      %v3307 = vunpack.c.l.b16 %v2926
      %v3308 = vunpack.c.l.b16 %v2927
      %v3309 = vunpack.c.l.b16 %v2928
      %v3310 = vunpack.c.l.b16 %v2929
      %v3311 = vunpack.c.l.b16 %v2930
      %v3312 = vunpack.c.l.b16 %v2931
      %v3313 = vunpack.c.l.b16 %v2932
      %v3314 = vunpack.c.l.b16 %v2933
      %v3315 = vunpack.c.l.b16 %v2934
      %v3316 = vunpack.c.l.b16 %v2935
      %v3317 = vunpack.c.l.b16 %v2936
      %v3318 = vunpack.c.l.b16 %v2937
      %v3319 = vunpack.c.l.b16 %v2938
      %v3320 = vunpack.c.l.b16 %v2939
      %v3321 = vunpack.c.l.b16 %v2940
      %v3322 = vunpack.c.l.b16 %v2941
      %v3323 = vunpack.c.l.b16 %v2942
      %v3324 = vunpack.c.l.b16 %v2943
      %v3325 = vunpack.c.l.b16 %v2944
      %v3326 = vunpack.c.l.b16 %v2945
      %v3327 = vunpack.c.l.b16 %v2946
      %v3328 = vunpack.c.l.b16 %v2947
      %v3329 = vpack.c.b16 %v3282, %v3281
      %v3330 = vpack.c.b16 %v3284, %v3283
      %v3331 = vpack.c.b16 %v3286, %v3285
      %v3332 = vpack.c.b16 %v3288, %v3287
      %v3333 = vpack.c.b16 %v3290, %v3289
      %v3334 = vpack.c.b16 %v3292, %v3291
      %v3335 = vpack.c.b16 %v3294, %v3293
      %v3336 = vpack.c.b16 %v3296, %v3295
      %v3337 = vpack.c.b16 %v3298, %v3297
      %v3338 = vpack.c.b16 %v3300, %v3299
      %v3339 = vpack.c.b16 %v3302, %v3301
      %v3340 = vpack.c.b16 %v3304, %v3303
      %v3341 = vpack.c.b16 %v3306, %v3305
      %v3342 = vpack.c.b16 %v3308, %v3307
      %v3343 = vpack.c.b16 %v3310, %v3309
      %v3344 = vpack.c.b16 %v3312, %v3311
      %v3345 = vpack.c.b16 %v3314, %v3313
      %v3346 = vpack.c.b16 %v3316, %v3315
      %v3347 = vpack.c.b16 %v3318, %v3317
      %v3348 = vpack.c.b16 %v3320, %v3319
      %v3349 = vpack.c.b16 %v3322, %v3321
      %v3350 = vpack.c.b16 %v3324, %v3323
      %v3351 = vpack.c.b16 %v3326, %v3325
      %v3352 = vpack.c.b16 %v3328, %v3327
      %3377 = vmatprep.subr.bf16.mxu0 0
      %3378 = vmatpush1.bf16.msra.mxu0 %v3329
      %3379 = vmatprep.subr.bf16.mxu0 0
      %3380 = vmatpush1.bf16.msra.mxu0 %v3330
      %3381 = vmatprep.subr.bf16.mxu0 0
      %3382 = vmatpush1.bf16.msra.mxu0 %v3331
      %3383 = vmatprep.subr.bf16.mxu0 0
      %3384 = vmatpush1.bf16.msra.mxu0 %v3332
      %3385 = vmatprep.subr.bf16.mxu0 0
      %3386 = vmatpush1.bf16.msra.mxu0 %v3333
      %3387 = vmatprep.subr.bf16.mxu0 0
      %3388 = vmatpush1.bf16.msra.mxu0 %v3334
      %3389 = vmatprep.subr.bf16.mxu0 0
      %3390 = vmatpush1.bf16.msra.mxu0 %v3335
      %3391 = vmatprep.subr.bf16.mxu0 0
      %3392 = vmatpush1.bf16.msra.mxu0 %v3336
      %3393 = vmatprep.subr.bf16.mxu0 0
      %3394 = vmatpush1.bf16.msra.mxu0 %v3337
      %3395 = vmatprep.subr.bf16.mxu0 0
      %3396 = vmatpush1.bf16.msra.mxu0 %v3338
      %3397 = vmatprep.subr.bf16.mxu0 0
      %3398 = vmatpush1.bf16.msra.mxu0 %v3339
      %3399 = vmatprep.subr.bf16.mxu0 0
      %3400 = vmatpush1.bf16.msra.mxu0 %v3340
      %3401 = vmatprep.subr.bf16.mxu0 0
      %3402 = vmatpush1.bf16.msra.mxu0 %v3341
      %3403 = vmatprep.subr.bf16.mxu0 0
      %3404 = vmatpush1.bf16.msra.mxu0 %v3342
      %3405 = vmatprep.subr.bf16.mxu0 0
      %3406 = vmatpush1.bf16.msra.mxu0 %v3343
      %3407 = vmatprep.subr.bf16.mxu0 0
      %3408 = vmatpush1.bf16.msra.mxu0 %v3344
      %3409 = vmatprep.mubr.bf16.mxu0 %v3025
      %3410 = vmatmul.mubr.bf16.gmra.mrb[0].mxu0 %v3022
      %v3411 = vpop.f32.mrb[0].mxu0
      %v3412 = vadd.f32 0.0, %v3411
      %v3413 = vpop.f32.mrb[0].mxu0
      %v3414 = vpop.f32.mrb[0].mxu0
      %v3415 = vadd.f32 0.0, %v3414
      %v3416 = vpop.f32.mrb[0].mxu0
      %3417 = vmatprep.mubr.bf16.mxu0 %v3032
      %3418 = vmatmul.mubr.bf16.gmra.mrb[0].mxu0 %v3030
      %v3419 = vpop.f32.mrb[0].mxu0
      %v3420 = vadd.f32 0.0, %v3419
      %v3421 = vpop.f32.mrb[0].mxu0
      %v3422 = vpop.f32.mrb[0].mxu0
      %v3423 = vadd.f32 0.0, %v3422
      %v3424 = vpop.f32.mrb[0].mxu0
      %3425 = vmatprep.mubr.bf16.mxu0 %v3038
      %3426 = vmatmul.mubr.bf16.gmra.mrb[0].mxu0 %v3036
      %v3427 = vpop.f32.mrb[0].mxu0
      %v3428 = vadd.f32 0.0, %v3427
      %v3429 = vpop.f32.mrb[0].mxu0
      %v3430 = vpop.f32.mrb[0].mxu0
      %v3431 = vadd.f32 0.0, %v3430
      %v3432 = vpop.f32.mrb[0].mxu0
      %3433 = vmatprep.mubr.bf16.mxu0 %v3044
      %3434 = vmatmul.mubr.bf16.gmra.mrb[0].mxu0 %v3042
      %v3435 = vpop.f32.mrb[0].mxu0
      %v3436 = vadd.f32 0.0, %v3435
      %v3437 = vpop.f32.mrb[0].mxu0
      %v3438 = vpop.f32.mrb[0].mxu0
      %v3439 = vadd.f32 0.0, %v3438
      %v3440 = vpop.f32.mrb[0].mxu0
      %3441 = vmatprep.mubr.bf16.mxu0 %v3050
      %3442 = vmatmul.mubr.bf16.gmra.mrb[0].mxu0 %v3048
      %v3443 = vpop.f32.mrb[0].mxu0
      %v3444 = vadd.f32 0.0, %v3443
      %v3445 = vpop.f32.mrb[0].mxu0
      %v3446 = vpop.f32.mrb[0].mxu0
      %v3447 = vadd.f32 0.0, %v3446
      %v3448 = vpop.f32.mrb[0].mxu0
      %3449 = vmatprep.mubr.bf16.mxu0 %v3056
      %3450 = vmatmul.mubr.bf16.gmra.mrb[0].mxu0 %v3054
      %v3451 = vpop.f32.mrb[0].mxu0
      %v3452 = vadd.f32 0.0, %v3451
      %v3453 = vpop.f32.mrb[0].mxu0
      %v3454 = vpop.f32.mrb[0].mxu0
      %v3455 = vadd.f32 0.0, %v3454
      %v3456 = vpop.f32.mrb[0].mxu0
      %3457 = vmatprep.mubr.bf16.mxu0 %v3062
      %3458 = vmatmul.mubr.bf16.gmra.mrb[0].mxu0 %v3060
      %v3459 = vpop.f32.mrb[0].mxu0
      %v3460 = vadd.f32 0.0, %v3459
      %v3461 = vpop.f32.mrb[0].mxu0
      %v3462 = vpop.f32.mrb[0].mxu0
      %v3463 = vadd.f32 0.0, %v3462
      %v3464 = vpop.f32.mrb[0].mxu0
      %3465 = vmatprep.mubr.bf16.mxu0 %v3068
      %3466 = vmatmul.mubr.bf16.gmra.mrb[0].mxu0 %v3066
      %v3467 = vpop.f32.mrb[0].mxu0
      %v3468 = vadd.f32 0.0, %v3467
      %v3469 = vpop.f32.mrb[0].mxu0
      %v3470 = vpop.f32.mrb[0].mxu0
      %v3471 = vadd.f32 0.0, %v3470
      %v3472 = vpop.f32.mrb[0].mxu0
      %3473 = vmatprep.mubr.bf16.mxu0 %v3074
      %3474 = vmatmul.mubr.bf16.gmra.mrb[0].mxu0 %v3072
      %v3475 = vpop.f32.mrb[0].mxu0
      %v3476 = vadd.f32 0.0, %v3475
      %v3477 = vpop.f32.mrb[0].mxu0
      %v3478 = vpop.f32.mrb[0].mxu0
      %v3479 = vadd.f32 0.0, %v3478
      %v3480 = vpop.f32.mrb[0].mxu0
      %3481 = vmatprep.mubr.bf16.mxu0 %v3080
      %3482 = vmatmul.mubr.bf16.gmra.mrb[0].mxu0 %v3078
      %v3483 = vpop.f32.mrb[0].mxu0
      %v3484 = vadd.f32 0.0, %v3483
      %v3485 = vpop.f32.mrb[0].mxu0
      %v3486 = vpop.f32.mrb[0].mxu0
      %v3487 = vadd.f32 0.0, %v3486
      %v3488 = vpop.f32.mrb[0].mxu0
      %3489 = vmatprep.mubr.bf16.mxu0 %v3086
      %3490 = vmatmul.mubr.bf16.gmra.mrb[0].mxu0 %v3084
      %v3491 = vpop.f32.mrb[0].mxu0
      %v3492 = vadd.f32 0.0, %v3491
      %v3493 = vpop.f32.mrb[0].mxu0
      %v3494 = vpop.f32.mrb[0].mxu0
      %v3495 = vadd.f32 0.0, %v3494
      %v3496 = vpop.f32.mrb[0].mxu0
      %3497 = vmatprep.mubr.bf16.mxu0 %v3092
      %3498 = vmatmul.mubr.bf16.gmra.mrb[0].mxu0 %v3090
      %v3499 = vpop.f32.mrb[0].mxu0
      %v3500 = vadd.f32 0.0, %v3499
      %v3501 = vpop.f32.mrb[0].mxu0
      %v3502 = vpop.f32.mrb[0].mxu0
      %v3503 = vadd.f32 0.0, %v3502
      %v3504 = vpop.f32.mrb[0].mxu0
      %3505 = vmatprep.mubr.bf16.mxu0 %v3098
      %3506 = vmatmul.mubr.bf16.gmra.mrb[0].mxu0 %v3096
      %v3507 = vpop.f32.mrb[0].mxu0
      %v3508 = vadd.f32 0.0, %v3507
      %v3509 = vpop.f32.mrb[0].mxu0
      %v3510 = vpop.f32.mrb[0].mxu0
      %v3511 = vadd.f32 0.0, %v3510
      %v3512 = vpop.f32.mrb[0].mxu0
      %3513 = vmatprep.mubr.bf16.mxu0 %v3104
      %3514 = vmatmul.mubr.bf16.gmra.mrb[0].mxu0 %v3102
      %v3515 = vpop.f32.mrb[0].mxu0
      %v3516 = vadd.f32 0.0, %v3515
      %v3517 = vpop.f32.mrb[0].mxu0
      %v3518 = vpop.f32.mrb[0].mxu0
      %v3519 = vadd.f32 0.0, %v3518
      %v3520 = vpop.f32.mrb[0].mxu0
      %3521 = vmatprep.mubr.bf16.mxu0 %v3110
      %3522 = vmatmul.mubr.bf16.gmra.mrb[0].mxu0 %v3108
      %v3523 = vpop.f32.mrb[0].mxu0
      %v3524 = vadd.f32 0.0, %v3523
      %v3525 = vpop.f32.mrb[0].mxu0
      %v3526 = vpop.f32.mrb[0].mxu0
      %v3527 = vadd.f32 0.0, %v3526
      %v3528 = vpop.f32.mrb[0].mxu0
      %3529 = vmatprep.mubr.bf16.mxu0 %v3116
      %3530 = vmatmul.mubr.bf16.gmra.mrb[0].mxu0 %v3114
      %v3531 = vpop.f32.mrb[0].mxu0
      %v3532 = vadd.f32 0.0, %v3531
      %v3533 = vpop.f32.mrb[0].mxu0
      %v3534 = vpop.f32.mrb[0].mxu0
      %v3535 = vadd.f32 0.0, %v3534
      %v3536 = vpop.f32.mrb[0].mxu0
      %3537 = vmatprep.mubr.bf16.mxu0 %v3122
      %3538 = vmatmul.mubr.bf16.gmra.mrb[0].mxu0 %v3120
      %v3539 = vpop.f32.mrb[0].mxu0
      %v3540 = vadd.f32 0.0, %v3539
      %v3541 = vpop.f32.mrb[0].mxu0
      %v3542 = vpop.f32.mrb[0].mxu0
      %v3543 = vadd.f32 0.0, %v3542
      %v3544 = vpop.f32.mrb[0].mxu0
      %3545 = vmatprep.mubr.bf16.mxu0 %v3128
      %3546 = vmatmul.mubr.bf16.gmra.mrb[0].mxu0 %v3126
      %v3547 = vpop.f32.mrb[0].mxu0
      %v3548 = vadd.f32 0.0, %v3547
      %v3549 = vpop.f32.mrb[0].mxu0
      %v3550 = vpop.f32.mrb[0].mxu0
      %v3551 = vadd.f32 0.0, %v3550
      %v3552 = vpop.f32.mrb[0].mxu0
      %3553 = vmatprep.mubr.bf16.mxu0 %v3134
      %3554 = vmatmul.mubr.bf16.gmra.mrb[0].mxu0 %v3132
      %v3555 = vpop.f32.mrb[0].mxu0
      %v3556 = vadd.f32 0.0, %v3555
      %v3557 = vpop.f32.mrb[0].mxu0
      %v3558 = vpop.f32.mrb[0].mxu0
      %v3559 = vadd.f32 0.0, %v3558
      %v3560 = vpop.f32.mrb[0].mxu0
      %3561 = vmatprep.mubr.bf16.mxu0 %v3140
      %3562 = vmatmul.mubr.bf16.gmra.mrb[0].mxu0 %v3138
      %v3563 = vpop.f32.mrb[0].mxu0
      %v3564 = vadd.f32 0.0, %v3563
      %v3565 = vpop.f32.mrb[0].mxu0
      %v3566 = vpop.f32.mrb[0].mxu0
      %v3567 = vadd.f32 0.0, %v3566
      %v3568 = vpop.f32.mrb[0].mxu0
      %3569 = vmatprep.mubr.bf16.mxu0 %v3146
      %3570 = vmatmul.mubr.bf16.gmra.mrb[0].mxu0 %v3144
      %v3571 = vpop.f32.mrb[0].mxu0
      %v3572 = vadd.f32 0.0, %v3571
      %v3573 = vpop.f32.mrb[0].mxu0
      %v3574 = vpop.f32.mrb[0].mxu0
      %v3575 = vadd.f32 0.0, %v3574
      %v3576 = vpop.f32.mrb[0].mxu0
      %3577 = vmatprep.mubr.bf16.mxu0 %v3152
      %3578 = vmatmul.mubr.bf16.gmra.mrb[0].mxu0 %v3150
      %v3579 = vpop.f32.mrb[0].mxu0
      %v3580 = vadd.f32 0.0, %v3579
      %v3581 = vpop.f32.mrb[0].mxu0
      %v3582 = vpop.f32.mrb[0].mxu0
      %v3583 = vadd.f32 0.0, %v3582
      %v3584 = vpop.f32.mrb[0].mxu0
      %3585 = vmatprep.mubr.bf16.mxu0 %v3158
      %3586 = vmatmul.mubr.bf16.gmra.mrb[0].mxu0 %v3156
      %v3587 = vpop.f32.mrb[0].mxu0
      %v3588 = vadd.f32 0.0, %v3587
      %v3589 = vpop.f32.mrb[0].mxu0
      %v3590 = vpop.f32.mrb[0].mxu0
      %v3591 = vadd.f32 0.0, %v3590
      %v3592 = vpop.f32.mrb[0].mxu0
      %3593 = vmatprep.mubr.bf16.mxu0 %v3157
      %3594 = vmatmul.mubr.bf16.gmra.mrb[0].mxu0 %v3155
      %v3595 = vpop.f32.mrb[0].mxu0
      %v3596 = vadd.f32 0.0, %v3595
      %v3597 = vpop.f32.mrb[0].mxu0
      %v3598 = vpop.f32.mrb[0].mxu0
      %v3599 = vpop.f32.mrb[0].mxu0
      %3600 = vdwg.mxu0
      %3601 = vmatprep.subr.bf16.mxu0 0
      %3602 = vmatpush1.bf16.msra.mxu0 %v3345
      %3603 = vmatprep.subr.bf16.mxu0 0
      %3604 = vmatpush1.bf16.msra.mxu0 %v3346
      %3605 = vmatprep.subr.bf16.mxu0 0
      %3606 = vmatpush1.bf16.msra.mxu0 %v3347
      %3607 = vmatprep.subr.bf16.mxu0 0
      %3608 = vmatpush1.bf16.msra.mxu0 %v3348
      %3609 = vmatprep.subr.bf16.mxu0 0
      %3610 = vmatpush1.bf16.msra.mxu0 %v3349
      %3611 = vmatprep.subr.bf16.mxu0 0
      %3612 = vmatpush1.bf16.msra.mxu0 %v3350
      %3613 = vmatprep.subr.bf16.mxu0 0
      %3614 = vmatpush1.bf16.msra.mxu0 %v3351
      %3615 = vmatprep.subr.bf16.mxu0 0
      %3616 = vmatpush1.bf16.msra.mxu0 %v3352
      %3617 = vmatprep.subr.bf16.mxu0 0
      %3618 = vmatpush1.bf16.msra.mxu0 0
      %3619 = vmatprep.subr.bf16.mxu0 0
      %3620 = vmatpush1.bf16.msra.mxu0 0
      %3621 = vmatprep.subr.bf16.mxu0 0
      %3622 = vmatpush1.bf16.msra.mxu0 0
      %3623 = vmatprep.subr.bf16.mxu0 0
      %3624 = vmatpush1.bf16.msra.mxu0 0
      %3625 = vmatprep.subr.bf16.mxu0 0
      %3626 = vmatpush1.bf16.msra.mxu0 0
      %3627 = vmatprep.subr.bf16.mxu0 0
      %3628 = vmatpush1.bf16.msra.mxu0 0
      %3629 = vmatprep.subr.bf16.mxu0 0
      %3630 = vmatpush1.bf16.msra.mxu0 0
      %3631 = vmatprep.subr.bf16.mxu0 0
      %3632 = vmatpush1.bf16.msra.mxu0 0
      %3633 = vmatprep.mubr.bf16.mxu0 0
      %3634 = vmatmul.mubr.bf16.gmra.mrb[0].mxu0 %v3028
      %v3635 = vpop.f32.mrb[0].mxu0
      %v3636 = vadd.f32 %v3412, %v3635
      %v3637 = vpop.f32.mrb[0].mxu0
      %v3638 = vpop.f32.mrb[0].mxu0
      %v3639 = vadd.f32 %v3415, %v3638
      %v3640 = vpop.f32.mrb[0].mxu0
      %3641 = vmatprep.mubr.bf16.mxu0 0
      %3642 = vmatmul.mubr.bf16.gmra.mrb[0].mxu0 %v3034
      %v3643 = vpop.f32.mrb[0].mxu0
      %v3644 = vadd.f32 %v3420, %v3643
      %v3645 = vpop.f32.mrb[0].mxu0
      %v3646 = vpop.f32.mrb[0].mxu0
      %v3647 = vadd.f32 %v3423, %v3646
      %v3648 = vpop.f32.mrb[0].mxu0
      %3649 = vmatprep.mubr.bf16.mxu0 0
      %3650 = vmatmul.mubr.bf16.gmra.mrb[0].mxu0 %v3040
      %v3651 = vpop.f32.mrb[0].mxu0
      %v3652 = vadd.f32 %v3428, %v3651
      %v3653 = vpop.f32.mrb[0].mxu0
      %v3654 = vpop.f32.mrb[0].mxu0
      %v3655 = vadd.f32 %v3431, %v3654
      %v3656 = vpop.f32.mrb[0].mxu0
      %3657 = vmatprep.mubr.bf16.mxu0 0
      %3658 = vmatmul.mubr.bf16.gmra.mrb[0].mxu0 %v3046
      %v3659 = vpop.f32.mrb[0].mxu0
      %v3660 = vadd.f32 %v3436, %v3659
      %v3661 = vpop.f32.mrb[0].mxu0
      %v3662 = vpop.f32.mrb[0].mxu0
      %v3663 = vadd.f32 %v3439, %v3662
      %v3664 = vpop.f32.mrb[0].mxu0
      %3665 = vmatprep.mubr.bf16.mxu0 0
      %3666 = vmatmul.mubr.bf16.gmra.mrb[0].mxu0 %v3052
      %v3667 = vpop.f32.mrb[0].mxu0
      %v3668 = vadd.f32 %v3444, %v3667
      %v3669 = vpop.f32.mrb[0].mxu0
      %v3670 = vpop.f32.mrb[0].mxu0
      %v3671 = vadd.f32 %v3447, %v3670
      %v3672 = vpop.f32.mrb[0].mxu0
      %3673 = vmatprep.mubr.bf16.mxu0 0
      %3674 = vmatmul.mubr.bf16.gmra.mrb[0].mxu0 %v3058
      %v3675 = vpop.f32.mrb[0].mxu0
      %v3676 = vadd.f32 %v3452, %v3675
      %v3677 = vpop.f32.mrb[0].mxu0
      %v3678 = vpop.f32.mrb[0].mxu0
      %v3679 = vadd.f32 %v3455, %v3678
      %v3680 = vpop.f32.mrb[0].mxu0
      %3681 = vmatprep.mubr.bf16.mxu0 0
      %3682 = vmatmul.mubr.bf16.gmra.mrb[0].mxu0 %v3064
      %v3683 = vpop.f32.mrb[0].mxu0
      %v3684 = vadd.f32 %v3460, %v3683
      %v3685 = vpop.f32.mrb[0].mxu0
      %v3686 = vpop.f32.mrb[0].mxu0
      %v3687 = vadd.f32 %v3463, %v3686
      %v3688 = vpop.f32.mrb[0].mxu0
      %3689 = vmatprep.mubr.bf16.mxu0 0
      %3690 = vmatmul.mubr.bf16.gmra.mrb[0].mxu0 %v3070
      %v3691 = vpop.f32.mrb[0].mxu0
      %v3692 = vadd.f32 %v3468, %v3691
      %v3693 = vpop.f32.mrb[0].mxu0
      %v3694 = vpop.f32.mrb[0].mxu0
      %v3695 = vadd.f32 %v3471, %v3694
      %v3696 = vpop.f32.mrb[0].mxu0
      %3697 = vmatprep.mubr.bf16.mxu0 0
      %3698 = vmatmul.mubr.bf16.gmra.mrb[0].mxu0 %v3076
      %v3699 = vpop.f32.mrb[0].mxu0
      %v3700 = vadd.f32 %v3476, %v3699
      %v3701 = vpop.f32.mrb[0].mxu0
      %v3702 = vpop.f32.mrb[0].mxu0
      %v3703 = vadd.f32 %v3479, %v3702
      %v3704 = vpop.f32.mrb[0].mxu0
      %3705 = vmatprep.mubr.bf16.mxu0 0
      %3706 = vmatmul.mubr.bf16.gmra.mrb[0].mxu0 %v3082
      %v3707 = vpop.f32.mrb[0].mxu0
      %v3708 = vadd.f32 %v3484, %v3707
      %v3709 = vpop.f32.mrb[0].mxu0
      %v3710 = vpop.f32.mrb[0].mxu0
      %v3711 = vadd.f32 %v3487, %v3710
      %v3712 = vpop.f32.mrb[0].mxu0
      %3713 = vmatprep.mubr.bf16.mxu0 0
      %3714 = vmatmul.mubr.bf16.gmra.mrb[0].mxu0 %v3088
      %v3715 = vpop.f32.mrb[0].mxu0
      %v3716 = vadd.f32 %v3492, %v3715
      %v3717 = vpop.f32.mrb[0].mxu0
      %v3718 = vpop.f32.mrb[0].mxu0
      %v3719 = vadd.f32 %v3495, %v3718
      %v3720 = vpop.f32.mrb[0].mxu0
      %3721 = vmatprep.mubr.bf16.mxu0 0
      %3722 = vmatmul.mubr.bf16.gmra.mrb[0].mxu0 %v3094
      %v3723 = vpop.f32.mrb[0].mxu0
      %v3724 = vadd.f32 %v3500, %v3723
      %v3725 = vpop.f32.mrb[0].mxu0
      %v3726 = vpop.f32.mrb[0].mxu0
      %v3727 = vadd.f32 %v3503, %v3726
      %v3728 = vpop.f32.mrb[0].mxu0
      %3729 = vmatprep.mubr.bf16.mxu0 0
      %3730 = vmatmul.mubr.bf16.gmra.mrb[0].mxu0 %v3100
      %v3731 = vpop.f32.mrb[0].mxu0
      %v3732 = vadd.f32 %v3508, %v3731
      %v3733 = vpop.f32.mrb[0].mxu0
      %v3734 = vpop.f32.mrb[0].mxu0
      %v3735 = vadd.f32 %v3511, %v3734
      %v3736 = vpop.f32.mrb[0].mxu0
      %3737 = vmatprep.mubr.bf16.mxu0 0
      %3738 = vmatmul.mubr.bf16.gmra.mrb[0].mxu0 %v3106
      %v3739 = vpop.f32.mrb[0].mxu0
      %v3740 = vadd.f32 %v3516, %v3739
      %v3741 = vpop.f32.mrb[0].mxu0
      %v3742 = vpop.f32.mrb[0].mxu0
      %v3743 = vadd.f32 %v3519, %v3742
      %v3744 = vpop.f32.mrb[0].mxu0
      %3745 = vmatprep.mubr.bf16.mxu0 0
      %3746 = vmatmul.mubr.bf16.gmra.mrb[0].mxu0 %v3112
      %v3747 = vpop.f32.mrb[0].mxu0
      %v3748 = vadd.f32 %v3524, %v3747
      %v3749 = vpop.f32.mrb[0].mxu0
      %v3750 = vpop.f32.mrb[0].mxu0
      %v3751 = vadd.f32 %v3527, %v3750
      %v3752 = vpop.f32.mrb[0].mxu0
      %3753 = vmatprep.mubr.bf16.mxu0 0
      %3754 = vmatmul.mubr.bf16.gmra.mrb[0].mxu0 %v3118
      %v3755 = vpop.f32.mrb[0].mxu0
      %v3756 = vadd.f32 %v3532, %v3755
      %v3757 = vpop.f32.mrb[0].mxu0
      %v3758 = vpop.f32.mrb[0].mxu0
      %v3759 = vadd.f32 %v3535, %v3758
      %v3760 = vpop.f32.mrb[0].mxu0
      %3761 = vmatprep.mubr.bf16.mxu0 0
      %3762 = vmatmul.mubr.bf16.gmra.mrb[0].mxu0 %v3124
      %v3763 = vpop.f32.mrb[0].mxu0
      %v3764 = vadd.f32 %v3540, %v3763
      %v3765 = vpop.f32.mrb[0].mxu0
      %v3766 = vpop.f32.mrb[0].mxu0
      %v3767 = vadd.f32 %v3543, %v3766
      %v3768 = vpop.f32.mrb[0].mxu0
      %3769 = vmatprep.mubr.bf16.mxu0 0
      %3770 = vmatmul.mubr.bf16.gmra.mrb[0].mxu0 %v3130
      %v3771 = vpop.f32.mrb[0].mxu0
      %v3772 = vadd.f32 %v3548, %v3771
      %v3773 = vpop.f32.mrb[0].mxu0
      %v3774 = vpop.f32.mrb[0].mxu0
      %v3775 = vadd.f32 %v3551, %v3774
      %v3776 = vpop.f32.mrb[0].mxu0
      %3777 = vmatprep.mubr.bf16.mxu0 0
      %3778 = vmatmul.mubr.bf16.gmra.mrb[0].mxu0 %v3136
      %v3779 = vpop.f32.mrb[0].mxu0
      %v3780 = vadd.f32 %v3556, %v3779
      %v3781 = vpop.f32.mrb[0].mxu0
      %v3782 = vpop.f32.mrb[0].mxu0
      %v3783 = vadd.f32 %v3559, %v3782
      %v3784 = vpop.f32.mrb[0].mxu0
      %3785 = vmatprep.mubr.bf16.mxu0 0
      %3786 = vmatmul.mubr.bf16.gmra.mrb[0].mxu0 %v3142
      %v3787 = vpop.f32.mrb[0].mxu0
      %v3788 = vadd.f32 %v3564, %v3787
      %v3789 = vpop.f32.mrb[0].mxu0
      %v3790 = vpop.f32.mrb[0].mxu0
      %v3791 = vadd.f32 %v3567, %v3790
      %v3792 = vpop.f32.mrb[0].mxu0
      %3793 = vmatprep.mubr.bf16.mxu0 0
      %3794 = vmatmul.mubr.bf16.gmra.mrb[0].mxu0 %v3148
      %v3795 = vpop.f32.mrb[0].mxu0
      %v3796 = vadd.f32 %v3572, %v3795
      %v3797 = vpop.f32.mrb[0].mxu0
      %v3798 = vpop.f32.mrb[0].mxu0
      %v3799 = vadd.f32 %v3575, %v3798
      %v3800 = vpop.f32.mrb[0].mxu0
      %3801 = vmatprep.mubr.bf16.mxu0 0
      %3802 = vmatmul.mubr.bf16.gmra.mrb[0].mxu0 %v3154
      %v3803 = vpop.f32.mrb[0].mxu0
      %v3804 = vadd.f32 %v3580, %v3803
      %v3805 = vpop.f32.mrb[0].mxu0
      %v3806 = vpop.f32.mrb[0].mxu0
      %v3807 = vadd.f32 %v3583, %v3806
      %v3808 = vpop.f32.mrb[0].mxu0
      %3809 = vmatprep.mubr.bf16.mxu0 0
      %3810 = vmatmul.mubr.bf16.gmra.mrb[0].mxu0 %v3160
      %v3811 = vpop.f32.mrb[0].mxu0
      %v3812 = vadd.f32 %v3588, %v3811
      %v3813 = vpop.f32.mrb[0].mxu0
      %v3814 = vpop.f32.mrb[0].mxu0
      %v3815 = vadd.f32 %v3591, %v3814
      %v3816 = vpop.f32.mrb[0].mxu0
      %3817 = vmatprep.mubr.bf16.mxu0 0
      %3818 = vmatmul.mubr.bf16.gmra.mrb[0].mxu0 %v3159
      %v3819 = vpop.f32.mrb[0].mxu0
      %v3820 = vadd.f32 %v3596, %v3819
      %v3821 = vpop.f32.mrb[0].mxu0
      %v3822 = vpop.f32.mrb[0].mxu0
      %v3823 = vpop.f32.mrb[0].mxu0
      %3824 = vdwg.mxu0
      %v3825 = vadd.f32 %v2638, %v3636
      %v3826 = vadd.f32 %v2641, %v3639
      %v3827 = vadd.f32 %v2646, %v3644
      %v3828 = vadd.f32 %v2649, %v3647
      %v3829 = vadd.f32 %v2654, %v3652
      %v3830 = vadd.f32 %v2657, %v3655
      %v3831 = vadd.f32 %v2662, %v3660
      %v3832 = vadd.f32 %v2665, %v3663
      %v3833 = vadd.f32 %v2670, %v3668
      %v3834 = vadd.f32 %v2673, %v3671
      %v3835 = vadd.f32 %v2678, %v3676
      %v3836 = vadd.f32 %v2681, %v3679
      %v3837 = vadd.f32 %v2686, %v3684
      %v3838 = vadd.f32 %v2689, %v3687
      %v3839 = vadd.f32 %v2694, %v3692
      %v3840 = vadd.f32 %v2697, %v3695
      %v3841 = vadd.f32 %v2702, %v3700
      %v3842 = vadd.f32 %v2705, %v3703
      %v3843 = vadd.f32 %v2710, %v3708
      %v3844 = vadd.f32 %v2713, %v3711
      %v3845 = vadd.f32 %v2718, %v3716
      %v3846 = vadd.f32 %v2721, %v3719
      %v3847 = vadd.f32 %v2726, %v3724
      %v3848 = vadd.f32 %v2729, %v3727
      %v3849 = vadd.f32 %v2734, %v3732
      %v3850 = vadd.f32 %v2737, %v3735
      %v3851 = vadd.f32 %v2742, %v3740
      %v3852 = vadd.f32 %v2745, %v3743
      %v3853 = vadd.f32 %v2750, %v3748
      %v3854 = vadd.f32 %v2753, %v3751
      %v3855 = vadd.f32 %v2758, %v3756
      %v3856 = vadd.f32 %v2761, %v3759
      %v3857 = vadd.f32 %v2766, %v3764
      %v3858 = vadd.f32 %v2769, %v3767
      %v3859 = vadd.f32 %v2774, %v3772
      %v3860 = vadd.f32 %v2777, %v3775
      %v3861 = vadd.f32 %v2782, %v3780
      %v3862 = vadd.f32 %v2785, %v3783
      %v3863 = vadd.f32 %v2790, %v3788
      %v3864 = vadd.f32 %v2793, %v3791
      %v3865 = vadd.f32 %v2798, %v3796
      %v3866 = vadd.f32 %v2801, %v3799
      %v3867 = vadd.f32 %v2806, %v3804
      %v3868 = vadd.f32 %v2809, %v3807
      %v3869 = vadd.f32 %v2814, %v3812
      %v3870 = vadd.f32 %v2817, %v3815
      %v3871 = vadd.f32 %v2822, %v3820
      %v3872 = vld [vmem:[%s3] sm:$0x1]
      %v3874 = vlaneseq
      %v3875 = vshrl.u32 %v3874, 7
      %v3876 = vsub.s32 0, %v3875
      %v3877 = vrot.slane %v3872, %v3876
      %v3879 = vadd.f32 %v3825, %v3877
      %v3880 = vadd.f32 %v3826, %v3877
      %v3881 = vadd.f32 %v3827, %v3877
      %v3882 = vadd.f32 %v3828, %v3877
      %v3883 = vadd.f32 %v3829, %v3877
      %v3884 = vadd.f32 %v3830, %v3877
      %v3885 = vadd.f32 %v3831, %v3877
      %v3886 = vadd.f32 %v3832, %v3877
      %v3887 = vadd.f32 %v3833, %v3877
      %v3888 = vadd.f32 %v3834, %v3877
      %v3889 = vadd.f32 %v3835, %v3877
      %v3890 = vadd.f32 %v3836, %v3877
      %v3891 = vadd.f32 %v3837, %v3877
      %v3892 = vadd.f32 %v3838, %v3877
      %v3893 = vadd.f32 %v3839, %v3877
      %v3894 = vadd.f32 %v3840, %v3877
      %v3895 = vadd.f32 %v3841, %v3877
      %v3896 = vadd.f32 %v3842, %v3877
      %v3897 = vadd.f32 %v3843, %v3877
      %v3898 = vadd.f32 %v3844, %v3877
      %v3899 = vadd.f32 %v3845, %v3877
      %v3900 = vadd.f32 %v3846, %v3877
      %v3901 = vadd.f32 %v3847, %v3877
      %v3902 = vadd.f32 %v3848, %v3877
      %v3903 = vadd.f32 %v3849, %v3877
      %v3904 = vadd.f32 %v3850, %v3877
      %v3905 = vadd.f32 %v3851, %v3877
      %v3906 = vadd.f32 %v3852, %v3877
      %v3907 = vadd.f32 %v3853, %v3877
      %v3908 = vadd.f32 %v3854, %v3877
      %v3909 = vadd.f32 %v3855, %v3877
      %v3910 = vadd.f32 %v3856, %v3877
      %v3911 = vadd.f32 %v3857, %v3877
      %v3912 = vadd.f32 %v3858, %v3877
      %v3913 = vadd.f32 %v3859, %v3877
      %v3914 = vadd.f32 %v3860, %v3877
      %v3915 = vadd.f32 %v3861, %v3877
      %v3916 = vadd.f32 %v3862, %v3877
      %v3917 = vadd.f32 %v3863, %v3877
      %v3918 = vadd.f32 %v3864, %v3877
      %v3919 = vadd.f32 %v3865, %v3877
      %v3920 = vadd.f32 %v3866, %v3877
      %v3921 = vadd.f32 %v3867, %v3877
      %v3922 = vadd.f32 %v3868, %v3877
      %v3923 = vadd.f32 %v3869, %v3877
      %v3924 = vadd.f32 %v3870, %v3877
      %v3925 = vadd.f32 %v3871, %v3877
      %v3926 = vmax.f32 %v3879, 0.0
      %v3927 = vmax.f32 %v3880, 0.0
      %v3928 = vmax.f32 %v3881, 0.0
      %v3929 = vmax.f32 %v3882, 0.0
      %v3930 = vmax.f32 %v3883, 0.0
      %v3931 = vmax.f32 %v3884, 0.0
      %v3932 = vmax.f32 %v3885, 0.0
      %v3933 = vmax.f32 %v3886, 0.0
      %v3934 = vmax.f32 %v3887, 0.0
      %v3935 = vmax.f32 %v3888, 0.0
      %v3936 = vmax.f32 %v3889, 0.0
      %v3937 = vmax.f32 %v3890, 0.0
      %v3938 = vmax.f32 %v3891, 0.0
      %v3939 = vmax.f32 %v3892, 0.0
      %v3940 = vmax.f32 %v3893, 0.0
      %v3941 = vmax.f32 %v3894, 0.0
      %v3942 = vmax.f32 %v3895, 0.0
      %v3943 = vmax.f32 %v3896, 0.0
      %v3944 = vmax.f32 %v3897, 0.0
      %v3945 = vmax.f32 %v3898, 0.0
      %v3946 = vmax.f32 %v3899, 0.0
      %v3947 = vmax.f32 %v3900, 0.0
      %v3948 = vmax.f32 %v3901, 0.0
      %v3949 = vmax.f32 %v3902, 0.0
      %v3950 = vmax.f32 %v3903, 0.0
      %v3951 = vmax.f32 %v3904, 0.0
      %v3952 = vmax.f32 %v3905, 0.0
      %v3953 = vmax.f32 %v3906, 0.0
      %v3954 = vmax.f32 %v3907, 0.0
      %v3955 = vmax.f32 %v3908, 0.0
      %v3956 = vmax.f32 %v3909, 0.0
      %v3957 = vmax.f32 %v3910, 0.0
      %v3958 = vmax.f32 %v3911, 0.0
      %v3959 = vmax.f32 %v3912, 0.0
      %v3960 = vmax.f32 %v3913, 0.0
      %v3961 = vmax.f32 %v3914, 0.0
      %v3962 = vmax.f32 %v3915, 0.0
      %v3963 = vmax.f32 %v3916, 0.0
      %v3964 = vmax.f32 %v3917, 0.0
      %v3965 = vmax.f32 %v3918, 0.0
      %v3966 = vmax.f32 %v3919, 0.0
      %v3967 = vmax.f32 %v3920, 0.0
      %v3968 = vmax.f32 %v3921, 0.0
      %v3969 = vmax.f32 %v3922, 0.0
      %v3970 = vmax.f32 %v3923, 0.0
      %v3971 = vmax.f32 %v3924, 0.0
      %v3972 = vmax.f32 %v3925, 0.0
      %v3973 = vsel %vm811, 1, 0
      %v3974 = vsel %vm812, 1, 0
      %v3975 = vsel %vm813, 1, 0
      %v3976 = vsel %vm814, 1, 0
      %v3977 = vsel %vm815, 1, 0
      %v3978 = vsel %vm816, 1, 0
      %v3979 = vsel %vm817, 1, 0
      %v3980 = vsel %vm818, 1, 0
      %v3981 = vsel %vm819, 1, 0
      %v3982 = vsel %vm820, 1, 0
      %v3983 = vsel %vm821, 1, 0
      %v3984 = vsel %vm822, 1, 0
      %v3985 = vsel %vm823, 1, 0
      %v3986 = vsel %vm824, 1, 0
      %v3987 = vsel %vm825, 1, 0
      %v3988 = vsel %vm826, 1, 0
      %v3989 = vsel %vm827, 1, 0
      %v3990 = vsel %vm828, 1, 0
      %v3991 = vsel %vm829, 1, 0
      %v3992 = vsel %vm830, 1, 0
      %v3993 = vsel %vm831, 1, 0
      %v3994 = vsel %vm832, 1, 0
      %v3995 = vsel %vm833, 1, 0
      %v3996 = vsel %vm834, 1, 0
      %v3997 = vsel %vm835, 1, 0
      %v3998 = vsel %vm836, 1, 0
      %v3999 = vsel %vm837, 1, 0
      %v4000 = vsel %vm838, 1, 0
      %v4001 = vsel %vm839, 1, 0
      %v4002 = vsel %vm840, 1, 0
      %v4003 = vsel %vm841, 1, 0
      %v4004 = vsel %vm842, 1, 0
      %v4005 = vsel %vm843, 1, 0
      %v4006 = vsel %vm844, 1, 0
      %v4007 = vsel %vm845, 1, 0
      %v4008 = vsel %vm846, 1, 0
      %v4009 = vsel %vm847, 1, 0
      %v4010 = vsel %vm848, 1, 0
      %v4011 = vsel %vm849, 1, 0
      %v4012 = vsel %vm850, 1, 0
      %v4013 = vsel %vm851, 1, 0
      %v4014 = vsel %vm852, 1, 0
      %v4015 = vsel %vm853, 1, 0
      %v4016 = vsel %vm854, 1, 0
      %v4017 = vsel %vm855, 1, 0
      %v4018 = vsel %vm856, 1, 0
      %v4019 = vsel %vm857, 1, 0
      %vm4020 = vcmp.eq.s32.totalorder %v3973, 1
      %vm4021 = vcmp.eq.s32.totalorder %v3974, 1
      %vm4022 = vcmp.eq.s32.totalorder %v3975, 1
      %vm4023 = vcmp.eq.s32.totalorder %v3976, 1
      %vm4024 = vcmp.eq.s32.totalorder %v3977, 1
      %vm4025 = vcmp.eq.s32.totalorder %v3978, 1
      %vm4026 = vcmp.eq.s32.totalorder %v3979, 1
      %vm4027 = vcmp.eq.s32.totalorder %v3980, 1
      %vm4028 = vcmp.eq.s32.totalorder %v3981, 1
      %vm4029 = vcmp.eq.s32.totalorder %v3982, 1
      %vm4030 = vcmp.eq.s32.totalorder %v3983, 1
      %vm4031 = vcmp.eq.s32.totalorder %v3984, 1
      %vm4032 = vcmp.eq.s32.totalorder %v3985, 1
      %vm4033 = vcmp.eq.s32.totalorder %v3986, 1
      %vm4034 = vcmp.eq.s32.totalorder %v3987, 1
      %vm4035 = vcmp.eq.s32.totalorder %v3988, 1
      %vm4036 = vcmp.eq.s32.totalorder %v3989, 1
      %vm4037 = vcmp.eq.s32.totalorder %v3990, 1
      %vm4038 = vcmp.eq.s32.totalorder %v3991, 1
      %vm4039 = vcmp.eq.s32.totalorder %v3992, 1
      %vm4040 = vcmp.eq.s32.totalorder %v3993, 1
      %vm4041 = vcmp.eq.s32.totalorder %v3994, 1
      %vm4042 = vcmp.eq.s32.totalorder %v3995, 1
      %vm4043 = vcmp.eq.s32.totalorder %v3996, 1
      %vm4044 = vcmp.eq.s32.totalorder %v3997, 1
      %vm4045 = vcmp.eq.s32.totalorder %v3998, 1
      %vm4046 = vcmp.eq.s32.totalorder %v3999, 1
      %vm4047 = vcmp.eq.s32.totalorder %v4000, 1
      %vm4048 = vcmp.eq.s32.totalorder %v4001, 1
      %vm4049 = vcmp.eq.s32.totalorder %v4002, 1
      %vm4050 = vcmp.eq.s32.totalorder %v4003, 1
      %vm4051 = vcmp.eq.s32.totalorder %v4004, 1
      %vm4052 = vcmp.eq.s32.totalorder %v4005, 1
      %vm4053 = vcmp.eq.s32.totalorder %v4006, 1
      %vm4054 = vcmp.eq.s32.totalorder %v4007, 1
      %vm4055 = vcmp.eq.s32.totalorder %v4008, 1
      %vm4056 = vcmp.eq.s32.totalorder %v4009, 1
      %vm4057 = vcmp.eq.s32.totalorder %v4010, 1
      %vm4058 = vcmp.eq.s32.totalorder %v4011, 1
      %vm4059 = vcmp.eq.s32.totalorder %v4012, 1
      %vm4060 = vcmp.eq.s32.totalorder %v4013, 1
      %vm4061 = vcmp.eq.s32.totalorder %v4014, 1
      %vm4062 = vcmp.eq.s32.totalorder %v4015, 1
      %vm4063 = vcmp.eq.s32.totalorder %v4016, 1
      %vm4064 = vcmp.eq.s32.totalorder %v4017, 1
      %vm4065 = vcmp.eq.s32.totalorder %v4018, 1
      %vm4066 = vcmp.eq.s32.totalorder %v4019, 1
      %v4067 = vsel %vm4020, %v3926, 0.0
      %v4068 = vsel %vm4021, %v3927, 0.0
      %v4069 = vsel %vm4022, %v3928, 0.0
      %v4070 = vsel %vm4023, %v3929, 0.0
      %v4071 = vsel %vm4024, %v3930, 0.0
      %v4072 = vsel %vm4025, %v3931, 0.0
      %v4073 = vsel %vm4026, %v3932, 0.0
      %v4074 = vsel %vm4027, %v3933, 0.0
      %v4075 = vsel %vm4028, %v3934, 0.0
      %v4076 = vsel %vm4029, %v3935, 0.0
      %v4077 = vsel %vm4030, %v3936, 0.0
      %v4078 = vsel %vm4031, %v3937, 0.0
      %v4079 = vsel %vm4032, %v3938, 0.0
      %v4080 = vsel %vm4033, %v3939, 0.0
      %v4081 = vsel %vm4034, %v3940, 0.0
      %v4082 = vsel %vm4035, %v3941, 0.0
      %v4083 = vsel %vm4036, %v3942, 0.0
      %v4084 = vsel %vm4037, %v3943, 0.0
      %v4085 = vsel %vm4038, %v3944, 0.0
      %v4086 = vsel %vm4039, %v3945, 0.0
      %v4087 = vsel %vm4040, %v3946, 0.0
      %v4088 = vsel %vm4041, %v3947, 0.0
      %v4089 = vsel %vm4042, %v3948, 0.0
      %v4090 = vsel %vm4043, %v3949, 0.0
      %v4091 = vsel %vm4044, %v3950, 0.0
      %v4092 = vsel %vm4045, %v3951, 0.0
      %v4093 = vsel %vm4046, %v3952, 0.0
      %v4094 = vsel %vm4047, %v3953, 0.0
      %v4095 = vsel %vm4048, %v3954, 0.0
      %v4096 = vsel %vm4049, %v3955, 0.0
      %v4097 = vsel %vm4050, %v3956, 0.0
      %v4098 = vsel %vm4051, %v3957, 0.0
      %v4099 = vsel %vm4052, %v3958, 0.0
      %v4100 = vsel %vm4053, %v3959, 0.0
      %v4101 = vsel %vm4054, %v3960, 0.0
      %v4102 = vsel %vm4055, %v3961, 0.0
      %v4103 = vsel %vm4056, %v3962, 0.0
      %v4104 = vsel %vm4057, %v3963, 0.0
      %v4105 = vsel %vm4058, %v3964, 0.0
      %v4106 = vsel %vm4059, %v3965, 0.0
      %v4107 = vsel %vm4060, %v3966, 0.0
      %v4108 = vsel %vm4061, %v3967, 0.0
      %v4109 = vsel %vm4062, %v3968, 0.0
      %v4110 = vsel %vm4063, %v3969, 0.0
      %v4111 = vsel %vm4064, %v3970, 0.0
      %v4112 = vsel %vm4065, %v3971, 0.0
      %v4113 = vsel %vm4066, %v3972, 0.0
      %4114 = vst [vmem:[#allocation3] sm:$0xff] 0.0
      %4115 = vst [vmem:[#allocation3 + $0x8] sm:$0xff] 0.0
      %4116 = vst [vmem:[#allocation3 + $0x10] sm:$0xff] 0.0
      %4117 = vst [vmem:[#allocation3 + $0x18] sm:$0xff] 0.0
      %4118 = vst [vmem:[#allocation3 + $0x20] sm:$0x1] 0.0
      %4119 = vst [vmem:[#allocation3 + $0x199] sm:$0xff] 0.0
      %4120 = vst [vmem:[#allocation3 + $0x1a1] sm:$0xff] 0.0
      %4121 = vst [vmem:[#allocation3 + $0x1a9] sm:$0xff] 0.0
      %4122 = vst [vmem:[#allocation3 + $0x1b1] sm:$0x7f] 0.0
      %4123 = vst [vmem:[#allocation3 + $0x21] sm:$0xff] %v4067
      %4124 = vst [vmem:[#allocation3 + $0x29] sm:$0xff] %v4068
      %4125 = vst [vmem:[#allocation3 + $0x31] sm:$0xff] %v4069
      %4126 = vst [vmem:[#allocation3 + $0x39] sm:$0xff] %v4070
      %4127 = vst [vmem:[#allocation3 + $0x41] sm:$0xff] %v4071
      %4128 = vst [vmem:[#allocation3 + $0x49] sm:$0xff] %v4072
      %4129 = vst [vmem:[#allocation3 + $0x51] sm:$0xff] %v4073
      %4130 = vst [vmem:[#allocation3 + $0x59] sm:$0xff] %v4074
      %4131 = vst [vmem:[#allocation3 + $0x61] sm:$0xff] %v4075
      %4132 = vst [vmem:[#allocation3 + $0x69] sm:$0xff] %v4076
      %4133 = vst [vmem:[#allocation3 + $0x71] sm:$0xff] %v4077
      %4134 = vst [vmem:[#allocation3 + $0x79] sm:$0xff] %v4078
      %4135 = vst [vmem:[#allocation3 + $0x81] sm:$0xff] %v4079
      %4136 = vst [vmem:[#allocation3 + $0x89] sm:$0xff] %v4080
      %4137 = vst [vmem:[#allocation3 + $0x91] sm:$0xff] %v4081
      %4138 = vst [vmem:[#allocation3 + $0x99] sm:$0xff] %v4082
      %4139 = vst [vmem:[#allocation3 + $0xa1] sm:$0xff] %v4083
      %4140 = vst [vmem:[#allocation3 + $0xa9] sm:$0xff] %v4084
      %4141 = vst [vmem:[#allocation3 + $0xb1] sm:$0xff] %v4085
      %4142 = vst [vmem:[#allocation3 + $0xb9] sm:$0xff] %v4086
      %4143 = vst [vmem:[#allocation3 + $0xc1] sm:$0xff] %v4087
      %4144 = vst [vmem:[#allocation3 + $0xc9] sm:$0xff] %v4088
      %4145 = vst [vmem:[#allocation3 + $0xd1] sm:$0xff] %v4089
      %4146 = vst [vmem:[#allocation3 + $0xd9] sm:$0xff] %v4090
      %4147 = vst [vmem:[#allocation3 + $0xe1] sm:$0xff] %v4091
      %4148 = vst [vmem:[#allocation3 + $0xe9] sm:$0xff] %v4092
      %4149 = vst [vmem:[#allocation3 + $0xf1] sm:$0xff] %v4093
      %4150 = vst [vmem:[#allocation3 + $0xf9] sm:$0xff] %v4094
      %4151 = vst [vmem:[#allocation3 + $0x101] sm:$0xff] %v4095
      %4152 = vst [vmem:[#allocation3 + $0x109] sm:$0xff] %v4096
      %4153 = vst [vmem:[#allocation3 + $0x111] sm:$0xff] %v4097
      %4154 = vst [vmem:[#allocation3 + $0x119] sm:$0xff] %v4098
      %4155 = vst [vmem:[#allocation3 + $0x121] sm:$0xff] %v4099
      %4156 = vst [vmem:[#allocation3 + $0x129] sm:$0xff] %v4100
      %4157 = vst [vmem:[#allocation3 + $0x131] sm:$0xff] %v4101
      %4158 = vst [vmem:[#allocation3 + $0x139] sm:$0xff] %v4102
      %4159 = vst [vmem:[#allocation3 + $0x141] sm:$0xff] %v4103
      %4160 = vst [vmem:[#allocation3 + $0x149] sm:$0xff] %v4104
      %4161 = vst [vmem:[#allocation3 + $0x151] sm:$0xff] %v4105
      %4162 = vst [vmem:[#allocation3 + $0x159] sm:$0xff] %v4106
      %4163 = vst [vmem:[#allocation3 + $0x161] sm:$0xff] %v4107
      %4164 = vst [vmem:[#allocation3 + $0x169] sm:$0xff] %v4108
      %4165 = vst [vmem:[#allocation3 + $0x171] sm:$0xff] %v4109
      %4166 = vst [vmem:[#allocation3 + $0x179] sm:$0xff] %v4110
      %4167 = vst [vmem:[#allocation3 + $0x181] sm:$0xff] %v4111
      %4168 = vst [vmem:[#allocation3 + $0x189] sm:$0xff] %v4112
      %4169 = vst [vmem:[#allocation3 + $0x191] sm:$0xff] %v4113
      %v4170 = vld [vmem:[#allocation3] sm:$0xff]
      %v4171 = vld [vmem:[#allocation3 + $0x8] sm:$0xff]
      %v4172 = vld [vmem:[#allocation3 + $0x10] sm:$0xff]
      %v4173 = vld [vmem:[#allocation3 + $0x18] sm:$0xff]
      %v4174 = vld [vmem:[#allocation3 + $0x20] sm:$0xff]
      %v4175 = vld [vmem:[#allocation3 + $0x28] sm:$0xff]
      %v4176 = vld [vmem:[#allocation3 + $0x30] sm:$0xff]
      %v4177 = vld [vmem:[#allocation3 + $0x38] sm:$0xff]
      %v4178 = vld [vmem:[#allocation3 + $0x40] sm:$0xff]
      %v4179 = vld [vmem:[#allocation3 + $0x48] sm:$0xff]
      %v4180 = vld [vmem:[#allocation3 + $0x50] sm:$0xff]
      %v4181 = vld [vmem:[#allocation3 + $0x58] sm:$0xff]
      %v4182 = vld [vmem:[#allocation3 + $0x60] sm:$0xff]
      %v4183 = vld [vmem:[#allocation3 + $0x68] sm:$0xff]
      %v4184 = vld [vmem:[#allocation3 + $0x70] sm:$0xff]
      %v4185 = vld [vmem:[#allocation3 + $0x78] sm:$0xff]
      %v4186 = vld [vmem:[#allocation3 + $0x80] sm:$0xff]
      %v4187 = vld [vmem:[#allocation3 + $0x88] sm:$0xff]
      %v4188 = vld [vmem:[#allocation3 + $0x90] sm:$0xff]
      %v4189 = vld [vmem:[#allocation3 + $0x98] sm:$0xff]
      %v4190 = vld [vmem:[#allocation3 + $0xa0] sm:$0xff]
      %v4191 = vld [vmem:[#allocation3 + $0xa8] sm:$0xff]
      %v4192 = vld [vmem:[#allocation3 + $0xb0] sm:$0xff]
      %v4193 = vld [vmem:[#allocation3 + $0xb8] sm:$0xff]
      %v4194 = vld [vmem:[#allocation3 + $0xc0] sm:$0xff]
      %v4195 = vld [vmem:[#allocation3 + $0xc8] sm:$0xff]
      %v4196 = vld [vmem:[#allocation3 + $0xd0] sm:$0xff]
      %v4197 = vld [vmem:[#allocation3 + $0xd8] sm:$0xff]
      %v4198 = vld [vmem:[#allocation3 + $0xe0] sm:$0xff]
      %v4199 = vld [vmem:[#allocation3 + $0xe8] sm:$0xff]
      %v4200 = vld [vmem:[#allocation3 + $0xf0] sm:$0xff]
      %v4201 = vld [vmem:[#allocation3 + $0xf8] sm:$0xff]
      %v4202 = vld [vmem:[#allocation3 + $0x100] sm:$0xff]
      %v4203 = vld [vmem:[#allocation3 + $0x108] sm:$0xff]
      %v4204 = vld [vmem:[#allocation3 + $0x110] sm:$0xff]
      %v4205 = vld [vmem:[#allocation3 + $0x118] sm:$0xff]
      %v4206 = vld [vmem:[#allocation3 + $0x120] sm:$0xff]
      %v4207 = vld [vmem:[#allocation3 + $0x128] sm:$0xff]
      %v4208 = vld [vmem:[#allocation3 + $0x130] sm:$0xff]
      %v4209 = vld [vmem:[#allocation3 + $0x138] sm:$0xff]
      %v4210 = vld [vmem:[#allocation3 + $0x140] sm:$0xff]
      %v4211 = vld [vmem:[#allocation3 + $0x148] sm:$0xff]
      %v4212 = vld [vmem:[#allocation3 + $0x150] sm:$0xff]
      %v4213 = vld [vmem:[#allocation3 + $0x158] sm:$0xff]
      %v4214 = vld [vmem:[#allocation3 + $0x160] sm:$0xff]
      %v4215 = vld [vmem:[#allocation3 + $0x168] sm:$0xff]
      %v4216 = vld [vmem:[#allocation3 + $0x170] sm:$0xff]
      %v4217 = vld [vmem:[#allocation3 + $0x178] sm:$0xff]
      %v4218 = vld [vmem:[#allocation3 + $0x180] sm:$0xff]
      %v4219 = vld [vmem:[#allocation3 + $0x188] sm:$0xff]
      %v4220 = vld [vmem:[#allocation3 + $0x190] sm:$0xff]
      %v4221 = vld [vmem:[#allocation3 + $0x198] sm:$0xff]
      %v4222 = vld [vmem:[#allocation3 + $0x1a0] sm:$0xff]
      %v4223 = vld [vmem:[#allocation3 + $0x1a8] sm:$0xff]
      %v4224 = vpack.c.bf16 %v4171, %v4170
      %v4225 = vpack.c.bf16 %v4173, %v4172
      %v4226 = vpack.c.bf16 %v4175, %v4174
      %v4227 = vpack.c.bf16 %v4177, %v4176
      %v4228 = vpack.c.bf16 %v4179, %v4178
      %v4229 = vpack.c.bf16 %v4181, %v4180
      %v4230 = vpack.c.bf16 %v4183, %v4182
      %v4231 = vpack.c.bf16 %v4185, %v4184
      %v4232 = vpack.c.bf16 %v4187, %v4186
      %v4233 = vpack.c.bf16 %v4189, %v4188
      %v4234 = vpack.c.bf16 %v4191, %v4190
      %v4235 = vpack.c.bf16 %v4193, %v4192
      %v4236 = vpack.c.bf16 %v4195, %v4194
      %v4237 = vpack.c.bf16 %v4197, %v4196
      %v4238 = vpack.c.bf16 %v4199, %v4198
      %v4239 = vpack.c.bf16 %v4201, %v4200
      %v4240 = vpack.c.bf16 %v4203, %v4202
      %v4241 = vpack.c.bf16 %v4205, %v4204
      %v4242 = vpack.c.bf16 %v4207, %v4206
      %v4243 = vpack.c.bf16 %v4209, %v4208
      %v4244 = vpack.c.bf16 %v4211, %v4210
      %v4245 = vpack.c.bf16 %v4213, %v4212
      %v4246 = vpack.c.bf16 %v4215, %v4214
      %v4247 = vpack.c.bf16 %v4217, %v4216
      %v4248 = vpack.c.bf16 %v4219, %v4218
      %v4249 = vpack.c.bf16 %v4221, %v4220
      %v4250 = vpack.c.bf16 %v4223, %v4222
      %4251 = vst [vmem:[#allocation2] sm:$0xff] %v4224
      %4252 = vst [vmem:[#allocation2 + $0x18] sm:$0xff] %v4225
      %4253 = vst [vmem:[#allocation2 + $0x30] sm:$0xff] %v4226
      %4254 = vst [vmem:[#allocation2 + $0x48] sm:$0xff] %v4227
      %4255 = vst [vmem:[#allocation2 + $0x60] sm:$0xff] %v4228
      %4256 = vst [vmem:[#allocation2 + $0x78] sm:$0xff] %v4229
      %4257 = vst [vmem:[#allocation2 + $0x90] sm:$0xff] %v4230
      %4258 = vst [vmem:[#allocation2 + $0xa8] sm:$0xff] %v4231
      %4259 = vst [vmem:[#allocation2 + $0xc0] sm:$0xff] %v4232
      %4260 = vst [vmem:[#allocation2 + $0xd8] sm:$0xff] %v4233
      %4261 = vst [vmem:[#allocation2 + $0xf0] sm:$0xff] %v4234
      %4262 = vst [vmem:[#allocation2 + $0x108] sm:$0xff] %v4235
      %4263 = vst [vmem:[#allocation2 + $0x120] sm:$0xff] %v4236
      %4264 = vst [vmem:[#allocation2 + $0x138] sm:$0xff] %v4237
      %4265 = vst [vmem:[#allocation2 + $0x150] sm:$0xff] %v4238
      %4266 = vst [vmem:[#allocation2 + $0x168] sm:$0xff] %v4239
      %4267 = vst [vmem:[#allocation2 + $0x180] sm:$0xff] %v4240
      %4268 = vst [vmem:[#allocation2 + $0x198] sm:$0xff] %v4241
      %4269 = vst [vmem:[#allocation2 + $0x1b0] sm:$0xff] %v4242
      %4270 = vst [vmem:[#allocation2 + $0x1c8] sm:$0xff] %v4243
      %4271 = vst [vmem:[#allocation2 + $0x1e0] sm:$0xff] %v4244
      %4272 = vst [vmem:[#allocation2 + $0x1f8] sm:$0xff] %v4245
      %4273 = vst [vmem:[#allocation2 + $0x210] sm:$0xff] %v4246
      %4274 = vst [vmem:[#allocation2 + $0x228] sm:$0xff] %v4247
      %4275 = vst [vmem:[#allocation2 + $0x240] sm:$0xff] %v4248
      %4276 = vst [vmem:[#allocation2 + $0x258] sm:$0xff] %v4249
      %4277 = vst [vmem:[#allocation2 + $0x270] sm:$0xff] %v4250
      %v4278 = vld [vmem:[#allocation3 + $0x1] sm:$0xff]
      %v4279 = vld [vmem:[#allocation3 + $0x9] sm:$0xff]
      %v4280 = vld [vmem:[#allocation3 + $0x11] sm:$0xff]
      %v4281 = vld [vmem:[#allocation3 + $0x19] sm:$0xff]
      %v4282 = vld [vmem:[#allocation3 + $0x21] sm:$0xff]
      %v4283 = vld [vmem:[#allocation3 + $0x29] sm:$0xff]
      %v4284 = vld [vmem:[#allocation3 + $0x31] sm:$0xff]
      %v4285 = vld [vmem:[#allocation3 + $0x39] sm:$0xff]
      %v4286 = vld [vmem:[#allocation3 + $0x41] sm:$0xff]
      %v4287 = vld [vmem:[#allocation3 + $0x49] sm:$0xff]
      %v4288 = vld [vmem:[#allocation3 + $0x51] sm:$0xff]
      %v4289 = vld [vmem:[#allocation3 + $0x59] sm:$0xff]
      %v4290 = vld [vmem:[#allocation3 + $0x61] sm:$0xff]
      %v4291 = vld [vmem:[#allocation3 + $0x69] sm:$0xff]
      %v4292 = vld [vmem:[#allocation3 + $0x71] sm:$0xff]
      %v4293 = vld [vmem:[#allocation3 + $0x79] sm:$0xff]
      %v4294 = vld [vmem:[#allocation3 + $0x81] sm:$0xff]
      %v4295 = vld [vmem:[#allocation3 + $0x89] sm:$0xff]
      %v4296 = vld [vmem:[#allocation3 + $0x91] sm:$0xff]
      %v4297 = vld [vmem:[#allocation3 + $0x99] sm:$0xff]
      %v4298 = vld [vmem:[#allocation3 + $0xa1] sm:$0xff]
      %v4299 = vld [vmem:[#allocation3 + $0xa9] sm:$0xff]
      %v4300 = vld [vmem:[#allocation3 + $0xb1] sm:$0xff]
      %v4301 = vld [vmem:[#allocation3 + $0xb9] sm:$0xff]
      %v4302 = vld [vmem:[#allocation3 + $0xc1] sm:$0xff]
      %v4303 = vld [vmem:[#allocation3 + $0xc9] sm:$0xff]
      %v4304 = vld [vmem:[#allocation3 + $0xd1] sm:$0xff]
      %v4305 = vld [vmem:[#allocation3 + $0xd9] sm:$0xff]
      %v4306 = vld [vmem:[#allocation3 + $0xe1] sm:$0xff]
      %v4307 = vld [vmem:[#allocation3 + $0xe9] sm:$0xff]
      %v4308 = vld [vmem:[#allocation3 + $0xf1] sm:$0xff]
      %v4309 = vld [vmem:[#allocation3 + $0xf9] sm:$0xff]
      %v4310 = vld [vmem:[#allocation3 + $0x101] sm:$0xff]
      %v4311 = vld [vmem:[#allocation3 + $0x109] sm:$0xff]
      %v4312 = vld [vmem:[#allocation3 + $0x111] sm:$0xff]
      %v4313 = vld [vmem:[#allocation3 + $0x119] sm:$0xff]
      %v4314 = vld [vmem:[#allocation3 + $0x121] sm:$0xff]
      %v4315 = vld [vmem:[#allocation3 + $0x129] sm:$0xff]
      %v4316 = vld [vmem:[#allocation3 + $0x131] sm:$0xff]
      %v4317 = vld [vmem:[#allocation3 + $0x139] sm:$0xff]
      %v4318 = vld [vmem:[#allocation3 + $0x141] sm:$0xff]
      %v4319 = vld [vmem:[#allocation3 + $0x149] sm:$0xff]
      %v4320 = vld [vmem:[#allocation3 + $0x151] sm:$0xff]
      %v4321 = vld [vmem:[#allocation3 + $0x159] sm:$0xff]
      %v4322 = vld [vmem:[#allocation3 + $0x161] sm:$0xff]
      %v4323 = vld [vmem:[#allocation3 + $0x169] sm:$0xff]
      %v4324 = vld [vmem:[#allocation3 + $0x171] sm:$0xff]
      %v4325 = vld [vmem:[#allocation3 + $0x179] sm:$0xff]
      %v4326 = vld [vmem:[#allocation3 + $0x181] sm:$0xff]
      %v4327 = vld [vmem:[#allocation3 + $0x189] sm:$0xff]
      %v4328 = vld [vmem:[#allocation3 + $0x191] sm:$0xff]
      %v4329 = vld [vmem:[#allocation3 + $0x199] sm:$0xff]
      %v4330 = vld [vmem:[#allocation3 + $0x1a1] sm:$0xff]
      %v4331 = vld [vmem:[#allocation3 + $0x1a9] sm:$0xff]
      %v4332 = vpack.c.bf16 %v4279, %v4278
      %v4333 = vpack.c.bf16 %v4281, %v4280
      %v4334 = vpack.c.bf16 %v4283, %v4282
      %v4335 = vpack.c.bf16 %v4285, %v4284
      %v4336 = vpack.c.bf16 %v4287, %v4286
      %v4337 = vpack.c.bf16 %v4289, %v4288
      %v4338 = vpack.c.bf16 %v4291, %v4290
      %v4339 = vpack.c.bf16 %v4293, %v4292
      %v4340 = vpack.c.bf16 %v4295, %v4294
      %v4341 = vpack.c.bf16 %v4297, %v4296
      %v4342 = vpack.c.bf16 %v4299, %v4298
      %v4343 = vpack.c.bf16 %v4301, %v4300
      %v4344 = vpack.c.bf16 %v4303, %v4302
      %v4345 = vpack.c.bf16 %v4305, %v4304
      %v4346 = vpack.c.bf16 %v4307, %v4306
      %v4347 = vpack.c.bf16 %v4309, %v4308
      %v4348 = vpack.c.bf16 %v4311, %v4310
      %v4349 = vpack.c.bf16 %v4313, %v4312
      %v4350 = vpack.c.bf16 %v4315, %v4314
      %v4351 = vpack.c.bf16 %v4317, %v4316
      %v4352 = vpack.c.bf16 %v4319, %v4318
      %v4353 = vpack.c.bf16 %v4321, %v4320
      %v4354 = vpack.c.bf16 %v4323, %v4322
      %v4355 = vpack.c.bf16 %v4325, %v4324
      %v4356 = vpack.c.bf16 %v4327, %v4326
      %v4357 = vpack.c.bf16 %v4329, %v4328
      %v4358 = vpack.c.bf16 %v4331, %v4330
      %4359 = vst [vmem:[#allocation2 + $0x8] sm:$0xff] %v4332
      %4360 = vst [vmem:[#allocation2 + $0x20] sm:$0xff] %v4333
      %4361 = vst [vmem:[#allocation2 + $0x38] sm:$0xff] %v4334
      %4362 = vst [vmem:[#allocation2 + $0x50] sm:$0xff] %v4335
      %4363 = vst [vmem:[#allocation2 + $0x68] sm:$0xff] %v4336
      %4364 = vst [vmem:[#allocation2 + $0x80] sm:$0xff] %v4337
      %4365 = vst [vmem:[#allocation2 + $0x98] sm:$0xff] %v4338
      %4366 = vst [vmem:[#allocation2 + $0xb0] sm:$0xff] %v4339
      %4367 = vst [vmem:[#allocation2 + $0xc8] sm:$0xff] %v4340
      %4368 = vst [vmem:[#allocation2 + $0xe0] sm:$0xff] %v4341
      %4369 = vst [vmem:[#allocation2 + $0xf8] sm:$0xff] %v4342
      %4370 = vst [vmem:[#allocation2 + $0x110] sm:$0xff] %v4343
      %4371 = vst [vmem:[#allocation2 + $0x128] sm:$0xff] %v4344
      %4372 = vst [vmem:[#allocation2 + $0x140] sm:$0xff] %v4345
      %4373 = vst [vmem:[#allocation2 + $0x158] sm:$0xff] %v4346
      %4374 = vst [vmem:[#allocation2 + $0x170] sm:$0xff] %v4347
      %4375 = vst [vmem:[#allocation2 + $0x188] sm:$0xff] %v4348
      %4376 = vst [vmem:[#allocation2 + $0x1a0] sm:$0xff] %v4349
      %4377 = vst [vmem:[#allocation2 + $0x1b8] sm:$0xff] %v4350
      %4378 = vst [vmem:[#allocation2 + $0x1d0] sm:$0xff] %v4351
      %4379 = vst [vmem:[#allocation2 + $0x1e8] sm:$0xff] %v4352
      %4380 = vst [vmem:[#allocation2 + $0x200] sm:$0xff] %v4353
      %4381 = vst [vmem:[#allocation2 + $0x218] sm:$0xff] %v4354
      %4382 = vst [vmem:[#allocation2 + $0x230] sm:$0xff] %v4355
      %4383 = vst [vmem:[#allocation2 + $0x248] sm:$0xff] %v4356
      %4384 = vst [vmem:[#allocation2 + $0x260] sm:$0xff] %v4357
      %4385 = vst [vmem:[#allocation2 + $0x278] sm:$0xff] %v4358
      %v4386 = vld [vmem:[#allocation3 + $0x2] sm:$0xff]
      %v4387 = vld [vmem:[#allocation3 + $0xa] sm:$0xff]
      %v4388 = vld [vmem:[#allocation3 + $0x12] sm:$0xff]
      %v4389 = vld [vmem:[#allocation3 + $0x1a] sm:$0xff]
      %v4390 = vld [vmem:[#allocation3 + $0x22] sm:$0xff]
      %v4391 = vld [vmem:[#allocation3 + $0x2a] sm:$0xff]
      %v4392 = vld [vmem:[#allocation3 + $0x32] sm:$0xff]
      %v4393 = vld [vmem:[#allocation3 + $0x3a] sm:$0xff]
      %v4394 = vld [vmem:[#allocation3 + $0x42] sm:$0xff]
      %v4395 = vld [vmem:[#allocation3 + $0x4a] sm:$0xff]
      %v4396 = vld [vmem:[#allocation3 + $0x52] sm:$0xff]
      %v4397 = vld [vmem:[#allocation3 + $0x5a] sm:$0xff]
      %v4398 = vld [vmem:[#allocation3 + $0x62] sm:$0xff]
      %v4399 = vld [vmem:[#allocation3 + $0x6a] sm:$0xff]
      %v4400 = vld [vmem:[#allocation3 + $0x72] sm:$0xff]
      %v4401 = vld [vmem:[#allocation3 + $0x7a] sm:$0xff]
      %v4402 = vld [vmem:[#allocation3 + $0x82] sm:$0xff]
      %v4403 = vld [vmem:[#allocation3 + $0x8a] sm:$0xff]
      %v4404 = vld [vmem:[#allocation3 + $0x92] sm:$0xff]
      %v4405 = vld [vmem:[#allocation3 + $0x9a] sm:$0xff]
      %v4406 = vld [vmem:[#allocation3 + $0xa2] sm:$0xff]
      %v4407 = vld [vmem:[#allocation3 + $0xaa] sm:$0xff]
      %v4408 = vld [vmem:[#allocation3 + $0xb2] sm:$0xff]
      %v4409 = vld [vmem:[#allocation3 + $0xba] sm:$0xff]
      %v4410 = vld [vmem:[#allocation3 + $0xc2] sm:$0xff]
      %v4411 = vld [vmem:[#allocation3 + $0xca] sm:$0xff]
      %v4412 = vld [vmem:[#allocation3 + $0xd2] sm:$0xff]
      %v4413 = vld [vmem:[#allocation3 + $0xda] sm:$0xff]
      %v4414 = vld [vmem:[#allocation3 + $0xe2] sm:$0xff]
      %v4415 = vld [vmem:[#allocation3 + $0xea] sm:$0xff]
      %v4416 = vld [vmem:[#allocation3 + $0xf2] sm:$0xff]
      %v4417 = vld [vmem:[#allocation3 + $0xfa] sm:$0xff]
      %v4418 = vld [vmem:[#allocation3 + $0x102] sm:$0xff]
      %v4419 = vld [vmem:[#allocation3 + $0x10a] sm:$0xff]
      %v4420 = vld [vmem:[#allocation3 + $0x112] sm:$0xff]
      %v4421 = vld [vmem:[#allocation3 + $0x11a] sm:$0xff]
      %v4422 = vld [vmem:[#allocation3 + $0x122] sm:$0xff]
      %v4423 = vld [vmem:[#allocation3 + $0x12a] sm:$0xff]
      %v4424 = vld [vmem:[#allocation3 + $0x132] sm:$0xff]
      %v4425 = vld [vmem:[#allocation3 + $0x13a] sm:$0xff]
      %v4426 = vld [vmem:[#allocation3 + $0x142] sm:$0xff]
      %v4427 = vld [vmem:[#allocation3 + $0x14a] sm:$0xff]
      %v4428 = vld [vmem:[#allocation3 + $0x152] sm:$0xff]
      %v4429 = vld [vmem:[#allocation3 + $0x15a] sm:$0xff]
      %v4430 = vld [vmem:[#allocation3 + $0x162] sm:$0xff]
      %v4431 = vld [vmem:[#allocation3 + $0x16a] sm:$0xff]
      %v4432 = vld [vmem:[#allocation3 + $0x172] sm:$0xff]
      %v4433 = vld [vmem:[#allocation3 + $0x17a] sm:$0xff]
      %v4434 = vld [vmem:[#allocation3 + $0x182] sm:$0xff]
      %v4435 = vld [vmem:[#allocation3 + $0x18a] sm:$0xff]
      %v4436 = vld [vmem:[#allocation3 + $0x192] sm:$0xff]
      %v4437 = vld [vmem:[#allocation3 + $0x19a] sm:$0xff]
      %v4438 = vld [vmem:[#allocation3 + $0x1a2] sm:$0xff]
      %v4439 = vld [vmem:[#allocation3 + $0x1aa] sm:$0xff]
      %v4440 = vpack.c.bf16 %v4387, %v4386
      %v4441 = vpack.c.bf16 %v4389, %v4388
      %v4442 = vpack.c.bf16 %v4391, %v4390
      %v4443 = vpack.c.bf16 %v4393, %v4392
      %v4444 = vpack.c.bf16 %v4395, %v4394
      %v4445 = vpack.c.bf16 %v4397, %v4396
      %v4446 = vpack.c.bf16 %v4399, %v4398
      %v4447 = vpack.c.bf16 %v4401, %v4400
      %v4448 = vpack.c.bf16 %v4403, %v4402
      %v4449 = vpack.c.bf16 %v4405, %v4404
      %v4450 = vpack.c.bf16 %v4407, %v4406
      %v4451 = vpack.c.bf16 %v4409, %v4408
      %v4452 = vpack.c.bf16 %v4411, %v4410
      %v4453 = vpack.c.bf16 %v4413, %v4412
      %v4454 = vpack.c.bf16 %v4415, %v4414
      %v4455 = vpack.c.bf16 %v4417, %v4416
      %v4456 = vpack.c.bf16 %v4419, %v4418
      %v4457 = vpack.c.bf16 %v4421, %v4420
      %v4458 = vpack.c.bf16 %v4423, %v4422
      %v4459 = vpack.c.bf16 %v4425, %v4424
      %v4460 = vpack.c.bf16 %v4427, %v4426
      %v4461 = vpack.c.bf16 %v4429, %v4428
      %v4462 = vpack.c.bf16 %v4431, %v4430
      %v4463 = vpack.c.bf16 %v4433, %v4432
      %v4464 = vpack.c.bf16 %v4435, %v4434
      %v4465 = vpack.c.bf16 %v4437, %v4436
      %v4466 = vpack.c.bf16 %v4439, %v4438
      %4467 = vst [vmem:[#allocation2 + $0x10] sm:$0xff] %v4440
      %4468 = vst [vmem:[#allocation2 + $0x28] sm:$0xff] %v4441
      %4469 = vst [vmem:[#allocation2 + $0x40] sm:$0xff] %v4442
      %4470 = vst [vmem:[#allocation2 + $0x58] sm:$0xff] %v4443
      %4471 = vst [vmem:[#allocation2 + $0x70] sm:$0xff] %v4444
      %4472 = vst [vmem:[#allocation2 + $0x88] sm:$0xff] %v4445
      %4473 = vst [vmem:[#allocation2 + $0xa0] sm:$0xff] %v4446
      %4474 = vst [vmem:[#allocation2 + $0xb8] sm:$0xff] %v4447
      %4475 = vst [vmem:[#allocation2 + $0xd0] sm:$0xff] %v4448
      %4476 = vst [vmem:[#allocation2 + $0xe8] sm:$0xff] %v4449
      %4477 = vst [vmem:[#allocation2 + $0x100] sm:$0xff] %v4450
      %4478 = vst [vmem:[#allocation2 + $0x118] sm:$0xff] %v4451
      %4479 = vst [vmem:[#allocation2 + $0x130] sm:$0xff] %v4452
      %4480 = vst [vmem:[#allocation2 + $0x148] sm:$0xff] %v4453
      %4481 = vst [vmem:[#allocation2 + $0x160] sm:$0xff] %v4454
      %4482 = vst [vmem:[#allocation2 + $0x178] sm:$0xff] %v4455
      %4483 = vst [vmem:[#allocation2 + $0x190] sm:$0xff] %v4456
      %4484 = vst [vmem:[#allocation2 + $0x1a8] sm:$0xff] %v4457
      %4485 = vst [vmem:[#allocation2 + $0x1c0] sm:$0xff] %v4458
      %4486 = vst [vmem:[#allocation2 + $0x1d8] sm:$0xff] %v4459
      %4487 = vst [vmem:[#allocation2 + $0x1f0] sm:$0xff] %v4460
      %4488 = vst [vmem:[#allocation2 + $0x208] sm:$0xff] %v4461
      %4489 = vst [vmem:[#allocation2 + $0x220] sm:$0xff] %v4462
      %4490 = vst [vmem:[#allocation2 + $0x238] sm:$0xff] %v4463
      %4491 = vst [vmem:[#allocation2 + $0x250] sm:$0xff] %v4464
      %4492 = vst [vmem:[#allocation2 + $0x268] sm:$0xff] %v4465
      %4493 = vst [vmem:[#allocation2 + $0x280] sm:$0xff] %v4466
      %v4494 = vld [vmem:[#allocation2] sm:$0xf0]
      %v4495 = vld [vmem:[#allocation2 + $0x8] sm:$0xf0]
      %v4496 = vld [vmem:[#allocation2 + $0x10] sm:$0xf0]
      %v4497 = vld [vmem:[#allocation2 + $0x18] sm:$0xff]
      %v4498 = vld [vmem:[#allocation2 + $0x20] sm:$0xff]
      %v4499 = vld [vmem:[#allocation2 + $0x28] sm:$0xff]
      %v4500 = vld [vmem:[#allocation2 + $0x30] sm:$0xff]
      %v4501 = vld [vmem:[#allocation2 + $0x38] sm:$0xff]
      %v4502 = vld [vmem:[#allocation2 + $0x40] sm:$0xff]
      %v4503 = vld [vmem:[#allocation2 + $0x48] sm:$0xff]
      %v4504 = vld [vmem:[#allocation2 + $0x50] sm:$0xff]
      %v4505 = vld [vmem:[#allocation2 + $0x58] sm:$0xff]
      %v4506 = vld [vmem:[#allocation2 + $0x60] sm:$0xff]
      %v4507 = vld [vmem:[#allocation2 + $0x68] sm:$0xff]
      %v4508 = vld [vmem:[#allocation2 + $0x70] sm:$0xff]
      %v4509 = vld [vmem:[#allocation2 + $0x78] sm:$0xff]
      %v4510 = vld [vmem:[#allocation2 + $0x80] sm:$0xff]
      %v4511 = vld [vmem:[#allocation2 + $0x88] sm:$0xff]
      %v4512 = vld [vmem:[#allocation2 + $0x90] sm:$0xff]
      %v4513 = vld [vmem:[#allocation2 + $0x98] sm:$0xff]
      %v4514 = vld [vmem:[#allocation2 + $0xa0] sm:$0xff]
      %v4515 = vld [vmem:[#allocation2 + $0xa8] sm:$0xff]
      %v4516 = vld [vmem:[#allocation2 + $0xb0] sm:$0xff]
      %v4517 = vld [vmem:[#allocation2 + $0xb8] sm:$0xff]
      %v4518 = vld [vmem:[#allocation2 + $0xc0] sm:$0xff]
      %v4519 = vld [vmem:[#allocation2 + $0xc8] sm:$0xff]
      %v4520 = vld [vmem:[#allocation2 + $0xd0] sm:$0xff]
      %v4521 = vld [vmem:[#allocation2 + $0xd8] sm:$0xff]
      %v4522 = vld [vmem:[#allocation2 + $0xe0] sm:$0xff]
      %v4523 = vld [vmem:[#allocation2 + $0xe8] sm:$0xff]
      %v4524 = vld [vmem:[#allocation2 + $0xf0] sm:$0xff]
      %v4525 = vld [vmem:[#allocation2 + $0xf8] sm:$0xff]
      %v4526 = vld [vmem:[#allocation2 + $0x100] sm:$0xff]
      %v4527 = vld [vmem:[#allocation2 + $0x108] sm:$0xff]
      %v4528 = vld [vmem:[#allocation2 + $0x110] sm:$0xff]
      %v4529 = vld [vmem:[#allocation2 + $0x118] sm:$0xff]
      %v4530 = vld [vmem:[#allocation2 + $0x120] sm:$0xff]
      %v4531 = vld [vmem:[#allocation2 + $0x128] sm:$0xff]
      %v4532 = vld [vmem:[#allocation2 + $0x130] sm:$0xff]
      %v4533 = vld [vmem:[#allocation2 + $0x138] sm:$0xff]
      %v4534 = vld [vmem:[#allocation2 + $0x140] sm:$0xff]
      %v4535 = vld [vmem:[#allocation2 + $0x148] sm:$0xff]
      %v4536 = vld [vmem:[#allocation2 + $0x150] sm:$0xff]
      %v4537 = vld [vmem:[#allocation2 + $0x158] sm:$0xff]
      %v4538 = vld [vmem:[#allocation2 + $0x160] sm:$0xff]
      %v4539 = vld [vmem:[#allocation2 + $0x168] sm:$0xff]
      %v4540 = vld [vmem:[#allocation2 + $0x170] sm:$0xff]
      %v4541 = vld [vmem:[#allocation2 + $0x178] sm:$0xff]
      %v4542 = vld [vmem:[#allocation2 + $0x180] sm:$0xff]
      %v4543 = vld [vmem:[#allocation2 + $0x188] sm:$0xff]
      %v4544 = vld [vmem:[#allocation2 + $0x190] sm:$0xff]
      %v4545 = vld [vmem:[#allocation2 + $0x198] sm:$0xff]
      %v4546 = vld [vmem:[#allocation2 + $0x1a0] sm:$0xff]
      %v4547 = vld [vmem:[#allocation2 + $0x1a8] sm:$0xff]
      %v4548 = vld [vmem:[#allocation2 + $0x1b0] sm:$0xff]
      %v4549 = vld [vmem:[#allocation2 + $0x1b8] sm:$0xff]
      %v4550 = vld [vmem:[#allocation2 + $0x1c0] sm:$0xff]
      %v4551 = vld [vmem:[#allocation2 + $0x1c8] sm:$0xff]
      %v4552 = vld [vmem:[#allocation2 + $0x1d0] sm:$0xff]
      %v4553 = vld [vmem:[#allocation2 + $0x1d8] sm:$0xff]
      %v4554 = vld [vmem:[#allocation2 + $0x1e0] sm:$0xff]
      %v4555 = vld [vmem:[#allocation2 + $0x1e8] sm:$0xff]
      %v4556 = vld [vmem:[#allocation2 + $0x1f0] sm:$0xff]
      %v4557 = vld [vmem:[#allocation2 + $0x1f8] sm:$0xff]
      %v4558 = vld [vmem:[#allocation2 + $0x200] sm:$0xff]
      %v4559 = vld [vmem:[#allocation2 + $0x208] sm:$0xff]
      %v4560 = vld [vmem:[#allocation2 + $0x210] sm:$0xff]
      %v4561 = vld [vmem:[#allocation2 + $0x218] sm:$0xff]
      %v4562 = vld [vmem:[#allocation2 + $0x220] sm:$0xff]
      %v4563 = vld [vmem:[#allocation2 + $0x228] sm:$0xff]
      %v4564 = vld [vmem:[#allocation2 + $0x230] sm:$0xff]
      %v4565 = vld [vmem:[#allocation2 + $0x238] sm:$0xff]
      %v4566 = vld [vmem:[%s2] sm:$0xf]
      %v4567 = vld [vmem:[%s2 + $0x4] sm:$0xf]
      %v4568 = vld [vmem:[%s2 + $0x8] sm:$0xf]
      %v4569 = vld [vmem:[%s2 + $0xc] sm:$0xf]
      %v4570 = vld [vmem:[%s2 + $0x10] sm:$0xf]
      %v4571 = vld [vmem:[%s2 + $0x14] sm:$0xf]
      %v4572 = vld [vmem:[%s2 + $0x18] sm:$0xf]
      %v4573 = vld [vmem:[%s2 + $0x1c] sm:$0xf]
      %v4574 = vld [vmem:[%s2 + $0x20] sm:$0xf]
      %v4575 = vld [vmem:[%s2 + $0x24] sm:$0xf]
      %v4576 = vld [vmem:[%s2 + $0x28] sm:$0xf]
      %v4577 = vld [vmem:[%s2 + $0x2c] sm:$0xf]
      %v4578 = vld [vmem:[%s2 + $0x30] sm:$0xf]
      %v4579 = vld [vmem:[%s2 + $0x34] sm:$0xf]
      %v4580 = vld [vmem:[%s2 + $0x38] sm:$0xf]
      %v4581 = vld [vmem:[%s2 + $0x3c] sm:$0xf]
      %v4582 = vld [vmem:[%s2 + $0x40] sm:$0xf]
      %v4583 = vld [vmem:[%s2 + $0x44] sm:$0xf]
      %v4584 = vld [vmem:[%s2 + $0x48] sm:$0xf]
      %v4585 = vld [vmem:[%s2 + $0x4c] sm:$0xf]
      %v4586 = vld [vmem:[%s2 + $0x50] sm:$0xf]
      %v4587 = vld [vmem:[%s2 + $0x54] sm:$0xf]
      %v4588 = vld [vmem:[%s2 + $0x58] sm:$0xf]
      %v4589 = vld [vmem:[%s2 + $0x5c] sm:$0xf]
      %v4590 = vld [vmem:[%s2 + $0x60] sm:$0xf]
      %v4591 = vld [vmem:[%s2 + $0x64] sm:$0xf]
      %v4592 = vld [vmem:[%s2 + $0x68] sm:$0xf]
      %v4593 = vld [vmem:[%s2 + $0x6c] sm:$0xf]
      %v4594 = vld [vmem:[%s2 + $0x70] sm:$0xf]
      %v4595 = vld [vmem:[%s2 + $0x74] sm:$0xf]
      %v4596 = vld [vmem:[%s2 + $0x78] sm:$0xf]
      %v4597 = vld [vmem:[%s2 + $0x7c] sm:$0xf]
      %v4598 = vld [vmem:[%s2 + $0x80] sm:$0xf]
      %v4599 = vld [vmem:[%s2 + $0x84] sm:$0xf]
      %v4600 = vld [vmem:[%s2 + $0x88] sm:$0xf]
      %v4601 = vld [vmem:[%s2 + $0x8c] sm:$0xf]
      %v4602 = vld [vmem:[%s2 + $0x90] sm:$0xf]
      %v4603 = vld [vmem:[%s2 + $0x94] sm:$0xf]
      %v4604 = vld [vmem:[%s2 + $0x98] sm:$0xf]
      %v4605 = vld [vmem:[%s2 + $0x9c] sm:$0xf]
      %v4606 = vld [vmem:[%s2 + $0xa0] sm:$0xf]
      %v4607 = vld [vmem:[%s2 + $0xa4] sm:$0xf]
      %v4608 = vld [vmem:[%s2 + $0xa8] sm:$0xf]
      %v4609 = vld [vmem:[%s2 + $0xac] sm:$0xf]
      %v4610 = vld [vmem:[%s2 + $0xb0] sm:$0xf]
      %v4611 = vld [vmem:[%s2 + $0xb4] sm:$0xf]
      %v4612 = vld [vmem:[%s2 + $0xb8] sm:$0xf]
      %v4613 = vld [vmem:[%s2 + $0xbc] sm:$0xf]
      %v4614 = vld [vmem:[#allocation2 + $0x240] sm:$0xff]
      %v4615 = vld [vmem:[#allocation2 + $0x248] sm:$0xff]
      %v4616 = vld [vmem:[#allocation2 + $0x250] sm:$0xff]
      %v4617 = vld [vmem:[#allocation2 + $0x258] sm:$0xf]
      %v4618 = vld [vmem:[#allocation2 + $0x260] sm:$0xf]
      %v4619 = vld [vmem:[#allocation2 + $0x268] sm:$0xf]
      %s4620 = scalar_lea.vmem %s2, 192
      %v4621 = vld [vmem:[%s4620] sm:$0xf]
      %v4622 = vld [vmem:[%s4620 + $0x4] sm:$0xf]
      %v4623 = vld [vmem:[%s4620 + $0x8] sm:$0xf]
      %v4624 = vld [vmem:[%s4620 + $0xc] sm:$0xf]
      %v4625 = vld [vmem:[%s4620 + $0x10] sm:$0xf]
      %v4626 = vld [vmem:[%s4620 + $0x14] sm:$0xf]
      %v4627 = vld [vmem:[%s4620 + $0x18] sm:$0xf]
      %v4628 = vld [vmem:[%s4620 + $0x1c] sm:$0xf]
      %v4629 = vld [vmem:[%s4620 + $0x20] sm:$0xf]
      %v4630 = vld [vmem:[%s4620 + $0x24] sm:$0xf]
      %v4631 = vld [vmem:[%s4620 + $0x28] sm:$0xf]
      %v4632 = vld [vmem:[%s4620 + $0x2c] sm:$0xf]
      %v4633 = vld [vmem:[%s4620 + $0x30] sm:$0xf]
      %v4634 = vld [vmem:[%s4620 + $0x34] sm:$0xf]
      %v4635 = vld [vmem:[%s4620 + $0x38] sm:$0xf]
      %v4636 = vld [vmem:[%s4620 + $0x3c] sm:$0xf]
      %v4637 = vld [vmem:[%s4620 + $0x40] sm:$0xf]
      %v4638 = vld [vmem:[%s4620 + $0x44] sm:$0xf]
      %v4639 = vld [vmem:[%s4620 + $0x48] sm:$0xf]
      %v4640 = vld [vmem:[%s4620 + $0x4c] sm:$0xf]
      %v4641 = vld [vmem:[%s4620 + $0x50] sm:$0xf]
      %v4642 = vld [vmem:[%s4620 + $0x54] sm:$0xf]
      %v4643 = vld [vmem:[%s4620 + $0x58] sm:$0xf]
      %v4644 = vld [vmem:[%s4620 + $0x5c] sm:$0xf]
      %v4645 = vld [vmem:[%s4620 + $0x60] sm:$0xf]
      %v4646 = vld [vmem:[%s4620 + $0x64] sm:$0xf]
      %v4647 = vld [vmem:[%s4620 + $0x68] sm:$0xf]
      %v4648 = vld [vmem:[%s4620 + $0x6c] sm:$0xf]
      %v4649 = vld [vmem:[%s4620 + $0x70] sm:$0xf]
      %v4650 = vld [vmem:[%s4620 + $0x74] sm:$0xf]
      %v4651 = vld [vmem:[%s4620 + $0x78] sm:$0xf]
      %v4652 = vld [vmem:[%s4620 + $0x7c] sm:$0xf]
      %v4653 = vld [vmem:[%s4620 + $0x80] sm:$0xf]
      %v4654 = vld [vmem:[%s4620 + $0x84] sm:$0xf]
      %v4655 = vld [vmem:[%s4620 + $0x88] sm:$0xf]
      %v4656 = vld [vmem:[%s4620 + $0x8c] sm:$0xf]
      %v4657 = vld [vmem:[%s4620 + $0x90] sm:$0xf]
      %v4658 = vld [vmem:[%s4620 + $0x94] sm:$0xf]
      %v4659 = vld [vmem:[%s4620 + $0x98] sm:$0xf]
      %v4660 = vld [vmem:[%s4620 + $0x9c] sm:$0xf]
      %v4661 = vld [vmem:[%s4620 + $0xa0] sm:$0xf]
      %v4662 = vld [vmem:[%s4620 + $0xa4] sm:$0xf]
      %v4663 = vld [vmem:[%s4620 + $0xa8] sm:$0xf]
      %v4664 = vld [vmem:[%s4620 + $0xac] sm:$0xf]
      %v4665 = vld [vmem:[%s4620 + $0xb0] sm:$0xf]
      %v4666 = vld [vmem:[%s4620 + $0xb4] sm:$0xf]
      %v4667 = vld [vmem:[%s4620 + $0xb8] sm:$0xf]
      %v4668 = vld [vmem:[%s4620 + $0xbc] sm:$0xf]
      %v4717 = vunpack.c.l.b16 %v4621
      %v4718 = vunpack.c.l.b16 %v4622
      %v4719 = vunpack.c.l.b16 %v4623
      %v4720 = vunpack.c.l.b16 %v4624
      %v4721 = vunpack.c.l.b16 %v4625
      %v4722 = vunpack.c.l.b16 %v4626
      %v4723 = vunpack.c.l.b16 %v4627
      %v4724 = vunpack.c.l.b16 %v4628
      %v4725 = vunpack.c.l.b16 %v4629
      %v4726 = vunpack.c.l.b16 %v4630
      %v4727 = vunpack.c.l.b16 %v4631
      %v4728 = vunpack.c.l.b16 %v4632
      %v4729 = vunpack.c.l.b16 %v4633
      %v4730 = vunpack.c.l.b16 %v4634
      %v4731 = vunpack.c.l.b16 %v4635
      %v4732 = vunpack.c.l.b16 %v4636
      %v4733 = vunpack.c.l.b16 %v4637
      %v4734 = vunpack.c.l.b16 %v4638
      %v4735 = vunpack.c.l.b16 %v4639
      %v4736 = vunpack.c.l.b16 %v4640
      %v4737 = vunpack.c.l.b16 %v4641
      %v4738 = vunpack.c.l.b16 %v4642
      %v4739 = vunpack.c.l.b16 %v4643
      %v4740 = vunpack.c.l.b16 %v4644
      %v4741 = vunpack.c.l.b16 %v4645
      %v4742 = vunpack.c.l.b16 %v4646
      %v4743 = vunpack.c.l.b16 %v4647
      %v4744 = vunpack.c.l.b16 %v4648
      %v4745 = vunpack.c.l.b16 %v4649
      %v4746 = vunpack.c.l.b16 %v4650
      %v4747 = vunpack.c.l.b16 %v4651
      %v4748 = vunpack.c.l.b16 %v4652
      %v4749 = vunpack.c.l.b16 %v4653
      %v4750 = vunpack.c.l.b16 %v4654
      %v4751 = vunpack.c.l.b16 %v4655
      %v4752 = vunpack.c.l.b16 %v4656
      %v4753 = vunpack.c.l.b16 %v4657
      %v4754 = vunpack.c.l.b16 %v4658
      %v4755 = vunpack.c.l.b16 %v4659
      %v4756 = vunpack.c.l.b16 %v4660
      %v4757 = vunpack.c.l.b16 %v4661
      %v4758 = vunpack.c.l.b16 %v4662
      %v4759 = vunpack.c.l.b16 %v4663
      %v4760 = vunpack.c.l.b16 %v4664
      %v4761 = vunpack.c.l.b16 %v4665
      %v4762 = vunpack.c.l.b16 %v4666
      %v4763 = vunpack.c.l.b16 %v4667
      %v4764 = vunpack.c.l.b16 %v4668
      %v4765 = vpack.c.b16 %v4718, %v4717
      %v4766 = vpack.c.b16 %v4720, %v4719
      %v4767 = vpack.c.b16 %v4722, %v4721
      %v4768 = vpack.c.b16 %v4724, %v4723
      %v4769 = vpack.c.b16 %v4726, %v4725
      %v4770 = vpack.c.b16 %v4728, %v4727
      %v4771 = vpack.c.b16 %v4730, %v4729
      %v4772 = vpack.c.b16 %v4732, %v4731
      %v4773 = vpack.c.b16 %v4734, %v4733
      %v4774 = vpack.c.b16 %v4736, %v4735
      %v4775 = vpack.c.b16 %v4738, %v4737
      %v4776 = vpack.c.b16 %v4740, %v4739
      %v4777 = vpack.c.b16 %v4742, %v4741
      %v4778 = vpack.c.b16 %v4744, %v4743
      %v4779 = vpack.c.b16 %v4746, %v4745
      %v4780 = vpack.c.b16 %v4748, %v4747
      %v4781 = vpack.c.b16 %v4750, %v4749
      %v4782 = vpack.c.b16 %v4752, %v4751
      %v4783 = vpack.c.b16 %v4754, %v4753
      %v4784 = vpack.c.b16 %v4756, %v4755
      %v4785 = vpack.c.b16 %v4758, %v4757
      %v4786 = vpack.c.b16 %v4760, %v4759
      %v4787 = vpack.c.b16 %v4762, %v4761
      %v4788 = vpack.c.b16 %v4764, %v4763
      %4813 = vmatprep.subr.bf16.mxu0 0
      %4814 = vmatpush1.bf16.msra.mxu0 %v4765
      %4815 = vmatprep.subr.bf16.mxu0 0
      %4816 = vmatpush1.bf16.msra.mxu0 %v4766
      %4817 = vmatprep.subr.bf16.mxu0 0
      %4818 = vmatpush1.bf16.msra.mxu0 %v4767
      %4819 = vmatprep.subr.bf16.mxu0 0
      %4820 = vmatpush1.bf16.msra.mxu0 %v4768
      %4821 = vmatprep.subr.bf16.mxu0 0
      %4822 = vmatpush1.bf16.msra.mxu0 %v4769
      %4823 = vmatprep.subr.bf16.mxu0 0
      %4824 = vmatpush1.bf16.msra.mxu0 %v4770
      %4825 = vmatprep.subr.bf16.mxu0 0
      %4826 = vmatpush1.bf16.msra.mxu0 %v4771
      %4827 = vmatprep.subr.bf16.mxu0 0
      %4828 = vmatpush1.bf16.msra.mxu0 %v4772
      %4829 = vmatprep.subr.bf16.mxu0 0
      %4830 = vmatpush1.bf16.msra.mxu0 %v4773
      %4831 = vmatprep.subr.bf16.mxu0 0
      %4832 = vmatpush1.bf16.msra.mxu0 %v4774
      %4833 = vmatprep.subr.bf16.mxu0 0
      %4834 = vmatpush1.bf16.msra.mxu0 %v4775
      %4835 = vmatprep.subr.bf16.mxu0 0
      %4836 = vmatpush1.bf16.msra.mxu0 %v4776
      %4837 = vmatprep.subr.bf16.mxu0 0
      %4838 = vmatpush1.bf16.msra.mxu0 %v4777
      %4839 = vmatprep.subr.bf16.mxu0 0
      %4840 = vmatpush1.bf16.msra.mxu0 %v4778
      %4841 = vmatprep.subr.bf16.mxu0 0
      %4842 = vmatpush1.bf16.msra.mxu0 %v4779
      %4843 = vmatprep.subr.bf16.mxu0 0
      %4844 = vmatpush1.bf16.msra.mxu0 %v4780
      %4845 = vmatprep.mubr.bf16.mxu0 %v4501
      %4846 = vmatmul.mubr.bf16.gmra.mrb[0].mxu0 %v4500
      %v4847 = vpop.f32.mrb[0].mxu0
      %v4848 = vadd.f32 0.0, %v4847
      %v4849 = vpop.f32.mrb[0].mxu0
      %v4850 = vpop.f32.mrb[0].mxu0
      %v4851 = vadd.f32 0.0, %v4850
      %v4852 = vpop.f32.mrb[0].mxu0
      %4853 = vmatprep.mubr.bf16.mxu0 %v4504
      %4854 = vmatmul.mubr.bf16.gmra.mrb[0].mxu0 %v4503
      %v4855 = vpop.f32.mrb[0].mxu0
      %v4856 = vadd.f32 0.0, %v4855
      %v4857 = vpop.f32.mrb[0].mxu0
      %v4858 = vpop.f32.mrb[0].mxu0
      %v4859 = vadd.f32 0.0, %v4858
      %v4860 = vpop.f32.mrb[0].mxu0
      %4861 = vmatprep.mubr.bf16.mxu0 %v4507
      %4862 = vmatmul.mubr.bf16.gmra.mrb[0].mxu0 %v4506
      %v4863 = vpop.f32.mrb[0].mxu0
      %v4864 = vadd.f32 0.0, %v4863
      %v4865 = vpop.f32.mrb[0].mxu0
      %v4866 = vpop.f32.mrb[0].mxu0
      %v4867 = vadd.f32 0.0, %v4866
      %v4868 = vpop.f32.mrb[0].mxu0
      %4869 = vmatprep.mubr.bf16.mxu0 %v4510
      %4870 = vmatmul.mubr.bf16.gmra.mrb[0].mxu0 %v4509
      %v4871 = vpop.f32.mrb[0].mxu0
      %v4872 = vadd.f32 0.0, %v4871
      %v4873 = vpop.f32.mrb[0].mxu0
      %v4874 = vpop.f32.mrb[0].mxu0
      %v4875 = vadd.f32 0.0, %v4874
      %v4876 = vpop.f32.mrb[0].mxu0
      %4877 = vmatprep.mubr.bf16.mxu0 %v4513
      %4878 = vmatmul.mubr.bf16.gmra.mrb[0].mxu0 %v4512
      %v4879 = vpop.f32.mrb[0].mxu0
      %v4880 = vadd.f32 0.0, %v4879
      %v4881 = vpop.f32.mrb[0].mxu0
      %v4882 = vpop.f32.mrb[0].mxu0
      %v4883 = vadd.f32 0.0, %v4882
      %v4884 = vpop.f32.mrb[0].mxu0
      %4885 = vmatprep.mubr.bf16.mxu0 %v4516
      %4886 = vmatmul.mubr.bf16.gmra.mrb[0].mxu0 %v4515
      %v4887 = vpop.f32.mrb[0].mxu0
      %v4888 = vadd.f32 0.0, %v4887
      %v4889 = vpop.f32.mrb[0].mxu0
      %v4890 = vpop.f32.mrb[0].mxu0
      %v4891 = vadd.f32 0.0, %v4890
      %v4892 = vpop.f32.mrb[0].mxu0
      %4893 = vmatprep.mubr.bf16.mxu0 %v4519
      %4894 = vmatmul.mubr.bf16.gmra.mrb[0].mxu0 %v4518
      %v4895 = vpop.f32.mrb[0].mxu0
      %v4896 = vadd.f32 0.0, %v4895
      %v4897 = vpop.f32.mrb[0].mxu0
      %v4898 = vpop.f32.mrb[0].mxu0
      %v4899 = vadd.f32 0.0, %v4898
      %v4900 = vpop.f32.mrb[0].mxu0
      %4901 = vmatprep.mubr.bf16.mxu0 %v4522
      %4902 = vmatmul.mubr.bf16.gmra.mrb[0].mxu0 %v4521
      %v4903 = vpop.f32.mrb[0].mxu0
      %v4904 = vadd.f32 0.0, %v4903
      %v4905 = vpop.f32.mrb[0].mxu0
      %v4906 = vpop.f32.mrb[0].mxu0
      %v4907 = vadd.f32 0.0, %v4906
      %v4908 = vpop.f32.mrb[0].mxu0
      %4909 = vmatprep.mubr.bf16.mxu0 %v4525
      %4910 = vmatmul.mubr.bf16.gmra.mrb[0].mxu0 %v4524
      %v4911 = vpop.f32.mrb[0].mxu0
      %v4912 = vadd.f32 0.0, %v4911
      %v4913 = vpop.f32.mrb[0].mxu0
      %v4914 = vpop.f32.mrb[0].mxu0
      %v4915 = vadd.f32 0.0, %v4914
      %v4916 = vpop.f32.mrb[0].mxu0
      %4917 = vmatprep.mubr.bf16.mxu0 %v4528
      %4918 = vmatmul.mubr.bf16.gmra.mrb[0].mxu0 %v4527
      %v4919 = vpop.f32.mrb[0].mxu0
      %v4920 = vadd.f32 0.0, %v4919
      %v4921 = vpop.f32.mrb[0].mxu0
      %v4922 = vpop.f32.mrb[0].mxu0
      %v4923 = vadd.f32 0.0, %v4922
      %v4924 = vpop.f32.mrb[0].mxu0
      %4925 = vmatprep.mubr.bf16.mxu0 %v4531
      %4926 = vmatmul.mubr.bf16.gmra.mrb[0].mxu0 %v4530
      %v4927 = vpop.f32.mrb[0].mxu0
      %v4928 = vadd.f32 0.0, %v4927
      %v4929 = vpop.f32.mrb[0].mxu0
      %v4930 = vpop.f32.mrb[0].mxu0
      %v4931 = vadd.f32 0.0, %v4930
      %v4932 = vpop.f32.mrb[0].mxu0
      %4933 = vmatprep.mubr.bf16.mxu0 %v4534
      %4934 = vmatmul.mubr.bf16.gmra.mrb[0].mxu0 %v4533
      %v4935 = vpop.f32.mrb[0].mxu0
      %v4936 = vadd.f32 0.0, %v4935
      %v4937 = vpop.f32.mrb[0].mxu0
      %v4938 = vpop.f32.mrb[0].mxu0
      %v4939 = vadd.f32 0.0, %v4938
      %v4940 = vpop.f32.mrb[0].mxu0
      %4941 = vmatprep.mubr.bf16.mxu0 %v4537
      %4942 = vmatmul.mubr.bf16.gmra.mrb[0].mxu0 %v4536
      %v4943 = vpop.f32.mrb[0].mxu0
      %v4944 = vadd.f32 0.0, %v4943
      %v4945 = vpop.f32.mrb[0].mxu0
      %v4946 = vpop.f32.mrb[0].mxu0
      %v4947 = vadd.f32 0.0, %v4946
      %v4948 = vpop.f32.mrb[0].mxu0
      %4949 = vmatprep.mubr.bf16.mxu0 %v4540
      %4950 = vmatmul.mubr.bf16.gmra.mrb[0].mxu0 %v4539
      %v4951 = vpop.f32.mrb[0].mxu0
      %v4952 = vadd.f32 0.0, %v4951
      %v4953 = vpop.f32.mrb[0].mxu0
      %v4954 = vpop.f32.mrb[0].mxu0
      %v4955 = vadd.f32 0.0, %v4954
      %v4956 = vpop.f32.mrb[0].mxu0
      %4957 = vmatprep.mubr.bf16.mxu0 %v4543
      %4958 = vmatmul.mubr.bf16.gmra.mrb[0].mxu0 %v4542
      %v4959 = vpop.f32.mrb[0].mxu0
      %v4960 = vadd.f32 0.0, %v4959
      %v4961 = vpop.f32.mrb[0].mxu0
      %v4962 = vpop.f32.mrb[0].mxu0
      %v4963 = vadd.f32 0.0, %v4962
      %v4964 = vpop.f32.mrb[0].mxu0
      %4965 = vmatprep.mubr.bf16.mxu0 %v4546
      %4966 = vmatmul.mubr.bf16.gmra.mrb[0].mxu0 %v4545
      %v4967 = vpop.f32.mrb[0].mxu0
      %v4968 = vadd.f32 0.0, %v4967
      %v4969 = vpop.f32.mrb[0].mxu0
      %v4970 = vpop.f32.mrb[0].mxu0
      %v4971 = vadd.f32 0.0, %v4970
      %v4972 = vpop.f32.mrb[0].mxu0
      %4973 = vmatprep.mubr.bf16.mxu0 %v4549
      %4974 = vmatmul.mubr.bf16.gmra.mrb[0].mxu0 %v4548
      %v4975 = vpop.f32.mrb[0].mxu0
      %v4976 = vadd.f32 0.0, %v4975
      %v4977 = vpop.f32.mrb[0].mxu0
      %v4978 = vpop.f32.mrb[0].mxu0
      %v4979 = vadd.f32 0.0, %v4978
      %v4980 = vpop.f32.mrb[0].mxu0
      %4981 = vmatprep.mubr.bf16.mxu0 %v4552
      %4982 = vmatmul.mubr.bf16.gmra.mrb[0].mxu0 %v4551
      %v4983 = vpop.f32.mrb[0].mxu0
      %v4984 = vadd.f32 0.0, %v4983
      %v4985 = vpop.f32.mrb[0].mxu0
      %v4986 = vpop.f32.mrb[0].mxu0
      %v4987 = vadd.f32 0.0, %v4986
      %v4988 = vpop.f32.mrb[0].mxu0
      %4989 = vmatprep.mubr.bf16.mxu0 %v4555
      %4990 = vmatmul.mubr.bf16.gmra.mrb[0].mxu0 %v4554
      %v4991 = vpop.f32.mrb[0].mxu0
      %v4992 = vadd.f32 0.0, %v4991
      %v4993 = vpop.f32.mrb[0].mxu0
      %v4994 = vpop.f32.mrb[0].mxu0
      %v4995 = vadd.f32 0.0, %v4994
      %v4996 = vpop.f32.mrb[0].mxu0
      %4997 = vmatprep.mubr.bf16.mxu0 %v4558
      %4998 = vmatmul.mubr.bf16.gmra.mrb[0].mxu0 %v4557
      %v4999 = vpop.f32.mrb[0].mxu0
      %v5000 = vadd.f32 0.0, %v4999
      %v5001 = vpop.f32.mrb[0].mxu0
      %v5002 = vpop.f32.mrb[0].mxu0
      %v5003 = vadd.f32 0.0, %v5002
      %v5004 = vpop.f32.mrb[0].mxu0
      %5005 = vmatprep.mubr.bf16.mxu0 %v4561
      %5006 = vmatmul.mubr.bf16.gmra.mrb[0].mxu0 %v4560
      %v5007 = vpop.f32.mrb[0].mxu0
      %v5008 = vadd.f32 0.0, %v5007
      %v5009 = vpop.f32.mrb[0].mxu0
      %v5010 = vpop.f32.mrb[0].mxu0
      %v5011 = vadd.f32 0.0, %v5010
      %v5012 = vpop.f32.mrb[0].mxu0
      %5013 = vmatprep.mubr.bf16.mxu0 %v4564
      %5014 = vmatmul.mubr.bf16.gmra.mrb[0].mxu0 %v4563
      %v5015 = vpop.f32.mrb[0].mxu0
      %v5016 = vadd.f32 0.0, %v5015
      %v5017 = vpop.f32.mrb[0].mxu0
      %v5018 = vpop.f32.mrb[0].mxu0
      %v5019 = vadd.f32 0.0, %v5018
      %v5020 = vpop.f32.mrb[0].mxu0
      %5021 = vmatprep.mubr.bf16.mxu0 %v4615
      %5022 = vmatmul.mubr.bf16.gmra.mrb[0].mxu0 %v4614
      %v5023 = vpop.f32.mrb[0].mxu0
      %v5024 = vadd.f32 0.0, %v5023
      %v5025 = vpop.f32.mrb[0].mxu0
      %v5026 = vpop.f32.mrb[0].mxu0
      %v5027 = vadd.f32 0.0, %v5026
      %v5028 = vpop.f32.mrb[0].mxu0
      %5029 = vmatprep.mubr.bf16.mxu0 %v4618
      %5030 = vmatmul.mubr.bf16.gmra.mrb[0].mxu0 %v4617
      %v5031 = vpop.f32.mrb[0].mxu0
      %v5032 = vadd.f32 0.0, %v5031
      %v5033 = vpop.f32.mrb[0].mxu0
      %v5034 = vpop.f32.mrb[0].mxu0
      %v5035 = vpop.f32.mrb[0].mxu0
      %5036 = vdwg.mxu0
      %5037 = vmatprep.subr.bf16.mxu0 0
      %5038 = vmatpush1.bf16.msra.mxu0 %v4781
      %5039 = vmatprep.subr.bf16.mxu0 0
      %5040 = vmatpush1.bf16.msra.mxu0 %v4782
      %5041 = vmatprep.subr.bf16.mxu0 0
      %5042 = vmatpush1.bf16.msra.mxu0 %v4783
      %5043 = vmatprep.subr.bf16.mxu0 0
      %5044 = vmatpush1.bf16.msra.mxu0 %v4784
      %5045 = vmatprep.subr.bf16.mxu0 0
      %5046 = vmatpush1.bf16.msra.mxu0 %v4785
      %5047 = vmatprep.subr.bf16.mxu0 0
      %5048 = vmatpush1.bf16.msra.mxu0 %v4786
      %5049 = vmatprep.subr.bf16.mxu0 0
      %5050 = vmatpush1.bf16.msra.mxu0 %v4787
      %5051 = vmatprep.subr.bf16.mxu0 0
      %5052 = vmatpush1.bf16.msra.mxu0 %v4788
      %5053 = vmatprep.subr.bf16.mxu0 0
      %5054 = vmatpush1.bf16.msra.mxu0 0
      %5055 = vmatprep.subr.bf16.mxu0 0
      %5056 = vmatpush1.bf16.msra.mxu0 0
      %5057 = vmatprep.subr.bf16.mxu0 0
      %5058 = vmatpush1.bf16.msra.mxu0 0
      %5059 = vmatprep.subr.bf16.mxu0 0
      %5060 = vmatpush1.bf16.msra.mxu0 0
      %5061 = vmatprep.subr.bf16.mxu0 0
      %5062 = vmatpush1.bf16.msra.mxu0 0
      %5063 = vmatprep.subr.bf16.mxu0 0
      %5064 = vmatpush1.bf16.msra.mxu0 0
      %5065 = vmatprep.subr.bf16.mxu0 0
      %5066 = vmatpush1.bf16.msra.mxu0 0
      %5067 = vmatprep.subr.bf16.mxu0 0
      %5068 = vmatpush1.bf16.msra.mxu0 0
      %5069 = vmatprep.mubr.bf16.mxu0 0
      %5070 = vmatmul.mubr.bf16.gmra.mrb[0].mxu0 %v4502
      %v5071 = vpop.f32.mrb[0].mxu0
      %v5072 = vadd.f32 %v4848, %v5071
      %v5073 = vpop.f32.mrb[0].mxu0
      %v5074 = vpop.f32.mrb[0].mxu0
      %v5075 = vadd.f32 %v4851, %v5074
      %v5076 = vpop.f32.mrb[0].mxu0
      %5077 = vmatprep.mubr.bf16.mxu0 0
      %5078 = vmatmul.mubr.bf16.gmra.mrb[0].mxu0 %v4505
      %v5079 = vpop.f32.mrb[0].mxu0
      %v5080 = vadd.f32 %v4856, %v5079
      %v5081 = vpop.f32.mrb[0].mxu0
      %v5082 = vpop.f32.mrb[0].mxu0
      %v5083 = vadd.f32 %v4859, %v5082
      %v5084 = vpop.f32.mrb[0].mxu0
      %5085 = vmatprep.mubr.bf16.mxu0 0
      %5086 = vmatmul.mubr.bf16.gmra.mrb[0].mxu0 %v4508
      %v5087 = vpop.f32.mrb[0].mxu0
      %v5088 = vadd.f32 %v4864, %v5087
      %v5089 = vpop.f32.mrb[0].mxu0
      %v5090 = vpop.f32.mrb[0].mxu0
      %v5091 = vadd.f32 %v4867, %v5090
      %v5092 = vpop.f32.mrb[0].mxu0
      %5093 = vmatprep.mubr.bf16.mxu0 0
      %5094 = vmatmul.mubr.bf16.gmra.mrb[0].mxu0 %v4511
      %v5095 = vpop.f32.mrb[0].mxu0
      %v5096 = vadd.f32 %v4872, %v5095
      %v5097 = vpop.f32.mrb[0].mxu0
      %v5098 = vpop.f32.mrb[0].mxu0
      %v5099 = vadd.f32 %v4875, %v5098
      %v5100 = vpop.f32.mrb[0].mxu0
      %5101 = vmatprep.mubr.bf16.mxu0 0
      %5102 = vmatmul.mubr.bf16.gmra.mrb[0].mxu0 %v4514
      %v5103 = vpop.f32.mrb[0].mxu0
      %v5104 = vadd.f32 %v4880, %v5103
      %v5105 = vpop.f32.mrb[0].mxu0
      %v5106 = vpop.f32.mrb[0].mxu0
      %v5107 = vadd.f32 %v4883, %v5106
      %v5108 = vpop.f32.mrb[0].mxu0
      %5109 = vmatprep.mubr.bf16.mxu0 0
      %5110 = vmatmul.mubr.bf16.gmra.mrb[0].mxu0 %v4517
      %v5111 = vpop.f32.mrb[0].mxu0
      %v5112 = vadd.f32 %v4888, %v5111
      %v5113 = vpop.f32.mrb[0].mxu0
      %v5114 = vpop.f32.mrb[0].mxu0
      %v5115 = vadd.f32 %v4891, %v5114
      %v5116 = vpop.f32.mrb[0].mxu0
      %5117 = vmatprep.mubr.bf16.mxu0 0
      %5118 = vmatmul.mubr.bf16.gmra.mrb[0].mxu0 %v4520
      %v5119 = vpop.f32.mrb[0].mxu0
      %v5120 = vadd.f32 %v4896, %v5119
      %v5121 = vpop.f32.mrb[0].mxu0
      %v5122 = vpop.f32.mrb[0].mxu0
      %v5123 = vadd.f32 %v4899, %v5122
      %v5124 = vpop.f32.mrb[0].mxu0
      %5125 = vmatprep.mubr.bf16.mxu0 0
      %5126 = vmatmul.mubr.bf16.gmra.mrb[0].mxu0 %v4523
      %v5127 = vpop.f32.mrb[0].mxu0
      %v5128 = vadd.f32 %v4904, %v5127
      %v5129 = vpop.f32.mrb[0].mxu0
      %v5130 = vpop.f32.mrb[0].mxu0
      %v5131 = vadd.f32 %v4907, %v5130
      %v5132 = vpop.f32.mrb[0].mxu0
      %5133 = vmatprep.mubr.bf16.mxu0 0
      %5134 = vmatmul.mubr.bf16.gmra.mrb[0].mxu0 %v4526
      %v5135 = vpop.f32.mrb[0].mxu0
      %v5136 = vadd.f32 %v4912, %v5135
      %v5137 = vpop.f32.mrb[0].mxu0
      %v5138 = vpop.f32.mrb[0].mxu0
      %v5139 = vadd.f32 %v4915, %v5138
      %v5140 = vpop.f32.mrb[0].mxu0
      %5141 = vmatprep.mubr.bf16.mxu0 0
      %5142 = vmatmul.mubr.bf16.gmra.mrb[0].mxu0 %v4529
      %v5143 = vpop.f32.mrb[0].mxu0
      %v5144 = vadd.f32 %v4920, %v5143
      %v5145 = vpop.f32.mrb[0].mxu0
      %v5146 = vpop.f32.mrb[0].mxu0
      %v5147 = vadd.f32 %v4923, %v5146
      %v5148 = vpop.f32.mrb[0].mxu0
      %5149 = vmatprep.mubr.bf16.mxu0 0
      %5150 = vmatmul.mubr.bf16.gmra.mrb[0].mxu0 %v4532
      %v5151 = vpop.f32.mrb[0].mxu0
      %v5152 = vadd.f32 %v4928, %v5151
      %v5153 = vpop.f32.mrb[0].mxu0
      %v5154 = vpop.f32.mrb[0].mxu0
      %v5155 = vadd.f32 %v4931, %v5154
      %v5156 = vpop.f32.mrb[0].mxu0
      %5157 = vmatprep.mubr.bf16.mxu0 0
      %5158 = vmatmul.mubr.bf16.gmra.mrb[0].mxu0 %v4535
      %v5159 = vpop.f32.mrb[0].mxu0
      %v5160 = vadd.f32 %v4936, %v5159
      %v5161 = vpop.f32.mrb[0].mxu0
      %v5162 = vpop.f32.mrb[0].mxu0
      %v5163 = vadd.f32 %v4939, %v5162
      %v5164 = vpop.f32.mrb[0].mxu0
      %5165 = vmatprep.mubr.bf16.mxu0 0
      %5166 = vmatmul.mubr.bf16.gmra.mrb[0].mxu0 %v4538
      %v5167 = vpop.f32.mrb[0].mxu0
      %v5168 = vadd.f32 %v4944, %v5167
      %v5169 = vpop.f32.mrb[0].mxu0
      %v5170 = vpop.f32.mrb[0].mxu0
      %v5171 = vadd.f32 %v4947, %v5170
      %v5172 = vpop.f32.mrb[0].mxu0
      %5173 = vmatprep.mubr.bf16.mxu0 0
      %5174 = vmatmul.mubr.bf16.gmra.mrb[0].mxu0 %v4541
      %v5175 = vpop.f32.mrb[0].mxu0
      %v5176 = vadd.f32 %v4952, %v5175
      %v5177 = vpop.f32.mrb[0].mxu0
      %v5178 = vpop.f32.mrb[0].mxu0
      %v5179 = vadd.f32 %v4955, %v5178
      %v5180 = vpop.f32.mrb[0].mxu0
      %5181 = vmatprep.mubr.bf16.mxu0 0
      %5182 = vmatmul.mubr.bf16.gmra.mrb[0].mxu0 %v4544
      %v5183 = vpop.f32.mrb[0].mxu0
      %v5184 = vadd.f32 %v4960, %v5183
      %v5185 = vpop.f32.mrb[0].mxu0
      %v5186 = vpop.f32.mrb[0].mxu0
      %v5187 = vadd.f32 %v4963, %v5186
      %v5188 = vpop.f32.mrb[0].mxu0
      %5189 = vmatprep.mubr.bf16.mxu0 0
      %5190 = vmatmul.mubr.bf16.gmra.mrb[0].mxu0 %v4547
      %v5191 = vpop.f32.mrb[0].mxu0
      %v5192 = vadd.f32 %v4968, %v5191
      %v5193 = vpop.f32.mrb[0].mxu0
      %v5194 = vpop.f32.mrb[0].mxu0
      %v5195 = vadd.f32 %v4971, %v5194
      %v5196 = vpop.f32.mrb[0].mxu0
      %5197 = vmatprep.mubr.bf16.mxu0 0
      %5198 = vmatmul.mubr.bf16.gmra.mrb[0].mxu0 %v4550
      %v5199 = vpop.f32.mrb[0].mxu0
      %v5200 = vadd.f32 %v4976, %v5199
      %v5201 = vpop.f32.mrb[0].mxu0
      %v5202 = vpop.f32.mrb[0].mxu0
      %v5203 = vadd.f32 %v4979, %v5202
      %v5204 = vpop.f32.mrb[0].mxu0
      %5205 = vmatprep.mubr.bf16.mxu0 0
      %5206 = vmatmul.mubr.bf16.gmra.mrb[0].mxu0 %v4553
      %v5207 = vpop.f32.mrb[0].mxu0
      %v5208 = vadd.f32 %v4984, %v5207
      %v5209 = vpop.f32.mrb[0].mxu0
      %v5210 = vpop.f32.mrb[0].mxu0
      %v5211 = vadd.f32 %v4987, %v5210
      %v5212 = vpop.f32.mrb[0].mxu0
      %5213 = vmatprep.mubr.bf16.mxu0 0
      %5214 = vmatmul.mubr.bf16.gmra.mrb[0].mxu0 %v4556
      %v5215 = vpop.f32.mrb[0].mxu0
      %v5216 = vadd.f32 %v4992, %v5215
      %v5217 = vpop.f32.mrb[0].mxu0
      %v5218 = vpop.f32.mrb[0].mxu0
      %v5219 = vadd.f32 %v4995, %v5218
      %v5220 = vpop.f32.mrb[0].mxu0
      %5221 = vmatprep.mubr.bf16.mxu0 0
      %5222 = vmatmul.mubr.bf16.gmra.mrb[0].mxu0 %v4559
      %v5223 = vpop.f32.mrb[0].mxu0
      %v5224 = vadd.f32 %v5000, %v5223
      %v5225 = vpop.f32.mrb[0].mxu0
      %v5226 = vpop.f32.mrb[0].mxu0
      %v5227 = vadd.f32 %v5003, %v5226
      %v5228 = vpop.f32.mrb[0].mxu0
      %5229 = vmatprep.mubr.bf16.mxu0 0
      %5230 = vmatmul.mubr.bf16.gmra.mrb[0].mxu0 %v4562
      %v5231 = vpop.f32.mrb[0].mxu0
      %v5232 = vadd.f32 %v5008, %v5231
      %v5233 = vpop.f32.mrb[0].mxu0
      %v5234 = vpop.f32.mrb[0].mxu0
      %v5235 = vadd.f32 %v5011, %v5234
      %v5236 = vpop.f32.mrb[0].mxu0
      %5237 = vmatprep.mubr.bf16.mxu0 0
      %5238 = vmatmul.mubr.bf16.gmra.mrb[0].mxu0 %v4565
      %v5239 = vpop.f32.mrb[0].mxu0
      %v5240 = vadd.f32 %v5016, %v5239
      %v5241 = vpop.f32.mrb[0].mxu0
      %v5242 = vpop.f32.mrb[0].mxu0
      %v5243 = vadd.f32 %v5019, %v5242
      %v5244 = vpop.f32.mrb[0].mxu0
      %5245 = vmatprep.mubr.bf16.mxu0 0
      %5246 = vmatmul.mubr.bf16.gmra.mrb[0].mxu0 %v4616
      %v5247 = vpop.f32.mrb[0].mxu0
      %v5248 = vadd.f32 %v5024, %v5247
      %v5249 = vpop.f32.mrb[0].mxu0
      %v5250 = vpop.f32.mrb[0].mxu0
      %v5251 = vadd.f32 %v5027, %v5250
      %v5252 = vpop.f32.mrb[0].mxu0
      %5253 = vmatprep.mubr.bf16.mxu0 0
      %5254 = vmatmul.mubr.bf16.gmra.mrb[0].mxu0 %v4619
      %v5255 = vpop.f32.mrb[0].mxu0
      %v5256 = vadd.f32 %v5032, %v5255
      %v5257 = vpop.f32.mrb[0].mxu0
      %v5258 = vpop.f32.mrb[0].mxu0
      %v5259 = vpop.f32.mrb[0].mxu0
      %5260 = vdwg.mxu0
      %v5333 = vrot.slane %v4494, 4
      %v5334 = vrot.slane %v4497, 4
      %v5335 = vsel %vm2021, %v5333, %v5334
      %v5336 = vrot.slane %v4495, 4
      %v5337 = vrot.slane %v4498, 4
      %v5338 = vsel %vm2021, %v5336, %v5337
      %v5339 = vrot.slane %v4496, 4
      %v5340 = vrot.slane %v4499, 4
      %v5341 = vsel %vm2021, %v5339, %v5340
      %v5342 = vrot.slane %v4500, 4
      %v5343 = vsel %vm2021, %v5334, %v5342
      %v5344 = vrot.slane %v4501, 4
      %v5345 = vsel %vm2021, %v5337, %v5344
      %v5346 = vrot.slane %v4502, 4
      %v5347 = vsel %vm2021, %v5340, %v5346
      %v5348 = vrot.slane %v4503, 4
      %v5349 = vsel %vm2021, %v5342, %v5348
      %v5350 = vrot.slane %v4504, 4
      %v5351 = vsel %vm2021, %v5344, %v5350
      %v5352 = vrot.slane %v4505, 4
      %v5353 = vsel %vm2021, %v5346, %v5352
      %v5354 = vrot.slane %v4506, 4
      %v5355 = vsel %vm2021, %v5348, %v5354
      %v5356 = vrot.slane %v4507, 4
      %v5357 = vsel %vm2021, %v5350, %v5356
      %v5358 = vrot.slane %v4508, 4
      %v5359 = vsel %vm2021, %v5352, %v5358
      %v5360 = vrot.slane %v4509, 4
      %v5361 = vsel %vm2021, %v5354, %v5360
      %v5362 = vrot.slane %v4510, 4
      %v5363 = vsel %vm2021, %v5356, %v5362
      %v5364 = vrot.slane %v4511, 4
      %v5365 = vsel %vm2021, %v5358, %v5364
      %v5366 = vrot.slane %v4512, 4
      %v5367 = vsel %vm2021, %v5360, %v5366
      %v5368 = vrot.slane %v4513, 4
      %v5369 = vsel %vm2021, %v5362, %v5368
      %v5370 = vrot.slane %v4514, 4
      %v5371 = vsel %vm2021, %v5364, %v5370
      %v5372 = vrot.slane %v4515, 4
      %v5373 = vsel %vm2021, %v5366, %v5372
      %v5374 = vrot.slane %v4516, 4
      %v5375 = vsel %vm2021, %v5368, %v5374
      %v5376 = vrot.slane %v4517, 4
      %v5377 = vsel %vm2021, %v5370, %v5376
      %v5378 = vrot.slane %v4518, 4
      %v5379 = vsel %vm2021, %v5372, %v5378
      %v5380 = vrot.slane %v4519, 4
      %v5381 = vsel %vm2021, %v5374, %v5380
      %v5382 = vrot.slane %v4520, 4
      %v5383 = vsel %vm2021, %v5376, %v5382
      %v5384 = vrot.slane %v4521, 4
      %v5385 = vsel %vm2021, %v5378, %v5384
      %v5386 = vrot.slane %v4522, 4
      %v5387 = vsel %vm2021, %v5380, %v5386
      %v5388 = vrot.slane %v4523, 4
      %v5389 = vsel %vm2021, %v5382, %v5388
      %v5390 = vrot.slane %v4524, 4
      %v5391 = vsel %vm2021, %v5384, %v5390
      %v5392 = vrot.slane %v4525, 4
      %v5393 = vsel %vm2021, %v5386, %v5392
      %v5394 = vrot.slane %v4526, 4
      %v5395 = vsel %vm2021, %v5388, %v5394
      %v5396 = vrot.slane %v4527, 4
      %v5397 = vsel %vm2021, %v5390, %v5396
      %v5398 = vrot.slane %v4528, 4
      %v5399 = vsel %vm2021, %v5392, %v5398
      %v5400 = vrot.slane %v4529, 4
      %v5401 = vsel %vm2021, %v5394, %v5400
      %v5402 = vrot.slane %v4530, 4
      %v5403 = vsel %vm2021, %v5396, %v5402
      %v5404 = vrot.slane %v4531, 4
      %v5405 = vsel %vm2021, %v5398, %v5404
      %v5406 = vrot.slane %v4532, 4
      %v5407 = vsel %vm2021, %v5400, %v5406
      %v5408 = vrot.slane %v4533, 4
      %v5409 = vsel %vm2021, %v5402, %v5408
      %v5410 = vrot.slane %v4534, 4
      %v5411 = vsel %vm2021, %v5404, %v5410
      %v5412 = vrot.slane %v4535, 4
      %v5413 = vsel %vm2021, %v5406, %v5412
      %v5414 = vrot.slane %v4536, 4
      %v5415 = vsel %vm2021, %v5408, %v5414
      %v5416 = vrot.slane %v4537, 4
      %v5417 = vsel %vm2021, %v5410, %v5416
      %v5418 = vrot.slane %v4538, 4
      %v5419 = vsel %vm2021, %v5412, %v5418
      %v5420 = vrot.slane %v4539, 4
      %v5421 = vsel %vm2021, %v5414, %v5420
      %v5422 = vrot.slane %v4540, 4
      %v5423 = vsel %vm2021, %v5416, %v5422
      %v5424 = vrot.slane %v4541, 4
      %v5425 = vsel %vm2021, %v5418, %v5424
      %v5426 = vrot.slane %v4542, 4
      %v5427 = vsel %vm2021, %v5420, %v5426
      %v5428 = vrot.slane %v4543, 4
      %v5429 = vsel %vm2021, %v5422, %v5428
      %v5430 = vrot.slane %v4544, 4
      %v5431 = vsel %vm2021, %v5424, %v5430
      %v5432 = vrot.slane %v4545, 4
      %v5433 = vsel %vm2021, %v5426, %v5432
      %v5434 = vrot.slane %v4546, 4
      %v5435 = vsel %vm2021, %v5428, %v5434
      %v5436 = vrot.slane %v4547, 4
      %v5437 = vsel %vm2021, %v5430, %v5436
      %v5438 = vrot.slane %v4548, 4
      %v5439 = vsel %vm2021, %v5432, %v5438
      %v5440 = vrot.slane %v4549, 4
      %v5441 = vsel %vm2021, %v5434, %v5440
      %v5442 = vrot.slane %v4550, 4
      %v5443 = vsel %vm2021, %v5436, %v5442
      %v5444 = vrot.slane %v4551, 4
      %v5445 = vsel %vm2021, %v5438, %v5444
      %v5446 = vrot.slane %v4552, 4
      %v5447 = vsel %vm2021, %v5440, %v5446
      %v5448 = vrot.slane %v4553, 4
      %v5449 = vsel %vm2021, %v5442, %v5448
      %v5450 = vrot.slane %v4554, 4
      %v5451 = vsel %vm2021, %v5444, %v5450
      %v5452 = vrot.slane %v4555, 4
      %v5453 = vsel %vm2021, %v5446, %v5452
      %v5454 = vrot.slane %v4556, 4
      %v5455 = vsel %vm2021, %v5448, %v5454
      %v5456 = vrot.slane %v4557, 4
      %v5457 = vsel %vm2021, %v5450, %v5456
      %v5458 = vrot.slane %v4558, 4
      %v5459 = vsel %vm2021, %v5452, %v5458
      %v5460 = vrot.slane %v4559, 4
      %v5461 = vsel %vm2021, %v5454, %v5460
      %v5462 = vrot.slane %v4560, 4
      %v5463 = vsel %vm2021, %v5456, %v5462
      %v5464 = vrot.slane %v4561, 4
      %v5465 = vsel %vm2021, %v5458, %v5464
      %v5466 = vrot.slane %v4562, 4
      %v5467 = vsel %vm2021, %v5460, %v5466
      %v5468 = vrot.slane %v4563, 4
      %v5469 = vsel %vm2021, %v5462, %v5468
      %v5470 = vrot.slane %v4564, 4
      %v5471 = vsel %vm2021, %v5464, %v5470
      %v5472 = vrot.slane %v4565, 4
      %v5473 = vsel %vm2021, %v5466, %v5472
      %v5594 = vunpack.c.l.b16 %v4566
      %v5595 = vunpack.c.l.b16 %v4567
      %v5596 = vunpack.c.l.b16 %v4568
      %v5597 = vunpack.c.l.b16 %v4569
      %v5598 = vunpack.c.l.b16 %v4570
      %v5599 = vunpack.c.l.b16 %v4571
      %v5600 = vunpack.c.l.b16 %v4572
      %v5601 = vunpack.c.l.b16 %v4573
      %v5602 = vunpack.c.l.b16 %v4574
      %v5603 = vunpack.c.l.b16 %v4575
      %v5604 = vunpack.c.l.b16 %v4576
      %v5605 = vunpack.c.l.b16 %v4577
      %v5606 = vunpack.c.l.b16 %v4578
      %v5607 = vunpack.c.l.b16 %v4579
      %v5608 = vunpack.c.l.b16 %v4580
      %v5609 = vunpack.c.l.b16 %v4581
      %v5610 = vunpack.c.l.b16 %v4582
      %v5611 = vunpack.c.l.b16 %v4583
      %v5612 = vunpack.c.l.b16 %v4584
      %v5613 = vunpack.c.l.b16 %v4585
      %v5614 = vunpack.c.l.b16 %v4586
      %v5615 = vunpack.c.l.b16 %v4587
      %v5616 = vunpack.c.l.b16 %v4588
      %v5617 = vunpack.c.l.b16 %v4589
      %v5618 = vunpack.c.l.b16 %v4590
      %v5619 = vunpack.c.l.b16 %v4591
      %v5620 = vunpack.c.l.b16 %v4592
      %v5621 = vunpack.c.l.b16 %v4593
      %v5622 = vunpack.c.l.b16 %v4594
      %v5623 = vunpack.c.l.b16 %v4595
      %v5624 = vunpack.c.l.b16 %v4596
      %v5625 = vunpack.c.l.b16 %v4597
      %v5626 = vunpack.c.l.b16 %v4598
      %v5627 = vunpack.c.l.b16 %v4599
      %v5628 = vunpack.c.l.b16 %v4600
      %v5629 = vunpack.c.l.b16 %v4601
      %v5630 = vunpack.c.l.b16 %v4602
      %v5631 = vunpack.c.l.b16 %v4603
      %v5632 = vunpack.c.l.b16 %v4604
      %v5633 = vunpack.c.l.b16 %v4605
      %v5634 = vunpack.c.l.b16 %v4606
      %v5635 = vunpack.c.l.b16 %v4607
      %v5636 = vunpack.c.l.b16 %v4608
      %v5637 = vunpack.c.l.b16 %v4609
      %v5638 = vunpack.c.l.b16 %v4610
      %v5639 = vunpack.c.l.b16 %v4611
      %v5640 = vunpack.c.l.b16 %v4612
      %v5641 = vunpack.c.l.b16 %v4613
      %v5642 = vpack.c.b16 %v5595, %v5594
      %v5643 = vpack.c.b16 %v5597, %v5596
      %v5644 = vpack.c.b16 %v5599, %v5598
      %v5645 = vpack.c.b16 %v5601, %v5600
      %v5646 = vpack.c.b16 %v5603, %v5602
      %v5647 = vpack.c.b16 %v5605, %v5604
      %v5648 = vpack.c.b16 %v5607, %v5606
      %v5649 = vpack.c.b16 %v5609, %v5608
      %v5650 = vpack.c.b16 %v5611, %v5610
      %v5651 = vpack.c.b16 %v5613, %v5612
      %v5652 = vpack.c.b16 %v5615, %v5614
      %v5653 = vpack.c.b16 %v5617, %v5616
      %v5654 = vpack.c.b16 %v5619, %v5618
      %v5655 = vpack.c.b16 %v5621, %v5620
      %v5656 = vpack.c.b16 %v5623, %v5622
      %v5657 = vpack.c.b16 %v5625, %v5624
      %v5658 = vpack.c.b16 %v5627, %v5626
      %v5659 = vpack.c.b16 %v5629, %v5628
      %v5660 = vpack.c.b16 %v5631, %v5630
      %v5661 = vpack.c.b16 %v5633, %v5632
      %v5662 = vpack.c.b16 %v5635, %v5634
      %v5663 = vpack.c.b16 %v5637, %v5636
      %v5664 = vpack.c.b16 %v5639, %v5638
      %v5665 = vpack.c.b16 %v5641, %v5640
      %5690 = vmatprep.subr.bf16.mxu0 0
      %5691 = vmatpush1.bf16.msra.mxu0 %v5642
      %5692 = vmatprep.subr.bf16.mxu0 0
      %5693 = vmatpush1.bf16.msra.mxu0 %v5643
      %5694 = vmatprep.subr.bf16.mxu0 0
      %5695 = vmatpush1.bf16.msra.mxu0 %v5644
      %5696 = vmatprep.subr.bf16.mxu0 0
      %5697 = vmatpush1.bf16.msra.mxu0 %v5645
      %5698 = vmatprep.subr.bf16.mxu0 0
      %5699 = vmatpush1.bf16.msra.mxu0 %v5646
      %5700 = vmatprep.subr.bf16.mxu0 0
      %5701 = vmatpush1.bf16.msra.mxu0 %v5647
      %5702 = vmatprep.subr.bf16.mxu0 0
      %5703 = vmatpush1.bf16.msra.mxu0 %v5648
      %5704 = vmatprep.subr.bf16.mxu0 0
      %5705 = vmatpush1.bf16.msra.mxu0 %v5649
      %5706 = vmatprep.subr.bf16.mxu0 0
      %5707 = vmatpush1.bf16.msra.mxu0 %v5650
      %5708 = vmatprep.subr.bf16.mxu0 0
      %5709 = vmatpush1.bf16.msra.mxu0 %v5651
      %5710 = vmatprep.subr.bf16.mxu0 0
      %5711 = vmatpush1.bf16.msra.mxu0 %v5652
      %5712 = vmatprep.subr.bf16.mxu0 0
      %5713 = vmatpush1.bf16.msra.mxu0 %v5653
      %5714 = vmatprep.subr.bf16.mxu0 0
      %5715 = vmatpush1.bf16.msra.mxu0 %v5654
      %5716 = vmatprep.subr.bf16.mxu0 0
      %5717 = vmatpush1.bf16.msra.mxu0 %v5655
      %5718 = vmatprep.subr.bf16.mxu0 0
      %5719 = vmatpush1.bf16.msra.mxu0 %v5656
      %5720 = vmatprep.subr.bf16.mxu0 0
      %5721 = vmatpush1.bf16.msra.mxu0 %v5657
      %5722 = vmatprep.mubr.bf16.mxu0 %v5338
      %5723 = vmatmul.mubr.bf16.gmra.mrb[0].mxu0 %v5335
      %v5724 = vpop.f32.mrb[0].mxu0
      %v5725 = vadd.f32 %v5072, %v5724
      %v5726 = vpop.f32.mrb[0].mxu0
      %v5727 = vpop.f32.mrb[0].mxu0
      %v5728 = vadd.f32 %v5075, %v5727
      %v5729 = vpop.f32.mrb[0].mxu0
      %5730 = vmatprep.mubr.bf16.mxu0 %v5345
      %5731 = vmatmul.mubr.bf16.gmra.mrb[0].mxu0 %v5343
      %v5732 = vpop.f32.mrb[0].mxu0
      %v5733 = vadd.f32 %v5080, %v5732
      %v5734 = vpop.f32.mrb[0].mxu0
      %v5735 = vpop.f32.mrb[0].mxu0
      %v5736 = vadd.f32 %v5083, %v5735
      %v5737 = vpop.f32.mrb[0].mxu0
      %5738 = vmatprep.mubr.bf16.mxu0 %v5351
      %5739 = vmatmul.mubr.bf16.gmra.mrb[0].mxu0 %v5349
      %v5740 = vpop.f32.mrb[0].mxu0
      %v5741 = vadd.f32 %v5088, %v5740
      %v5742 = vpop.f32.mrb[0].mxu0
      %v5743 = vpop.f32.mrb[0].mxu0
      %v5744 = vadd.f32 %v5091, %v5743
      %v5745 = vpop.f32.mrb[0].mxu0
      %5746 = vmatprep.mubr.bf16.mxu0 %v5357
      %5747 = vmatmul.mubr.bf16.gmra.mrb[0].mxu0 %v5355
      %v5748 = vpop.f32.mrb[0].mxu0
      %v5749 = vadd.f32 %v5096, %v5748
      %v5750 = vpop.f32.mrb[0].mxu0
      %v5751 = vpop.f32.mrb[0].mxu0
      %v5752 = vadd.f32 %v5099, %v5751
      %v5753 = vpop.f32.mrb[0].mxu0
      %5754 = vmatprep.mubr.bf16.mxu0 %v5363
      %5755 = vmatmul.mubr.bf16.gmra.mrb[0].mxu0 %v5361
      %v5756 = vpop.f32.mrb[0].mxu0
      %v5757 = vadd.f32 %v5104, %v5756
      %v5758 = vpop.f32.mrb[0].mxu0
      %v5759 = vpop.f32.mrb[0].mxu0
      %v5760 = vadd.f32 %v5107, %v5759
      %v5761 = vpop.f32.mrb[0].mxu0
      %5762 = vmatprep.mubr.bf16.mxu0 %v5369
      %5763 = vmatmul.mubr.bf16.gmra.mrb[0].mxu0 %v5367
      %v5764 = vpop.f32.mrb[0].mxu0
      %v5765 = vadd.f32 %v5112, %v5764
      %v5766 = vpop.f32.mrb[0].mxu0
      %v5767 = vpop.f32.mrb[0].mxu0
      %v5768 = vadd.f32 %v5115, %v5767
      %v5769 = vpop.f32.mrb[0].mxu0
      %5770 = vmatprep.mubr.bf16.mxu0 %v5375
      %5771 = vmatmul.mubr.bf16.gmra.mrb[0].mxu0 %v5373
      %v5772 = vpop.f32.mrb[0].mxu0
      %v5773 = vadd.f32 %v5120, %v5772
      %v5774 = vpop.f32.mrb[0].mxu0
      %v5775 = vpop.f32.mrb[0].mxu0
      %v5776 = vadd.f32 %v5123, %v5775
      %v5777 = vpop.f32.mrb[0].mxu0
      %5778 = vmatprep.mubr.bf16.mxu0 %v5381
      %5779 = vmatmul.mubr.bf16.gmra.mrb[0].mxu0 %v5379
      %v5780 = vpop.f32.mrb[0].mxu0
      %v5781 = vadd.f32 %v5128, %v5780
      %v5782 = vpop.f32.mrb[0].mxu0
      %v5783 = vpop.f32.mrb[0].mxu0
      %v5784 = vadd.f32 %v5131, %v5783
      %v5785 = vpop.f32.mrb[0].mxu0
      %5786 = vmatprep.mubr.bf16.mxu0 %v5387
      %5787 = vmatmul.mubr.bf16.gmra.mrb[0].mxu0 %v5385
      %v5788 = vpop.f32.mrb[0].mxu0
      %v5789 = vadd.f32 %v5136, %v5788
      %v5790 = vpop.f32.mrb[0].mxu0
      %v5791 = vpop.f32.mrb[0].mxu0
      %v5792 = vadd.f32 %v5139, %v5791
      %v5793 = vpop.f32.mrb[0].mxu0
      %5794 = vmatprep.mubr.bf16.mxu0 %v5393
      %5795 = vmatmul.mubr.bf16.gmra.mrb[0].mxu0 %v5391
      %v5796 = vpop.f32.mrb[0].mxu0
      %v5797 = vadd.f32 %v5144, %v5796
      %v5798 = vpop.f32.mrb[0].mxu0
      %v5799 = vpop.f32.mrb[0].mxu0
      %v5800 = vadd.f32 %v5147, %v5799
      %v5801 = vpop.f32.mrb[0].mxu0
      %5802 = vmatprep.mubr.bf16.mxu0 %v5399
      %5803 = vmatmul.mubr.bf16.gmra.mrb[0].mxu0 %v5397
      %v5804 = vpop.f32.mrb[0].mxu0
      %v5805 = vadd.f32 %v5152, %v5804
      %v5806 = vpop.f32.mrb[0].mxu0
      %v5807 = vpop.f32.mrb[0].mxu0
      %v5808 = vadd.f32 %v5155, %v5807
      %v5809 = vpop.f32.mrb[0].mxu0
      %5810 = vmatprep.mubr.bf16.mxu0 %v5405
      %5811 = vmatmul.mubr.bf16.gmra.mrb[0].mxu0 %v5403
      %v5812 = vpop.f32.mrb[0].mxu0
      %v5813 = vadd.f32 %v5160, %v5812
      %v5814 = vpop.f32.mrb[0].mxu0
      %v5815 = vpop.f32.mrb[0].mxu0
      %v5816 = vadd.f32 %v5163, %v5815
      %v5817 = vpop.f32.mrb[0].mxu0
      %5818 = vmatprep.mubr.bf16.mxu0 %v5411
      %5819 = vmatmul.mubr.bf16.gmra.mrb[0].mxu0 %v5409
      %v5820 = vpop.f32.mrb[0].mxu0
      %v5821 = vadd.f32 %v5168, %v5820
      %v5822 = vpop.f32.mrb[0].mxu0
      %v5823 = vpop.f32.mrb[0].mxu0
      %v5824 = vadd.f32 %v5171, %v5823
      %v5825 = vpop.f32.mrb[0].mxu0
      %5826 = vmatprep.mubr.bf16.mxu0 %v5417
      %5827 = vmatmul.mubr.bf16.gmra.mrb[0].mxu0 %v5415
      %v5828 = vpop.f32.mrb[0].mxu0
      %v5829 = vadd.f32 %v5176, %v5828
      %v5830 = vpop.f32.mrb[0].mxu0
      %v5831 = vpop.f32.mrb[0].mxu0
      %v5832 = vadd.f32 %v5179, %v5831
      %v5833 = vpop.f32.mrb[0].mxu0
      %5834 = vmatprep.mubr.bf16.mxu0 %v5423
      %5835 = vmatmul.mubr.bf16.gmra.mrb[0].mxu0 %v5421
      %v5836 = vpop.f32.mrb[0].mxu0
      %v5837 = vadd.f32 %v5184, %v5836
      %v5838 = vpop.f32.mrb[0].mxu0
      %v5839 = vpop.f32.mrb[0].mxu0
      %v5840 = vadd.f32 %v5187, %v5839
      %v5841 = vpop.f32.mrb[0].mxu0
      %5842 = vmatprep.mubr.bf16.mxu0 %v5429
      %5843 = vmatmul.mubr.bf16.gmra.mrb[0].mxu0 %v5427
      %v5844 = vpop.f32.mrb[0].mxu0
      %v5845 = vadd.f32 %v5192, %v5844
      %v5846 = vpop.f32.mrb[0].mxu0
      %v5847 = vpop.f32.mrb[0].mxu0
      %v5848 = vadd.f32 %v5195, %v5847
      %v5849 = vpop.f32.mrb[0].mxu0
      %5850 = vmatprep.mubr.bf16.mxu0 %v5435
      %5851 = vmatmul.mubr.bf16.gmra.mrb[0].mxu0 %v5433
      %v5852 = vpop.f32.mrb[0].mxu0
      %v5853 = vadd.f32 %v5200, %v5852
      %v5854 = vpop.f32.mrb[0].mxu0
      %v5855 = vpop.f32.mrb[0].mxu0
      %v5856 = vadd.f32 %v5203, %v5855
      %v5857 = vpop.f32.mrb[0].mxu0
      %5858 = vmatprep.mubr.bf16.mxu0 %v5441
      %5859 = vmatmul.mubr.bf16.gmra.mrb[0].mxu0 %v5439
      %v5860 = vpop.f32.mrb[0].mxu0
      %v5861 = vadd.f32 %v5208, %v5860
      %v5862 = vpop.f32.mrb[0].mxu0
      %v5863 = vpop.f32.mrb[0].mxu0
      %v5864 = vadd.f32 %v5211, %v5863
      %v5865 = vpop.f32.mrb[0].mxu0
      %5866 = vmatprep.mubr.bf16.mxu0 %v5447
      %5867 = vmatmul.mubr.bf16.gmra.mrb[0].mxu0 %v5445
      %v5868 = vpop.f32.mrb[0].mxu0
      %v5869 = vadd.f32 %v5216, %v5868
      %v5870 = vpop.f32.mrb[0].mxu0
      %v5871 = vpop.f32.mrb[0].mxu0
      %v5872 = vadd.f32 %v5219, %v5871
      %v5873 = vpop.f32.mrb[0].mxu0
      %5874 = vmatprep.mubr.bf16.mxu0 %v5453
      %5875 = vmatmul.mubr.bf16.gmra.mrb[0].mxu0 %v5451
      %v5876 = vpop.f32.mrb[0].mxu0
      %v5877 = vadd.f32 %v5224, %v5876
      %v5878 = vpop.f32.mrb[0].mxu0
      %v5879 = vpop.f32.mrb[0].mxu0
      %v5880 = vadd.f32 %v5227, %v5879
      %v5881 = vpop.f32.mrb[0].mxu0
      %5882 = vmatprep.mubr.bf16.mxu0 %v5459
      %5883 = vmatmul.mubr.bf16.gmra.mrb[0].mxu0 %v5457
      %v5884 = vpop.f32.mrb[0].mxu0
      %v5885 = vadd.f32 %v5232, %v5884
      %v5886 = vpop.f32.mrb[0].mxu0
      %v5887 = vpop.f32.mrb[0].mxu0
      %v5888 = vadd.f32 %v5235, %v5887
      %v5889 = vpop.f32.mrb[0].mxu0
      %5890 = vmatprep.mubr.bf16.mxu0 %v5465
      %5891 = vmatmul.mubr.bf16.gmra.mrb[0].mxu0 %v5463
      %v5892 = vpop.f32.mrb[0].mxu0
      %v5893 = vadd.f32 %v5240, %v5892
      %v5894 = vpop.f32.mrb[0].mxu0
      %v5895 = vpop.f32.mrb[0].mxu0
      %v5896 = vadd.f32 %v5243, %v5895
      %v5897 = vpop.f32.mrb[0].mxu0
      %5898 = vmatprep.mubr.bf16.mxu0 %v5471
      %5899 = vmatmul.mubr.bf16.gmra.mrb[0].mxu0 %v5469
      %v5900 = vpop.f32.mrb[0].mxu0
      %v5901 = vadd.f32 %v5248, %v5900
      %v5902 = vpop.f32.mrb[0].mxu0
      %v5903 = vpop.f32.mrb[0].mxu0
      %v5904 = vadd.f32 %v5251, %v5903
      %v5905 = vpop.f32.mrb[0].mxu0
      %5906 = vmatprep.mubr.bf16.mxu0 %v5470
      %5907 = vmatmul.mubr.bf16.gmra.mrb[0].mxu0 %v5468
      %v5908 = vpop.f32.mrb[0].mxu0
      %v5909 = vadd.f32 %v5256, %v5908
      %v5910 = vpop.f32.mrb[0].mxu0
      %v5911 = vpop.f32.mrb[0].mxu0
      %v5912 = vpop.f32.mrb[0].mxu0
      %5913 = vdwg.mxu0
      %5914 = vmatprep.subr.bf16.mxu0 0
      %5915 = vmatpush1.bf16.msra.mxu0 %v5658
      %5916 = vmatprep.subr.bf16.mxu0 0
      %5917 = vmatpush1.bf16.msra.mxu0 %v5659
      %5918 = vmatprep.subr.bf16.mxu0 0
      %5919 = vmatpush1.bf16.msra.mxu0 %v5660
      %5920 = vmatprep.subr.bf16.mxu0 0
      %5921 = vmatpush1.bf16.msra.mxu0 %v5661
      %5922 = vmatprep.subr.bf16.mxu0 0
      %5923 = vmatpush1.bf16.msra.mxu0 %v5662
      %5924 = vmatprep.subr.bf16.mxu0 0
      %5925 = vmatpush1.bf16.msra.mxu0 %v5663
      %5926 = vmatprep.subr.bf16.mxu0 0
      %5927 = vmatpush1.bf16.msra.mxu0 %v5664
      %5928 = vmatprep.subr.bf16.mxu0 0
      %5929 = vmatpush1.bf16.msra.mxu0 %v5665
      %5930 = vmatprep.subr.bf16.mxu0 0
      %5931 = vmatpush1.bf16.msra.mxu0 0
      %5932 = vmatprep.subr.bf16.mxu0 0
      %5933 = vmatpush1.bf16.msra.mxu0 0
      %5934 = vmatprep.subr.bf16.mxu0 0
      %5935 = vmatpush1.bf16.msra.mxu0 0
      %5936 = vmatprep.subr.bf16.mxu0 0
      %5937 = vmatpush1.bf16.msra.mxu0 0
      %5938 = vmatprep.subr.bf16.mxu0 0
      %5939 = vmatpush1.bf16.msra.mxu0 0
      %5940 = vmatprep.subr.bf16.mxu0 0
      %5941 = vmatpush1.bf16.msra.mxu0 0
      %5942 = vmatprep.subr.bf16.mxu0 0
      %5943 = vmatpush1.bf16.msra.mxu0 0
      %5944 = vmatprep.subr.bf16.mxu0 0
      %5945 = vmatpush1.bf16.msra.mxu0 0
      %5946 = vmatprep.mubr.bf16.mxu0 0
      %5947 = vmatmul.mubr.bf16.gmra.mrb[0].mxu0 %v5341
      %v5948 = vpop.f32.mrb[0].mxu0
      %v5949 = vadd.f32 %v5725, %v5948
      %v5950 = vpop.f32.mrb[0].mxu0
      %v5951 = vpop.f32.mrb[0].mxu0
      %v5952 = vadd.f32 %v5728, %v5951
      %v5953 = vpop.f32.mrb[0].mxu0
      %5954 = vmatprep.mubr.bf16.mxu0 0
      %5955 = vmatmul.mubr.bf16.gmra.mrb[0].mxu0 %v5347
      %v5956 = vpop.f32.mrb[0].mxu0
      %v5957 = vadd.f32 %v5733, %v5956
      %v5958 = vpop.f32.mrb[0].mxu0
      %v5959 = vpop.f32.mrb[0].mxu0
      %v5960 = vadd.f32 %v5736, %v5959
      %v5961 = vpop.f32.mrb[0].mxu0
      %5962 = vmatprep.mubr.bf16.mxu0 0
      %5963 = vmatmul.mubr.bf16.gmra.mrb[0].mxu0 %v5353
      %v5964 = vpop.f32.mrb[0].mxu0
      %v5965 = vadd.f32 %v5741, %v5964
      %v5966 = vpop.f32.mrb[0].mxu0
      %v5967 = vpop.f32.mrb[0].mxu0
      %v5968 = vadd.f32 %v5744, %v5967
      %v5969 = vpop.f32.mrb[0].mxu0
      %5970 = vmatprep.mubr.bf16.mxu0 0
      %5971 = vmatmul.mubr.bf16.gmra.mrb[0].mxu0 %v5359
      %v5972 = vpop.f32.mrb[0].mxu0
      %v5973 = vadd.f32 %v5749, %v5972
      %v5974 = vpop.f32.mrb[0].mxu0
      %v5975 = vpop.f32.mrb[0].mxu0
      %v5976 = vadd.f32 %v5752, %v5975
      %v5977 = vpop.f32.mrb[0].mxu0
      %5978 = vmatprep.mubr.bf16.mxu0 0
      %5979 = vmatmul.mubr.bf16.gmra.mrb[0].mxu0 %v5365
      %v5980 = vpop.f32.mrb[0].mxu0
      %v5981 = vadd.f32 %v5757, %v5980
      %v5982 = vpop.f32.mrb[0].mxu0
      %v5983 = vpop.f32.mrb[0].mxu0
      %v5984 = vadd.f32 %v5760, %v5983
      %v5985 = vpop.f32.mrb[0].mxu0
      %5986 = vmatprep.mubr.bf16.mxu0 0
      %5987 = vmatmul.mubr.bf16.gmra.mrb[0].mxu0 %v5371
      %v5988 = vpop.f32.mrb[0].mxu0
      %v5989 = vadd.f32 %v5765, %v5988
      %v5990 = vpop.f32.mrb[0].mxu0
      %v5991 = vpop.f32.mrb[0].mxu0
      %v5992 = vadd.f32 %v5768, %v5991
      %v5993 = vpop.f32.mrb[0].mxu0
      %5994 = vmatprep.mubr.bf16.mxu0 0
      %5995 = vmatmul.mubr.bf16.gmra.mrb[0].mxu0 %v5377
      %v5996 = vpop.f32.mrb[0].mxu0
      %v5997 = vadd.f32 %v5773, %v5996
      %v5998 = vpop.f32.mrb[0].mxu0
      %v5999 = vpop.f32.mrb[0].mxu0
      %v6000 = vadd.f32 %v5776, %v5999
      %v6001 = vpop.f32.mrb[0].mxu0
      %6002 = vmatprep.mubr.bf16.mxu0 0
      %6003 = vmatmul.mubr.bf16.gmra.mrb[0].mxu0 %v5383
      %v6004 = vpop.f32.mrb[0].mxu0
      %v6005 = vadd.f32 %v5781, %v6004
      %v6006 = vpop.f32.mrb[0].mxu0
      %v6007 = vpop.f32.mrb[0].mxu0
      %v6008 = vadd.f32 %v5784, %v6007
      %v6009 = vpop.f32.mrb[0].mxu0
      %6010 = vmatprep.mubr.bf16.mxu0 0
      %6011 = vmatmul.mubr.bf16.gmra.mrb[0].mxu0 %v5389
      %v6012 = vpop.f32.mrb[0].mxu0
      %v6013 = vadd.f32 %v5789, %v6012
      %v6014 = vpop.f32.mrb[0].mxu0
      %v6015 = vpop.f32.mrb[0].mxu0
      %v6016 = vadd.f32 %v5792, %v6015
      %v6017 = vpop.f32.mrb[0].mxu0
      %6018 = vmatprep.mubr.bf16.mxu0 0
      %6019 = vmatmul.mubr.bf16.gmra.mrb[0].mxu0 %v5395
      %v6020 = vpop.f32.mrb[0].mxu0
      %v6021 = vadd.f32 %v5797, %v6020
      %v6022 = vpop.f32.mrb[0].mxu0
      %v6023 = vpop.f32.mrb[0].mxu0
      %v6024 = vadd.f32 %v5800, %v6023
      %v6025 = vpop.f32.mrb[0].mxu0
      %6026 = vmatprep.mubr.bf16.mxu0 0
      %6027 = vmatmul.mubr.bf16.gmra.mrb[0].mxu0 %v5401
      %v6028 = vpop.f32.mrb[0].mxu0
      %v6029 = vadd.f32 %v5805, %v6028
      %v6030 = vpop.f32.mrb[0].mxu0
      %v6031 = vpop.f32.mrb[0].mxu0
      %v6032 = vadd.f32 %v5808, %v6031
      %v6033 = vpop.f32.mrb[0].mxu0
      %6034 = vmatprep.mubr.bf16.mxu0 0
      %6035 = vmatmul.mubr.bf16.gmra.mrb[0].mxu0 %v5407
      %v6036 = vpop.f32.mrb[0].mxu0
      %v6037 = vadd.f32 %v5813, %v6036
      %v6038 = vpop.f32.mrb[0].mxu0
      %v6039 = vpop.f32.mrb[0].mxu0
      %v6040 = vadd.f32 %v5816, %v6039
      %v6041 = vpop.f32.mrb[0].mxu0
      %6042 = vmatprep.mubr.bf16.mxu0 0
      %6043 = vmatmul.mubr.bf16.gmra.mrb[0].mxu0 %v5413
      %v6044 = vpop.f32.mrb[0].mxu0
      %v6045 = vadd.f32 %v5821, %v6044
      %v6046 = vpop.f32.mrb[0].mxu0
      %v6047 = vpop.f32.mrb[0].mxu0
      %v6048 = vadd.f32 %v5824, %v6047
      %v6049 = vpop.f32.mrb[0].mxu0
      %6050 = vmatprep.mubr.bf16.mxu0 0
      %6051 = vmatmul.mubr.bf16.gmra.mrb[0].mxu0 %v5419
      %v6052 = vpop.f32.mrb[0].mxu0
      %v6053 = vadd.f32 %v5829, %v6052
      %v6054 = vpop.f32.mrb[0].mxu0
      %v6055 = vpop.f32.mrb[0].mxu0
      %v6056 = vadd.f32 %v5832, %v6055
      %v6057 = vpop.f32.mrb[0].mxu0
      %6058 = vmatprep.mubr.bf16.mxu0 0
      %6059 = vmatmul.mubr.bf16.gmra.mrb[0].mxu0 %v5425
      %v6060 = vpop.f32.mrb[0].mxu0
      %v6061 = vadd.f32 %v5837, %v6060
      %v6062 = vpop.f32.mrb[0].mxu0
      %v6063 = vpop.f32.mrb[0].mxu0
      %v6064 = vadd.f32 %v5840, %v6063
      %v6065 = vpop.f32.mrb[0].mxu0
      %6066 = vmatprep.mubr.bf16.mxu0 0
      %6067 = vmatmul.mubr.bf16.gmra.mrb[0].mxu0 %v5431
      %v6068 = vpop.f32.mrb[0].mxu0
      %v6069 = vadd.f32 %v5845, %v6068
      %v6070 = vpop.f32.mrb[0].mxu0
      %v6071 = vpop.f32.mrb[0].mxu0
      %v6072 = vadd.f32 %v5848, %v6071
      %v6073 = vpop.f32.mrb[0].mxu0
      %6074 = vmatprep.mubr.bf16.mxu0 0
      %6075 = vmatmul.mubr.bf16.gmra.mrb[0].mxu0 %v5437
      %v6076 = vpop.f32.mrb[0].mxu0
      %v6077 = vadd.f32 %v5853, %v6076
      %v6078 = vpop.f32.mrb[0].mxu0
      %v6079 = vpop.f32.mrb[0].mxu0
      %v6080 = vadd.f32 %v5856, %v6079
      %v6081 = vpop.f32.mrb[0].mxu0
      %6082 = vmatprep.mubr.bf16.mxu0 0
      %6083 = vmatmul.mubr.bf16.gmra.mrb[0].mxu0 %v5443
      %v6084 = vpop.f32.mrb[0].mxu0
      %v6085 = vadd.f32 %v5861, %v6084
      %v6086 = vpop.f32.mrb[0].mxu0
      %v6087 = vpop.f32.mrb[0].mxu0
      %v6088 = vadd.f32 %v5864, %v6087
      %v6089 = vpop.f32.mrb[0].mxu0
      %6090 = vmatprep.mubr.bf16.mxu0 0
      %6091 = vmatmul.mubr.bf16.gmra.mrb[0].mxu0 %v5449
      %v6092 = vpop.f32.mrb[0].mxu0
      %v6093 = vadd.f32 %v5869, %v6092
      %v6094 = vpop.f32.mrb[0].mxu0
      %v6095 = vpop.f32.mrb[0].mxu0
      %v6096 = vadd.f32 %v5872, %v6095
      %v6097 = vpop.f32.mrb[0].mxu0
      %6098 = vmatprep.mubr.bf16.mxu0 0
      %6099 = vmatmul.mubr.bf16.gmra.mrb[0].mxu0 %v5455
      %v6100 = vpop.f32.mrb[0].mxu0
      %v6101 = vadd.f32 %v5877, %v6100
      %v6102 = vpop.f32.mrb[0].mxu0
      %v6103 = vpop.f32.mrb[0].mxu0
      %v6104 = vadd.f32 %v5880, %v6103
      %v6105 = vpop.f32.mrb[0].mxu0
      %6106 = vmatprep.mubr.bf16.mxu0 0
      %6107 = vmatmul.mubr.bf16.gmra.mrb[0].mxu0 %v5461
      %v6108 = vpop.f32.mrb[0].mxu0
      %v6109 = vadd.f32 %v5885, %v6108
      %v6110 = vpop.f32.mrb[0].mxu0
      %v6111 = vpop.f32.mrb[0].mxu0
      %v6112 = vadd.f32 %v5888, %v6111
      %v6113 = vpop.f32.mrb[0].mxu0
      %6114 = vmatprep.mubr.bf16.mxu0 0
      %6115 = vmatmul.mubr.bf16.gmra.mrb[0].mxu0 %v5467
      %v6116 = vpop.f32.mrb[0].mxu0
      %v6117 = vadd.f32 %v5893, %v6116
      %v6118 = vpop.f32.mrb[0].mxu0
      %v6119 = vpop.f32.mrb[0].mxu0
      %v6120 = vadd.f32 %v5896, %v6119
      %v6121 = vpop.f32.mrb[0].mxu0
      %6122 = vmatprep.mubr.bf16.mxu0 0
      %6123 = vmatmul.mubr.bf16.gmra.mrb[0].mxu0 %v5473
      %v6124 = vpop.f32.mrb[0].mxu0
      %v6125 = vadd.f32 %v5901, %v6124
      %v6126 = vpop.f32.mrb[0].mxu0
      %v6127 = vpop.f32.mrb[0].mxu0
      %v6128 = vadd.f32 %v5904, %v6127
      %v6129 = vpop.f32.mrb[0].mxu0
      %6130 = vmatprep.mubr.bf16.mxu0 0
      %6131 = vmatmul.mubr.bf16.gmra.mrb[0].mxu0 %v5472
      %v6132 = vpop.f32.mrb[0].mxu0
      %v6133 = vadd.f32 %v5909, %v6132
      %v6134 = vpop.f32.mrb[0].mxu0
      %v6135 = vpop.f32.mrb[0].mxu0
      %v6136 = vpop.f32.mrb[0].mxu0
      %6137 = vdwg.mxu0
      %v6138 = vld [vmem:[#allocation2 + $0x48] sm:$0xf0]
      %v6139 = vld [vmem:[#allocation2 + $0x50] sm:$0xf0]
      %v6140 = vld [vmem:[#allocation2 + $0x58] sm:$0xf0]
      %v6141 = vld [vmem:[#allocation2 + $0x60] sm:$0xff]
      %v6142 = vld [vmem:[#allocation2 + $0x68] sm:$0xff]
      %v6143 = vld [vmem:[#allocation2 + $0x70] sm:$0xff]
      %v6144 = vld [vmem:[#allocation2 + $0x78] sm:$0xff]
      %v6145 = vld [vmem:[#allocation2 + $0x80] sm:$0xff]
      %v6146 = vld [vmem:[#allocation2 + $0x88] sm:$0xff]
      %v6147 = vld [vmem:[#allocation2 + $0x90] sm:$0xff]
      %v6148 = vld [vmem:[#allocation2 + $0x98] sm:$0xff]
      %v6149 = vld [vmem:[#allocation2 + $0xa0] sm:$0xff]
      %v6150 = vld [vmem:[#allocation2 + $0xa8] sm:$0xff]
      %v6151 = vld [vmem:[#allocation2 + $0xb0] sm:$0xff]
      %v6152 = vld [vmem:[#allocation2 + $0xb8] sm:$0xff]
      %v6153 = vld [vmem:[#allocation2 + $0xc0] sm:$0xff]
      %v6154 = vld [vmem:[#allocation2 + $0xc8] sm:$0xff]
      %v6155 = vld [vmem:[#allocation2 + $0xd0] sm:$0xff]
      %v6156 = vld [vmem:[#allocation2 + $0xd8] sm:$0xff]
      %v6157 = vld [vmem:[#allocation2 + $0xe0] sm:$0xff]
      %v6158 = vld [vmem:[#allocation2 + $0xe8] sm:$0xff]
      %v6159 = vld [vmem:[#allocation2 + $0xf0] sm:$0xff]
      %v6160 = vld [vmem:[#allocation2 + $0xf8] sm:$0xff]
      %v6161 = vld [vmem:[#allocation2 + $0x100] sm:$0xff]
      %v6162 = vld [vmem:[#allocation2 + $0x108] sm:$0xff]
      %v6163 = vld [vmem:[#allocation2 + $0x110] sm:$0xff]
      %v6164 = vld [vmem:[#allocation2 + $0x118] sm:$0xff]
      %v6165 = vld [vmem:[#allocation2 + $0x120] sm:$0xff]
      %v6166 = vld [vmem:[#allocation2 + $0x128] sm:$0xff]
      %v6167 = vld [vmem:[#allocation2 + $0x130] sm:$0xff]
      %v6168 = vld [vmem:[#allocation2 + $0x138] sm:$0xff]
      %v6169 = vld [vmem:[#allocation2 + $0x140] sm:$0xff]
      %v6170 = vld [vmem:[#allocation2 + $0x148] sm:$0xff]
      %v6171 = vld [vmem:[#allocation2 + $0x150] sm:$0xff]
      %v6172 = vld [vmem:[#allocation2 + $0x158] sm:$0xff]
      %v6173 = vld [vmem:[#allocation2 + $0x160] sm:$0xff]
      %v6174 = vld [vmem:[#allocation2 + $0x168] sm:$0xff]
      %v6175 = vld [vmem:[#allocation2 + $0x170] sm:$0xff]
      %v6176 = vld [vmem:[#allocation2 + $0x178] sm:$0xff]
      %v6177 = vld [vmem:[#allocation2 + $0x180] sm:$0xff]
      %v6178 = vld [vmem:[#allocation2 + $0x188] sm:$0xff]
      %v6179 = vld [vmem:[#allocation2 + $0x190] sm:$0xff]
      %v6180 = vld [vmem:[#allocation2 + $0x198] sm:$0xff]
      %v6181 = vld [vmem:[#allocation2 + $0x1a0] sm:$0xff]
      %v6182 = vld [vmem:[#allocation2 + $0x1a8] sm:$0xff]
      %v6183 = vld [vmem:[#allocation2 + $0x1b0] sm:$0xff]
      %v6184 = vld [vmem:[#allocation2 + $0x1b8] sm:$0xff]
      %v6185 = vld [vmem:[#allocation2 + $0x1c0] sm:$0xff]
      %v6186 = vld [vmem:[#allocation2 + $0x1c8] sm:$0xff]
      %v6187 = vld [vmem:[#allocation2 + $0x1d0] sm:$0xff]
      %v6188 = vld [vmem:[#allocation2 + $0x1d8] sm:$0xff]
      %v6189 = vld [vmem:[#allocation2 + $0x1e0] sm:$0xff]
      %v6190 = vld [vmem:[#allocation2 + $0x1e8] sm:$0xff]
      %v6191 = vld [vmem:[#allocation2 + $0x1f0] sm:$0xff]
      %v6192 = vld [vmem:[#allocation2 + $0x1f8] sm:$0xff]
      %v6193 = vld [vmem:[#allocation2 + $0x200] sm:$0xff]
      %v6194 = vld [vmem:[#allocation2 + $0x208] sm:$0xff]
      %v6195 = vld [vmem:[#allocation2 + $0x210] sm:$0xff]
      %v6196 = vld [vmem:[#allocation2 + $0x218] sm:$0xff]
      %v6197 = vld [vmem:[#allocation2 + $0x220] sm:$0xff]
      %v6198 = vld [vmem:[#allocation2 + $0x228] sm:$0xff]
      %v6199 = vld [vmem:[#allocation2 + $0x230] sm:$0xff]
      %v6200 = vld [vmem:[#allocation2 + $0x238] sm:$0xff]
      %v6201 = vld [vmem:[#allocation2 + $0x240] sm:$0xff]
      %v6202 = vld [vmem:[#allocation2 + $0x248] sm:$0xff]
      %v6203 = vld [vmem:[#allocation2 + $0x250] sm:$0xff]
      %v6204 = vld [vmem:[#allocation2 + $0x258] sm:$0xff]
      %v6205 = vld [vmem:[#allocation2 + $0x260] sm:$0xff]
      %v6206 = vld [vmem:[#allocation2 + $0x268] sm:$0xff]
      %v6207 = vld [vmem:[#allocation2 + $0x270] sm:$0xff]
      %v6208 = vld [vmem:[#allocation2 + $0x278] sm:$0xff]
      %v6209 = vld [vmem:[#allocation2 + $0x280] sm:$0xff]
      %s6210 = scalar_lea.vmem %s2, 384
      %v6211 = vld [vmem:[%s6210] sm:$0xf]
      %v6212 = vld [vmem:[%s6210 + $0x4] sm:$0xf]
      %v6213 = vld [vmem:[%s6210 + $0x8] sm:$0xf]
      %v6214 = vld [vmem:[%s6210 + $0xc] sm:$0xf]
      %v6215 = vld [vmem:[%s6210 + $0x10] sm:$0xf]
      %v6216 = vld [vmem:[%s6210 + $0x14] sm:$0xf]
      %v6217 = vld [vmem:[%s6210 + $0x18] sm:$0xf]
      %v6218 = vld [vmem:[%s6210 + $0x1c] sm:$0xf]
      %v6219 = vld [vmem:[%s6210 + $0x20] sm:$0xf]
      %v6220 = vld [vmem:[%s6210 + $0x24] sm:$0xf]
      %v6221 = vld [vmem:[%s6210 + $0x28] sm:$0xf]
      %v6222 = vld [vmem:[%s6210 + $0x2c] sm:$0xf]
      %v6223 = vld [vmem:[%s6210 + $0x30] sm:$0xf]
      %v6224 = vld [vmem:[%s6210 + $0x34] sm:$0xf]
      %v6225 = vld [vmem:[%s6210 + $0x38] sm:$0xf]
      %v6226 = vld [vmem:[%s6210 + $0x3c] sm:$0xf]
      %v6227 = vld [vmem:[%s6210 + $0x40] sm:$0xf]
      %v6228 = vld [vmem:[%s6210 + $0x44] sm:$0xf]
      %v6229 = vld [vmem:[%s6210 + $0x48] sm:$0xf]
      %v6230 = vld [vmem:[%s6210 + $0x4c] sm:$0xf]
      %v6231 = vld [vmem:[%s6210 + $0x50] sm:$0xf]
      %v6232 = vld [vmem:[%s6210 + $0x54] sm:$0xf]
      %v6233 = vld [vmem:[%s6210 + $0x58] sm:$0xf]
      %v6234 = vld [vmem:[%s6210 + $0x5c] sm:$0xf]
      %v6235 = vld [vmem:[%s6210 + $0x60] sm:$0xf]
      %v6236 = vld [vmem:[%s6210 + $0x64] sm:$0xf]
      %v6237 = vld [vmem:[%s6210 + $0x68] sm:$0xf]
      %v6238 = vld [vmem:[%s6210 + $0x6c] sm:$0xf]
      %v6239 = vld [vmem:[%s6210 + $0x70] sm:$0xf]
      %v6240 = vld [vmem:[%s6210 + $0x74] sm:$0xf]
      %v6241 = vld [vmem:[%s6210 + $0x78] sm:$0xf]
      %v6242 = vld [vmem:[%s6210 + $0x7c] sm:$0xf]
      %v6243 = vld [vmem:[%s6210 + $0x80] sm:$0xf]
      %v6244 = vld [vmem:[%s6210 + $0x84] sm:$0xf]
      %v6245 = vld [vmem:[%s6210 + $0x88] sm:$0xf]
      %v6246 = vld [vmem:[%s6210 + $0x8c] sm:$0xf]
      %v6247 = vld [vmem:[%s6210 + $0x90] sm:$0xf]
      %v6248 = vld [vmem:[%s6210 + $0x94] sm:$0xf]
      %v6249 = vld [vmem:[%s6210 + $0x98] sm:$0xf]
      %v6250 = vld [vmem:[%s6210 + $0x9c] sm:$0xf]
      %v6251 = vld [vmem:[%s6210 + $0xa0] sm:$0xf]
      %v6252 = vld [vmem:[%s6210 + $0xa4] sm:$0xf]
      %v6253 = vld [vmem:[%s6210 + $0xa8] sm:$0xf]
      %v6254 = vld [vmem:[%s6210 + $0xac] sm:$0xf]
      %v6255 = vld [vmem:[%s6210 + $0xb0] sm:$0xf]
      %v6256 = vld [vmem:[%s6210 + $0xb4] sm:$0xf]
      %v6257 = vld [vmem:[%s6210 + $0xb8] sm:$0xf]
      %v6258 = vld [vmem:[%s6210 + $0xbc] sm:$0xf]
      %v6331 = vrot.slane %v6138, 4
      %v6332 = vrot.slane %v6141, 4
      %v6333 = vsel %vm2021, %v6331, %v6332
      %v6334 = vrot.slane %v6139, 4
      %v6335 = vrot.slane %v6142, 4
      %v6336 = vsel %vm2021, %v6334, %v6335
      %v6337 = vrot.slane %v6140, 4
      %v6338 = vrot.slane %v6143, 4
      %v6339 = vsel %vm2021, %v6337, %v6338
      %v6340 = vrot.slane %v6144, 4
      %v6341 = vsel %vm2021, %v6332, %v6340
      %v6342 = vrot.slane %v6145, 4
      %v6343 = vsel %vm2021, %v6335, %v6342
      %v6344 = vrot.slane %v6146, 4
      %v6345 = vsel %vm2021, %v6338, %v6344
      %v6346 = vrot.slane %v6147, 4
      %v6347 = vsel %vm2021, %v6340, %v6346
      %v6348 = vrot.slane %v6148, 4
      %v6349 = vsel %vm2021, %v6342, %v6348
      %v6350 = vrot.slane %v6149, 4
      %v6351 = vsel %vm2021, %v6344, %v6350
      %v6352 = vrot.slane %v6150, 4
      %v6353 = vsel %vm2021, %v6346, %v6352
      %v6354 = vrot.slane %v6151, 4
      %v6355 = vsel %vm2021, %v6348, %v6354
      %v6356 = vrot.slane %v6152, 4
      %v6357 = vsel %vm2021, %v6350, %v6356
      %v6358 = vrot.slane %v6153, 4
      %v6359 = vsel %vm2021, %v6352, %v6358
      %v6360 = vrot.slane %v6154, 4
      %v6361 = vsel %vm2021, %v6354, %v6360
      %v6362 = vrot.slane %v6155, 4
      %v6363 = vsel %vm2021, %v6356, %v6362
      %v6364 = vrot.slane %v6156, 4
      %v6365 = vsel %vm2021, %v6358, %v6364
      %v6366 = vrot.slane %v6157, 4
      %v6367 = vsel %vm2021, %v6360, %v6366
      %v6368 = vrot.slane %v6158, 4
      %v6369 = vsel %vm2021, %v6362, %v6368
      %v6370 = vrot.slane %v6159, 4
      %v6371 = vsel %vm2021, %v6364, %v6370
      %v6372 = vrot.slane %v6160, 4
      %v6373 = vsel %vm2021, %v6366, %v6372
      %v6374 = vrot.slane %v6161, 4
      %v6375 = vsel %vm2021, %v6368, %v6374
      %v6376 = vrot.slane %v6162, 4
      %v6377 = vsel %vm2021, %v6370, %v6376
      %v6378 = vrot.slane %v6163, 4
      %v6379 = vsel %vm2021, %v6372, %v6378
      %v6380 = vrot.slane %v6164, 4
      %v6381 = vsel %vm2021, %v6374, %v6380
      %v6382 = vrot.slane %v6165, 4
      %v6383 = vsel %vm2021, %v6376, %v6382
      %v6384 = vrot.slane %v6166, 4
      %v6385 = vsel %vm2021, %v6378, %v6384
      %v6386 = vrot.slane %v6167, 4
      %v6387 = vsel %vm2021, %v6380, %v6386
      %v6388 = vrot.slane %v6168, 4
      %v6389 = vsel %vm2021, %v6382, %v6388
      %v6390 = vrot.slane %v6169, 4
      %v6391 = vsel %vm2021, %v6384, %v6390
      %v6392 = vrot.slane %v6170, 4
      %v6393 = vsel %vm2021, %v6386, %v6392
      %v6394 = vrot.slane %v6171, 4
      %v6395 = vsel %vm2021, %v6388, %v6394
      %v6396 = vrot.slane %v6172, 4
      %v6397 = vsel %vm2021, %v6390, %v6396
      %v6398 = vrot.slane %v6173, 4
      %v6399 = vsel %vm2021, %v6392, %v6398
      %v6400 = vrot.slane %v6174, 4
      %v6401 = vsel %vm2021, %v6394, %v6400
      %v6402 = vrot.slane %v6175, 4
      %v6403 = vsel %vm2021, %v6396, %v6402
      %v6404 = vrot.slane %v6176, 4
      %v6405 = vsel %vm2021, %v6398, %v6404
      %v6406 = vrot.slane %v6177, 4
      %v6407 = vsel %vm2021, %v6400, %v6406
      %v6408 = vrot.slane %v6178, 4
      %v6409 = vsel %vm2021, %v6402, %v6408
      %v6410 = vrot.slane %v6179, 4
      %v6411 = vsel %vm2021, %v6404, %v6410
      %v6412 = vrot.slane %v6180, 4
      %v6413 = vsel %vm2021, %v6406, %v6412
      %v6414 = vrot.slane %v6181, 4
      %v6415 = vsel %vm2021, %v6408, %v6414
      %v6416 = vrot.slane %v6182, 4
      %v6417 = vsel %vm2021, %v6410, %v6416
      %v6418 = vrot.slane %v6183, 4
      %v6419 = vsel %vm2021, %v6412, %v6418
      %v6420 = vrot.slane %v6184, 4
      %v6421 = vsel %vm2021, %v6414, %v6420
      %v6422 = vrot.slane %v6185, 4
      %v6423 = vsel %vm2021, %v6416, %v6422
      %v6424 = vrot.slane %v6186, 4
      %v6425 = vsel %vm2021, %v6418, %v6424
      %v6426 = vrot.slane %v6187, 4
      %v6427 = vsel %vm2021, %v6420, %v6426
      %v6428 = vrot.slane %v6188, 4
      %v6429 = vsel %vm2021, %v6422, %v6428
      %v6430 = vrot.slane %v6189, 4
      %v6431 = vsel %vm2021, %v6424, %v6430
      %v6432 = vrot.slane %v6190, 4
      %v6433 = vsel %vm2021, %v6426, %v6432
      %v6434 = vrot.slane %v6191, 4
      %v6435 = vsel %vm2021, %v6428, %v6434
      %v6436 = vrot.slane %v6192, 4
      %v6437 = vsel %vm2021, %v6430, %v6436
      %v6438 = vrot.slane %v6193, 4
      %v6439 = vsel %vm2021, %v6432, %v6438
      %v6440 = vrot.slane %v6194, 4
      %v6441 = vsel %vm2021, %v6434, %v6440
      %v6442 = vrot.slane %v6195, 4
      %v6443 = vsel %vm2021, %v6436, %v6442
      %v6444 = vrot.slane %v6196, 4
      %v6445 = vsel %vm2021, %v6438, %v6444
      %v6446 = vrot.slane %v6197, 4
      %v6447 = vsel %vm2021, %v6440, %v6446
      %v6448 = vrot.slane %v6198, 4
      %v6449 = vsel %vm2021, %v6442, %v6448
      %v6450 = vrot.slane %v6199, 4
      %v6451 = vsel %vm2021, %v6444, %v6450
      %v6452 = vrot.slane %v6200, 4
      %v6453 = vsel %vm2021, %v6446, %v6452
      %v6454 = vrot.slane %v6201, 4
      %v6455 = vsel %vm2021, %v6448, %v6454
      %v6456 = vrot.slane %v6202, 4
      %v6457 = vsel %vm2021, %v6450, %v6456
      %v6458 = vrot.slane %v6203, 4
      %v6459 = vsel %vm2021, %v6452, %v6458
      %v6460 = vrot.slane %v6204, 4
      %v6461 = vsel %vm2021, %v6454, %v6460
      %v6462 = vrot.slane %v6205, 4
      %v6463 = vsel %vm2021, %v6456, %v6462
      %v6464 = vrot.slane %v6206, 4
      %v6465 = vsel %vm2021, %v6458, %v6464
      %v6466 = vrot.slane %v6207, 4
      %v6467 = vsel %vm2021, %v6460, %v6466
      %v6468 = vrot.slane %v6208, 4
      %v6469 = vsel %vm2021, %v6462, %v6468
      %v6470 = vrot.slane %v6209, 4
      %v6471 = vsel %vm2021, %v6464, %v6470
      %v6592 = vunpack.c.l.b16 %v6211
      %v6593 = vunpack.c.l.b16 %v6212
      %v6594 = vunpack.c.l.b16 %v6213
      %v6595 = vunpack.c.l.b16 %v6214
      %v6596 = vunpack.c.l.b16 %v6215
      %v6597 = vunpack.c.l.b16 %v6216
      %v6598 = vunpack.c.l.b16 %v6217
      %v6599 = vunpack.c.l.b16 %v6218
      %v6600 = vunpack.c.l.b16 %v6219
      %v6601 = vunpack.c.l.b16 %v6220
      %v6602 = vunpack.c.l.b16 %v6221
      %v6603 = vunpack.c.l.b16 %v6222
      %v6604 = vunpack.c.l.b16 %v6223
      %v6605 = vunpack.c.l.b16 %v6224
      %v6606 = vunpack.c.l.b16 %v6225
      %v6607 = vunpack.c.l.b16 %v6226
      %v6608 = vunpack.c.l.b16 %v6227
      %v6609 = vunpack.c.l.b16 %v6228
      %v6610 = vunpack.c.l.b16 %v6229
      %v6611 = vunpack.c.l.b16 %v6230
      %v6612 = vunpack.c.l.b16 %v6231
      %v6613 = vunpack.c.l.b16 %v6232
      %v6614 = vunpack.c.l.b16 %v6233
      %v6615 = vunpack.c.l.b16 %v6234
      %v6616 = vunpack.c.l.b16 %v6235
      %v6617 = vunpack.c.l.b16 %v6236
      %v6618 = vunpack.c.l.b16 %v6237
      %v6619 = vunpack.c.l.b16 %v6238
      %v6620 = vunpack.c.l.b16 %v6239
      %v6621 = vunpack.c.l.b16 %v6240
      %v6622 = vunpack.c.l.b16 %v6241
      %v6623 = vunpack.c.l.b16 %v6242
      %v6624 = vunpack.c.l.b16 %v6243
      %v6625 = vunpack.c.l.b16 %v6244
      %v6626 = vunpack.c.l.b16 %v6245
      %v6627 = vunpack.c.l.b16 %v6246
      %v6628 = vunpack.c.l.b16 %v6247
      %v6629 = vunpack.c.l.b16 %v6248
      %v6630 = vunpack.c.l.b16 %v6249
      %v6631 = vunpack.c.l.b16 %v6250
      %v6632 = vunpack.c.l.b16 %v6251
      %v6633 = vunpack.c.l.b16 %v6252
      %v6634 = vunpack.c.l.b16 %v6253
      %v6635 = vunpack.c.l.b16 %v6254
      %v6636 = vunpack.c.l.b16 %v6255
      %v6637 = vunpack.c.l.b16 %v6256
      %v6638 = vunpack.c.l.b16 %v6257
      %v6639 = vunpack.c.l.b16 %v6258
      %v6640 = vpack.c.b16 %v6593, %v6592
      %v6641 = vpack.c.b16 %v6595, %v6594
      %v6642 = vpack.c.b16 %v6597, %v6596
      %v6643 = vpack.c.b16 %v6599, %v6598
      %v6644 = vpack.c.b16 %v6601, %v6600
      %v6645 = vpack.c.b16 %v6603, %v6602
      %v6646 = vpack.c.b16 %v6605, %v6604
      %v6647 = vpack.c.b16 %v6607, %v6606
      %v6648 = vpack.c.b16 %v6609, %v6608
      %v6649 = vpack.c.b16 %v6611, %v6610
      %v6650 = vpack.c.b16 %v6613, %v6612
      %v6651 = vpack.c.b16 %v6615, %v6614
      %v6652 = vpack.c.b16 %v6617, %v6616
      %v6653 = vpack.c.b16 %v6619, %v6618
      %v6654 = vpack.c.b16 %v6621, %v6620
      %v6655 = vpack.c.b16 %v6623, %v6622
      %v6656 = vpack.c.b16 %v6625, %v6624
      %v6657 = vpack.c.b16 %v6627, %v6626
      %v6658 = vpack.c.b16 %v6629, %v6628
      %v6659 = vpack.c.b16 %v6631, %v6630
      %v6660 = vpack.c.b16 %v6633, %v6632
      %v6661 = vpack.c.b16 %v6635, %v6634
      %v6662 = vpack.c.b16 %v6637, %v6636
      %v6663 = vpack.c.b16 %v6639, %v6638
      %6688 = vmatprep.subr.bf16.mxu0 0
      %6689 = vmatpush1.bf16.msra.mxu0 %v6640
      %6690 = vmatprep.subr.bf16.mxu0 0
      %6691 = vmatpush1.bf16.msra.mxu0 %v6641
      %6692 = vmatprep.subr.bf16.mxu0 0
      %6693 = vmatpush1.bf16.msra.mxu0 %v6642
      %6694 = vmatprep.subr.bf16.mxu0 0
      %6695 = vmatpush1.bf16.msra.mxu0 %v6643
      %6696 = vmatprep.subr.bf16.mxu0 0
      %6697 = vmatpush1.bf16.msra.mxu0 %v6644
      %6698 = vmatprep.subr.bf16.mxu0 0
      %6699 = vmatpush1.bf16.msra.mxu0 %v6645
      %6700 = vmatprep.subr.bf16.mxu0 0
      %6701 = vmatpush1.bf16.msra.mxu0 %v6646
      %6702 = vmatprep.subr.bf16.mxu0 0
      %6703 = vmatpush1.bf16.msra.mxu0 %v6647
      %6704 = vmatprep.subr.bf16.mxu0 0
      %6705 = vmatpush1.bf16.msra.mxu0 %v6648
      %6706 = vmatprep.subr.bf16.mxu0 0
      %6707 = vmatpush1.bf16.msra.mxu0 %v6649
      %6708 = vmatprep.subr.bf16.mxu0 0
      %6709 = vmatpush1.bf16.msra.mxu0 %v6650
      %6710 = vmatprep.subr.bf16.mxu0 0
      %6711 = vmatpush1.bf16.msra.mxu0 %v6651
      %6712 = vmatprep.subr.bf16.mxu0 0
      %6713 = vmatpush1.bf16.msra.mxu0 %v6652
      %6714 = vmatprep.subr.bf16.mxu0 0
      %6715 = vmatpush1.bf16.msra.mxu0 %v6653
      %6716 = vmatprep.subr.bf16.mxu0 0
      %6717 = vmatpush1.bf16.msra.mxu0 %v6654
      %6718 = vmatprep.subr.bf16.mxu0 0
      %6719 = vmatpush1.bf16.msra.mxu0 %v6655
      %6720 = vmatprep.mubr.bf16.mxu0 %v6336
      %6721 = vmatmul.mubr.bf16.gmra.mrb[0].mxu0 %v6333
      %v6722 = vpop.f32.mrb[0].mxu0
      %v6723 = vadd.f32 0.0, %v6722
      %v6724 = vpop.f32.mrb[0].mxu0
      %v6725 = vpop.f32.mrb[0].mxu0
      %v6726 = vadd.f32 0.0, %v6725
      %v6727 = vpop.f32.mrb[0].mxu0
      %6728 = vmatprep.mubr.bf16.mxu0 %v6343
      %6729 = vmatmul.mubr.bf16.gmra.mrb[0].mxu0 %v6341
      %v6730 = vpop.f32.mrb[0].mxu0
      %v6731 = vadd.f32 0.0, %v6730
      %v6732 = vpop.f32.mrb[0].mxu0
      %v6733 = vpop.f32.mrb[0].mxu0
      %v6734 = vadd.f32 0.0, %v6733
      %v6735 = vpop.f32.mrb[0].mxu0
      %6736 = vmatprep.mubr.bf16.mxu0 %v6349
      %6737 = vmatmul.mubr.bf16.gmra.mrb[0].mxu0 %v6347
      %v6738 = vpop.f32.mrb[0].mxu0
      %v6739 = vadd.f32 0.0, %v6738
      %v6740 = vpop.f32.mrb[0].mxu0
      %v6741 = vpop.f32.mrb[0].mxu0
      %v6742 = vadd.f32 0.0, %v6741
      %v6743 = vpop.f32.mrb[0].mxu0
      %6744 = vmatprep.mubr.bf16.mxu0 %v6355
      %6745 = vmatmul.mubr.bf16.gmra.mrb[0].mxu0 %v6353
      %v6746 = vpop.f32.mrb[0].mxu0
      %v6747 = vadd.f32 0.0, %v6746
      %v6748 = vpop.f32.mrb[0].mxu0
      %v6749 = vpop.f32.mrb[0].mxu0
      %v6750 = vadd.f32 0.0, %v6749
      %v6751 = vpop.f32.mrb[0].mxu0
      %6752 = vmatprep.mubr.bf16.mxu0 %v6361
      %6753 = vmatmul.mubr.bf16.gmra.mrb[0].mxu0 %v6359
      %v6754 = vpop.f32.mrb[0].mxu0
      %v6755 = vadd.f32 0.0, %v6754
      %v6756 = vpop.f32.mrb[0].mxu0
      %v6757 = vpop.f32.mrb[0].mxu0
      %v6758 = vadd.f32 0.0, %v6757
      %v6759 = vpop.f32.mrb[0].mxu0
      %6760 = vmatprep.mubr.bf16.mxu0 %v6367
      %6761 = vmatmul.mubr.bf16.gmra.mrb[0].mxu0 %v6365
      %v6762 = vpop.f32.mrb[0].mxu0
      %v6763 = vadd.f32 0.0, %v6762
      %v6764 = vpop.f32.mrb[0].mxu0
      %v6765 = vpop.f32.mrb[0].mxu0
      %v6766 = vadd.f32 0.0, %v6765
      %v6767 = vpop.f32.mrb[0].mxu0
      %6768 = vmatprep.mubr.bf16.mxu0 %v6373
      %6769 = vmatmul.mubr.bf16.gmra.mrb[0].mxu0 %v6371
      %v6770 = vpop.f32.mrb[0].mxu0
      %v6771 = vadd.f32 0.0, %v6770
      %v6772 = vpop.f32.mrb[0].mxu0
      %v6773 = vpop.f32.mrb[0].mxu0
      %v6774 = vadd.f32 0.0, %v6773
      %v6775 = vpop.f32.mrb[0].mxu0
      %6776 = vmatprep.mubr.bf16.mxu0 %v6379
      %6777 = vmatmul.mubr.bf16.gmra.mrb[0].mxu0 %v6377
      %v6778 = vpop.f32.mrb[0].mxu0
      %v6779 = vadd.f32 0.0, %v6778
      %v6780 = vpop.f32.mrb[0].mxu0
      %v6781 = vpop.f32.mrb[0].mxu0
      %v6782 = vadd.f32 0.0, %v6781
      %v6783 = vpop.f32.mrb[0].mxu0
      %6784 = vmatprep.mubr.bf16.mxu0 %v6385
      %6785 = vmatmul.mubr.bf16.gmra.mrb[0].mxu0 %v6383
      %v6786 = vpop.f32.mrb[0].mxu0
      %v6787 = vadd.f32 0.0, %v6786
      %v6788 = vpop.f32.mrb[0].mxu0
      %v6789 = vpop.f32.mrb[0].mxu0
      %v6790 = vadd.f32 0.0, %v6789
      %v6791 = vpop.f32.mrb[0].mxu0
      %6792 = vmatprep.mubr.bf16.mxu0 %v6391
      %6793 = vmatmul.mubr.bf16.gmra.mrb[0].mxu0 %v6389
      %v6794 = vpop.f32.mrb[0].mxu0
      %v6795 = vadd.f32 0.0, %v6794
      %v6796 = vpop.f32.mrb[0].mxu0
      %v6797 = vpop.f32.mrb[0].mxu0
      %v6798 = vadd.f32 0.0, %v6797
      %v6799 = vpop.f32.mrb[0].mxu0
      %6800 = vmatprep.mubr.bf16.mxu0 %v6397
      %6801 = vmatmul.mubr.bf16.gmra.mrb[0].mxu0 %v6395
      %v6802 = vpop.f32.mrb[0].mxu0
      %v6803 = vadd.f32 0.0, %v6802
      %v6804 = vpop.f32.mrb[0].mxu0
      %v6805 = vpop.f32.mrb[0].mxu0
      %v6806 = vadd.f32 0.0, %v6805
      %v6807 = vpop.f32.mrb[0].mxu0
      %6808 = vmatprep.mubr.bf16.mxu0 %v6403
      %6809 = vmatmul.mubr.bf16.gmra.mrb[0].mxu0 %v6401
      %v6810 = vpop.f32.mrb[0].mxu0
      %v6811 = vadd.f32 0.0, %v6810
      %v6812 = vpop.f32.mrb[0].mxu0
      %v6813 = vpop.f32.mrb[0].mxu0
      %v6814 = vadd.f32 0.0, %v6813
      %v6815 = vpop.f32.mrb[0].mxu0
      %6816 = vmatprep.mubr.bf16.mxu0 %v6409
      %6817 = vmatmul.mubr.bf16.gmra.mrb[0].mxu0 %v6407
      %v6818 = vpop.f32.mrb[0].mxu0
      %v6819 = vadd.f32 0.0, %v6818
      %v6820 = vpop.f32.mrb[0].mxu0
      %v6821 = vpop.f32.mrb[0].mxu0
      %v6822 = vadd.f32 0.0, %v6821
      %v6823 = vpop.f32.mrb[0].mxu0
      %6824 = vmatprep.mubr.bf16.mxu0 %v6415
      %6825 = vmatmul.mubr.bf16.gmra.mrb[0].mxu0 %v6413
      %v6826 = vpop.f32.mrb[0].mxu0
      %v6827 = vadd.f32 0.0, %v6826
      %v6828 = vpop.f32.mrb[0].mxu0
      %v6829 = vpop.f32.mrb[0].mxu0
      %v6830 = vadd.f32 0.0, %v6829
      %v6831 = vpop.f32.mrb[0].mxu0
      %6832 = vmatprep.mubr.bf16.mxu0 %v6421
      %6833 = vmatmul.mubr.bf16.gmra.mrb[0].mxu0 %v6419
      %v6834 = vpop.f32.mrb[0].mxu0
      %v6835 = vadd.f32 0.0, %v6834
      %v6836 = vpop.f32.mrb[0].mxu0
      %v6837 = vpop.f32.mrb[0].mxu0
      %v6838 = vadd.f32 0.0, %v6837
      %v6839 = vpop.f32.mrb[0].mxu0
      %6840 = vmatprep.mubr.bf16.mxu0 %v6427
      %6841 = vmatmul.mubr.bf16.gmra.mrb[0].mxu0 %v6425
      %v6842 = vpop.f32.mrb[0].mxu0
      %v6843 = vadd.f32 0.0, %v6842
      %v6844 = vpop.f32.mrb[0].mxu0
      %v6845 = vpop.f32.mrb[0].mxu0
      %v6846 = vadd.f32 0.0, %v6845
      %v6847 = vpop.f32.mrb[0].mxu0
      %6848 = vmatprep.mubr.bf16.mxu0 %v6433
      %6849 = vmatmul.mubr.bf16.gmra.mrb[0].mxu0 %v6431
      %v6850 = vpop.f32.mrb[0].mxu0
      %v6851 = vadd.f32 0.0, %v6850
      %v6852 = vpop.f32.mrb[0].mxu0
      %v6853 = vpop.f32.mrb[0].mxu0
      %v6854 = vadd.f32 0.0, %v6853
      %v6855 = vpop.f32.mrb[0].mxu0
      %6856 = vmatprep.mubr.bf16.mxu0 %v6439
      %6857 = vmatmul.mubr.bf16.gmra.mrb[0].mxu0 %v6437
      %v6858 = vpop.f32.mrb[0].mxu0
      %v6859 = vadd.f32 0.0, %v6858
      %v6860 = vpop.f32.mrb[0].mxu0
      %v6861 = vpop.f32.mrb[0].mxu0
      %v6862 = vadd.f32 0.0, %v6861
      %v6863 = vpop.f32.mrb[0].mxu0
      %6864 = vmatprep.mubr.bf16.mxu0 %v6445
      %6865 = vmatmul.mubr.bf16.gmra.mrb[0].mxu0 %v6443
      %v6866 = vpop.f32.mrb[0].mxu0
      %v6867 = vadd.f32 0.0, %v6866
      %v6868 = vpop.f32.mrb[0].mxu0
      %v6869 = vpop.f32.mrb[0].mxu0
      %v6870 = vadd.f32 0.0, %v6869
      %v6871 = vpop.f32.mrb[0].mxu0
      %6872 = vmatprep.mubr.bf16.mxu0 %v6451
      %6873 = vmatmul.mubr.bf16.gmra.mrb[0].mxu0 %v6449
      %v6874 = vpop.f32.mrb[0].mxu0
      %v6875 = vadd.f32 0.0, %v6874
      %v6876 = vpop.f32.mrb[0].mxu0
      %v6877 = vpop.f32.mrb[0].mxu0
      %v6878 = vadd.f32 0.0, %v6877
      %v6879 = vpop.f32.mrb[0].mxu0
      %6880 = vmatprep.mubr.bf16.mxu0 %v6457
      %6881 = vmatmul.mubr.bf16.gmra.mrb[0].mxu0 %v6455
      %v6882 = vpop.f32.mrb[0].mxu0
      %v6883 = vadd.f32 0.0, %v6882
      %v6884 = vpop.f32.mrb[0].mxu0
      %v6885 = vpop.f32.mrb[0].mxu0
      %v6886 = vadd.f32 0.0, %v6885
      %v6887 = vpop.f32.mrb[0].mxu0
      %6888 = vmatprep.mubr.bf16.mxu0 %v6463
      %6889 = vmatmul.mubr.bf16.gmra.mrb[0].mxu0 %v6461
      %v6890 = vpop.f32.mrb[0].mxu0
      %v6891 = vadd.f32 0.0, %v6890
      %v6892 = vpop.f32.mrb[0].mxu0
      %v6893 = vpop.f32.mrb[0].mxu0
      %v6894 = vadd.f32 0.0, %v6893
      %v6895 = vpop.f32.mrb[0].mxu0
      %6896 = vmatprep.mubr.bf16.mxu0 %v6469
      %6897 = vmatmul.mubr.bf16.gmra.mrb[0].mxu0 %v6467
      %v6898 = vpop.f32.mrb[0].mxu0
      %v6899 = vadd.f32 0.0, %v6898
      %v6900 = vpop.f32.mrb[0].mxu0
      %v6901 = vpop.f32.mrb[0].mxu0
      %v6902 = vadd.f32 0.0, %v6901
      %v6903 = vpop.f32.mrb[0].mxu0
      %6904 = vmatprep.mubr.bf16.mxu0 %v6468
      %6905 = vmatmul.mubr.bf16.gmra.mrb[0].mxu0 %v6466
      %v6906 = vpop.f32.mrb[0].mxu0
      %v6907 = vadd.f32 0.0, %v6906
      %v6908 = vpop.f32.mrb[0].mxu0
      %v6909 = vpop.f32.mrb[0].mxu0
      %v6910 = vpop.f32.mrb[0].mxu0
      %6911 = vdwg.mxu0
      %6912 = vmatprep.subr.bf16.mxu0 0
      %6913 = vmatpush1.bf16.msra.mxu0 %v6656
      %6914 = vmatprep.subr.bf16.mxu0 0
      %6915 = vmatpush1.bf16.msra.mxu0 %v6657
      %6916 = vmatprep.subr.bf16.mxu0 0
      %6917 = vmatpush1.bf16.msra.mxu0 %v6658
      %6918 = vmatprep.subr.bf16.mxu0 0
      %6919 = vmatpush1.bf16.msra.mxu0 %v6659
      %6920 = vmatprep.subr.bf16.mxu0 0
      %6921 = vmatpush1.bf16.msra.mxu0 %v6660
      %6922 = vmatprep.subr.bf16.mxu0 0
      %6923 = vmatpush1.bf16.msra.mxu0 %v6661
      %6924 = vmatprep.subr.bf16.mxu0 0
      %6925 = vmatpush1.bf16.msra.mxu0 %v6662
      %6926 = vmatprep.subr.bf16.mxu0 0
      %6927 = vmatpush1.bf16.msra.mxu0 %v6663
      %6928 = vmatprep.subr.bf16.mxu0 0
      %6929 = vmatpush1.bf16.msra.mxu0 0
      %6930 = vmatprep.subr.bf16.mxu0 0
      %6931 = vmatpush1.bf16.msra.mxu0 0
      %6932 = vmatprep.subr.bf16.mxu0 0
      %6933 = vmatpush1.bf16.msra.mxu0 0
      %6934 = vmatprep.subr.bf16.mxu0 0
      %6935 = vmatpush1.bf16.msra.mxu0 0
      %6936 = vmatprep.subr.bf16.mxu0 0
      %6937 = vmatpush1.bf16.msra.mxu0 0
      %6938 = vmatprep.subr.bf16.mxu0 0
      %6939 = vmatpush1.bf16.msra.mxu0 0
      %6940 = vmatprep.subr.bf16.mxu0 0
      %6941 = vmatpush1.bf16.msra.mxu0 0
      %6942 = vmatprep.subr.bf16.mxu0 0
      %6943 = vmatpush1.bf16.msra.mxu0 0
      %6944 = vmatprep.mubr.bf16.mxu0 0
      %6945 = vmatmul.mubr.bf16.gmra.mrb[0].mxu0 %v6339
      %v6946 = vpop.f32.mrb[0].mxu0
      %v6947 = vadd.f32 %v6723, %v6946
      %v6948 = vpop.f32.mrb[0].mxu0
      %v6949 = vpop.f32.mrb[0].mxu0
      %v6950 = vadd.f32 %v6726, %v6949
      %v6951 = vpop.f32.mrb[0].mxu0
      %6952 = vmatprep.mubr.bf16.mxu0 0
      %6953 = vmatmul.mubr.bf16.gmra.mrb[0].mxu0 %v6345
      %v6954 = vpop.f32.mrb[0].mxu0
      %v6955 = vadd.f32 %v6731, %v6954
      %v6956 = vpop.f32.mrb[0].mxu0
      %v6957 = vpop.f32.mrb[0].mxu0
      %v6958 = vadd.f32 %v6734, %v6957
      %v6959 = vpop.f32.mrb[0].mxu0
      %6960 = vmatprep.mubr.bf16.mxu0 0
      %6961 = vmatmul.mubr.bf16.gmra.mrb[0].mxu0 %v6351
      %v6962 = vpop.f32.mrb[0].mxu0
      %v6963 = vadd.f32 %v6739, %v6962
      %v6964 = vpop.f32.mrb[0].mxu0
      %v6965 = vpop.f32.mrb[0].mxu0
      %v6966 = vadd.f32 %v6742, %v6965
      %v6967 = vpop.f32.mrb[0].mxu0
      %6968 = vmatprep.mubr.bf16.mxu0 0
      %6969 = vmatmul.mubr.bf16.gmra.mrb[0].mxu0 %v6357
      %v6970 = vpop.f32.mrb[0].mxu0
      %v6971 = vadd.f32 %v6747, %v6970
      %v6972 = vpop.f32.mrb[0].mxu0
      %v6973 = vpop.f32.mrb[0].mxu0
      %v6974 = vadd.f32 %v6750, %v6973
      %v6975 = vpop.f32.mrb[0].mxu0
      %6976 = vmatprep.mubr.bf16.mxu0 0
      %6977 = vmatmul.mubr.bf16.gmra.mrb[0].mxu0 %v6363
      %v6978 = vpop.f32.mrb[0].mxu0
      %v6979 = vadd.f32 %v6755, %v6978
      %v6980 = vpop.f32.mrb[0].mxu0
      %v6981 = vpop.f32.mrb[0].mxu0
      %v6982 = vadd.f32 %v6758, %v6981
      %v6983 = vpop.f32.mrb[0].mxu0
      %6984 = vmatprep.mubr.bf16.mxu0 0
      %6985 = vmatmul.mubr.bf16.gmra.mrb[0].mxu0 %v6369
      %v6986 = vpop.f32.mrb[0].mxu0
      %v6987 = vadd.f32 %v6763, %v6986
      %v6988 = vpop.f32.mrb[0].mxu0
      %v6989 = vpop.f32.mrb[0].mxu0
      %v6990 = vadd.f32 %v6766, %v6989
      %v6991 = vpop.f32.mrb[0].mxu0
      %6992 = vmatprep.mubr.bf16.mxu0 0
      %6993 = vmatmul.mubr.bf16.gmra.mrb[0].mxu0 %v6375
      %v6994 = vpop.f32.mrb[0].mxu0
      %v6995 = vadd.f32 %v6771, %v6994
      %v6996 = vpop.f32.mrb[0].mxu0
      %v6997 = vpop.f32.mrb[0].mxu0
      %v6998 = vadd.f32 %v6774, %v6997
      %v6999 = vpop.f32.mrb[0].mxu0
      %7000 = vmatprep.mubr.bf16.mxu0 0
      %7001 = vmatmul.mubr.bf16.gmra.mrb[0].mxu0 %v6381
      %v7002 = vpop.f32.mrb[0].mxu0
      %v7003 = vadd.f32 %v6779, %v7002
      %v7004 = vpop.f32.mrb[0].mxu0
      %v7005 = vpop.f32.mrb[0].mxu0
      %v7006 = vadd.f32 %v6782, %v7005
      %v7007 = vpop.f32.mrb[0].mxu0
      %7008 = vmatprep.mubr.bf16.mxu0 0
      %7009 = vmatmul.mubr.bf16.gmra.mrb[0].mxu0 %v6387
      %v7010 = vpop.f32.mrb[0].mxu0
      %v7011 = vadd.f32 %v6787, %v7010
      %v7012 = vpop.f32.mrb[0].mxu0
      %v7013 = vpop.f32.mrb[0].mxu0
      %v7014 = vadd.f32 %v6790, %v7013
      %v7015 = vpop.f32.mrb[0].mxu0
      %7016 = vmatprep.mubr.bf16.mxu0 0
      %7017 = vmatmul.mubr.bf16.gmra.mrb[0].mxu0 %v6393
      %v7018 = vpop.f32.mrb[0].mxu0
      %v7019 = vadd.f32 %v6795, %v7018
      %v7020 = vpop.f32.mrb[0].mxu0
      %v7021 = vpop.f32.mrb[0].mxu0
      %v7022 = vadd.f32 %v6798, %v7021
      %v7023 = vpop.f32.mrb[0].mxu0
      %7024 = vmatprep.mubr.bf16.mxu0 0
      %7025 = vmatmul.mubr.bf16.gmra.mrb[0].mxu0 %v6399
      %v7026 = vpop.f32.mrb[0].mxu0
      %v7027 = vadd.f32 %v6803, %v7026
      %v7028 = vpop.f32.mrb[0].mxu0
      %v7029 = vpop.f32.mrb[0].mxu0
      %v7030 = vadd.f32 %v6806, %v7029
      %v7031 = vpop.f32.mrb[0].mxu0
      %7032 = vmatprep.mubr.bf16.mxu0 0
      %7033 = vmatmul.mubr.bf16.gmra.mrb[0].mxu0 %v6405
      %v7034 = vpop.f32.mrb[0].mxu0
      %v7035 = vadd.f32 %v6811, %v7034
      %v7036 = vpop.f32.mrb[0].mxu0
      %v7037 = vpop.f32.mrb[0].mxu0
      %v7038 = vadd.f32 %v6814, %v7037
      %v7039 = vpop.f32.mrb[0].mxu0
      %7040 = vmatprep.mubr.bf16.mxu0 0
      %7041 = vmatmul.mubr.bf16.gmra.mrb[0].mxu0 %v6411
      %v7042 = vpop.f32.mrb[0].mxu0
      %v7043 = vadd.f32 %v6819, %v7042
      %v7044 = vpop.f32.mrb[0].mxu0
      %v7045 = vpop.f32.mrb[0].mxu0
      %v7046 = vadd.f32 %v6822, %v7045
      %v7047 = vpop.f32.mrb[0].mxu0
      %7048 = vmatprep.mubr.bf16.mxu0 0
      %7049 = vmatmul.mubr.bf16.gmra.mrb[0].mxu0 %v6417
      %v7050 = vpop.f32.mrb[0].mxu0
      %v7051 = vadd.f32 %v6827, %v7050
      %v7052 = vpop.f32.mrb[0].mxu0
      %v7053 = vpop.f32.mrb[0].mxu0
      %v7054 = vadd.f32 %v6830, %v7053
      %v7055 = vpop.f32.mrb[0].mxu0
      %7056 = vmatprep.mubr.bf16.mxu0 0
      %7057 = vmatmul.mubr.bf16.gmra.mrb[0].mxu0 %v6423
      %v7058 = vpop.f32.mrb[0].mxu0
      %v7059 = vadd.f32 %v6835, %v7058
      %v7060 = vpop.f32.mrb[0].mxu0
      %v7061 = vpop.f32.mrb[0].mxu0
      %v7062 = vadd.f32 %v6838, %v7061
      %v7063 = vpop.f32.mrb[0].mxu0
      %7064 = vmatprep.mubr.bf16.mxu0 0
      %7065 = vmatmul.mubr.bf16.gmra.mrb[0].mxu0 %v6429
      %v7066 = vpop.f32.mrb[0].mxu0
      %v7067 = vadd.f32 %v6843, %v7066
      %v7068 = vpop.f32.mrb[0].mxu0
      %v7069 = vpop.f32.mrb[0].mxu0
      %v7070 = vadd.f32 %v6846, %v7069
      %v7071 = vpop.f32.mrb[0].mxu0
      %7072 = vmatprep.mubr.bf16.mxu0 0
      %7073 = vmatmul.mubr.bf16.gmra.mrb[0].mxu0 %v6435
      %v7074 = vpop.f32.mrb[0].mxu0
      %v7075 = vadd.f32 %v6851, %v7074
      %v7076 = vpop.f32.mrb[0].mxu0
      %v7077 = vpop.f32.mrb[0].mxu0
      %v7078 = vadd.f32 %v6854, %v7077
      %v7079 = vpop.f32.mrb[0].mxu0
      %7080 = vmatprep.mubr.bf16.mxu0 0
      %7081 = vmatmul.mubr.bf16.gmra.mrb[0].mxu0 %v6441
      %v7082 = vpop.f32.mrb[0].mxu0
      %v7083 = vadd.f32 %v6859, %v7082
      %v7084 = vpop.f32.mrb[0].mxu0
      %v7085 = vpop.f32.mrb[0].mxu0
      %v7086 = vadd.f32 %v6862, %v7085
      %v7087 = vpop.f32.mrb[0].mxu0
      %7088 = vmatprep.mubr.bf16.mxu0 0
      %7089 = vmatmul.mubr.bf16.gmra.mrb[0].mxu0 %v6447
      %v7090 = vpop.f32.mrb[0].mxu0
      %v7091 = vadd.f32 %v6867, %v7090
      %v7092 = vpop.f32.mrb[0].mxu0
      %v7093 = vpop.f32.mrb[0].mxu0
      %v7094 = vadd.f32 %v6870, %v7093
      %v7095 = vpop.f32.mrb[0].mxu0
      %7096 = vmatprep.mubr.bf16.mxu0 0
      %7097 = vmatmul.mubr.bf16.gmra.mrb[0].mxu0 %v6453
      %v7098 = vpop.f32.mrb[0].mxu0
      %v7099 = vadd.f32 %v6875, %v7098
      %v7100 = vpop.f32.mrb[0].mxu0
      %v7101 = vpop.f32.mrb[0].mxu0
      %v7102 = vadd.f32 %v6878, %v7101
      %v7103 = vpop.f32.mrb[0].mxu0
      %7104 = vmatprep.mubr.bf16.mxu0 0
      %7105 = vmatmul.mubr.bf16.gmra.mrb[0].mxu0 %v6459
      %v7106 = vpop.f32.mrb[0].mxu0
      %v7107 = vadd.f32 %v6883, %v7106
      %v7108 = vpop.f32.mrb[0].mxu0
      %v7109 = vpop.f32.mrb[0].mxu0
      %v7110 = vadd.f32 %v6886, %v7109
      %v7111 = vpop.f32.mrb[0].mxu0
      %7112 = vmatprep.mubr.bf16.mxu0 0
      %7113 = vmatmul.mubr.bf16.gmra.mrb[0].mxu0 %v6465
      %v7114 = vpop.f32.mrb[0].mxu0
      %v7115 = vadd.f32 %v6891, %v7114
      %v7116 = vpop.f32.mrb[0].mxu0
      %v7117 = vpop.f32.mrb[0].mxu0
      %v7118 = vadd.f32 %v6894, %v7117
      %v7119 = vpop.f32.mrb[0].mxu0
      %7120 = vmatprep.mubr.bf16.mxu0 0
      %7121 = vmatmul.mubr.bf16.gmra.mrb[0].mxu0 %v6471
      %v7122 = vpop.f32.mrb[0].mxu0
      %v7123 = vadd.f32 %v6899, %v7122
      %v7124 = vpop.f32.mrb[0].mxu0
      %v7125 = vpop.f32.mrb[0].mxu0
      %v7126 = vadd.f32 %v6902, %v7125
      %v7127 = vpop.f32.mrb[0].mxu0
      %7128 = vmatprep.mubr.bf16.mxu0 0
      %7129 = vmatmul.mubr.bf16.gmra.mrb[0].mxu0 %v6470
      %v7130 = vpop.f32.mrb[0].mxu0
      %v7131 = vadd.f32 %v6907, %v7130
      %v7132 = vpop.f32.mrb[0].mxu0
      %v7133 = vpop.f32.mrb[0].mxu0
      %v7134 = vpop.f32.mrb[0].mxu0
      %7135 = vdwg.mxu0
      %v7136 = vadd.f32 %v5949, %v6947
      %v7137 = vadd.f32 %v5952, %v6950
      %v7138 = vadd.f32 %v5957, %v6955
      %v7139 = vadd.f32 %v5960, %v6958
      %v7140 = vadd.f32 %v5965, %v6963
      %v7141 = vadd.f32 %v5968, %v6966
      %v7142 = vadd.f32 %v5973, %v6971
      %v7143 = vadd.f32 %v5976, %v6974
      %v7144 = vadd.f32 %v5981, %v6979
      %v7145 = vadd.f32 %v5984, %v6982
      %v7146 = vadd.f32 %v5989, %v6987
      %v7147 = vadd.f32 %v5992, %v6990
      %v7148 = vadd.f32 %v5997, %v6995
      %v7149 = vadd.f32 %v6000, %v6998
      %v7150 = vadd.f32 %v6005, %v7003
      %v7151 = vadd.f32 %v6008, %v7006
      %v7152 = vadd.f32 %v6013, %v7011
      %v7153 = vadd.f32 %v6016, %v7014
      %v7154 = vadd.f32 %v6021, %v7019
      %v7155 = vadd.f32 %v6024, %v7022
      %v7156 = vadd.f32 %v6029, %v7027
      %v7157 = vadd.f32 %v6032, %v7030
      %v7158 = vadd.f32 %v6037, %v7035
      %v7159 = vadd.f32 %v6040, %v7038
      %v7160 = vadd.f32 %v6045, %v7043
      %v7161 = vadd.f32 %v6048, %v7046
      %v7162 = vadd.f32 %v6053, %v7051
      %v7163 = vadd.f32 %v6056, %v7054
      %v7164 = vadd.f32 %v6061, %v7059
      %v7165 = vadd.f32 %v6064, %v7062
      %v7166 = vadd.f32 %v6069, %v7067
      %v7167 = vadd.f32 %v6072, %v7070
      %v7168 = vadd.f32 %v6077, %v7075
      %v7169 = vadd.f32 %v6080, %v7078
      %v7170 = vadd.f32 %v6085, %v7083
      %v7171 = vadd.f32 %v6088, %v7086
      %v7172 = vadd.f32 %v6093, %v7091
      %v7173 = vadd.f32 %v6096, %v7094
      %v7174 = vadd.f32 %v6101, %v7099
      %v7175 = vadd.f32 %v6104, %v7102
      %v7176 = vadd.f32 %v6109, %v7107
      %v7177 = vadd.f32 %v6112, %v7110
      %v7178 = vadd.f32 %v6117, %v7115
      %v7179 = vadd.f32 %v6120, %v7118
      %v7180 = vadd.f32 %v6125, %v7123
      %v7181 = vadd.f32 %v6128, %v7126
      %v7182 = vadd.f32 %v6133, %v7131
      %v7183 = vld [vmem:[%s192 + $0x21] sm:$0xff]
      %v7184 = vld [vmem:[%s192 + $0x29] sm:$0xff]
      %v7185 = vld [vmem:[%s192 + $0x31] sm:$0xff]
      %v7186 = vld [vmem:[%s192 + $0x39] sm:$0xff]
      %v7187 = vld [vmem:[%s192 + $0x41] sm:$0xff]
      %v7188 = vld [vmem:[%s192 + $0x49] sm:$0xff]
      %v7189 = vld [vmem:[%s192 + $0x51] sm:$0xff]
      %v7190 = vld [vmem:[%s192 + $0x59] sm:$0xff]
      %v7191 = vld [vmem:[%s192 + $0x61] sm:$0xff]
      %v7192 = vld [vmem:[%s192 + $0x69] sm:$0xff]
      %v7193 = vld [vmem:[%s192 + $0x71] sm:$0xff]
      %v7194 = vld [vmem:[%s192 + $0x79] sm:$0xff]
      %v7195 = vld [vmem:[%s192 + $0x81] sm:$0xff]
      %v7196 = vld [vmem:[%s192 + $0x89] sm:$0xff]
      %v7197 = vld [vmem:[%s192 + $0x91] sm:$0xff]
      %v7198 = vld [vmem:[%s192 + $0x99] sm:$0xff]
      %v7199 = vld [vmem:[%s192 + $0xa1] sm:$0xff]
      %v7200 = vld [vmem:[%s192 + $0xa9] sm:$0xff]
      %v7201 = vld [vmem:[%s192 + $0xb1] sm:$0xff]
      %v7202 = vld [vmem:[%s192 + $0xb9] sm:$0xff]
      %v7203 = vld [vmem:[%s192 + $0xc1] sm:$0xff]
      %v7204 = vld [vmem:[%s192 + $0xc9] sm:$0xff]
      %v7205 = vld [vmem:[%s192 + $0xd1] sm:$0xff]
      %v7206 = vld [vmem:[%s192 + $0xd9] sm:$0xff]
      %v7207 = vld [vmem:[%s192 + $0xe1] sm:$0xff]
      %v7208 = vld [vmem:[%s192 + $0xe9] sm:$0xff]
      %v7209 = vld [vmem:[%s192 + $0xf1] sm:$0xff]
      %v7210 = vld [vmem:[%s192 + $0xf9] sm:$0xff]
      %v7211 = vld [vmem:[%s192 + $0x101] sm:$0xff]
      %v7212 = vld [vmem:[%s192 + $0x109] sm:$0xff]
      %v7213 = vld [vmem:[%s192 + $0x111] sm:$0xff]
      %v7214 = vld [vmem:[%s192 + $0x119] sm:$0xff]
      %v7215 = vld [vmem:[%s192 + $0x121] sm:$0xff]
      %v7216 = vld [vmem:[%s192 + $0x129] sm:$0xff]
      %v7217 = vld [vmem:[%s192 + $0x131] sm:$0xff]
      %v7218 = vld [vmem:[%s192 + $0x139] sm:$0xff]
      %v7219 = vld [vmem:[%s192 + $0x141] sm:$0xff]
      %v7220 = vld [vmem:[%s192 + $0x149] sm:$0xff]
      %v7221 = vld [vmem:[%s192 + $0x151] sm:$0xff]
      %v7222 = vld [vmem:[%s192 + $0x159] sm:$0xff]
      %v7223 = vld [vmem:[%s192 + $0x161] sm:$0xff]
      %v7224 = vld [vmem:[%s192 + $0x169] sm:$0xff]
      %v7225 = vld [vmem:[%s192 + $0x171] sm:$0xff]
      %v7226 = vld [vmem:[%s192 + $0x179] sm:$0xff]
      %v7227 = vld [vmem:[%s192 + $0x181] sm:$0xff]
      %v7228 = vld [vmem:[%s192 + $0x189] sm:$0xff]
      %v7229 = vld [vmem:[%s192 + $0x191] sm:$0xff]
      %s7230 = scalar_lea.vmem %s3, 1
      %v7231 = vld [vmem:[%s7230] sm:$0x1]
      %v7233 = vlaneseq
      %v7234 = vshrl.u32 %v7233, 7
      %v7235 = vsub.s32 0, %v7234
      %v7236 = vrot.slane %v7231, %v7235
      %v7238 = vadd.f32 %v7136, %v7236
      %v7239 = vadd.f32 %v7137, %v7236
      %v7240 = vadd.f32 %v7138, %v7236
      %v7241 = vadd.f32 %v7139, %v7236
      %v7242 = vadd.f32 %v7140, %v7236
      %v7243 = vadd.f32 %v7141, %v7236
      %v7244 = vadd.f32 %v7142, %v7236
      %v7245 = vadd.f32 %v7143, %v7236
      %v7246 = vadd.f32 %v7144, %v7236
      %v7247 = vadd.f32 %v7145, %v7236
      %v7248 = vadd.f32 %v7146, %v7236
      %v7249 = vadd.f32 %v7147, %v7236
      %v7250 = vadd.f32 %v7148, %v7236
      %v7251 = vadd.f32 %v7149, %v7236
      %v7252 = vadd.f32 %v7150, %v7236
      %v7253 = vadd.f32 %v7151, %v7236
      %v7254 = vadd.f32 %v7152, %v7236
      %v7255 = vadd.f32 %v7153, %v7236
      %v7256 = vadd.f32 %v7154, %v7236
      %v7257 = vadd.f32 %v7155, %v7236
      %v7258 = vadd.f32 %v7156, %v7236
      %v7259 = vadd.f32 %v7157, %v7236
      %v7260 = vadd.f32 %v7158, %v7236
      %v7261 = vadd.f32 %v7159, %v7236
      %v7262 = vadd.f32 %v7160, %v7236
      %v7263 = vadd.f32 %v7161, %v7236
      %v7264 = vadd.f32 %v7162, %v7236
      %v7265 = vadd.f32 %v7163, %v7236
      %v7266 = vadd.f32 %v7164, %v7236
      %v7267 = vadd.f32 %v7165, %v7236
      %v7268 = vadd.f32 %v7166, %v7236
      %v7269 = vadd.f32 %v7167, %v7236
      %v7270 = vadd.f32 %v7168, %v7236
      %v7271 = vadd.f32 %v7169, %v7236
      %v7272 = vadd.f32 %v7170, %v7236
      %v7273 = vadd.f32 %v7171, %v7236
      %v7274 = vadd.f32 %v7172, %v7236
      %v7275 = vadd.f32 %v7173, %v7236
      %v7276 = vadd.f32 %v7174, %v7236
      %v7277 = vadd.f32 %v7175, %v7236
      %v7278 = vadd.f32 %v7176, %v7236
      %v7279 = vadd.f32 %v7177, %v7236
      %v7280 = vadd.f32 %v7178, %v7236
      %v7281 = vadd.f32 %v7179, %v7236
      %v7282 = vadd.f32 %v7180, %v7236
      %v7283 = vadd.f32 %v7181, %v7236
      %v7284 = vadd.f32 %v7182, %v7236
      %v7285 = vadd.f32 %v7238, %v7183
      %v7286 = vadd.f32 %v7239, %v7184
      %v7287 = vadd.f32 %v7240, %v7185
      %v7288 = vadd.f32 %v7241, %v7186
      %v7289 = vadd.f32 %v7242, %v7187
      %v7290 = vadd.f32 %v7243, %v7188
      %v7291 = vadd.f32 %v7244, %v7189
      %v7292 = vadd.f32 %v7245, %v7190
      %v7293 = vadd.f32 %v7246, %v7191
      %v7294 = vadd.f32 %v7247, %v7192
      %v7295 = vadd.f32 %v7248, %v7193
      %v7296 = vadd.f32 %v7249, %v7194
      %v7297 = vadd.f32 %v7250, %v7195
      %v7298 = vadd.f32 %v7251, %v7196
      %v7299 = vadd.f32 %v7252, %v7197
      %v7300 = vadd.f32 %v7253, %v7198
      %v7301 = vadd.f32 %v7254, %v7199
      %v7302 = vadd.f32 %v7255, %v7200
      %v7303 = vadd.f32 %v7256, %v7201
      %v7304 = vadd.f32 %v7257, %v7202
      %v7305 = vadd.f32 %v7258, %v7203
      %v7306 = vadd.f32 %v7259, %v7204
      %v7307 = vadd.f32 %v7260, %v7205
      %v7308 = vadd.f32 %v7261, %v7206
      %v7309 = vadd.f32 %v7262, %v7207
      %v7310 = vadd.f32 %v7263, %v7208
      %v7311 = vadd.f32 %v7264, %v7209
      %v7312 = vadd.f32 %v7265, %v7210
      %v7313 = vadd.f32 %v7266, %v7211
      %v7314 = vadd.f32 %v7267, %v7212
      %v7315 = vadd.f32 %v7268, %v7213
      %v7316 = vadd.f32 %v7269, %v7214
      %v7317 = vadd.f32 %v7270, %v7215
      %v7318 = vadd.f32 %v7271, %v7216
      %v7319 = vadd.f32 %v7272, %v7217
      %v7320 = vadd.f32 %v7273, %v7218
      %v7321 = vadd.f32 %v7274, %v7219
      %v7322 = vadd.f32 %v7275, %v7220
      %v7323 = vadd.f32 %v7276, %v7221
      %v7324 = vadd.f32 %v7277, %v7222
      %v7325 = vadd.f32 %v7278, %v7223
      %v7326 = vadd.f32 %v7279, %v7224
      %v7327 = vadd.f32 %v7280, %v7225
      %v7328 = vadd.f32 %v7281, %v7226
      %v7329 = vadd.f32 %v7282, %v7227
      %v7330 = vadd.f32 %v7283, %v7228
      %v7331 = vadd.f32 %v7284, %v7229
      %v7332 = vmax.f32 %v7285, 0.0
      %v7333 = vmax.f32 %v7286, 0.0
      %v7334 = vmax.f32 %v7287, 0.0
      %v7335 = vmax.f32 %v7288, 0.0
      %v7336 = vmax.f32 %v7289, 0.0
      %v7337 = vmax.f32 %v7290, 0.0
      %v7338 = vmax.f32 %v7291, 0.0
      %v7339 = vmax.f32 %v7292, 0.0
      %v7340 = vmax.f32 %v7293, 0.0
      %v7341 = vmax.f32 %v7294, 0.0
      %v7342 = vmax.f32 %v7295, 0.0
      %v7343 = vmax.f32 %v7296, 0.0
      %v7344 = vmax.f32 %v7297, 0.0
      %v7345 = vmax.f32 %v7298, 0.0
      %v7346 = vmax.f32 %v7299, 0.0
      %v7347 = vmax.f32 %v7300, 0.0
      %v7348 = vmax.f32 %v7301, 0.0
      %v7349 = vmax.f32 %v7302, 0.0
      %v7350 = vmax.f32 %v7303, 0.0
      %v7351 = vmax.f32 %v7304, 0.0
      %v7352 = vmax.f32 %v7305, 0.0
      %v7353 = vmax.f32 %v7306, 0.0
      %v7354 = vmax.f32 %v7307, 0.0
      %v7355 = vmax.f32 %v7308, 0.0
      %v7356 = vmax.f32 %v7309, 0.0
      %v7357 = vmax.f32 %v7310, 0.0
      %v7358 = vmax.f32 %v7311, 0.0
      %v7359 = vmax.f32 %v7312, 0.0
      %v7360 = vmax.f32 %v7313, 0.0
      %v7361 = vmax.f32 %v7314, 0.0
      %v7362 = vmax.f32 %v7315, 0.0
      %v7363 = vmax.f32 %v7316, 0.0
      %v7364 = vmax.f32 %v7317, 0.0
      %v7365 = vmax.f32 %v7318, 0.0
      %v7366 = vmax.f32 %v7319, 0.0
      %v7367 = vmax.f32 %v7320, 0.0
      %v7368 = vmax.f32 %v7321, 0.0
      %v7369 = vmax.f32 %v7322, 0.0
      %v7370 = vmax.f32 %v7323, 0.0
      %v7371 = vmax.f32 %v7324, 0.0
      %v7372 = vmax.f32 %v7325, 0.0
      %v7373 = vmax.f32 %v7326, 0.0
      %v7374 = vmax.f32 %v7327, 0.0
      %v7375 = vmax.f32 %v7328, 0.0
      %v7376 = vmax.f32 %v7329, 0.0
      %v7377 = vmax.f32 %v7330, 0.0
      %v7378 = vmax.f32 %v7331, 0.0
      %7379 = vst [vmem:[%s197] sm:$0xff] %v7332
      %7380 = vst [vmem:[%s197 + $0x8] sm:$0xff] %v7333
      %7381 = vst [vmem:[%s197 + $0x10] sm:$0xff] %v7334
      %7382 = vst [vmem:[%s197 + $0x18] sm:$0xff] %v7335
      %7383 = vst [vmem:[%s197 + $0x20] sm:$0xff] %v7336
      %7384 = vst [vmem:[%s197 + $0x28] sm:$0xff] %v7337
      %7385 = vst [vmem:[%s197 + $0x30] sm:$0xff] %v7338
      %7386 = vst [vmem:[%s197 + $0x38] sm:$0xff] %v7339
      %7387 = vst [vmem:[%s197 + $0x40] sm:$0xff] %v7340
      %7388 = vst [vmem:[%s197 + $0x48] sm:$0xff] %v7341
      %7389 = vst [vmem:[%s197 + $0x50] sm:$0xff] %v7342
      %7390 = vst [vmem:[%s197 + $0x58] sm:$0xff] %v7343
      %7391 = vst [vmem:[%s197 + $0x60] sm:$0xff] %v7344
      %7392 = vst [vmem:[%s197 + $0x68] sm:$0xff] %v7345
      %7393 = vst [vmem:[%s197 + $0x70] sm:$0xff] %v7346
      %7394 = vst [vmem:[%s197 + $0x78] sm:$0xff] %v7347
      %7395 = vst [vmem:[%s197 + $0x80] sm:$0xff] %v7348
      %7396 = vst [vmem:[%s197 + $0x88] sm:$0xff] %v7349
      %7397 = vst [vmem:[%s197 + $0x90] sm:$0xff] %v7350
      %7398 = vst [vmem:[%s197 + $0x98] sm:$0xff] %v7351
      %7399 = vst [vmem:[%s197 + $0xa0] sm:$0xff] %v7352
      %7400 = vst [vmem:[%s197 + $0xa8] sm:$0xff] %v7353
      %7401 = vst [vmem:[%s197 + $0xb0] sm:$0xff] %v7354
      %7402 = vst [vmem:[%s197 + $0xb8] sm:$0xff] %v7355
      %7403 = vst [vmem:[%s197 + $0xc0] sm:$0xff] %v7356
      %7404 = vst [vmem:[%s197 + $0xc8] sm:$0xff] %v7357
      %7405 = vst [vmem:[%s197 + $0xd0] sm:$0xff] %v7358
      %7406 = vst [vmem:[%s197 + $0xd8] sm:$0xff] %v7359
      %7407 = vst [vmem:[%s197 + $0xe0] sm:$0xff] %v7360
      %7408 = vst [vmem:[%s197 + $0xe8] sm:$0xff] %v7361
      %7409 = vst [vmem:[%s197 + $0xf0] sm:$0xff] %v7362
      %7410 = vst [vmem:[%s197 + $0xf8] sm:$0xff] %v7363
      %7411 = vst [vmem:[%s197 + $0x100] sm:$0xff] %v7364
      %7412 = vst [vmem:[%s197 + $0x108] sm:$0xff] %v7365
      %7413 = vst [vmem:[%s197 + $0x110] sm:$0xff] %v7366
      %7414 = vst [vmem:[%s197 + $0x118] sm:$0xff] %v7367
      %7415 = vst [vmem:[%s197 + $0x120] sm:$0xff] %v7368
      %7416 = vst [vmem:[%s197 + $0x128] sm:$0xff] %v7369
      %7417 = vst [vmem:[%s197 + $0x130] sm:$0xff] %v7370
      %7418 = vst [vmem:[%s197 + $0x138] sm:$0xff] %v7371
      %7419 = vst [vmem:[%s197 + $0x140] sm:$0xff] %v7372
      %7420 = vst [vmem:[%s197 + $0x148] sm:$0xff] %v7373
      %7421 = vst [vmem:[%s197 + $0x150] sm:$0xff] %v7374
      %7422 = vst [vmem:[%s197 + $0x158] sm:$0xff] %v7375
      %7423 = vst [vmem:[%s197 + $0x160] sm:$0xff] %v7376
      %7424 = vst [vmem:[%s197 + $0x168] sm:$0xff] %v7377
      %7425 = vst [vmem:[%s197 + $0x170] sm:$0xff] %v7378
      %p7426 = scmp.lt.s32.totalorder %s15, 1
      %s7427 = scalar_select %p7426, %s15, 1
      %s7428 = smul.addr %s7427, 47
      %s7429 = smul.addr %s7428, 8
      %s7430 = scalar_lea.vmem %s4, %s7429
      // Predicated region
      $region37: #{resblock_forward.1} parent=35 // pred_check
        %p7431 = pneg %p122
      $region38: #{resblock_forward.1} parent=35 // pred_check_branch
        %7433 = sbr.rel (%p7431) target = $region40
      $region39: #{resblock_forward.1} parent=35 // pred_region
        _
      $region40: #{resblock_forward.1} parent=35 // pred_fallthru
        _
    $region36: #{resblock_forward.1} parent=5 // pred_fallthru
      _
    %p7434 = scmp.le.s32.totalorder 2, %s10
    // Predicated region
    $region41: #{resblock_forward.1} parent=5 // pred_check
      %p7435 = pneg %p7434
    $region42: #{resblock_forward.1} parent=5 // pred_check_branch
      %7437 = sbr.rel (%p7435) target = $region44
    $region43: #{resblock_forward.1} parent=5 // pred_region
      %s7438 = ssub.s32 %s10, 2
      // Predicated region
      $region45: #{resblock_forward.1} parent=43 // pred_check
        %p7439 = pneg %p128
      $region46: #{resblock_forward.1} parent=43 // pred_check_branch
        %7441 = sbr.rel (%p7439) target = $region48
      $region47: #{resblock_forward.1} parent=43 // pred_region
        %p7442 = scmp.lt.s32.totalorder %s16, 1
        %s7443 = scalar_select %p7442, %s16, 1
        %s7444 = smul.addr %s7443, 47
        %s7445 = smul.addr %s7444, 8
        %s7446 = scalar_lea.vmem %s4, %s7445
      $region48: #{resblock_forward.1} parent=43 // pred_fallthru
        _
    $region44: #{resblock_forward.1} parent=5 // pred_fallthru
      _
  $region6: #{resblock_forward.1} parent=0 // loop_footer
    %s14 = sadd.s32 1, %s10
  $region7: #{resblock_forward.1} parent=0 // loop_footer_branch
    %9 = sbr.rel target = $region3
  $region8: #{resblock_forward.1} parent=0 // loop_exit
    _

</llo_original>
